<compile_context>
chip_gen: v7x
topology: tpu7x:2x2x1
jax: 0.10.0
libtpu: 0.0.40
codegen_flags: <defaults>
</compile_context>

<pallas_src>
import functools

import numpy as np
import jax
import jax.numpy as jnp
from jax.experimental import pallas as pl
from jax.experimental.pallas import tpu as pltpu

# Full-f32 matmuls everywhere (kernels and the jnp reference) so the numeric
# cross-check at the bottom is meaningful.
jax.config.update("jax_default_matmul_precision", "highest")

LANE = 128


def _round_up(n, m):
    return ((n + m - 1) // m) * m


@functools.lru_cache(maxsize=None)
def _vmem_limit_bytes():
    # Generation-aware scoped-VMEM budget: ~3/4 of physical, capped at 96 MiB
    # (v5e/v6e: 96 MiB of 128 MiB physical, v7x: 48 MiB of 64 MiB).
    try:
        cap = int(pltpu.get_tpu_info().vmem_capacity_bytes)
        return int(max(32 * 1024 * 1024, min(cap * 3 // 4, 96 * 1024 * 1024)))
    except Exception:
        return 32 * 1024 * 1024


def _pick_tile(n_pad, max_tile, min_tiles=2):
    """Largest LANE-multiple divisor of n_pad that is <= max_tile and (when
    possible) leaves >= min_tiles grid steps (keeps both v7x TCs busy)."""
    assert n_pad % LANE == 0
    cap = min(max_tile, n_pad)
    if n_pad // cap < min_tiles and n_pad >= LANE * min_tiles:
        cap = max(LANE, n_pad // min_tiles)
    best = LANE
    t = LANE
    while t <= cap:
        if n_pad % t == 0:
            best = t
        t += LANE
    return best


def _rows_for_budget(s_pad):
    # Rows per block such that (in + out), double-buffered, f32 blocks stay
    # well inside the scoped-VMEM budget.
    budget = _vmem_limit_bytes() // 3
    rows = budget // max(1, s_pad * 4 * 4)
    return max(8, int(rows))


def _pick_row_tile(r_pad, max_rows, min_tiles=2):
    """Largest multiple-of-8 divisor of r_pad that is <= max_rows and (when
    possible) leaves >= min_tiles grid steps."""
    cap = min(max_rows, r_pad)
    if r_pad // cap < min_tiles and r_pad >= 8 * min_tiles:
        cap = r_pad // min_tiles
    cap = max(8, (cap // 8) * 8)
    best = 8
    t = 8
    while t <= cap:
        if r_pad % t == 0:
            best = t
        t += 8
    return best


# --------------------- channel-space linear (transposed, lane-dense) ---------------------

def _channel_linear_kernel(x_ref, w_ref, b_ref, o_ref):
    # x: (B, Cin, ts), w: (Cout, Cin), b: (Cout, 1)  ->  o: (B, Cout, ts)
    w = w_ref[...]
    bias = b_ref[...]
    nb = x_ref.shape[0]
    for b in range(nb):                       # batch handled in-kernel (no batch grid axis)
        o_ref[b] = (jnp.dot(w, x_ref[b], preferred_element_type=jnp.float32)
                    + bias).astype(o_ref.dtype)


def channel_linear(x_cf, w, b, max_tile_s=2048):
    """y[b, co, s] = sum_ci x_cf[b, ci, s] * w[ci, co] + b[co].

    x_cf: (B, Cin, S) channels-first f32.  Returns (B, Cout, S) f32.
    """
    B, Cin, S = x_cf.shape
    Cout = w.shape[1]
    S_pad = _round_up(S, LANE)                # pad only to the lane size, never to the tile
    if S_pad != S:
        x_cf = jnp.pad(x_cf, ((0, 0), (0, 0), (0, S_pad - S)))
    ts = _pick_tile(S_pad, max_tile_s)
    wt = jnp.asarray(w, jnp.float32).T                 # (Cout, Cin)
    b2 = jnp.asarray(b, jnp.float32).reshape(Cout, 1)
    out = pl.pallas_call(
        _channel_linear_kernel,
        out_shape=jax.ShapeDtypeStruct((B, Cout, S_pad), jnp.float32),
        grid_spec=pltpu.PrefetchScalarGridSpec(
            num_scalar_prefetch=0,
            grid=(S_pad // ts,),
            in_specs=[pl.BlockSpec((B, Cin, ts), lambda si: (0, 0, si)),
                      pl.BlockSpec((Cout, Cin), lambda si: (0, 0)),
                      pl.BlockSpec((Cout, 1), lambda si: (0, 0))],
            out_specs=pl.BlockSpec((B, Cout, ts), lambda si: (0, 0, si))),
        compiler_params=pltpu.CompilerParams(
            dimension_semantics=("parallel",),
            vmem_limit_bytes=_vmem_limit_bytes()),
    )(x_cf, wt, b2)
    return out[:, :, :S]


# --------------------- InstanceNorm3d (affine=False, eps=1e-5), one pass ---------------------

def _instance_norm_kernel(x_ref, o_ref, *, eps, inv_n):
    x = x_ref[...]
    s1 = jnp.sum(x, axis=-1, keepdims=True)
    s2 = jnp.sum(x * x, axis=-1, keepdims=True)
    mean = s1 * inv_n
    var = jnp.maximum(s2 * inv_n - mean * mean, 0.0)
    o_ref[...] = (x - mean) * jax.lax.rsqrt(var + eps)


def instance_norm(x2d, eps=1e-5):
    """x2d: (R, S) -> per-row normalization over S (biased variance)."""
    R, S = x2d.shape
    S_pad = _round_up(S, LANE)
    if S_pad != S:
        x2d = jnp.pad(x2d, ((0, 0), (0, S_pad - S)))   # zero pad keeps sums exact
    Rp = _round_up(R, 8)
    if Rp != R:
        x2d = jnp.pad(x2d, ((0, Rp - R), (0, 0)))
    # TODO(synk): for production S the whole-row (tile_r, S_pad) block may not fit
    # v7x VMEM; switch to a grid-over-S stats pass + fused apply in that regime.
    tile_r = _pick_row_tile(Rp, _rows_for_budget(S_pad))
    out = pl.pallas_call(
        functools.partial(_instance_norm_kernel, eps=eps, inv_n=1.0 / S),
        out_shape=jax.ShapeDtypeStruct((Rp, S_pad), jnp.float32),
        grid_spec=pltpu.PrefetchScalarGridSpec(
            num_scalar_prefetch=0, grid=(Rp // tile_r,),
            in_specs=[pl.BlockSpec((tile_r, S_pad), lambda i: (i, 0))],
            out_specs=pl.BlockSpec((tile_r, S_pad), lambda i: (i, 0))),
        compiler_params=pltpu.CompilerParams(
            dimension_semantics=("parallel",),
            vmem_limit_bytes=_vmem_limit_bytes()),
    )(x2d)
    return out[:R, :S]


def _inorm_stats_kernel(x_ref, mean_ref, rstd_ref, *, eps, inv_n):
    x = x_ref[...]
    s1 = jnp.sum(x, axis=-1, keepdims=True)
    s2 = jnp.sum(x * x, axis=-1, keepdims=True)
    mean = s1 * inv_n
    var = jnp.maximum(s2 * inv_n - mean * mean, 0.0)
    mean_ref[...] = mean
    rstd_ref[...] = jax.lax.rsqrt(var + eps)


def instance_norm_stats(x2d, true_n, eps=1e-5):
    """Per-row mean / rstd of x2d (biased variance over true_n elements).

    Only the tiny (R, 1) stats hit HBM; the normalized tensor is applied on the
    fly in the fused head kernel.
    """
    R, S = x2d.shape
    S_pad = _round_up(S, LANE)
    if S_pad != S:
        x2d = jnp.pad(x2d, ((0, 0), (0, S_pad - S)))
    Rp = _round_up(R, 8)
    if Rp != R:
        x2d = jnp.pad(x2d, ((0, Rp - R), (0, 0)))
    tile_r = _pick_row_tile(Rp, _rows_for_budget(S_pad))
    mean, rstd = pl.pallas_call(
        functools.partial(_inorm_stats_kernel, eps=eps, inv_n=1.0 / true_n),
        out_shape=[jax.ShapeDtypeStruct((Rp, 1), jnp.float32)] * 2,
        grid_spec=pltpu.PrefetchScalarGridSpec(
            num_scalar_prefetch=0, grid=(Rp // tile_r,),
            in_specs=[pl.BlockSpec((tile_r, S_pad), lambda i: (i, 0))],
            out_specs=[pl.BlockSpec((tile_r, 1), lambda i: (i, 0)),
                       pl.BlockSpec((tile_r, 1), lambda i: (i, 0))]),
        compiler_params=pltpu.CompilerParams(
            dimension_semantics=("parallel",),
            vmem_limit_bytes=_vmem_limit_bytes()),
    )(x2d)
    return mean[:R], rstd[:R]


# --------------------- PR3d output_residue1 contraction (tiled, lane-dense) ---------------------

def _residue1_kernel(ar_ref, ai_ref, hr_ref, hi_ref, or_ref, oi_ref):
    # ar/ai: (B*Cin, ts) ; hr/hi: (Cin, Cout, ts) ; or/oi: (B*Cout, ts)
    cin, cout, _ = hr_ref.shape
    nb = ar_ref.shape[0] // cin
    for b in range(nb):                       # batch in-kernel: the hwsum tile is
        acc_r = jnp.zeros(hr_ref.shape[1:], jnp.float32)   # DMA'd once per s-tile
        acc_i = jnp.zeros(hr_ref.shape[1:], jnp.float32)
        for i in range(cin):                  # Cin == width (small): fully unrolled
            h_r = hr_ref[i]                   # (Cout, ts) per-i ref slice, never wholesale
            h_i = hi_ref[i]
            r = b * cin + i
            a_r = ar_ref[r:r + 1, :]          # (1, ts): sliced in-loop -> low vreg pressure
            a_i = ai_ref[r:r + 1, :]
            acc_r = acc_r + a_r * h_r - a_i * h_i
            acc_i = acc_i + a_r * h_i + a_i * h_r
        or_ref[b * cout:(b + 1) * cout, :] = acc_r
        oi_ref[b * cout:(b + 1) * cout, :] = acc_i


def residue1_pallas(alpha_cf, hwsum, max_tile_s=2048):
    """out[b, k, s] = sum_i alpha_cf[b, i, s] * hwsum[i, k, s]   (complex, pointwise over s)."""
    B, Cin, S = alpha_cf.shape
    Cout = hwsum.shape[1]
    S_pad = _round_up(S, LANE)
    ar = jnp.real(alpha_cf).astype(jnp.float32).reshape(B * Cin, S)
    ai = jnp.imag(alpha_cf).astype(jnp.float32).reshape(B * Cin, S)
    hr = jnp.real(hwsum).astype(jnp.float32)
    hi = jnp.imag(hwsum).astype(jnp.float32)
    if S_pad != S:
        pad2 = ((0, 0), (0, S_pad - S))
        pad3 = ((0, 0), (0, 0), (0, S_pad - S))
        ar = jnp.pad(ar, pad2)
        ai = jnp.pad(ai, pad2)
        hr = jnp.pad(hr, pad3)
        hi = jnp.pad(hi, pad3)
    ts = _pick_tile(S_pad, max_tile_s)
    or_, oi_ = pl.pallas_call(
        _residue1_kernel,
        out_shape=[jax.ShapeDtypeStruct((B * Cout, S_pad), jnp.float32)] * 2,
        grid_spec=pltpu.PrefetchScalarGridSpec(
            num_scalar_prefetch=0, grid=(S_pad // ts,),
            in_specs=[pl.BlockSpec((B * Cin, ts), lambda si: (0, si)),
                      pl.BlockSpec((B * Cin, ts), lambda si: (0, si)),
                      pl.BlockSpec((Cin, Cout, ts), lambda si: (0, 0, si)),
                      pl.BlockSpec((Cin, Cout, ts), lambda si: (0, 0, si))],
            out_specs=[pl.BlockSpec((B * Cout, ts), lambda si: (0, si)),
                       pl.BlockSpec((B * Cout, ts), lambda si: (0, si))]),
        compiler_params=pltpu.CompilerParams(
            dimension_semantics=("parallel",),
            vmem_limit_bytes=_vmem_limit_bytes()),
    )(ar, ai, hr, hi)
    out = (or_[:, :S] + 1j * oi_[:, :S]).reshape(B, Cout, S)
    return out.astype(jnp.complex64)


# ---- fused head: InstanceNorm apply + (w0 folded into fc1) + relu + fc2 ----

def _head_kernel(conv_ref, h_ref, mean_ref, rstd_ref,
                 w1t_ref, w1h_ref, b1_ref, w2t_ref, b2_ref, o_ref):
    # conv/h: (B, W, ts); mean/rstd: (B, W, 1); w1t/w1h: (64, W); b1: (64, 1);
    # w2t: (1, 64); b2: (1, 1); o: (B, ts)
    nb = conv_ref.shape[0]
    w1t = w1t_ref[...]
    w1h = w1h_ref[...]
    b1 = b1_ref[...]
    w2t = w2t_ref[...]
    b2 = b2_ref[...]
    rows = []
    for b in range(nb):
        # Second InstanceNorm fused in: apply precomputed per-(b, c) mean / rstd.
        xb = (conv_ref[b] - mean_ref[b]) * rstd_ref[b]          # (W, ts)
        # w0 folded into fc1: z = fc1^T.norm(conv) + (fc1^T w0^T).h + (fc1^T b0 + b1)
        z = (jnp.dot(w1t, xb, preferred_element_type=jnp.float32)
             + jnp.dot(w1h, h_ref[b], preferred_element_type=jnp.float32)
             + b1)
        z = jnp.maximum(z, 0.0)                                  # (64, ts) stays in VMEM
        # fc2 as a (1, 64) x (64, ts) MXU matmul (no VPU mul + cross-sublane reduce).
        rows.append(jnp.dot(w2t, z, preferred_element_type=jnp.float32) + b2)
    o_ref[...] = jnp.concatenate(rows, axis=0).astype(o_ref.dtype)


def head_fused(conv3, h3, mean_b, rstd_b, w0_w, w0_b, fc1_w, fc1_b, fc2_w, fc2_b,
               max_tile_s=2048):
    """fc2(relu(fc1(norm(conv) + w0(h)))) for channels-first (B, W, S) activations -> (B, S).

    The InstanceNorm is applied from precomputed stats and w0 is algebraically
    folded into fc1, so the whole head is a single pass over HBM.
    """
    B, Wc, S = conv3.shape
    H1 = fc1_w.shape[1]
    assert fc2_w.shape == (H1, 1)
    S_pad = _round_up(S, LANE)
    if S_pad != S:
        pad = ((0, 0), (0, 0), (0, S_pad - S))
        conv3 = jnp.pad(conv3, pad)
        h3 = jnp.pad(h3, pad)
    ts = _pick_tile(S_pad, max_tile_s)
    w1t = jnp.asarray(fc1_w, jnp.float32).T               # (64, W)
    w0t = jnp.asarray(w0_w, jnp.float32).T                # (Wout, Win)
    w1h = w1t @ w0t                                       # fold w0 into fc1
    b1p = (w1t @ jnp.asarray(w0_b, jnp.float32)
           + jnp.asarray(fc1_b, jnp.float32)).reshape(H1, 1)
    w2t = jnp.asarray(fc2_w, jnp.float32).T               # (1, 64)
    b2 = jnp.asarray(fc2_b, jnp.float32).reshape(1, 1)
    out = pl.pallas_call(
        _head_kernel,
        out_shape=jax.ShapeDtypeStruct((B, S_pad), jnp.float32),
        grid_spec=pltpu.PrefetchScalarGridSpec(
            num_scalar_prefetch=0,
            grid=(S_pad // ts,),
            in_specs=[pl.BlockSpec((B, Wc, ts), lambda si: (0, 0, si)),
                      pl.BlockSpec((B, Wc, ts), lambda si: (0, 0, si)),
                      pl.BlockSpec((B, Wc, 1), lambda si: (0, 0, 0)),
                      pl.BlockSpec((B, Wc, 1), lambda si: (0, 0, 0)),
                      pl.BlockSpec((H1, Wc), lambda si: (0, 0)),
                      pl.BlockSpec((H1, Wc), lambda si: (0, 0)),
                      pl.BlockSpec((H1, 1), lambda si: (0, 0)),
                      pl.BlockSpec((1, H1), lambda si: (0, 0)),
                      pl.BlockSpec((1, 1), lambda si: (0, 0))],
            out_specs=pl.BlockSpec((B, ts), lambda si: (0, si))),
        compiler_params=pltpu.CompilerParams(
            dimension_semantics=("parallel",),
            vmem_limit_bytes=_vmem_limit_bytes()),
    )(conv3, h3, mean_b, rstd_b, w1t, w1h, b1p, w2t, b2)
    return out[:, :S]


# --------------------- PR3d forward (spectral pole/residue operator) ---------------------

def pr3d_forward(x_cf, wp1, wp2, wp3, wres, lam1, lam2, lam3, tt, tx, ty):
    """x_cf: (B, Cin, NT, SX, SY) f32 -> (B, Cout, NT, SX, SY) f32."""
    B, Cin, NT, SX, SY = x_cf.shape
    Cout = wres.shape[1]
    S = NT * SX * SY

    # TODO(synk): 3D FFT / iFFT have no clean Pallas TPU equivalent; jnp.fft stays as glue.
    alpha = jnp.fft.fftn(x_cf, axes=(-3, -2, -1)).astype(jnp.complex64)

    # Reciprocal pole factors.  The 8-D Hw tensor is never materialized: the mode
    # sums are factored into three tiny sequential contractions instead.
    inv1 = 1.0 / (lam1[:, None, None, None] - wp1[None])     # (NT, Cin, Cout, M1)
    inv2 = 1.0 / (lam2[:, None, None, None] - wp2[None])     # (SX, Cin, Cout, M2)
    inv3 = 1.0 / (lam3[:, None, None, None] - wp3[None])     # (SY, Cin, Cout, M3)

    # hwsum[i,k,o,x,s] = sum_{p,q,r} wres[i,k,p,q,r] inv1[o,i,k,p] inv2[x,i,k,q] inv3[s,i,k,r]
    w1s = jnp.einsum('ikpqr,oikp->ikoqr', wres, inv1)
    w2s = jnp.einsum('ikoqr,xikq->ikoxr', w1s, inv2)
    # TODO(synk): for production S, stream w2s/inv3 into the residue1 kernel and rebuild the
    # hwsum s-tile on-chip instead of materializing the (Cin, Cout, S) complex tensor in HBM.
    hwsum = jnp.einsum('ikoxr,sikr->ikoxs', w2s, inv3).reshape(Cin, Cout, S)

    # output_residue1 (the big B*Cout*S spectral tensor): tiled Pallas kernel.
    res1 = residue1_pallas(alpha.reshape(B, Cin, S), hwsum).reshape(B, Cout, NT, SX, SY)
    x1 = jnp.real(jnp.fft.ifftn(res1, s=(NT, SX, SY), axes=(-3, -2, -1)))

    # output_residue2[b,k,p,q,r] = -sum_{i,o,x,s} alpha * Hw, computed separably over
    # the three spatial axes (mode dims are tiny -> jnp complex glue, no Hw / Hw2 matrix).
    u = jnp.einsum('bioxs,oikp->bikpxs', alpha, inv1)
    v = jnp.einsum('bikpxs,xikq->bikpqs', u, inv2)
    g = jnp.einsum('bikpqs,sikr->bikpqr', v, inv3)
    res2 = -jnp.einsum('ikpqr,bikpqr->bkpqr', wres, g)        # (B, Cout, M1, M2, M3)

    # x2: pole-exponential expansion contracted separably (term4 never materialized).
    ttc = tt.reshape(-1).astype(jnp.complex64)
    txc = tx.reshape(-1).astype(jnp.complex64)
    tyc = ty.reshape(-1).astype(jnp.complex64)
    e1 = jnp.exp(wp1[:, :, :, None] * ttc)                    # (Cin, Cout, M1, NT)
    e2 = jnp.exp(wp2[:, :, :, None] * txc)                    # (Cin, Cout, M2, SX)
    e3 = jnp.exp(wp3[:, :, :, None] * tyc)                    # (Cin, Cout, M3, SY)
    # NOTE: as in the original module, res2's channel axis is contracted against the
    # pole tensors' *in*-channel axis (valid because in_channels == out_channels).
    t1v = jnp.einsum('bcpqm,cjpz->bcjqmz', res2, e1)
    t2v = jnp.einsum('bcjqmz,cjqx->bcjmzx', t1v, e2)
    x2 = jnp.real(jnp.einsum('bcjmzx,cjmy->bjzxy', t2v, e3))
    x2 = x2 / SY / SX / NT
    return (x1 + x2).astype(jnp.float32)


# --------------------- LNO3d forward ---------------------

def lno3d_forward(x, params):
    """x: (B, NT, SX, SY, 4) f32 -> (B, NT, SX, SY, 1) f32."""
    B, NT, SX, SY, C0 = x.shape
    W = params['fc0_w'].shape[1]
    S = NT * SX * SY

    # Single small input transpose; every later stage keeps the channels-first
    # (B, C, S) layout, so no further full-tensor transposes occur.
    x_cf = jnp.transpose(x, (0, 4, 1, 2, 3)).reshape(B, C0, S)

    h = channel_linear(x_cf, params['fc0_w'], params['fc0_b'])        # fc0 -> (B, W, S)
    x_n = instance_norm(h.reshape(B * W, S))                          # norm(x)
    conv = pr3d_forward(x_n.reshape(B, W, NT, SX, SY),
                        params['wp1'], params['wp2'], params['wp3'], params['wres'],
                        params['lam1'], params['lam2'], params['lam3'],
                        params['tt'], params['tx'], params['ty'])     # PR3d
    conv3 = conv.reshape(B, W, S)

    # Second InstanceNorm is fused into the head: only its tiny per-(b, c) stats
    # are materialized; the normalized (B, W, S) tensor never touches HBM.
    mean, rstd = instance_norm_stats(conv3.reshape(B * W, S), S)

    # Fused head: norm-apply + (w0 folded into fc1) + relu + fc2.
    y = head_fused(conv3, h,
                   mean.reshape(B, W, 1), rstd.reshape(B, W, 1),
                   params['w0_w'], params['w0_b'],
                   params['fc1_w'], params['fc1_b'],
                   params['fc2_w'], params['fc2_b'])                  # (B, S)
    return y.reshape(B, NT, SX, SY, 1)


# --------------------- pure-jnp reference (original PyTorch formulation) ---------------------

def lno3d_reference(x, params):
    """Reference that materializes Hw / term4 exactly like the original PyTorch einsums."""
    B, NT, SX, SY, _ = x.shape
    eps = 1e-5
    h = x @ params['fc0_w'] + params['fc0_b']
    x_cf = jnp.transpose(h, (0, 4, 1, 2, 3))

    def inorm(v):
        mean = jnp.mean(v, axis=(2, 3, 4), keepdims=True)
        var = jnp.mean((v - mean) ** 2, axis=(2, 3, 4), keepdims=True)
        return (v - mean) / jnp.sqrt(var + eps)

    xn = inorm(x_cf)
    wp1, wp2, wp3 = params['wp1'], params['wp2'], params['wp3']
    wres = params['wres']
    lam1, lam2, lam3 = params['lam1'], params['lam2'], params['lam3']
    alpha = jnp.fft.fftn(xn, axes=(-3, -2, -1))
    sub1 = lam1[:, None, None, None] - wp1[None]
    sub2 = lam2[:, None, None, None] - wp2[None]
    sub3 = lam3[:, None, None, None] - wp3[None]
    term1 = 1.0 / jnp.einsum('pbix,qbik,rbio->pqrbixko', sub1, sub2, sub3)
    Hw = jnp.einsum('bixko,pqrbixko->pqrbixko', wres, term1)
    res1 = jnp.einsum('bioxs,oxsikpqr->bkoxs', alpha, Hw)
    res2 = jnp.einsum('bioxs,oxsikpqr->bkpqr', alpha, -Hw)
    x1 = jnp.real(jnp.fft.ifftn(res1, s=(NT, SX, SY), axes=(-3, -2, -1)))
    ttc = params['tt'].reshape(1, -1).astype(jnp.complex64)
    txc = params['tx'].reshape(1, -1).astype(jnp.complex64)
    tyc = params['ty'].reshape(1, -1).astype(jnp.complex64)
    t1 = jnp.einsum('bip,kz->bipz', wp1, ttc)
    t2 = jnp.einsum('biq,kx->biqx', wp2, txc)
    t3 = jnp.einsum('bim,ky->bimy', wp3, tyc)
    term4 = jnp.einsum('bipz,biqx,bimy->bipqmzxy', jnp.exp(t1), jnp.exp(t2), jnp.exp(t3))
    x2 = jnp.real(jnp.einsum('kbpqm,bipqmzxy->kizxy', res2, term4))
    x2 = x2 / SY / SX / NT
    conv = x1 + x2
    x1n = inorm(conv)
    x2w = (jnp.einsum('io,bitxy->botxy', params['w0_w'], x_cf)
           + params['w0_b'][None, :, None, None, None])
    xs = x1n + x2w
    xcl = jnp.transpose(xs, (0, 2, 3, 4, 1))
    z = jnp.maximum(xcl @ params['fc1_w'] + params['fc1_b'], 0.0)
    return z @ params['fc2_w'] + params['fc2_b']


# --------------------- main ---------------------

if __name__ == "__main__":
    # Small shapes consistent with the module: nt=8, orig_r=16, r=2 -> s=8.
    B, NT = 2, 8
    orig_r, rr = 16, 2
    s = int((orig_r - 1) / rr + 1)        # 8
    SX = SY = s
    width = 8
    m1 = m2 = m3 = 4

    T_np = np.linspace(0, 19, NT).reshape(1, NT)
    X_np = np.linspace(0, 1, orig_r).reshape(1, orig_r)[:, :s]
    Y_np = np.linspace(0, 1, orig_r).reshape(1, orig_r)[:, :s]
    dtt = float(T_np[0, 1] - T_np[0, 0])
    dtx = float(X_np[0, 1] - X_np[0, 0])
    dty = float(Y_np[0, 1] - Y_np[0, 0])
    lam1 = (np.fft.fftfreq(NT, dtt) * 2 * np.pi * 1j).astype(np.complex64)
    lam2 = (np.fft.fftfreq(SX, dtx) * 2 * np.pi * 1j).astype(np.complex64)
    lam3 = (np.fft.fftfreq(SY, dty) * 2 * np.pi * 1j).astype(np.complex64)

    key = jax.random.PRNGKey(0)
    ks = jax.random.split(key, 20)

    def uni(k, shape, a):
        return jax.random.uniform(k, shape, jnp.float32, -a, a)

    def crand(kr, ki, shape, sc, shift=0.0):
        re = jax.random.uniform(kr, shape, jnp.float32)
        im = jax.random.uniform(ki, shape, jnp.float32)
        return (sc * (re + 1j * im) + shift).astype(jnp.complex64)

    sc = 1.0 / (width * width)
    # Poles keep the PyTorch scale*rand shape/scale but are shifted to Re < 0 so
    # |i*omega - pole| is never tiny: keeps the f32 kernel-vs-reference check
    # well-conditioned and exp(pole * t) bounded.
    params = {
        'fc0_w': uni(ks[0], (4, width), 0.5),
        'fc0_b': uni(ks[1], (width,), 0.5),
        'w0_w': uni(ks[2], (width, width), 1.0 / np.sqrt(width)),
        'w0_b': uni(ks[3], (width,), 1.0 / np.sqrt(width)),
        'fc1_w': uni(ks[4], (width, 64), 1.0 / np.sqrt(width)),
        'fc1_b': uni(ks[5], (64,), 1.0 / np.sqrt(width)),
        'fc2_w': uni(ks[6], (64, 1), 1.0 / 8.0),
        'fc2_b': uni(ks[7], (1,), 1.0 / 8.0),
        'wp1': crand(ks[8], ks[9], (width, width, m1), sc, shift=-0.3),
        'wp2': crand(ks[10], ks[11], (width, width, m2), sc, shift=-0.3),
        'wp3': crand(ks[12], ks[13], (width, width, m3), sc, shift=-0.3),
        'wres': crand(ks[14], ks[15], (width, width, m1, m2, m3), sc),
        'lam1': jnp.asarray(lam1),
        'lam2': jnp.asarray(lam2),
        'lam3': jnp.asarray(lam3),
        'tt': jnp.asarray(T_np, dtype=jnp.float32),
        'tx': jnp.asarray(X_np, dtype=jnp.float32),
        'ty': jnp.asarray(Y_np, dtype=jnp.float32),
    }

    x = jax.random.normal(ks[16], (B, NT, SX, SY, 4), jnp.float32)

    y = jax.jit(lno3d_forward)(x, params)
    y = jax.block_until_ready(y)
    assert y.shape == (B, NT, SX, SY, 1)
    assert bool(jnp.all(jnp.isfinite(y)))

    # Numeric cross-check against a pure-jnp implementation of the original
    # PyTorch formulation (verifies the factored Hw / term4 contractions and
    # the fused norm / folded-w0 head).
    y_ref = jax.block_until_ready(jax.jit(lno3d_reference)(x, params))
    rel_err = float(jnp.max(jnp.abs(y - y_ref)) / (jnp.max(jnp.abs(y_ref)) + 1e-8))
    assert rel_err < 2e-2, f"kernel/reference mismatch: rel_err={rel_err:.3e}"
    print("KERNEL_OK")
</pallas_src>

<mosaic_0001>
module attributes {stable_mosaic.version = 11 : i64} {
  func.func @_channel_linear_kernel(%arg0: i32, %arg1: memref<2x4x256xf32, #tpu.memory_space<vmem>>, %arg2: memref<8x4xf32, #tpu.memory_space<vmem>>, %arg3: memref<8x1xf32, #tpu.memory_space<vmem>>, %arg4: memref<2x8x256xf32, #tpu.memory_space<vmem>>) attributes {dimension_semantics = [#tpu.dimension_semantics<parallel>], iteration_bounds = array<i64: 2>, scalar_prefetch = 0 : i64, scratch_operands = 0 : i64, tpu.core_type = #tpu.core_type<tc>, window_params = [{transform_indices = @transform_0, window_bounds = array<i64: 2, 4, 256>}, {pipeline_mode = #tpu.pipeline_mode<synchronous>, transform_indices = @transform_1, window_bounds = array<i64: 8, 4>}, {pipeline_mode = #tpu.pipeline_mode<synchronous>, transform_indices = @transform_2, window_bounds = array<i64: 8, 1>}, {transform_indices = @transform_3, window_bounds = array<i64: 2, 8, 256>}]} {
    %c0 = arith.constant 0 : index
    %c0_0 = arith.constant 0 : index
    %0 = vector.load %arg2[%c0, %c0_0] : memref<8x4xf32, #tpu.memory_space<vmem>>, vector<8x4xf32>
    %c0_1 = arith.constant 0 : index
    %c0_2 = arith.constant 0 : index
    %1 = vector.load %arg3[%c0_1, %c0_2] : memref<8x1xf32, #tpu.memory_space<vmem>>, vector<8x1xf32>
    %c0_3 = arith.constant 0 : index
    %c0_4 = arith.constant 0 : index
    %c0_5 = arith.constant 0 : index
    %2 = vector.load %arg1[%c0_3, %c0_4, %c0_5] : memref<2x4x256xf32, #tpu.memory_space<vmem>>, vector<1x4x256xf32>
    %3 = vector.shape_cast %2 : vector<1x4x256xf32> to vector<4x256xf32>
    %cst = arith.constant dense<0.000000e+00> : vector<8x256xf32>
    %4 = tpu.matmul %0, %3, %cst {dimension_numbers = #tpu.dot_dimension_numbers<[1], [0], [0], [1], [0, 0, 1, 1], [], []>, precision = #tpu.contract_precision<fp32>} : vector<8x4xf32>, vector<4x256xf32>, vector<8x256xf32> -> vector<8x256xf32>
    %5 = vector.broadcast %1 : vector<8x1xf32> to vector<8x256xf32>
    %6 = arith.addf %4, %5 : vector<8x256xf32>
    %c0_6 = arith.constant 0 : index
    %c0_7 = arith.constant 0 : index
    %c0_8 = arith.constant 0 : index
    %7 = vector.load %arg4[%c0_6, %c0_7, %c0_8] : memref<2x8x256xf32, #tpu.memory_space<vmem>>, vector<1x8x256xf32>
    %8 = vector.shape_cast %7 : vector<1x8x256xf32> to vector<8x256xf32>
    %9 = vector.shape_cast %6 : vector<8x256xf32> to vector<1x8x256xf32>
    tpu.vector_store %arg4[%c0_6, %c0_7, %c0_8], %9 {strides = array<i32>} : memref<2x8x256xf32, #tpu.memory_space<vmem>>, vector<1x8x256xf32>,
    %c1 = arith.constant 1 : index
    %c0_9 = arith.constant 0 : index
    %c0_10 = arith.constant 0 : index
    %10 = vector.load %arg1[%c1, %c0_9, %c0_10] : memref<2x4x256xf32, #tpu.memory_space<vmem>>, vector<1x4x256xf32>
    %11 = vector.shape_cast %10 : vector<1x4x256xf32> to vector<4x256xf32>
    %cst_11 = arith.constant dense<0.000000e+00> : vector<8x256xf32>
    %12 = tpu.matmul %0, %11, %cst_11 {dimension_numbers = #tpu.dot_dimension_numbers<[1], [0], [0], [1], [0, 0, 1, 1], [], []>, precision = #tpu.contract_precision<fp32>} : vector<8x4xf32>, vector<4x256xf32>, vector<8x256xf32> -> vector<8x256xf32>
    %13 = vector.broadcast %1 : vector<8x1xf32> to vector<8x256xf32>
    %14 = arith.addf %12, %13 : vector<8x256xf32>
    %c1_12 = arith.constant 1 : index
    %c0_13 = arith.constant 0 : index
    %c0_14 = arith.constant 0 : index
    %15 = vector.load %arg4[%c1_12, %c0_13, %c0_14] : memref<2x8x256xf32, #tpu.memory_space<vmem>>, vector<1x8x256xf32>
    %16 = vector.shape_cast %15 : vector<1x8x256xf32> to vector<8x256xf32>
    %17 = vector.shape_cast %14 : vector<8x256xf32> to vector<1x8x256xf32>
    tpu.vector_store %arg4[%c1_12, %c0_13, %c0_14], %17 {strides = array<i32>} : memref<2x8x256xf32, #tpu.memory_space<vmem>>, vector<1x8x256xf32>,
    return
  }
  func.func @transform_0(%arg0: i32) -> (i32, i32, i32) {
    %c0_i32 = arith.constant 0 : i32
    %c0_i32_0 = arith.constant 0 : i32
    %c0_i32_1 = arith.constant 0 : i32
    return %c0_i32, %c0_i32_0, %arg0 : i32, i32, i32
  }
  func.func @transform_1(%arg0: i32) -> (i32, i32) {
    %c0_i32 = arith.constant 0 : i32
    %c0_i32_0 = arith.constant 0 : i32
    %c0_i32_1 = arith.constant 0 : i32
    return %c0_i32, %c0_i32_0 : i32, i32
  }
  func.func @transform_2(%arg0: i32) -> (i32, i32) {
    %c0_i32 = arith.constant 0 : i32
    %c0_i32_0 = arith.constant 0 : i32
    %c0_i32_1 = arith.constant 0 : i32
    return %c0_i32, %c0_i32_0 : i32, i32
  }
  func.func @transform_3(%arg0: i32) -> (i32, i32, i32) {
    %c0_i32 = arith.constant 0 : i32
    %c0_i32_0 = arith.constant 0 : i32
    %c0_i32_1 = arith.constant 0 : i32
    return %c0_i32, %c0_i32_0, %arg0 : i32, i32, i32
  }
}

module attributes {stable_mosaic.version = 11 : i64} {
  func.func @_instance_norm_kernel(%arg0: i32, %arg1: memref<8x512xf32, #tpu.memory_space<vmem>>, %arg2: memref<8x512xf32, #tpu.memory_space<vmem>>) attributes {dimension_semantics = [#tpu.dimension_semantics<parallel>], iteration_bounds = array<i64: 2>, scalar_prefetch = 0 : i64, scratch_operands = 0 : i64, tpu.core_type = #tpu.core_type<tc>, window_params = [{transform_indices = @transform_0, window_bounds = array<i64: 8, 512>}, {transform_indices = @transform_1, window_bounds = array<i64: 8, 512>}]} {
    %c0 = arith.constant 0 : index
    %c0_0 = arith.constant 0 : index
    %0 = vector.load %arg1[%c0, %c0_0] : memref<8x512xf32, #tpu.memory_space<vmem>>, vector<8x512xf32>
    %cst = arith.constant dense<0.000000e+00> : vector<8xf32>
    %1 = vector.multi_reduction <add>, %0, %cst [1] : vector<8x512xf32> to vector<8xf32>
    %2 = vector.shape_cast %1 : vector<8xf32> to vector<8x1xf32>
    %3 = arith.mulf %0, %0 : vector<8x512xf32>
    %cst_1 = arith.constant dense<0.000000e+00> : vector<8xf32>
    %4 = vector.multi_reduction <add>, %3, %cst_1 [1] : vector<8x512xf32> to vector<8xf32>
    %5 = vector.shape_cast %4 : vector<8xf32> to vector<8x1xf32>
    %cst_2 = arith.constant 0.001953125 : f32
    %6 = vector.broadcast %cst_2 : f32 to vector<8x1xf32>
    %7 = arith.mulf %2, %6 : vector<8x1xf32>
    %cst_3 = arith.constant 0.001953125 : f32
    %8 = vector.broadcast %cst_3 : f32 to vector<8x1xf32>
    %9 = arith.mulf %5, %8 : vector<8x1xf32>
    %10 = arith.mulf %7, %7 : vector<8x1xf32>
    %11 = arith.subf %9, %10 : vector<8x1xf32>
    %cst_4 = arith.constant 0.000000e+00 : f32
    %12 = vector.broadcast %cst_4 : f32 to vector<8x1xf32>
    %13 = arith.maximumf %11, %12 : vector<8x1xf32>
    %14 = vector.broadcast %7 : vector<8x1xf32> to vector<8x512xf32>
    %15 = arith.subf %0, %14 : vector<8x512xf32>
    %cst_5 = arith.constant 9.99999974E-6 : f32
    %16 = vector.broadcast %cst_5 : f32 to vector<8x1xf32>
    %17 = arith.addf %13, %16 : vector<8x1xf32>
    %18 = math.rsqrt %17 : vector<8x1xf32>
    %19 = vector.broadcast %18 : vector<8x1xf32> to vector<8x512xf32>
    %20 = arith.mulf %15, %19 : vector<8x512xf32>
    %c0_6 = arith.constant 0 : index
    %c0_7 = arith.constant 0 : index
    %21 = vector.load %arg2[%c0_6, %c0_7] : memref<8x512xf32, #tpu.memory_space<vmem>>, vector<8x512xf32>
    tpu.vector_store %arg2[%c0_6, %c0_7], %20 {strides = array<i32>} : memref<8x512xf32, #tpu.memory_space<vmem>>, vector<8x512xf32>,
    return
  }
  func.func @transform_0(%arg0: i32) -> (i32, i32) {
    %c0_i32 = arith.constant 0 : i32
    %c0_i32_0 = arith.constant 0 : i32
    return %arg0, %c0_i32 : i32, i32
  }
  func.func @transform_1(%arg0: i32) -> (i32, i32) {
    %c0_i32 = arith.constant 0 : i32
    %c0_i32_0 = arith.constant 0 : i32
    return %arg0, %c0_i32 : i32, i32
  }
}

module attributes {stable_mosaic.version = 11 : i64} {
  func.func @_residue1_kernel(%arg0: i32, %arg1: memref<16x256xf32, #tpu.memory_space<vmem>>, %arg2: memref<16x256xf32, #tpu.memory_space<vmem>>, %arg3: memref<8x8x256xf32, #tpu.memory_space<vmem>>, %arg4: memref<8x8x256xf32, #tpu.memory_space<vmem>>, %arg5: memref<16x256xf32, #tpu.memory_space<vmem>>, %arg6: memref<16x256xf32, #tpu.memory_space<vmem>>) attributes {dimension_semantics = [#tpu.dimension_semantics<parallel>], iteration_bounds = array<i64: 2>, scalar_prefetch = 0 : i64, scratch_operands = 0 : i64, tpu.core_type = #tpu.core_type<tc>, window_params = [{transform_indices = @transform_0, window_bounds = array<i64: 16, 256>}, {transform_indices = @transform_1, window_bounds = array<i64: 16, 256>}, {transform_indices = @transform_2, window_bounds = array<i64: 8, 8, 256>}, {transform_indices = @transform_3, window_bounds = array<i64: 8, 8, 256>}, {transform_indices = @transform_4, window_bounds = array<i64: 16, 256>}, {transform_indices = @transform_5, window_bounds = array<i64: 16, 256>}]} {
    %cst = arith.constant 0.000000e+00 : f32
    %0 = vector.broadcast %cst : f32 to vector<8x256xf32>
    %cst_0 = arith.constant 0.000000e+00 : f32
    %1 = vector.broadcast %cst_0 : f32 to vector<8x256xf32>
    %c0 = arith.constant 0 : index
    %c0_1 = arith.constant 0 : index
    %c0_2 = arith.constant 0 : index
    %2 = vector.load %arg3[%c0, %c0_1, %c0_2] : memref<8x8x256xf32, #tpu.memory_space<vmem>>, vector<1x8x256xf32>
    %3 = vector.shape_cast %2 : vector<1x8x256xf32> to vector<8x256xf32>
    %c0_3 = arith.constant 0 : index
    %c0_4 = arith.constant 0 : index
    %c0_5 = arith.constant 0 : index
    %4 = vector.load %arg4[%c0_3, %c0_4, %c0_5] : memref<8x8x256xf32, #tpu.memory_space<vmem>>, vector<1x8x256xf32>
    %5 = vector.shape_cast %4 : vector<1x8x256xf32> to vector<8x256xf32>
    %c0_6 = arith.constant 0 : index
    %c0_7 = arith.constant 0 : index
    %6 = vector.load %arg1[%c0_6, %c0_7] : memref<16x256xf32, #tpu.memory_space<vmem>>, vector<1x256xf32>
    %c0_8 = arith.constant 0 : index
    %c0_9 = arith.constant 0 : index
    %7 = vector.load %arg2[%c0_8, %c0_9] : memref<16x256xf32, #tpu.memory_space<vmem>>, vector<1x256xf32>
    %8 = vector.broadcast %6 : vector<1x256xf32> to vector<8x256xf32>
    %9 = arith.mulf %8, %3 : vector<8x256xf32>
    %10 = arith.addf %0, %9 : vector<8x256xf32>
    %11 = vector.broadcast %7 : vector<1x256xf32> to vector<8x256xf32>
    %12 = arith.mulf %11, %5 : vector<8x256xf32>
    %13 = arith.subf %10, %12 : vector<8x256xf32>
    %14 = vector.broadcast %6 : vector<1x256xf32> to vector<8x256xf32>
    %15 = arith.mulf %14, %5 : vector<8x256xf32>
    %16 = arith.addf %1, %15 : vector<8x256xf32>
    %17 = vector.broadcast %7 : vector<1x256xf32> to vector<8x256xf32>
    %18 = arith.mulf %17, %3 : vector<8x256xf32>
    %19 = arith.addf %16, %18 : vector<8x256xf32>
    %c1 = arith.constant 1 : index
    %c0_10 = arith.constant 0 : index
    %c0_11 = arith.constant 0 : index
    %20 = vector.load %arg3[%c1, %c0_10, %c0_11] : memref<8x8x256xf32, #tpu.memory_space<vmem>>, vector<1x8x256xf32>
    %21 = vector.shape_cast %20 : vector<1x8x256xf32> to vector<8x256xf32>
    %c1_12 = arith.constant 1 : index
    %c0_13 = arith.constant 0 : index
    %c0_14 = arith.constant 0 : index
    %22 = vector.load %arg4[%c1_12, %c0_13, %c0_14] : memref<8x8x256xf32, #tpu.memory_space<vmem>>, vector<1x8x256xf32>
    %23 = vector.shape_cast %22 : vector<1x8x256xf32> to vector<8x256xf32>
    %c1_15 = arith.constant 1 : index
    %c0_16 = arith.constant 0 : index
    %24 = vector.load %arg1[%c1_15, %c0_16] : memref<16x256xf32, #tpu.memory_space<vmem>>, vector<1x256xf32>
    %c1_17 = arith.constant 1 : index
    %c0_18 = arith.constant 0 : index
    %25 = vector.load %arg2[%c1_17, %c0_18] : memref<16x256xf32, #tpu.memory_space<vmem>>, vector<1x256xf32>
    %26 = vector.broadcast %24 : vector<1x256xf32> to vector<8x256xf32>
    %27 = arith.mulf %26, %21 : vector<8x256xf32>
    %28 = arith.addf %13, %27 : vector<8x256xf32>
    %29 = vector.broadcast %25 : vector<1x256xf32> to vector<8x256xf32>
    %30 = arith.mulf %29, %23 : vector<8x256xf32>
    %31 = arith.subf %28, %30 : vector<8x256xf32>
    %32 = vector.broadcast %24 : vector<1x256xf32> to vector<8x256xf32>
    %33 = arith.mulf %32, %23 : vector<8x256xf32>
    %34 = arith.addf %19, %33 : vector<8x256xf32>
    %35 = vector.broadcast %25 : vector<1x256xf32> to vector<8x256xf32>
    %36 = arith.mulf %35, %21 : vector<8x256xf32>
    %37 = arith.addf %34, %36 : vector<8x256xf32>
    %c2 = arith.constant 2 : index
    %c0_19 = arith.constant 0 : index
    %c0_20 = arith.constant 0 : index
    %38 = vector.load %arg3[%c2, %c0_19, %c0_20] : memref<8x8x256xf32, #tpu.memory_space<vmem>>, vector<1x8x256xf32>
    %39 = vector.shape_cast %38 : vector<1x8x256xf32> to vector<8x256xf32>
    %c2_21 = arith.constant 2 : index
    %c0_22 = arith.constant 0 : index
    %c0_23 = arith.constant 0 : index
    %40 = vector.load %arg4[%c2_21, %c0_22, %c0_23] : memref<8x8x256xf32, #tpu.memory_space<vmem>>, vector<1x8x256xf32>
    %41 = vector.shape_cast %40 : vector<1x8x256xf32> to vector<8x256xf32>
    %c2_24 = arith.constant 2 : index
    %c0_25 = arith.constant 0 : index
    %42 = vector.load %arg1[%c2_24, %c0_25] : memref<16x256xf32, #tpu.memory_space<vmem>>, vector<1x256xf32>
    %c2_26 = arith.constant 2 : index
    %c0_27 = arith.constant 0 : index
    %43 = vector.load %arg2[%c2_26, %c0_27] : memref<16x256xf32, #tpu.memory_space<vmem>>, vector<1x256xf32>
    %44 = vector.broadcast %42 : vector<1x256xf32> to vector<8x256xf32>
    %45 = arith.mulf %44, %39 : vector<8x256xf32>
    %46 = arith.addf %31, %45 : vector<8x256xf32>
    %47 = vector.broadcast %43 : vector<1x256xf32> to vector<8x256xf32>
    %48 = arith.mulf %47, %41 : vector<8x256xf32>
    %49 = arith.subf %46, %48 : vector<8x256xf32>
    %50 = vector.broadcast %42 : vector<1x256xf32> to vector<8x256xf32>
    %51 = arith.mulf %50, %41 : vector<8x256xf32>
    %52 = arith.addf %37, %51 : vector<8x256xf32>
    %53 = vector.broadcast %43 : vector<1x256xf32> to vector<8x256xf32>
    %54 = arith.mulf %53, %39 : vector<8x256xf32>
    %55 = arith.addf %52, %54 : vector<8x256xf32>
    %c3 = arith.constant 3 : index
    %c0_28 = arith.constant 0 : index
    %c0_29 = arith.constant 0 : index
    %56 = vector.load %arg3[%c3, %c0_28, %c0_29] : memref<8x8x256xf32, #tpu.memory_space<vmem>>, vector<1x8x256xf32>
    %57 = vector.shape_cast %56 : vector<1x8x256xf32> to vector<8x256xf32>
    %c3_30 = arith.constant 3 : index
    %c0_31 = arith.constant 0 : index
    %c0_32 = arith.constant 0 : index
    %58 = vector.load %arg4[%c3_30, %c0_31, %c0_32] : memref<8x8x256xf32, #tpu.memory_space<vmem>>, vector<1x8x256xf32>
    %59 = vector.shape_cast %58 : vector<1x8x256xf32> to vector<8x256xf32>
    %c3_33 = arith.constant 3 : index
    %c0_34 = arith.constant 0 : index
    %60 = vector.load %arg1[%c3_33, %c0_34] : memref<16x256xf32, #tpu.memory_space<vmem>>, vector<1x256xf32>
    %c3_35 = arith.constant 3 : index
    %c0_36 = arith.constant 0 : index
    %61 = vector.load %arg2[%c3_35, %c0_36] : memref<16x256xf32, #tpu.memory_space<vmem>>, vector<1x256xf32>
    %62 = vector.broadcast %60 : vector<1x256xf32> to vector<8x256xf32>
    %63 = arith.mulf %62, %57 : vector<8x256xf32>
    %64 = arith.addf %49, %63 : vector<8x256xf32>
    %65 = vector.broadcast %61 : vector<1x256xf32> to vector<8x256xf32>
    %66 = arith.mulf %65, %59 : vector<8x256xf32>
    %67 = arith.subf %64, %66 : vector<8x256xf32>
    %68 = vector.broadcast %60 : vector<1x256xf32> to vector<8x256xf32>
    %69 = arith.mulf %68, %59 : vector<8x256xf32>
    %70 = arith.addf %55, %69 : vector<8x256xf32>
    %71 = vector.broadcast %61 : vector<1x256xf32> to vector<8x256xf32>
    %72 = arith.mulf %71, %57 : vector<8x256xf32>
    %73 = arith.addf %70, %72 : vector<8x256xf32>
    %c4 = arith.constant 4 : index
    %c0_37 = arith.constant 0 : index
    %c0_38 = arith.constant 0 : index
    %74 = vector.load %arg3[%c4, %c0_37, %c0_38] : memref<8x8x256xf32, #tpu.memory_space<vmem>>, vector<1x8x256xf32>
    %75 = vector.shape_cast %74 : vector<1x8x256xf32> to vector<8x256xf32>
    %c4_39 = arith.constant 4 : index
    %c0_40 = arith.constant 0 : index
    %c0_41 = arith.constant 0 : index
    %76 = vector.load %arg4[%c4_39, %c0_40, %c0_41] : memref<8x8x256xf32, #tpu.memory_space<vmem>>, vector<1x8x256xf32>
    %77 = vector.shape_cast %76 : vector<1x8x256xf32> to vector<8x256xf32>
    %c4_42 = arith.constant 4 : index
    %c0_43 = arith.constant 0 : index
    %78 = vector.load %arg1[%c4_42, %c0_43] : memref<16x256xf32, #tpu.memory_space<vmem>>, vector<1x256xf32>
    %c4_44 = arith.constant 4 : index
    %c0_45 = arith.constant 0 : index
    %79 = vector.load %arg2[%c4_44, %c0_45] : memref<16x256xf32, #tpu.memory_space<vmem>>, vector<1x256xf32>
    %80 = vector.broadcast %78 : vector<1x256xf32> to vector<8x256xf32>
    %81 = arith.mulf %80, %75 : vector<8x256xf32>
    %82 = arith.addf %67, %81 : vector<8x256xf32>
    %83 = vector.broadcast %79 : vector<1x256xf32> to vector<8x256xf32>
    %84 = arith.mulf %83, %77 : vector<8x256xf32>
    %85 = arith.subf %82, %84 : vector<8x256xf32>
    %86 = vector.broadcast %78 : vector<1x256xf32> to vector<8x256xf32>
    %87 = arith.mulf %86, %77 : vector<8x256xf32>
    %88 = arith.addf %73, %87 : vector<8x256xf32>
    %89 = vector.broadcast %79 : vector<1x256xf32> to vector<8x256xf32>
    %90 = arith.mulf %89, %75 : vector<8x256xf32>
    %91 = arith.addf %88, %90 : vector<8x256xf32>
    %c5 = arith.constant 5 : index
    %c0_46 = arith.constant 0 : index
    %c0_47 = arith.constant 0 : index
    %92 = vector.load %arg3[%c5, %c0_46, %c0_47] : memref<8x8x256xf32, #tpu.memory_space<vmem>>, vector<1x8x256xf32>
    %93 = vector.shape_cast %92 : vector<1x8x256xf32> to vector<8x256xf32>
    %c5_48 = arith.constant 5 : index
    %c0_49 = arith.constant 0 : index
    %c0_50 = arith.constant 0 : index
    %94 = vector.load %arg4[%c5_48, %c0_49, %c0_50] : memref<8x8x256xf32, #tpu.memory_space<vmem>>, vector<1x8x256xf32>
    %95 = vector.shape_cast %94 : vector<1x8x256xf32> to vector<8x256xf32>
    %c5_51 = arith.constant 5 : index
    %c0_52 = arith.constant 0 : index
    %96 = vector.load %arg1[%c5_51, %c0_52] : memref<16x256xf32, #tpu.memory_space<vmem>>, vector<1x256xf32>
    %c5_53 = arith.constant 5 : index
    %c0_54 = arith.constant 0 : index
    %97 = vector.load %arg2[%c5_53, %c0_54] : memref<16x256xf32, #tpu.memory_space<vmem>>, vector<1x256xf32>
    %98 = vector.broadcast %96 : vector<1x256xf32> to vector<8x256xf32>
    %99 = arith.mulf %98, %93 : vector<8x256xf32>
    %100 = arith.addf %85, %99 : vector<8x256xf32>
    %101 = vector.broadcast %97 : vector<1x256xf32> to vector<8x256xf32>
    %102 = arith.mulf %101, %95 : vector<8x256xf32>
    %103 = arith.subf %100, %102 : vector<8x256xf32>
    %104 = vector.broadcast %96 : vector<1x256xf32> to vector<8x256xf32>
    %105 = arith.mulf %104, %95 : vector<8x256xf32>
    %106 = arith.addf %91, %105 : vector<8x256xf32>
    %107 = vector.broadcast %97 : vector<1x256xf32> to vector<8x256xf32>
    %108 = arith.mulf %107, %93 : vector<8x256xf32>
    %109 = arith.addf %106, %108 : vector<8x256xf32>
    %c6 = arith.constant 6 : index
    %c0_55 = arith.constant 0 : index
    %c0_56 = arith.constant 0 : index
    %110 = vector.load %arg3[%c6, %c0_55, %c0_56] : memref<8x8x256xf32, #tpu.memory_space<vmem>>, vector<1x8x256xf32>
    %111 = vector.shape_cast %110 : vector<1x8x256xf32> to vector<8x256xf32>
    %c6_57 = arith.constant 6 : index
    %c0_58 = arith.constant 0 : index
    %c0_59 = arith.constant 0 : index
    %112 = vector.load %arg4[%c6_57, %c0_58, %c0_59] : memref<8x8x256xf32, #tpu.memory_space<vmem>>, vector<1x8x256xf32>
    %113 = vector.shape_cast %112 : vector<1x8x256xf32> to vector<8x256xf32>
    %c6_60 = arith.constant 6 : index
    %c0_61 = arith.constant 0 : index
    %114 = vector.load %arg1[%c6_60, %c0_61] : memref<16x256xf32, #tpu.memory_space<vmem>>, vector<1x256xf32>
    %c6_62 = arith.constant 6 : index
    %c0_63 = arith.constant 0 : index
    %115 = vector.load %arg2[%c6_62, %c0_63] : memref<16x256xf32, #tpu.memory_space<vmem>>, vector<1x256xf32>
    %116 = vector.broadcast %114 : vector<1x256xf32> to vector<8x256xf32>
    %117 = arith.mulf %116, %111 : vector<8x256xf32>
    %118 = arith.addf %103, %117 : vector<8x256xf32>
    %119 = vector.broadcast %115 : vector<1x256xf32> to vector<8x256xf32>
    %120 = arith.mulf %119, %113 : vector<8x256xf32>
    %121 = arith.subf %118, %120 : vector<8x256xf32>
    %122 = vector.broadcast %114 : vector<1x256xf32> to vector<8x256xf32>
    %123 = arith.mulf %122, %113 : vector<8x256xf32>
    %124 = arith.addf %109, %123 : vector<8x256xf32>
    %125 = vector.broadcast %115 : vector<1x256xf32> to vector<8x256xf32>
    %126 = arith.mulf %125, %111 : vector<8x256xf32>
    %127 = arith.addf %124, %126 : vector<8x256xf32>
    %c7 = arith.constant 7 : index
    %c0_64 = arith.constant 0 : index
    %c0_65 = arith.constant 0 : index
    %128 = vector.load %arg3[%c7, %c0_64, %c0_65] : memref<8x8x256xf32, #tpu.memory_space<vmem>>, vector<1x8x256xf32>
    %129 = vector.shape_cast %128 : vector<1x8x256xf32> to vector<8x256xf32>
    %c7_66 = arith.constant 7 : index
    %c0_67 = arith.constant 0 : index
    %c0_68 = arith.constant 0 : index
    %130 = vector.load %arg4[%c7_66, %c0_67, %c0_68] : memref<8x8x256xf32, #tpu.memory_space<vmem>>, vector<1x8x256xf32>
    %131 = vector.shape_cast %130 : vector<1x8x256xf32> to vector<8x256xf32>
    %c7_69 = arith.constant 7 : index
    %c0_70 = arith.constant 0 : index
    %132 = vector.load %arg1[%c7_69, %c0_70] : memref<16x256xf32, #tpu.memory_space<vmem>>, vector<1x256xf32>
    %c7_71 = arith.constant 7 : index
    %c0_72 = arith.constant 0 : index
    %133 = vector.load %arg2[%c7_71, %c0_72] : memref<16x256xf32, #tpu.memory_space<vmem>>, vector<1x256xf32>
    %134 = vector.broadcast %132 : vector<1x256xf32> to vector<8x256xf32>
    %135 = arith.mulf %134, %129 : vector<8x256xf32>
    %136 = arith.addf %121, %135 : vector<8x256xf32>
    %137 = vector.broadcast %133 : vector<1x256xf32> to vector<8x256xf32>
    %138 = arith.mulf %137, %131 : vector<8x256xf32>
    %139 = arith.subf %136, %138 : vector<8x256xf32>
    %140 = vector.broadcast %132 : vector<1x256xf32> to vector<8x256xf32>
    %141 = arith.mulf %140, %131 : vector<8x256xf32>
    %142 = arith.addf %127, %141 : vector<8x256xf32>
    %143 = vector.broadcast %133 : vector<1x256xf32> to vector<8x256xf32>
    %144 = arith.mulf %143, %129 : vector<8x256xf32>
    %145 = arith.addf %142, %144 : vector<8x256xf32>
    %c0_73 = arith.constant 0 : index
    %c0_74 = arith.constant 0 : index
    %146 = vector.load %arg5[%c0_73, %c0_74] : memref<16x256xf32, #tpu.memory_space<vmem>>, vector<8x256xf32>
    tpu.vector_store %arg5[%c0_73, %c0_74], %139 {strides = array<i32>} : memref<16x256xf32, #tpu.memory_space<vmem>>, vector<8x256xf32>,
    %c0_75 = arith.constant 0 : index
    %c0_76 = arith.constant 0 : index
    %147 = vector.load %arg6[%c0_75, %c0_76] : memref<16x256xf32, #tpu.memory_space<vmem>>, vector<8x256xf32>
    tpu.vector_store %arg6[%c0_75, %c0_76], %145 {strides = array<i32>} : memref<16x256xf32, #tpu.memory_space<vmem>>, vector<8x256xf32>,
    %cst_77 = arith.constant 0.000000e+00 : f32
    %148 = vector.broadcast %cst_77 : f32 to vector<8x256xf32>
    %cst_78 = arith.constant 0.000000e+00 : f32
    %149 = vector.broadcast %cst_78 : f32 to vector<8x256xf32>
    %c0_79 = arith.constant 0 : index
    %c0_80 = arith.constant 0 : index
    %c0_81 = arith.constant 0 : index
    %150 = vector.load %arg3[%c0_79, %c0_80, %c0_81] : memref<8x8x256xf32, #tpu.memory_space<vmem>>, vector<1x8x256xf32>
    %151 = vector.shape_cast %150 : vector<1x8x256xf32> to vector<8x256xf32>
    %c0_82 = arith.constant 0 : index
    %c0_83 = arith.constant 0 : index
    %c0_84 = arith.constant 0 : index
    %152 = vector.load %arg4[%c0_82, %c0_83, %c0_84] : memref<8x8x256xf32, #tpu.memory_space<vmem>>, vector<1x8x256xf32>
    %153 = vector.shape_cast %152 : vector<1x8x256xf32> to vector<8x256xf32>
    %c8 = arith.constant 8 : index
    %c0_85 = arith.constant 0 : index
    %154 = vector.load %arg1[%c8, %c0_85] : memref<16x256xf32, #tpu.memory_space<vmem>>, vector<1x256xf32>
    %c8_86 = arith.constant 8 : index
    %c0_87 = arith.constant 0 : index
    %155 = vector.load %arg2[%c8_86, %c0_87] : memref<16x256xf32, #tpu.memory_space<vmem>>, vector<1x256xf32>
    %156 = vector.broadcast %154 : vector<1x256xf32> to vector<8x256xf32>
    %157 = arith.mulf %156, %151 : vector<8x256xf32>
    %158 = arith.addf %148, %157 : vector<8x256xf32>
    %159 = vector.broadcast %155 : vector<1x256xf32> to vector<8x256xf32>
    %160 = arith.mulf %159, %153 : vector<8x256xf32>
    %161 = arith.subf %158, %160 : vector<8x256xf32>
    %162 = vector.broadcast %154 : vector<1x256xf32> to vector<8x256xf32>
    %163 = arith.mulf %162, %153 : vector<8x256xf32>
    %164 = arith.addf %149, %163 : vector<8x256xf32>
    %165 = vector.broadcast %155 : vector<1x256xf32> to vector<8x256xf32>
    %166 = arith.mulf %165, %151 : vector<8x256xf32>
    %167 = arith.addf %164, %166 : vector<8x256xf32>
    %c1_88 = arith.constant 1 : index
    %c0_89 = arith.constant 0 : index
    %c0_90 = arith.constant 0 : index
    %168 = vector.load %arg3[%c1_88, %c0_89, %c0_90] : memref<8x8x256xf32, #tpu.memory_space<vmem>>, vector<1x8x256xf32>
    %169 = vector.shape_cast %168 : vector<1x8x256xf32> to vector<8x256xf32>
    %c1_91 = arith.constant 1 : index
    %c0_92 = arith.constant 0 : index
    %c0_93 = arith.constant 0 : index
    %170 = vector.load %arg4[%c1_91, %c0_92, %c0_93] : memref<8x8x256xf32, #tpu.memory_space<vmem>>, vector<1x8x256xf32>
    %171 = vector.shape_cast %170 : vector<1x8x256xf32> to vector<8x256xf32>
    %c9 = arith.constant 9 : index
    %c0_94 = arith.constant 0 : index
    %172 = vector.load %arg1[%c9, %c0_94] : memref<16x256xf32, #tpu.memory_space<vmem>>, vector<1x256xf32>
    %c9_95 = arith.constant 9 : index
    %c0_96 = arith.constant 0 : index
    %173 = vector.load %arg2[%c9_95, %c0_96] : memref<16x256xf32, #tpu.memory_space<vmem>>, vector<1x256xf32>
    %174 = vector.broadcast %172 : vector<1x256xf32> to vector<8x256xf32>
    %175 = arith.mulf %174, %169 : vector<8x256xf32>
    %176 = arith.addf %161, %175 : vector<8x256xf32>
    %177 = vector.broadcast %173 : vector<1x256xf32> to vector<8x256xf32>
    %178 = arith.mulf %177, %171 : vector<8x256xf32>
    %179 = arith.subf %176, %178 : vector<8x256xf32>
    %180 = vector.broadcast %172 : vector<1x256xf32> to vector<8x256xf32>
    %181 = arith.mulf %180, %171 : vector<8x256xf32>
    %182 = arith.addf %167, %181 : vector<8x256xf32>
    %183 = vector.broadcast %173 : vector<1x256xf32> to vector<8x256xf32>
    %184 = arith.mulf %183, %169 : vector<8x256xf32>
    %185 = arith.addf %182, %184 : vector<8x256xf32>
    %c2_97 = arith.constant 2 : index
    %c0_98 = arith.constant 0 : index
    %c0_99 = arith.constant 0 : index
    %186 = vector.load %arg3[%c2_97, %c0_98, %c0_99] : memref<8x8x256xf32, #tpu.memory_space<vmem>>, vector<1x8x256xf32>
    %187 = vector.shape_cast %186 : vector<1x8x256xf32> to vector<8x256xf32>
    %c2_100 = arith.constant 2 : index
    %c0_101 = arith.constant 0 : index
    %c0_102 = arith.constant 0 : index
    %188 = vector.load %arg4[%c2_100, %c0_101, %c0_102] : memref<8x8x256xf32, #tpu.memory_space<vmem>>, vector<1x8x256xf32>
    %189 = vector.shape_cast %188 : vector<1x8x256xf32> to vector<8x256xf32>
    %c10 = arith.constant 10 : index
    %c0_103 = arith.constant 0 : index
    %190 = vector.load %arg1[%c10, %c0_103] : memref<16x256xf32, #tpu.memory_space<vmem>>, vector<1x256xf32>
    %c10_104 = arith.constant 10 : index
    %c0_105 = arith.constant 0 : index
    %191 = vector.load %arg2[%c10_104, %c0_105] : memref<16x256xf32, #tpu.memory_space<vmem>>, vector<1x256xf32>
    %192 = vector.broadcast %190 : vector<1x256xf32> to vector<8x256xf32>
    %193 = arith.mulf %192, %187 : vector<8x256xf32>
    %194 = arith.addf %179, %193 : vector<8x256xf32>
    %195 = vector.broadcast %191 : vector<1x256xf32> to vector<8x256xf32>
    %196 = arith.mulf %195, %189 : vector<8x256xf32>
    %197 = arith.subf %194, %196 : vector<8x256xf32>
    %198 = vector.broadcast %190 : vector<1x256xf32> to vector<8x256xf32>
    %199 = arith.mulf %198, %189 : vector<8x256xf32>
    %200 = arith.addf %185, %199 : vector<8x256xf32>
    %201 = vector.broadcast %191 : vector<1x256xf32> to vector<8x256xf32>
    %202 = arith.mulf %201, %187 : vector<8x256xf32>
    %203 = arith.addf %200, %202 : vector<8x256xf32>
    %c3_106 = arith.constant 3 : index
    %c0_107 = arith.constant 0 : index
    %c0_108 = arith.constant 0 : index
    %204 = vector.load %arg3[%c3_106, %c0_107, %c0_108] : memref<8x8x256xf32, #tpu.memory_space<vmem>>, vector<1x8x256xf32>
    %205 = vector.shape_cast %204 : vector<1x8x256xf32> to vector<8x256xf32>
    %c3_109 = arith.constant 3 : index
    %c0_110 = arith.constant 0 : index
    %c0_111 = arith.constant 0 : index
    %206 = vector.load %arg4[%c3_109, %c0_110, %c0_111] : memref<8x8x256xf32, #tpu.memory_space<vmem>>, vector<1x8x256xf32>
    %207 = vector.shape_cast %206 : vector<1x8x256xf32> to vector<8x256xf32>
    %c11 = arith.constant 11 : index
    %c0_112 = arith.constant 0 : index
    %208 = vector.load %arg1[%c11, %c0_112] : memref<16x256xf32, #tpu.memory_space<vmem>>, vector<1x256xf32>
    %c11_113 = arith.constant 11 : index
    %c0_114 = arith.constant 0 : index
    %209 = vector.load %arg2[%c11_113, %c0_114] : memref<16x256xf32, #tpu.memory_space<vmem>>, vector<1x256xf32>
    %210 = vector.broadcast %208 : vector<1x256xf32> to vector<8x256xf32>
    %211 = arith.mulf %210, %205 : vector<8x256xf32>
    %212 = arith.addf %197, %211 : vector<8x256xf32>
    %213 = vector.broadcast %209 : vector<1x256xf32> to vector<8x256xf32>
    %214 = arith.mulf %213, %207 : vector<8x256xf32>
    %215 = arith.subf %212, %214 : vector<8x256xf32>
    %216 = vector.broadcast %208 : vector<1x256xf32> to vector<8x256xf32>
    %217 = arith.mulf %216, %207 : vector<8x256xf32>
    %218 = arith.addf %203, %217 : vector<8x256xf32>
    %219 = vector.broadcast %209 : vector<1x256xf32> to vector<8x256xf32>
    %220 = arith.mulf %219, %205 : vector<8x256xf32>
    %221 = arith.addf %218, %220 : vector<8x256xf32>
    %c4_115 = arith.constant 4 : index
    %c0_116 = arith.constant 0 : index
    %c0_117 = arith.constant 0 : index
    %222 = vector.load %arg3[%c4_115, %c0_116, %c0_117] : memref<8x8x256xf32, #tpu.memory_space<vmem>>, vector<1x8x256xf32>
    %223 = vector.shape_cast %222 : vector<1x8x256xf32> to vector<8x256xf32>
    %c4_118 = arith.constant 4 : index
    %c0_119 = arith.constant 0 : index
    %c0_120 = arith.constant 0 : index
    %224 = vector.load %arg4[%c4_118, %c0_119, %c0_120] : memref<8x8x256xf32, #tpu.memory_space<vmem>>, vector<1x8x256xf32>
    %225 = vector.shape_cast %224 : vector<1x8x256xf32> to vector<8x256xf32>
    %c12 = arith.constant 12 : index
    %c0_121 = arith.constant 0 : index
    %226 = vector.load %arg1[%c12, %c0_121] : memref<16x256xf32, #tpu.memory_space<vmem>>, vector<1x256xf32>
    %c12_122 = arith.constant 12 : index
    %c0_123 = arith.constant 0 : index
    %227 = vector.load %arg2[%c12_122, %c0_123] : memref<16x256xf32, #tpu.memory_space<vmem>>, vector<1x256xf32>
    %228 = vector.broadcast %226 : vector<1x256xf32> to vector<8x256xf32>
    %229 = arith.mulf %228, %223 : vector<8x256xf32>
    %230 = arith.addf %215, %229 : vector<8x256xf32>
    %231 = vector.broadcast %227 : vector<1x256xf32> to vector<8x256xf32>
    %232 = arith.mulf %231, %225 : vector<8x256xf32>
    %233 = arith.subf %230, %232 : vector<8x256xf32>
    %234 = vector.broadcast %226 : vector<1x256xf32> to vector<8x256xf32>
    %235 = arith.mulf %234, %225 : vector<8x256xf32>
    %236 = arith.addf %221, %235 : vector<8x256xf32>
    %237 = vector.broadcast %227 : vector<1x256xf32> to vector<8x256xf32>
    %238 = arith.mulf %237, %223 : vector<8x256xf32>
    %239 = arith.addf %236, %238 : vector<8x256xf32>
    %c5_124 = arith.constant 5 : index
    %c0_125 = arith.constant 0 : index
    %c0_126 = arith.constant 0 : index
    %240 = vector.load %arg3[%c5_124, %c0_125, %c0_126] : memref<8x8x256xf32, #tpu.memory_space<vmem>>, vector<1x8x256xf32>
    %241 = vector.shape_cast %240 : vector<1x8x256xf32> to vector<8x256xf32>
    %c5_127 = arith.constant 5 : index
    %c0_128 = arith.constant 0 : index
    %c0_129 = arith.constant 0 : index
    %242 = vector.load %arg4[%c5_127, %c0_128, %c0_129] : memref<8x8x256xf32, #tpu.memory_space<vmem>>, vector<1x8x256xf32>
    %243 = vector.shape_cast %242 : vector<1x8x256xf32> to vector<8x256xf32>
    %c13 = arith.constant 13 : index
    %c0_130 = arith.constant 0 : index
    %244 = vector.load %arg1[%c13, %c0_130] : memref<16x256xf32, #tpu.memory_space<vmem>>, vector<1x256xf32>
    %c13_131 = arith.constant 13 : index
    %c0_132 = arith.constant 0 : index
    %245 = vector.load %arg2[%c13_131, %c0_132] : memref<16x256xf32, #tpu.memory_space<vmem>>, vector<1x256xf32>
    %246 = vector.broadcast %244 : vector<1x256xf32> to vector<8x256xf32>
    %247 = arith.mulf %246, %241 : vector<8x256xf32>
    %248 = arith.addf %233, %247 : vector<8x256xf32>
    %249 = vector.broadcast %245 : vector<1x256xf32> to vector<8x256xf32>
    %250 = arith.mulf %249, %243 : vector<8x256xf32>
    %251 = arith.subf %248, %250 : vector<8x256xf32>
    %252 = vector.broadcast %244 : vector<1x256xf32> to vector<8x256xf32>
    %253 = arith.mulf %252, %243 : vector<8x256xf32>
    %254 = arith.addf %239, %253 : vector<8x256xf32>
    %255 = vector.broadcast %245 : vector<1x256xf32> to vector<8x256xf32>
    %256 = arith.mulf %255, %241 : vector<8x256xf32>
    %257 = arith.addf %254, %256 : vector<8x256xf32>
    %c6_133 = arith.constant 6 : index
    %c0_134 = arith.constant 0 : index
    %c0_135 = arith.constant 0 : index
    %258 = vector.load %arg3[%c6_133, %c0_134, %c0_135] : memref<8x8x256xf32, #tpu.memory_space<vmem>>, vector<1x8x256xf32>
    %259 = vector.shape_cast %258 : vector<1x8x256xf32> to vector<8x256xf32>
    %c6_136 = arith.constant 6 : index
    %c0_137 = arith.constant 0 : index
    %c0_138 = arith.constant 0 : index
    %260 = vector.load %arg4[%c6_136, %c0_137, %c0_138] : memref<8x8x256xf32, #tpu.memory_space<vmem>>, vector<1x8x256xf32>
    %261 = vector.shape_cast %260 : vector<1x8x256xf32> to vector<8x256xf32>
    %c14 = arith.constant 14 : index
    %c0_139 = arith.constant 0 : index
    %262 = vector.load %arg1[%c14, %c0_139] : memref<16x256xf32, #tpu.memory_space<vmem>>, vector<1x256xf32>
    %c14_140 = arith.constant 14 : index
    %c0_141 = arith.constant 0 : index
    %263 = vector.load %arg2[%c14_140, %c0_141] : memref<16x256xf32, #tpu.memory_space<vmem>>, vector<1x256xf32>
    %264 = vector.broadcast %262 : vector<1x256xf32> to vector<8x256xf32>
    %265 = arith.mulf %264, %259 : vector<8x256xf32>
    %266 = arith.addf %251, %265 : vector<8x256xf32>
    %267 = vector.broadcast %263 : vector<1x256xf32> to vector<8x256xf32>
    %268 = arith.mulf %267, %261 : vector<8x256xf32>
    %269 = arith.subf %266, %268 : vector<8x256xf32>
    %270 = vector.broadcast %262 : vector<1x256xf32> to vector<8x256xf32>
    %271 = arith.mulf %270, %261 : vector<8x256xf32>
    %272 = arith.addf %257, %271 : vector<8x256xf32>
    %273 = vector.broadcast %263 : vector<1x256xf32> to vector<8x256xf32>
    %274 = arith.mulf %273, %259 : vector<8x256xf32>
    %275 = arith.addf %272, %274 : vector<8x256xf32>
    %c7_142 = arith.constant 7 : index
    %c0_143 = arith.constant 0 : index
    %c0_144 = arith.constant 0 : index
    %276 = vector.load %arg3[%c7_142, %c0_143, %c0_144] : memref<8x8x256xf32, #tpu.memory_space<vmem>>, vector<1x8x256xf32>
    %277 = vector.shape_cast %276 : vector<1x8x256xf32> to vector<8x256xf32>
    %c7_145 = arith.constant 7 : index
    %c0_146 = arith.constant 0 : index
    %c0_147 = arith.constant 0 : index
    %278 = vector.load %arg4[%c7_145, %c0_146, %c0_147] : memref<8x8x256xf32, #tpu.memory_space<vmem>>, vector<1x8x256xf32>
    %279 = vector.shape_cast %278 : vector<1x8x256xf32> to vector<8x256xf32>
    %c15 = arith.constant 15 : index
    %c0_148 = arith.constant 0 : index
    %280 = vector.load %arg1[%c15, %c0_148] : memref<16x256xf32, #tpu.memory_space<vmem>>, vector<1x256xf32>
    %c15_149 = arith.constant 15 : index
    %c0_150 = arith.constant 0 : index
    %281 = vector.load %arg2[%c15_149, %c0_150] : memref<16x256xf32, #tpu.memory_space<vmem>>, vector<1x256xf32>
    %282 = vector.broadcast %280 : vector<1x256xf32> to vector<8x256xf32>
    %283 = arith.mulf %282, %277 : vector<8x256xf32>
    %284 = arith.addf %269, %283 : vector<8x256xf32>
    %285 = vector.broadcast %281 : vector<1x256xf32> to vector<8x256xf32>
    %286 = arith.mulf %285, %279 : vector<8x256xf32>
    %287 = arith.subf %284, %286 : vector<8x256xf32>
    %288 = vector.broadcast %280 : vector<1x256xf32> to vector<8x256xf32>
    %289 = arith.mulf %288, %279 : vector<8x256xf32>
    %290 = arith.addf %275, %289 : vector<8x256xf32>
    %291 = vector.broadcast %281 : vector<1x256xf32> to vector<8x256xf32>
    %292 = arith.mulf %291, %277 : vector<8x256xf32>
    %293 = arith.addf %290, %292 : vector<8x256xf32>
    %c8_151 = arith.constant 8 : index
    %c0_152 = arith.constant 0 : index
    %294 = vector.load %arg5[%c8_151, %c0_152] : memref<16x256xf32, #tpu.memory_space<vmem>>, vector<8x256xf32>
    tpu.vector_store %arg5[%c8_151, %c0_152], %287 {strides = array<i32>} : memref<16x256xf32, #tpu.memory_space<vmem>>, vector<8x256xf32>,
    %c8_153 = arith.constant 8 : index
    %c0_154 = arith.constant 0 : index
    %295 = vector.load %arg6[%c8_153, %c0_154] : memref<16x256xf32, #tpu.memory_space<vmem>>, vector<8x256xf32>
    tpu.vector_store %arg6[%c8_153, %c0_154], %293 {strides = array<i32>} : memref<16x256xf32, #tpu.memory_space<vmem>>, vector<8x256xf32>,
    return
  }
  func.func @transform_0(%arg0: i32) -> (i32, i32) {
    %c0_i32 = arith.constant 0 : i32
    %c0_i32_0 = arith.constant 0 : i32
    return %c0_i32, %arg0 : i32, i32
  }
  func.func @transform_1(%arg0: i32) -> (i32, i32) {
    %c0_i32 = arith.constant 0 : i32
    %c0_i32_0 = arith.constant 0 : i32
    return %c0_i32, %arg0 : i32, i32
  }
  func.func @transform_2(%arg0: i32) -> (i32, i32, i32) {
    %c0_i32 = arith.constant 0 : i32
    %c0_i32_0 = arith.constant 0 : i32
    %c0_i32_1 = arith.constant 0 : i32
    return %c0_i32, %c0_i32_0, %arg0 : i32, i32, i32
  }
  func.func @transform_3(%arg0: i32) -> (i32, i32, i32) {
    %c0_i32 = arith.constant 0 : i32
    %c0_i32_0 = arith.constant 0 : i32
    %c0_i32_1 = arith.constant 0 : i32
    return %c0_i32, %c0_i32_0, %arg0 : i32, i32, i32
  }
  func.func @transform_4(%arg0: i32) -> (i32, i32) {
    %c0_i32 = arith.constant 0 : i32
    %c0_i32_0 = arith.constant 0 : i32
    return %c0_i32, %arg0 : i32, i32
  }
  func.func @transform_5(%arg0: i32) -> (i32, i32) {
    %c0_i32 = arith.constant 0 : i32
    %c0_i32_0 = arith.constant 0 : i32
    return %c0_i32, %arg0 : i32, i32
  }
}

module attributes {stable_mosaic.version = 11 : i64} {
  func.func @_inorm_stats_kernel(%arg0: i32, %arg1: memref<8x512xf32, #tpu.memory_space<vmem>>, %arg2: memref<8x1xf32, #tpu.memory_space<vmem>>, %arg3: memref<8x1xf32, #tpu.memory_space<vmem>>) attributes {dimension_semantics = [#tpu.dimension_semantics<parallel>], iteration_bounds = array<i64: 2>, scalar_prefetch = 0 : i64, scratch_operands = 0 : i64, tpu.core_type = #tpu.core_type<tc>, window_params = [{transform_indices = @transform_0, window_bounds = array<i64: 8, 512>}, {transform_indices = @transform_1, window_bounds = array<i64: 8, 1>}, {transform_indices = @transform_2, window_bounds = array<i64: 8, 1>}]} {
    %c0 = arith.constant 0 : index
    %c0_0 = arith.constant 0 : index
    %0 = vector.load %arg1[%c0, %c0_0] : memref<8x512xf32, #tpu.memory_space<vmem>>, vector<8x512xf32>
    %cst = arith.constant dense<0.000000e+00> : vector<8xf32>
    %1 = vector.multi_reduction <add>, %0, %cst [1] : vector<8x512xf32> to vector<8xf32>
    %2 = vector.shape_cast %1 : vector<8xf32> to vector<8x1xf32>
    %3 = arith.mulf %0, %0 : vector<8x512xf32>
    %cst_1 = arith.constant dense<0.000000e+00> : vector<8xf32>
    %4 = vector.multi_reduction <add>, %3, %cst_1 [1] : vector<8x512xf32> to vector<8xf32>
    %5 = vector.shape_cast %4 : vector<8xf32> to vector<8x1xf32>
    %cst_2 = arith.constant 0.001953125 : f32
    %6 = vector.broadcast %cst_2 : f32 to vector<8x1xf32>
    %7 = arith.mulf %2, %6 : vector<8x1xf32>
    %cst_3 = arith.constant 0.001953125 : f32
    %8 = vector.broadcast %cst_3 : f32 to vector<8x1xf32>
    %9 = arith.mulf %5, %8 : vector<8x1xf32>
    %10 = arith.mulf %7, %7 : vector<8x1xf32>
    %11 = arith.subf %9, %10 : vector<8x1xf32>
    %cst_4 = arith.constant 0.000000e+00 : f32
    %12 = vector.broadcast %cst_4 : f32 to vector<8x1xf32>
    %13 = arith.maximumf %11, %12 : vector<8x1xf32>
    %c0_5 = arith.constant 0 : index
    %c0_6 = arith.constant 0 : index
    %14 = vector.load %arg2[%c0_5, %c0_6] : memref<8x1xf32, #tpu.memory_space<vmem>>, vector<8x1xf32>
    tpu.vector_store %arg2[%c0_5, %c0_6], %7 {strides = array<i32>} : memref<8x1xf32, #tpu.memory_space<vmem>>, vector<8x1xf32>,
    %cst_7 = arith.constant 9.99999974E-6 : f32
    %15 = vector.broadcast %cst_7 : f32 to vector<8x1xf32>
    %16 = arith.addf %13, %15 : vector<8x1xf32>
    %17 = math.rsqrt %16 : vector<8x1xf32>
    %c0_8 = arith.constant 0 : index
    %c0_9 = arith.constant 0 : index
    %18 = vector.load %arg3[%c0_8, %c0_9] : memref<8x1xf32, #tpu.memory_space<vmem>>, vector<8x1xf32>
    tpu.vector_store %arg3[%c0_8, %c0_9], %17 {strides = array<i32>} : memref<8x1xf32, #tpu.memory_space<vmem>>, vector<8x1xf32>,
    return
  }
  func.func @transform_0(%arg0: i32) -> (i32, i32) {
    %c0_i32 = arith.constant 0 : i32
    %c0_i32_0 = arith.constant 0 : i32
    return %arg0, %c0_i32 : i32, i32
  }
  func.func @transform_1(%arg0: i32) -> (i32, i32) {
    %c0_i32 = arith.constant 0 : i32
    %c0_i32_0 = arith.constant 0 : i32
    return %arg0, %c0_i32 : i32, i32
  }
  func.func @transform_2(%arg0: i32) -> (i32, i32) {
    %c0_i32 = arith.constant 0 : i32
    %c0_i32_0 = arith.constant 0 : i32
    return %arg0, %c0_i32 : i32, i32
  }
}

module attributes {stable_mosaic.version = 11 : i64} {
  func.func @_head_kernel(%arg0: i32, %arg1: memref<2x8x256xf32, #tpu.memory_space<vmem>>, %arg2: memref<2x8x256xf32, #tpu.memory_space<vmem>>, %arg3: memref<2x8x1xf32, #tpu.memory_space<vmem>>, %arg4: memref<2x8x1xf32, #tpu.memory_space<vmem>>, %arg5: memref<64x8xf32, #tpu.memory_space<vmem>>, %arg6: memref<64x8xf32, #tpu.memory_space<vmem>>, %arg7: memref<64x1xf32, #tpu.memory_space<vmem>>, %arg8: memref<1x64xf32, #tpu.memory_space<vmem>>, %arg9: memref<1x1xf32, #tpu.memory_space<vmem>>, %arg10: memref<2x256xf32, #tpu.memory_space<vmem>>) attributes {dimension_semantics = [#tpu.dimension_semantics<parallel>], iteration_bounds = array<i64: 2>, scalar_prefetch = 0 : i64, scratch_operands = 0 : i64, tpu.core_type = #tpu.core_type<tc>, window_params = [{transform_indices = @transform_0, window_bounds = array<i64: 2, 8, 256>}, {transform_indices = @transform_1, window_bounds = array<i64: 2, 8, 256>}, {pipeline_mode = #tpu.pipeline_mode<synchronous>, transform_indices = @transform_2, window_bounds = array<i64: 2, 8, 1>}, {pipeline_mode = #tpu.pipeline_mode<synchronous>, transform_indices = @transform_3, window_bounds = array<i64: 2, 8, 1>}, {pipeline_mode = #tpu.pipeline_mode<synchronous>, transform_indices = @transform_4, window_bounds = array<i64: 64, 8>}, {pipeline_mode = #tpu.pipeline_mode<synchronous>, transform_indices = @transform_5, window_bounds = array<i64: 64, 8>}, {pipeline_mode = #tpu.pipeline_mode<synchronous>, transform_indices = @transform_6, window_bounds = array<i64: 64, 1>}, {pipeline_mode = #tpu.pipeline_mode<synchronous>, transform_indices = @transform_7, window_bounds = array<i64: 1, 64>}, {pipeline_mode = #tpu.pipeline_mode<synchronous>, transform_indices = @transform_8, window_bounds = array<i64: 1, 1>}, {transform_indices = @transform_9, window_bounds = array<i64: 2, 256>}]} {
    %c0 = arith.constant 0 : index
    %c0_0 = arith.constant 0 : index
    %0 = vector.load %arg5[%c0, %c0_0] : memref<64x8xf32, #tpu.memory_space<vmem>>, vector<64x8xf32>
    %c0_1 = arith.constant 0 : index
    %c0_2 = arith.constant 0 : index
    %1 = vector.load %arg6[%c0_1, %c0_2] : memref<64x8xf32, #tpu.memory_space<vmem>>, vector<64x8xf32>
    %c0_3 = arith.constant 0 : index
    %c0_4 = arith.constant 0 : index
    %2 = vector.load %arg7[%c0_3, %c0_4] : memref<64x1xf32, #tpu.memory_space<vmem>>, vector<64x1xf32>
    %c0_5 = arith.constant 0 : index
    %c0_6 = arith.constant 0 : index
    %3 = vector.load %arg8[%c0_5, %c0_6] : memref<1x64xf32, #tpu.memory_space<vmem>>, vector<1x64xf32>
    %c0_7 = arith.constant 0 : index
    %c0_8 = arith.constant 0 : index
    %4 = vector.load %arg9[%c0_7, %c0_8] : memref<1x1xf32, #tpu.memory_space<vmem>>, vector<1x1xf32>
    %c0_9 = arith.constant 0 : index
    %c0_10 = arith.constant 0 : index
    %c0_11 = arith.constant 0 : index
    %5 = vector.load %arg1[%c0_9, %c0_10, %c0_11] : memref<2x8x256xf32, #tpu.memory_space<vmem>>, vector<1x8x256xf32>
    %6 = vector.shape_cast %5 : vector<1x8x256xf32> to vector<8x256xf32>
    %c0_12 = arith.constant 0 : index
    %c0_13 = arith.constant 0 : index
    %c0_14 = arith.constant 0 : index
    %7 = vector.load %arg3[%c0_12, %c0_13, %c0_14] : memref<2x8x1xf32, #tpu.memory_space<vmem>>, vector<1x8x1xf32>
    %8 = vector.shape_cast %7 : vector<1x8x1xf32> to vector<8x1xf32>
    %9 = vector.broadcast %8 : vector<8x1xf32> to vector<8x256xf32>
    %10 = arith.subf %6, %9 : vector<8x256xf32>
    %c0_15 = arith.constant 0 : index
    %c0_16 = arith.constant 0 : index
    %c0_17 = arith.constant 0 : index
    %11 = vector.load %arg4[%c0_15, %c0_16, %c0_17] : memref<2x8x1xf32, #tpu.memory_space<vmem>>, vector<1x8x1xf32>
    %12 = vector.shape_cast %11 : vector<1x8x1xf32> to vector<8x1xf32>
    %13 = vector.broadcast %12 : vector<8x1xf32> to vector<8x256xf32>
    %14 = arith.mulf %10, %13 : vector<8x256xf32>
    %cst = arith.constant dense<0.000000e+00> : vector<64x256xf32>
    %15 = tpu.matmul %0, %14, %cst {dimension_numbers = #tpu.dot_dimension_numbers<[1], [0], [0], [1], [0, 0, 1, 1], [], []>, precision = #tpu.contract_precision<fp32>} : vector<64x8xf32>, vector<8x256xf32>, vector<64x256xf32> -> vector<64x256xf32>
    %c0_18 = arith.constant 0 : index
    %c0_19 = arith.constant 0 : index
    %c0_20 = arith.constant 0 : index
    %16 = vector.load %arg2[%c0_18, %c0_19, %c0_20] : memref<2x8x256xf32, #tpu.memory_space<vmem>>, vector<1x8x256xf32>
    %17 = vector.shape_cast %16 : vector<1x8x256xf32> to vector<8x256xf32>
    %cst_21 = arith.constant dense<0.000000e+00> : vector<64x256xf32>
    %18 = tpu.matmul %1, %17, %cst_21 {dimension_numbers = #tpu.dot_dimension_numbers<[1], [0], [0], [1], [0, 0, 1, 1], [], []>, precision = #tpu.contract_precision<fp32>} : vector<64x8xf32>, vector<8x256xf32>, vector<64x256xf32> -> vector<64x256xf32>
    %19 = arith.addf %15, %18 : vector<64x256xf32>
    %20 = vector.broadcast %2 : vector<64x1xf32> to vector<64x256xf32>
    %21 = arith.addf %19, %20 : vector<64x256xf32>
    %cst_22 = arith.constant 0.000000e+00 : f32
    %22 = vector.broadcast %cst_22 : f32 to vector<64x256xf32>
    %23 = arith.maximumf %21, %22 : vector<64x256xf32>
    %cst_23 = arith.constant dense<0.000000e+00> : vector<1x256xf32>
    %24 = tpu.matmul %3, %23, %cst_23 {dimension_numbers = #tpu.dot_dimension_numbers<[1], [0], [0], [1], [0, 0, 1, 1], [], []>, precision = #tpu.contract_precision<fp32>} : vector<1x64xf32>, vector<64x256xf32>, vector<1x256xf32> -> vector<1x256xf32>
    %25 = vector.broadcast %4 : vector<1x1xf32> to vector<1x256xf32>
    %26 = arith.addf %24, %25 : vector<1x256xf32>
    %c1 = arith.constant 1 : index
    %c0_24 = arith.constant 0 : index
    %c0_25 = arith.constant 0 : index
    %27 = vector.load %arg1[%c1, %c0_24, %c0_25] : memref<2x8x256xf32, #tpu.memory_space<vmem>>, vector<1x8x256xf32>
    %28 = vector.shape_cast %27 : vector<1x8x256xf32> to vector<8x256xf32>
    %c1_26 = arith.constant 1 : index
    %c0_27 = arith.constant 0 : index
    %c0_28 = arith.constant 0 : index
    %29 = vector.load %arg3[%c1_26, %c0_27, %c0_28] : memref<2x8x1xf32, #tpu.memory_space<vmem>>, vector<1x8x1xf32>
    %30 = vector.shape_cast %29 : vector<1x8x1xf32> to vector<8x1xf32>
    %31 = vector.broadcast %30 : vector<8x1xf32> to vector<8x256xf32>
    %32 = arith.subf %28, %31 : vector<8x256xf32>
    %c1_29 = arith.constant 1 : index
    %c0_30 = arith.constant 0 : index
    %c0_31 = arith.constant 0 : index
    %33 = vector.load %arg4[%c1_29, %c0_30, %c0_31] : memref<2x8x1xf32, #tpu.memory_space<vmem>>, vector<1x8x1xf32>
    %34 = vector.shape_cast %33 : vector<1x8x1xf32> to vector<8x1xf32>
    %35 = vector.broadcast %34 : vector<8x1xf32> to vector<8x256xf32>
    %36 = arith.mulf %32, %35 : vector<8x256xf32>
    %cst_32 = arith.constant dense<0.000000e+00> : vector<64x256xf32>
    %37 = tpu.matmul %0, %36, %cst_32 {dimension_numbers = #tpu.dot_dimension_numbers<[1], [0], [0], [1], [0, 0, 1, 1], [], []>, precision = #tpu.contract_precision<fp32>} : vector<64x8xf32>, vector<8x256xf32>, vector<64x256xf32> -> vector<64x256xf32>
    %c1_33 = arith.constant 1 : index
    %c0_34 = arith.constant 0 : index
    %c0_35 = arith.constant 0 : index
    %38 = vector.load %arg2[%c1_33, %c0_34, %c0_35] : memref<2x8x256xf32, #tpu.memory_space<vmem>>, vector<1x8x256xf32>
    %39 = vector.shape_cast %38 : vector<1x8x256xf32> to vector<8x256xf32>
    %cst_36 = arith.constant dense<0.000000e+00> : vector<64x256xf32>
    %40 = tpu.matmul %1, %39, %cst_36 {dimension_numbers = #tpu.dot_dimension_numbers<[1], [0], [0], [1], [0, 0, 1, 1], [], []>, precision = #tpu.contract_precision<fp32>} : vector<64x8xf32>, vector<8x256xf32>, vector<64x256xf32> -> vector<64x256xf32>
    %41 = arith.addf %37, %40 : vector<64x256xf32>
    %42 = vector.broadcast %2 : vector<64x1xf32> to vector<64x256xf32>
    %43 = arith.addf %41, %42 : vector<64x256xf32>
    %cst_37 = arith.constant 0.000000e+00 : f32
    %44 = vector.broadcast %cst_37 : f32 to vector<64x256xf32>
    %45 = arith.maximumf %43, %44 : vector<64x256xf32>
    %cst_38 = arith.constant dense<0.000000e+00> : vector<1x256xf32>
    %46 = tpu.matmul %3, %45, %cst_38 {dimension_numbers = #tpu.dot_dimension_numbers<[1], [0], [0], [1], [0, 0, 1, 1], [], []>, precision = #tpu.contract_precision<fp32>} : vector<1x64xf32>, vector<64x256xf32>, vector<1x256xf32> -> vector<1x256xf32>
    %47 = vector.broadcast %4 : vector<1x1xf32> to vector<1x256xf32>
    %48 = arith.addf %46, %47 : vector<1x256xf32>
    %49 = tpu.concatenate %26, %48 in 0 : vector<1x256xf32>, vector<1x256xf32> -> vector<2x256xf32>
    %c0_39 = arith.constant 0 : index
    %c0_40 = arith.constant 0 : index
    %50 = vector.load %arg10[%c0_39, %c0_40] : memref<2x256xf32, #tpu.memory_space<vmem>>, vector<2x256xf32>
    tpu.vector_store %arg10[%c0_39, %c0_40], %49 {strides = array<i32>} : memref<2x256xf32, #tpu.memory_space<vmem>>, vector<2x256xf32>,
    return
  }
  func.func @transform_0(%arg0: i32) -> (i32, i32, i32) {
    %c0_i32 = arith.constant 0 : i32
    %c0_i32_0 = arith.constant 0 : i32
    %c0_i32_1 = arith.constant 0 : i32
    return %c0_i32, %c0_i32_0, %arg0 : i32, i32, i32
  }
  func.func @transform_1(%arg0: i32) -> (i32, i32, i32) {
    %c0_i32 = arith.constant 0 : i32
    %c0_i32_0 = arith.constant 0 : i32
    %c0_i32_1 = arith.constant 0 : i32
    return %c0_i32, %c0_i32_0, %arg0 : i32, i32, i32
  }
  func.func @transform_2(%arg0: i32) -> (i32, i32, i32) {
    %c0_i32 = arith.constant 0 : i32
    %c0_i32_0 = arith.constant 0 : i32
    %c0_i32_1 = arith.constant 0 : i32
    %c0_i32_2 = arith.constant 0 : i32
    return %c0_i32, %c0_i32_0, %c0_i32_1 : i32, i32, i32
  }
  func.func @transform_3(%arg0: i32) -> (i32, i32, i32) {
    %c0_i32 = arith.constant 0 : i32
    %c0_i32_0 = arith.constant 0 : i32
    %c0_i32_1 = arith.constant 0 : i32
    %c0_i32_2 = arith.constant 0 : i32
    return %c0_i32, %c0_i32_0, %c0_i32_1 : i32, i32, i32
  }
  func.func @transform_4(%arg0: i32) -> (i32, i32) {
    %c0_i32 = arith.constant 0 : i32
    %c0_i32_0 = arith.constant 0 : i32
    %c0_i32_1 = arith.constant 0 : i32
    return %c0_i32, %c0_i32_0 : i32, i32
  }
  func.func @transform_5(%arg0: i32) -> (i32, i32) {
    %c0_i32 = arith.constant 0 : i32
    %c0_i32_0 = arith.constant 0 : i32
    %c0_i32_1 = arith.constant 0 : i32
    return %c0_i32, %c0_i32_0 : i32, i32
  }
  func.func @transform_6(%arg0: i32) -> (i32, i32) {
    %c0_i32 = arith.constant 0 : i32
    %c0_i32_0 = arith.constant 0 : i32
    %c0_i32_1 = arith.constant 0 : i32
    return %c0_i32, %c0_i32_0 : i32, i32
  }
  func.func @transform_7(%arg0: i32) -> (i32, i32) {
    %c0_i32 = arith.constant 0 : i32
    %c0_i32_0 = arith.constant 0 : i32
    %c0_i32_1 = arith.constant 0 : i32
    return %c0_i32, %c0_i32_0 : i32, i32
  }
  func.func @transform_8(%arg0: i32) -> (i32, i32) {
    %c0_i32 = arith.constant 0 : i32
    %c0_i32_0 = arith.constant 0 : i32
    %c0_i32_1 = arith.constant 0 : i32
    return %c0_i32, %c0_i32_0 : i32, i32
  }
  func.func @transform_9(%arg0: i32) -> (i32, i32) {
    %c0_i32 = arith.constant 0 : i32
    %c0_i32_0 = arith.constant 0 : i32
    return %c0_i32, %arg0 : i32, i32
  }
}

</mosaic_0001>

<llo_original>
// kernel: custom-call.7
$region0: #{custom-call.7}
  %s0 = inlined_call_operand.hbm [shape: c64[8,8,4], index: 0, kind: input, shape index: {}]
  %s1 = inlined_call_operand.vmem [shape: f32[8,8,4], index: 1, kind: output, shape index: {}]
  %s2 = scalar_lea.hbm %s0, 512
  $region1: #{custom-call.7} parent=0
    #allocation0 [shape = 's32[1]{0}', space=sflag, size = 0x4, scoped, tag = 'scoped memory for custom-call.7']
    %3 = vsyncpa [#allocation0], 0
    %s4 = sshll.u32 %s1, 4
    %s5 = int_to_ptr.vmem [resolvable:$true] %s4
    %7 = dma.hbm_to_vmem [thread:$0]  %s2, 512, %s5, [#allocation0]
    %8 = dma.done [#allocation0], 512
    %9 = vsyncpa [#allocation0], 1

// kernel: custom-call.4
$region0: #{custom-call.4}
  %s0 = inlined_call_operand.hbm [shape: c64[8], index: 0, kind: input, shape index: {}]
  %s1 = inlined_call_operand.vmem [shape: f32[8], index: 1, kind: output, shape index: {}]
  $region1: #{custom-call.4} parent=0
    #allocation0 [shape = 's32[1]{0}', space=sflag, size = 0x4, scoped, tag = 'scoped memory for custom-call.4']
    %2 = vsyncpa [#allocation0], 0
    %s3 = sshll.u32 %s1, 4
    %s4 = int_to_ptr.vmem [resolvable:$true] %s3
    %6 = dma.hbm_to_vmem [thread:$0]  %s0, 16, %s4, [#allocation0]
    %7 = dma.done [#allocation0], 16
    %8 = vsyncpa [#allocation0], 1

// kernel: custom-call.6
$region0: #{custom-call.6}
  %s0 = inlined_call_operand.hbm [shape: c64[8,8,4], index: 0, kind: input, shape index: {}]
  %s1 = inlined_call_operand.vmem [shape: f32[8,8,4], index: 1, kind: output, shape index: {}]
  $region1: #{custom-call.6} parent=0
    #allocation0 [shape = 's32[1]{0}', space=sflag, size = 0x4, scoped, tag = 'scoped memory for custom-call.6']
    %2 = vsyncpa [#allocation0], 0
    %s3 = sshll.u32 %s1, 4
    %s4 = int_to_ptr.vmem [resolvable:$true] %s3
    %6 = dma.hbm_to_vmem [thread:$0]  %s0, 512, %s4, [#allocation0]
    %7 = dma.done [#allocation0], 512
    %8 = vsyncpa [#allocation0], 1

// kernel: custom-call.8
$region0: #{custom-call.8}
  %s0 = inlined_call_operand.hbm [shape: c64[8,8,4,4,4], index: 0, kind: input, shape index: {}]
  %s1 = inlined_call_operand.vmem [shape: f32[8,8,4,4,4], index: 1, kind: output, shape index: {}]
  $region1: #{custom-call.8} parent=0
    #allocation0 [shape = 's32[1]{0}', space=sflag, size = 0x4, scoped, tag = 'scoped memory for custom-call.8']
    %2 = vsyncpa [#allocation0], 0
    %s3 = sshll.u32 %s1, 4
    %s4 = int_to_ptr.vmem [resolvable:$true] %s3
    %6 = dma.hbm_to_vmem [thread:$0]  %s0, 8192, %s4, [#allocation0]
    %7 = dma.done [#allocation0], 8192
    %8 = vsyncpa [#allocation0], 1

// kernel: custom-call.5
$region0: #{custom-call.5}
  %s0 = inlined_call_operand.hbm [shape: c64[8], index: 0, kind: input, shape index: {}]
  %s1 = inlined_call_operand.vmem [shape: f32[8], index: 1, kind: output, shape index: {}]
  %s2 = scalar_lea.hbm %s0, 16
  $region1: #{custom-call.5} parent=0
    #allocation0 [shape = 's32[1]{0}', space=sflag, size = 0x4, scoped, tag = 'scoped memory for custom-call.5']
    %3 = vsyncpa [#allocation0], 0
    %s4 = sshll.u32 %s1, 4
    %s5 = int_to_ptr.vmem [resolvable:$true] %s4
    %7 = dma.hbm_to_vmem [thread:$0]  %s2, 16, %s5, [#allocation0]
    %8 = dma.done [#allocation0], 16
    %9 = vsyncpa [#allocation0], 1

// kernel: custom-call.9
$region0: #{custom-call.9}
  %s0 = inlined_call_operand.hbm [shape: c64[8,8,4,4,4], index: 0, kind: input, shape index: {}]
  %s1 = inlined_call_operand.vmem [shape: f32[8,8,4,4,4], index: 1, kind: output, shape index: {}]
  %s2 = scalar_lea.hbm %s0, 8192
  $region1: #{custom-call.9} parent=0
    #allocation0 [shape = 's32[1]{0}', space=sflag, size = 0x4, scoped, tag = 'scoped memory for custom-call.9']
    %3 = vsyncpa [#allocation0], 0
    %s4 = sshll.u32 %s1, 4
    %s5 = int_to_ptr.vmem [resolvable:$true] %s4
    %7 = dma.hbm_to_vmem [thread:$0]  %s2, 8192, %s5, [#allocation0]
    %8 = dma.done [#allocation0], 8192
    %9 = vsyncpa [#allocation0], 1

// kernel: lno3d_forward.5
$region0: #{lno3d_forward.5}
  #allocation0 [shape = 'u32[]', space=smem, size = 0x4, offset = 0x4, fixed_abs, tag = 'smem constant byte address 0x4 - core index']
  #allocation1 [shape = 'u32[144,128]{1,0:T(1,128)}', space=vmem, size = 0x12000, scoped, tag = 'internal scratch']
  %s0 = inlined_call_operand.vmem [shape: f32[2,4,512], index: 0, kind: input, shape index: {}]
  %s1 = inlined_call_operand.vmem [shape: f32[8,4], index: 1, kind: input, shape index: {}]
  %s2 = inlined_call_operand.vmem [shape: f32[8,1], index: 2, kind: input, shape index: {}]
  %s3 = inlined_call_operand.vmem [shape: f32[2,8,512], index: 3, kind: output, shape index: {}]
  %s4 = sld [smem:[#allocation0]]
  $region102: #{lno3d_forward.5} parent=0
    _
  %s6 = ssub.s32 1, %s4
  %s7 = scalar_select 0, %s6, %s4
  $region1: #{lno3d_forward.5} parent=0
    #allocation2 [shape = 'u8[16384]{0}', space=vmem, size = 0x4000, scoped, tag = 'input window, operand 0']
    #allocation3 [shape = 'u8[32768]{0}', space=vmem, size = 0x8000, scoped, tag = 'output window, operand 0']
    loop: start=0, step=1, limit=4
    $region2: #{lno3d_forward.5} parent=1 // loop_pre_header
      _
    $region3: #{lno3d_forward.5} parent=1 // loop_header
      %s9 = sphi 0, %s13
      %p10 = scmp.ge.s32.totalorder %s9, 4
      %s19 = sphi 0, %s21
      %s22 = sphi 0, %s19
      %s23 = sphi 0, %s22
      %s39 = sphi 0, %s23
      %s43 = sphi 0, %s43
      %s45 = sphi 0, %s43
      %s46 = sphi 0, %s45
      %s60 = sphi 0, %s46
      %s64 = sphi 0, %s64
      %s66 = sphi 0, %s64
      %s67 = sphi 0, %s66
      %s81 = sphi 0, %s67
      %s87 = sphi 0, %s89
      %s90 = sphi 0, %s87
      %s91 = sphi 0, %s90
      %s107 = sphi 0, %s91
    $region4: #{lno3d_forward.5} parent=1 // loop_header_branch
      %12 = sbr.rel (%p10) target = $region8
    $region5: #{lno3d_forward.5} parent=1 // loop_body
      %s14 = ssub.s32 %s9, 1
      %s15 = ssub.s32 %s9, 2
      %s16 = sadd.s32 %s9, 1
      %s17 = ssub.s32 %s9, %s16
      %p18 = scmp.eq.s32.totalorder %s17, 0
      %s20 = sadd.s32 %s19, 1
      %s21 = scalar_select %p18, %s19, %s20
      %p24 = pneg %p18
      %p25 = scmp.eq.s32.totalorder %s9, 1
      %p26 = por %p24, %p25
      %p27 = scmp.ne.s32.totalorder %s19, %s22
      %p28 = scmp.eq.s32.totalorder %s9, 0
      %p29 = por %p27, %p28
      %p30 = scmp.ne.s32.totalorder %s19, %s22
      %p31 = scmp.eq.s32.totalorder %s14, 1
      %p32 = por %p30, %p31
      %p33 = scmp.ne.s32.totalorder %s22, %s23
      %p34 = scmp.eq.s32.totalorder %s14, 0
      %p35 = por %p33, %p34
      %p36 = scmp.ne.s32.totalorder %s22, %s23
      %p37 = scmp.eq.s32.totalorder %s15, 1
      %p38 = por %p36, %p37
      %p40 = scmp.ne.s32.totalorder %s23, %s39
      %p41 = scmp.eq.s32.totalorder %s15, 0
      %p42 = por %p40, %p41
      %s44 = sadd.s32 %s43, 1
      %p47 = scmp.eq.s32.totalorder %s9, 1
      %p48 = scmp.ne.s32.totalorder %s43, %s45
      %p49 = scmp.eq.s32.totalorder %s9, 0
      %p50 = por %p48, %p49
      %p51 = scmp.ne.s32.totalorder %s43, %s45
      %p52 = scmp.eq.s32.totalorder %s14, 1
      %p53 = por %p51, %p52
      %p54 = scmp.ne.s32.totalorder %s45, %s46
      %p55 = scmp.eq.s32.totalorder %s14, 0
      %p56 = por %p54, %p55
      %p57 = scmp.ne.s32.totalorder %s45, %s46
      %p58 = scmp.eq.s32.totalorder %s15, 1
      %p59 = por %p57, %p58
      %p61 = scmp.ne.s32.totalorder %s46, %s60
      %p62 = scmp.eq.s32.totalorder %s15, 0
      %p63 = por %p61, %p62
      %s65 = sadd.s32 %s64, 1
      %p68 = scmp.eq.s32.totalorder %s9, 1
      %p69 = scmp.ne.s32.totalorder %s64, %s66
      %p70 = scmp.eq.s32.totalorder %s9, 0
      %p71 = por %p69, %p70
      %p72 = scmp.ne.s32.totalorder %s64, %s66
      %p73 = scmp.eq.s32.totalorder %s14, 1
      %p74 = por %p72, %p73
      %p75 = scmp.ne.s32.totalorder %s66, %s67
      %p76 = scmp.eq.s32.totalorder %s14, 0
      %p77 = por %p75, %p76
      %p78 = scmp.ne.s32.totalorder %s66, %s67
      %p79 = scmp.eq.s32.totalorder %s15, 1
      %p80 = por %p78, %p79
      %p82 = scmp.ne.s32.totalorder %s67, %s81
      %p83 = scmp.eq.s32.totalorder %s15, 0
      %p84 = por %p82, %p83
      %s85 = ssub.s32 %s9, %s16
      %p86 = scmp.eq.s32.totalorder %s85, 0
      %s88 = sadd.s32 %s87, 1
      %s89 = scalar_select %p86, %s87, %s88
      %p92 = pneg %p86
      %p93 = scmp.eq.s32.totalorder %s9, 1
      %p94 = por %p92, %p93
      %p95 = scmp.ne.s32.totalorder %s87, %s90
      %p96 = scmp.eq.s32.totalorder %s9, 0
      %p97 = por %p95, %p96
      %p98 = scmp.ne.s32.totalorder %s87, %s90
      %p99 = scmp.eq.s32.totalorder %s14, 1
      %p100 = por %p98, %p99
      %p101 = scmp.ne.s32.totalorder %s90, %s91
      %p102 = scmp.eq.s32.totalorder %s14, 0
      %p103 = por %p101, %p102
      %p104 = scmp.ne.s32.totalorder %s90, %s91
      %p105 = scmp.eq.s32.totalorder %s15, 1
      %p106 = por %p104, %p105
      %p108 = scmp.ne.s32.totalorder %s91, %s107
      %p109 = scmp.eq.s32.totalorder %s15, 0
      %p110 = por %p108, %p109
      %p111 = scmp.le.s32.totalorder 1, %s9
      %p112 = scmp.lt.s32.totalorder %s9, 3
      %p113 = pnand %p111, %p112
      %p114 = pneg %p113
      // Predicated region
      $region9: #{lno3d_forward.5} parent=5 // pred_check
        _
      $region10: #{lno3d_forward.5} parent=5 // pred_check_branch
        %116 = sbr.rel (%p113) target = $region12
      $region11: #{lno3d_forward.5} parent=5 // pred_region
        %s117 = ssub.s32 %s9, 1
        // Predicated region
        $region13: #{lno3d_forward.5} parent=11 // pred_check
          %p118 = pneg %p56
        $region14: #{lno3d_forward.5} parent=11 // pred_check_branch
          %120 = sbr.rel (%p118) target = $region16
        $region15: #{lno3d_forward.5} parent=11 // pred_region
          _
        $region16: #{lno3d_forward.5} parent=11 // pred_fallthru
          _
        // Predicated region
        $region17: #{lno3d_forward.5} parent=11 // pred_check
          %p121 = pneg %p77
        $region18: #{lno3d_forward.5} parent=11 // pred_check_branch
          %123 = sbr.rel (%p121) target = $region20
        $region19: #{lno3d_forward.5} parent=11 // pred_region
          _
        $region20: #{lno3d_forward.5} parent=11 // pred_fallthru
          _
      $region12: #{lno3d_forward.5} parent=5 // pred_fallthru
        _
      %p124 = scmp.lt.s32.totalorder %s9, 2
      // Predicated region
      $region21: #{lno3d_forward.5} parent=5 // pred_check
        %p125 = pneg %p124
      $region22: #{lno3d_forward.5} parent=5 // pred_check_branch
        %127 = sbr.rel (%p125) target = $region24
      $region23: #{lno3d_forward.5} parent=5 // pred_region
        // Predicated region
        $region25: #{lno3d_forward.5} parent=23 // pred_check
          %p128 = pneg %p29
        $region26: #{lno3d_forward.5} parent=23 // pred_check_branch
          %130 = sbr.rel (%p128) target = $region28
        $region27: #{lno3d_forward.5} parent=23 // pred_region
          %s131 = sand.u32 %s19, 1
          %s132 = sand.u32 %s19, 1
          %s133 = smul.addr %s132, 16
          %s134 = scalar_lea.vmem [#allocation2], %s133
          %s135 = smul.u32 2, %s9
          %s136 = smul.addr %s135, 4
          %s137 = scalar_lea.vmem %s0, %s136
          // Predicated region
          $region29: #{lno3d_forward.5} parent=27 // pred_check
            _
          $region30: #{lno3d_forward.5} parent=27 // pred_check_branch
            %139 = sbr.rel (0) target = $region32
          $region31: #{lno3d_forward.5} parent=27 // pred_region
            // Predicated region
            $region33: #{lno3d_forward.5} parent=31 // pred_check
              _
            $region34: #{lno3d_forward.5} parent=31 // pred_check_branch
              %141 = sbr.rel (0) target = $region36
            $region35: #{lno3d_forward.5} parent=31 // pred_region
              // Predicated region
              $region48: #{lno3d_forward.5} parent=35 // pred_check
                _
              $region49: #{lno3d_forward.5} parent=35 // pred_check_branch
                %158 = sbr.rel (0) target = $region51
              $region50: #{lno3d_forward.5} parent=35 // pred_region
                loop: start=0, step=1, limit=1
                $region52: #{lno3d_forward.5} parent=50 // loop_pre_header
                  _
                $region53: #{lno3d_forward.5} parent=50 // loop_header
                  %s160 = sphi 0, %s164
                  %p161 = scmp.ge.s32.totalorder %s160, 1
                  %s165 = sphi %s137, %s137
                  %s166 = sphi %s134, %s134
                $region54: #{lno3d_forward.5} parent=50 // loop_header_branch
                  %163 = sbr.rel (%p161) target = $region58
                $region55: #{lno3d_forward.5} parent=50 // loop_body
                  %v167 = vld [vmem:[%s165] sm:$0xff]
                  %168 = vst [vmem:[%s166] sm:$0xff] %v167
                  %v169 = vld [vmem:[%s165 + $0x10] sm:$0xff]
                  %170 = vst [vmem:[%s166 + $0x8] sm:$0xff] %v169
                $region56: #{lno3d_forward.5} parent=50 // loop_footer
                  %s164 = sadd.s32 1, %s160
                $region57: #{lno3d_forward.5} parent=50 // loop_footer_branch
                  %159 = sbr.rel target = $region53
                $region58: #{lno3d_forward.5} parent=50 // loop_exit
                  _
              $region51: #{lno3d_forward.5} parent=35 // pred_fallthru
                _
              // Predicated region
              $region59: #{lno3d_forward.5} parent=35 // pred_check
                _
              $region60: #{lno3d_forward.5} parent=35 // pred_check_branch
                %172 = sbr.rel target = $region62
              $region61: #{lno3d_forward.5} parent=35 // pred_region
                _
              $region62: #{lno3d_forward.5} parent=35 // pred_fallthru
                _
            $region36: #{lno3d_forward.5} parent=31 // pred_fallthru
              _
            // Predicated region
            $region37: #{lno3d_forward.5} parent=31 // pred_check
              _
            $region38: #{lno3d_forward.5} parent=31 // pred_check_branch
              %143 = sbr.rel target = $region40
            $region39: #{lno3d_forward.5} parent=31 // pred_region
              loop: start=0, step=1, limit=1
              $region41: #{lno3d_forward.5} parent=39 // loop_pre_header
                _
              $region42: #{lno3d_forward.5} parent=39 // loop_header
                %s146 = sphi 0, %s150
                %p147 = scmp.ge.s32.totalorder %s146, 1
                %s151 = sphi %s137, %s137
                %s152 = sphi %s134, %s134
              $region43: #{lno3d_forward.5} parent=39 // loop_header_branch
                %149 = sbr.rel (%p147) target = $region47
              $region44: #{lno3d_forward.5} parent=39 // loop_body
                %v153 = vld [vmem:[%s151] sm:$0xff]
                %154 = vst [vmem:[%s152] sm:$0xff] %v153
                %v155 = vld [vmem:[%s151 + $0x10] sm:$0xff]
                %156 = vst [vmem:[%s152 + $0x8] sm:$0xff] %v155
              $region45: #{lno3d_forward.5} parent=39 // loop_footer
                %s150 = sadd.s32 1, %s146
              $region46: #{lno3d_forward.5} parent=39 // loop_footer_branch
                %145 = sbr.rel target = $region42
              $region47: #{lno3d_forward.5} parent=39 // loop_exit
                _
            $region40: #{lno3d_forward.5} parent=31 // pred_fallthru
              _
          $region32: #{lno3d_forward.5} parent=27 // pred_fallthru
            _
          %173 = vnop
        $region28: #{lno3d_forward.5} parent=23 // pred_fallthru
          _
      $region24: #{lno3d_forward.5} parent=5 // pred_fallthru
        _
      %p174 = scmp.le.s32.totalorder 1, %s9
      %p175 = scmp.lt.s32.totalorder %s9, 3
      %p176 = pnand %p174, %p175
      %p177 = pneg %p176
      // Predicated region
      $region63: #{lno3d_forward.5} parent=5 // pred_check
        _
      $region64: #{lno3d_forward.5} parent=5 // pred_check_branch
        %179 = sbr.rel (%p176) target = $region66
      $region65: #{lno3d_forward.5} parent=5 // pred_region
        %s180 = ssub.s32 %s9, 1
        %s181 = sand.u32 %s22, 1
        %s182 = sand.u32 %s22, 1
        %s183 = smul.addr %s182, 16
        %s184 = scalar_lea.vmem [#allocation2], %s183
        // Predicated region
        $region67: #{lno3d_forward.5} parent=65 // pred_check
          %p185 = pneg %p35
        $region68: #{lno3d_forward.5} parent=65 // pred_check_branch
          %187 = sbr.rel (%p185) target = $region70
        $region69: #{lno3d_forward.5} parent=65 // pred_region
          _
        $region70: #{lno3d_forward.5} parent=65 // pred_fallthru
          _
        %s188 = sand.u32 %s22, 1
        %s189 = sand.u32 %s22, 1
        %s190 = smul.addr %s189, 16
        %s191 = scalar_lea.vmem [#allocation2], %s190
        %p192 = pneg %p35
        %p193 = pneg %p32
        %p194 = pneg %p56
        %p195 = pneg %p53
        %p196 = pneg %p77
        %p197 = pneg %p74
        %p198 = pneg %p103
        %p199 = pneg %p100
        %s200 = sand.u32 %s90, 1
        %s201 = sand.u32 %s90, 1
        %s202 = smul.addr %s201, 32
        %s203 = scalar_lea.vmem [#allocation3], %s202
        %s204 = smul.u32 2, %s14
        %s205 = smul.u32 2, %s14
        %v206 = vld [vmem:[%s1] sm:$0xff]
        %v207 = vld [vmem:[%s2] sm:$0xff]
        %v208 = vld [vmem:[%s184] sm:$0xff]
        %210 = vset.pattern.permute.xlu0 0
        %211 = vperm.xlu0 %210, %v207
        %v212 = vpop.permute.xlu0 %211
        %v215 = vcombine.high %v208, %v208
        %vm216 = vcmask 31744
        %v218 = vsel %vm216, %v206, 0
        %vm220 = vcmask 1043456
        %v221 = vsel %vm220, %v208, 0
        %v223 = vsel %vm220, %v215, 0
        %v225 = vand.u32 %v223, 4294901760
        %226 = vmatprep.subr.mxu0 %v225
        %v227 = vand.u32 %v221, 4294901760
        %228 = vmatpush1.msra.mxu0 %v227
        %229 = vmatprep.subr.mxu0 0.0
        %230 = vmatpush1.msra.mxu0 0.0
        %231 = vmatprep.subr.mxu0 0.0
        %232 = vmatpush1.msra.mxu0 0.0
        %233 = vmatprep.subr.mxu0 0.0
        %234 = vmatpush1.msra.mxu0 0.0
        %235 = vmatprep.subr.mxu0 0.0
        %236 = vmatpush1.msra.mxu0 0.0
        %237 = vmatprep.subr.mxu0 0.0
        %238 = vmatpush1.msra.mxu0 0.0
        %239 = vmatprep.subr.mxu0 0.0
        %240 = vmatpush1.msra.mxu0 0.0
        %241 = vmatprep.subr.mxu0 0.0
        %242 = vmatpush1.msra.mxu0 0.0
        %243 = vmatprep.subr.mxu0 0.0
        %244 = vmatpush1.msra.mxu0 0.0
        %245 = vmatprep.subr.mxu0 0.0
        %246 = vmatpush1.msra.mxu0 0.0
        %247 = vmatprep.subr.mxu0 0.0
        %248 = vmatpush1.msra.mxu0 0.0
        %249 = vmatprep.subr.mxu0 0.0
        %250 = vmatpush1.msra.mxu0 0.0
        %251 = vmatprep.subr.mxu0 0.0
        %252 = vmatpush1.msra.mxu0 0.0
        %253 = vmatprep.subr.mxu0 0.0
        %254 = vmatpush1.msra.mxu0 0.0
        %255 = vmatprep.subr.mxu0 0.0
        %256 = vmatpush1.msra.mxu0 0.0
        %257 = vmatprep.subr.mxu0 0.0
        %258 = vmatpush1.msra.mxu0 0.0
        %259 = vmatprep.subr.mxu0 0.0
        %260 = vmatpush1.msra.mxu0 0.0
        %261 = vmatprep.subr.mxu0 0.0
        %262 = vmatpush1.msra.mxu0 0.0
        %263 = vmatprep.subr.mxu0 0.0
        %264 = vmatpush1.msra.mxu0 0.0
        %265 = vmatprep.subr.mxu0 0.0
        %266 = vmatpush1.msra.mxu0 0.0
        %267 = vmatprep.subr.mxu0 0.0
        %268 = vmatpush1.msra.mxu0 0.0
        %269 = vmatprep.subr.mxu0 0.0
        %270 = vmatpush1.msra.mxu0 0.0
        %271 = vmatprep.subr.mxu0 0.0
        %272 = vmatpush1.msra.mxu0 0.0
        %273 = vmatprep.subr.mxu0 0.0
        %274 = vmatpush1.msra.mxu0 0.0
        %275 = vmatprep.subr.mxu0 0.0
        %276 = vmatpush1.msra.mxu0 0.0
        %277 = vmatprep.subr.mxu0 0.0
        %278 = vmatpush1.msra.mxu0 0.0
        %279 = vmatprep.subr.mxu0 0.0
        %280 = vmatpush1.msra.mxu0 0.0
        %281 = vmatprep.subr.mxu0 0.0
        %282 = vmatpush1.msra.mxu0 0.0
        %283 = vmatprep.subr.mxu0 0.0
        %284 = vmatpush1.msra.mxu0 0.0
        %285 = vmatprep.subr.mxu0 0.0
        %286 = vmatpush1.msra.mxu0 0.0
        %287 = vmatprep.subr.mxu0 0.0
        %288 = vmatpush1.msra.mxu0 0.0
        %289 = vmatprep.subr.mxu0 0.0
        %290 = vmatpush1.msra.mxu0 0.0
        %291 = vmatprep.mubr.f32.mxu0 0.0
        %v292 = vand.u32 %v218, 4294901760
        %v293 = vsub.f32 %v218, %v292
        %v294 = vand.u32 %v293, 4294901760
        %v295 = vsub.f32 %v293, %v294
        %v296 = vand.u32 %v295, 4294901760
        %297 = vmatmul.mubr.f32.gmra.mrb[0].mxu0 %v296
        %v298 = vpop.f32.mrb[0].mxu0
        %v299 = vadd.f32 %v212, %v298
        %v300 = vpop.f32.mrb[0].mxu0
        %v301 = vadd.f32 %v212, %v300
        %302 = vdwg.mxu0
        %v303 = vand.u32 %v223, 4294901760
        %v304 = vsub.f32 %v223, %v303
        %v305 = vand.u32 %v304, 4294901760
        %v306 = vsub.f32 %v304, %v305
        %v307 = vand.u32 %v306, 4294901760
        %308 = vmatprep.subr.mxu0 %v307
        %v309 = vand.u32 %v221, 4294901760
        %v310 = vsub.f32 %v221, %v309
        %v311 = vand.u32 %v310, 4294901760
        %v312 = vsub.f32 %v310, %v311
        %v313 = vand.u32 %v312, 4294901760
        %314 = vmatpush1.msra.mxu0 %v313
        %315 = vmatprep.subr.mxu0 0.0
        %316 = vmatpush1.msra.mxu0 0.0
        %317 = vmatprep.subr.mxu0 0.0
        %318 = vmatpush1.msra.mxu0 0.0
        %319 = vmatprep.subr.mxu0 0.0
        %320 = vmatpush1.msra.mxu0 0.0
        %321 = vmatprep.subr.mxu0 0.0
        %322 = vmatpush1.msra.mxu0 0.0
        %323 = vmatprep.subr.mxu0 0.0
        %324 = vmatpush1.msra.mxu0 0.0
        %325 = vmatprep.subr.mxu0 0.0
        %326 = vmatpush1.msra.mxu0 0.0
        %327 = vmatprep.subr.mxu0 0.0
        %328 = vmatpush1.msra.mxu0 0.0
        %329 = vmatprep.subr.mxu0 0.0
        %330 = vmatpush1.msra.mxu0 0.0
        %331 = vmatprep.subr.mxu0 0.0
        %332 = vmatpush1.msra.mxu0 0.0
        %333 = vmatprep.subr.mxu0 0.0
        %334 = vmatpush1.msra.mxu0 0.0
        %335 = vmatprep.subr.mxu0 0.0
        %336 = vmatpush1.msra.mxu0 0.0
        %337 = vmatprep.subr.mxu0 0.0
        %338 = vmatpush1.msra.mxu0 0.0
        %339 = vmatprep.subr.mxu0 0.0
        %340 = vmatpush1.msra.mxu0 0.0
        %341 = vmatprep.subr.mxu0 0.0
        %342 = vmatpush1.msra.mxu0 0.0
        %343 = vmatprep.subr.mxu0 0.0
        %344 = vmatpush1.msra.mxu0 0.0
        %345 = vmatprep.subr.mxu0 0.0
        %346 = vmatpush1.msra.mxu0 0.0
        %347 = vmatprep.subr.mxu0 0.0
        %348 = vmatpush1.msra.mxu0 0.0
        %349 = vmatprep.subr.mxu0 0.0
        %350 = vmatpush1.msra.mxu0 0.0
        %351 = vmatprep.subr.mxu0 0.0
        %352 = vmatpush1.msra.mxu0 0.0
        %353 = vmatprep.subr.mxu0 0.0
        %354 = vmatpush1.msra.mxu0 0.0
        %355 = vmatprep.subr.mxu0 0.0
        %356 = vmatpush1.msra.mxu0 0.0
        %357 = vmatprep.subr.mxu0 0.0
        %358 = vmatpush1.msra.mxu0 0.0
        %359 = vmatprep.subr.mxu0 0.0
        %360 = vmatpush1.msra.mxu0 0.0
        %361 = vmatprep.subr.mxu0 0.0
        %362 = vmatpush1.msra.mxu0 0.0
        %363 = vmatprep.subr.mxu0 0.0
        %364 = vmatpush1.msra.mxu0 0.0
        %365 = vmatprep.subr.mxu0 0.0
        %366 = vmatpush1.msra.mxu0 0.0
        %367 = vmatprep.subr.mxu0 0.0
        %368 = vmatpush1.msra.mxu0 0.0
        %369 = vmatprep.subr.mxu0 0.0
        %370 = vmatpush1.msra.mxu0 0.0
        %371 = vmatprep.subr.mxu0 0.0
        %372 = vmatpush1.msra.mxu0 0.0
        %373 = vmatprep.subr.mxu0 0.0
        %374 = vmatpush1.msra.mxu0 0.0
        %375 = vmatprep.subr.mxu0 0.0
        %376 = vmatpush1.msra.mxu0 0.0
        %377 = vmatprep.mubr.f32.mxu0 0.0
        %v378 = vand.u32 %v218, 4294901760
        %379 = vmatmul.mubr.f32.gmra.mrb[0].mxu0 %v378
        %v380 = vpop.f32.mrb[0].mxu0
        %v381 = vadd.f32 %v299, %v380
        %v382 = vpop.f32.mrb[0].mxu0
        %v383 = vadd.f32 %v301, %v382
        %384 = vdwg.mxu0
        %v385 = vand.u32 %v223, 4294901760
        %v386 = vsub.f32 %v223, %v385
        %387 = vmatprep.subr.mxu0 %v386
        %v388 = vand.u32 %v221, 4294901760
        %v389 = vsub.f32 %v221, %v388
        %390 = vmatpush1.msra.mxu0 %v389
        %391 = vmatprep.subr.mxu0 0.0
        %392 = vmatpush1.msra.mxu0 0.0
        %393 = vmatprep.subr.mxu0 0.0
        %394 = vmatpush1.msra.mxu0 0.0
        %395 = vmatprep.subr.mxu0 0.0
        %396 = vmatpush1.msra.mxu0 0.0
        %397 = vmatprep.subr.mxu0 0.0
        %398 = vmatpush1.msra.mxu0 0.0
        %399 = vmatprep.subr.mxu0 0.0
        %400 = vmatpush1.msra.mxu0 0.0
        %401 = vmatprep.subr.mxu0 0.0
        %402 = vmatpush1.msra.mxu0 0.0
        %403 = vmatprep.subr.mxu0 0.0
        %404 = vmatpush1.msra.mxu0 0.0
        %405 = vmatprep.subr.mxu0 0.0
        %406 = vmatpush1.msra.mxu0 0.0
        %407 = vmatprep.subr.mxu0 0.0
        %408 = vmatpush1.msra.mxu0 0.0
        %409 = vmatprep.subr.mxu0 0.0
        %410 = vmatpush1.msra.mxu0 0.0
        %411 = vmatprep.subr.mxu0 0.0
        %412 = vmatpush1.msra.mxu0 0.0
        %413 = vmatprep.subr.mxu0 0.0
        %414 = vmatpush1.msra.mxu0 0.0
        %415 = vmatprep.subr.mxu0 0.0
        %416 = vmatpush1.msra.mxu0 0.0
        %417 = vmatprep.subr.mxu0 0.0
        %418 = vmatpush1.msra.mxu0 0.0
        %419 = vmatprep.subr.mxu0 0.0
        %420 = vmatpush1.msra.mxu0 0.0
        %421 = vmatprep.subr.mxu0 0.0
        %422 = vmatpush1.msra.mxu0 0.0
        %423 = vmatprep.subr.mxu0 0.0
        %424 = vmatpush1.msra.mxu0 0.0
        %425 = vmatprep.subr.mxu0 0.0
        %426 = vmatpush1.msra.mxu0 0.0
        %427 = vmatprep.subr.mxu0 0.0
        %428 = vmatpush1.msra.mxu0 0.0
        %429 = vmatprep.subr.mxu0 0.0
        %430 = vmatpush1.msra.mxu0 0.0
        %431 = vmatprep.subr.mxu0 0.0
        %432 = vmatpush1.msra.mxu0 0.0
        %433 = vmatprep.subr.mxu0 0.0
        %434 = vmatpush1.msra.mxu0 0.0
        %435 = vmatprep.subr.mxu0 0.0
        %436 = vmatpush1.msra.mxu0 0.0
        %437 = vmatprep.subr.mxu0 0.0
        %438 = vmatpush1.msra.mxu0 0.0
        %439 = vmatprep.subr.mxu0 0.0
        %440 = vmatpush1.msra.mxu0 0.0
        %441 = vmatprep.subr.mxu0 0.0
        %442 = vmatpush1.msra.mxu0 0.0
        %443 = vmatprep.subr.mxu0 0.0
        %444 = vmatpush1.msra.mxu0 0.0
        %445 = vmatprep.subr.mxu0 0.0
        %446 = vmatpush1.msra.mxu0 0.0
        %447 = vmatprep.subr.mxu0 0.0
        %448 = vmatpush1.msra.mxu0 0.0
        %449 = vmatprep.subr.mxu0 0.0
        %450 = vmatpush1.msra.mxu0 0.0
        %451 = vmatprep.subr.mxu0 0.0
        %452 = vmatpush1.msra.mxu0 0.0
        %453 = vmatprep.mubr.f32.mxu0 0.0
        %v454 = vand.u32 %v218, 4294901760
        %v455 = vsub.f32 %v218, %v454
        %456 = vmatmul.mubr.f32.gmra.mrb[0].mxu0 %v455
        %v457 = vpop.f32.mrb[0].mxu0
        %v458 = vadd.f32 %v381, %v457
        %v459 = vpop.f32.mrb[0].mxu0
        %v460 = vadd.f32 %v383, %v459
        %461 = vdwg.mxu0
        %v462 = vand.u32 %v223, 4294901760
        %463 = vmatprep.subr.mxu0 %v462
        %v464 = vand.u32 %v221, 4294901760
        %465 = vmatpush1.msra.mxu0 %v464
        %466 = vmatprep.subr.mxu0 0.0
        %467 = vmatpush1.msra.mxu0 0.0
        %468 = vmatprep.subr.mxu0 0.0
        %469 = vmatpush1.msra.mxu0 0.0
        %470 = vmatprep.subr.mxu0 0.0
        %471 = vmatpush1.msra.mxu0 0.0
        %472 = vmatprep.subr.mxu0 0.0
        %473 = vmatpush1.msra.mxu0 0.0
        %474 = vmatprep.subr.mxu0 0.0
        %475 = vmatpush1.msra.mxu0 0.0
        %476 = vmatprep.subr.mxu0 0.0
        %477 = vmatpush1.msra.mxu0 0.0
        %478 = vmatprep.subr.mxu0 0.0
        %479 = vmatpush1.msra.mxu0 0.0
        %480 = vmatprep.subr.mxu0 0.0
        %481 = vmatpush1.msra.mxu0 0.0
        %482 = vmatprep.subr.mxu0 0.0
        %483 = vmatpush1.msra.mxu0 0.0
        %484 = vmatprep.subr.mxu0 0.0
        %485 = vmatpush1.msra.mxu0 0.0
        %486 = vmatprep.subr.mxu0 0.0
        %487 = vmatpush1.msra.mxu0 0.0
        %488 = vmatprep.subr.mxu0 0.0
        %489 = vmatpush1.msra.mxu0 0.0
        %490 = vmatprep.subr.mxu0 0.0
        %491 = vmatpush1.msra.mxu0 0.0
        %492 = vmatprep.subr.mxu0 0.0
        %493 = vmatpush1.msra.mxu0 0.0
        %494 = vmatprep.subr.mxu0 0.0
        %495 = vmatpush1.msra.mxu0 0.0
        %496 = vmatprep.subr.mxu0 0.0
        %497 = vmatpush1.msra.mxu0 0.0
        %498 = vmatprep.subr.mxu0 0.0
        %499 = vmatpush1.msra.mxu0 0.0
        %500 = vmatprep.subr.mxu0 0.0
        %501 = vmatpush1.msra.mxu0 0.0
        %502 = vmatprep.subr.mxu0 0.0
        %503 = vmatpush1.msra.mxu0 0.0
        %504 = vmatprep.subr.mxu0 0.0
        %505 = vmatpush1.msra.mxu0 0.0
        %506 = vmatprep.subr.mxu0 0.0
        %507 = vmatpush1.msra.mxu0 0.0
        %508 = vmatprep.subr.mxu0 0.0
        %509 = vmatpush1.msra.mxu0 0.0
        %510 = vmatprep.subr.mxu0 0.0
        %511 = vmatpush1.msra.mxu0 0.0
        %512 = vmatprep.subr.mxu0 0.0
        %513 = vmatpush1.msra.mxu0 0.0
        %514 = vmatprep.subr.mxu0 0.0
        %515 = vmatpush1.msra.mxu0 0.0
        %516 = vmatprep.subr.mxu0 0.0
        %517 = vmatpush1.msra.mxu0 0.0
        %518 = vmatprep.subr.mxu0 0.0
        %519 = vmatpush1.msra.mxu0 0.0
        %520 = vmatprep.subr.mxu0 0.0
        %521 = vmatpush1.msra.mxu0 0.0
        %522 = vmatprep.subr.mxu0 0.0
        %523 = vmatpush1.msra.mxu0 0.0
        %524 = vmatprep.subr.mxu0 0.0
        %525 = vmatpush1.msra.mxu0 0.0
        %526 = vmatprep.subr.mxu0 0.0
        %527 = vmatpush1.msra.mxu0 0.0
        %528 = vmatprep.mubr.f32.mxu0 0.0
        %v529 = vand.u32 %v218, 4294901760
        %v530 = vsub.f32 %v218, %v529
        %v531 = vand.u32 %v530, 4294901760
        %532 = vmatmul.mubr.f32.gmra.mrb[0].mxu0 %v531
        %v533 = vpop.f32.mrb[0].mxu0
        %v534 = vadd.f32 %v458, %v533
        %v535 = vpop.f32.mrb[0].mxu0
        %v536 = vadd.f32 %v460, %v535
        %537 = vdwg.mxu0
        %v538 = vand.u32 %v223, 4294901760
        %v539 = vsub.f32 %v223, %v538
        %v540 = vand.u32 %v539, 4294901760
        %541 = vmatprep.subr.mxu0 %v540
        %v542 = vand.u32 %v221, 4294901760
        %v543 = vsub.f32 %v221, %v542
        %v544 = vand.u32 %v543, 4294901760
        %545 = vmatpush1.msra.mxu0 %v544
        %546 = vmatprep.subr.mxu0 0.0
        %547 = vmatpush1.msra.mxu0 0.0
        %548 = vmatprep.subr.mxu0 0.0
        %549 = vmatpush1.msra.mxu0 0.0
        %550 = vmatprep.subr.mxu0 0.0
        %551 = vmatpush1.msra.mxu0 0.0
        %552 = vmatprep.subr.mxu0 0.0
        %553 = vmatpush1.msra.mxu0 0.0
        %554 = vmatprep.subr.mxu0 0.0
        %555 = vmatpush1.msra.mxu0 0.0
        %556 = vmatprep.subr.mxu0 0.0
        %557 = vmatpush1.msra.mxu0 0.0
        %558 = vmatprep.subr.mxu0 0.0
        %559 = vmatpush1.msra.mxu0 0.0
        %560 = vmatprep.subr.mxu0 0.0
        %561 = vmatpush1.msra.mxu0 0.0
        %562 = vmatprep.subr.mxu0 0.0
        %563 = vmatpush1.msra.mxu0 0.0
        %564 = vmatprep.subr.mxu0 0.0
        %565 = vmatpush1.msra.mxu0 0.0
        %566 = vmatprep.subr.mxu0 0.0
        %567 = vmatpush1.msra.mxu0 0.0
        %568 = vmatprep.subr.mxu0 0.0
        %569 = vmatpush1.msra.mxu0 0.0
        %570 = vmatprep.subr.mxu0 0.0
        %571 = vmatpush1.msra.mxu0 0.0
        %572 = vmatprep.subr.mxu0 0.0
        %573 = vmatpush1.msra.mxu0 0.0
        %574 = vmatprep.subr.mxu0 0.0
        %575 = vmatpush1.msra.mxu0 0.0
        %576 = vmatprep.subr.mxu0 0.0
        %577 = vmatpush1.msra.mxu0 0.0
        %578 = vmatprep.subr.mxu0 0.0
        %579 = vmatpush1.msra.mxu0 0.0
        %580 = vmatprep.subr.mxu0 0.0
        %581 = vmatpush1.msra.mxu0 0.0
        %582 = vmatprep.subr.mxu0 0.0
        %583 = vmatpush1.msra.mxu0 0.0
        %584 = vmatprep.subr.mxu0 0.0
        %585 = vmatpush1.msra.mxu0 0.0
        %586 = vmatprep.subr.mxu0 0.0
        %587 = vmatpush1.msra.mxu0 0.0
        %588 = vmatprep.subr.mxu0 0.0
        %589 = vmatpush1.msra.mxu0 0.0
        %590 = vmatprep.subr.mxu0 0.0
        %591 = vmatpush1.msra.mxu0 0.0
        %592 = vmatprep.subr.mxu0 0.0
        %593 = vmatpush1.msra.mxu0 0.0
        %594 = vmatprep.subr.mxu0 0.0
        %595 = vmatpush1.msra.mxu0 0.0
        %596 = vmatprep.subr.mxu0 0.0
        %597 = vmatpush1.msra.mxu0 0.0
        %598 = vmatprep.subr.mxu0 0.0
        %599 = vmatpush1.msra.mxu0 0.0
        %600 = vmatprep.subr.mxu0 0.0
        %601 = vmatpush1.msra.mxu0 0.0
        %602 = vmatprep.subr.mxu0 0.0
        %603 = vmatpush1.msra.mxu0 0.0
        %604 = vmatprep.subr.mxu0 0.0
        %605 = vmatpush1.msra.mxu0 0.0
        %606 = vmatprep.subr.mxu0 0.0
        %607 = vmatpush1.msra.mxu0 0.0
        %608 = vmatprep.mubr.f32.mxu0 0.0
        %v609 = vand.u32 %v218, 4294901760
        %610 = vmatmul.mubr.f32.gmra.mrb[0].mxu0 %v609
        %v611 = vpop.f32.mrb[0].mxu0
        %v612 = vadd.f32 %v534, %v611
        %v613 = vpop.f32.mrb[0].mxu0
        %v614 = vadd.f32 %v536, %v613
        %615 = vdwg.mxu0
        %v616 = vand.u32 %v223, 4294901760
        %617 = vmatprep.subr.mxu0 %v616
        %v618 = vand.u32 %v221, 4294901760
        %619 = vmatpush1.msra.mxu0 %v618
        %620 = vmatprep.subr.mxu0 0.0
        %621 = vmatpush1.msra.mxu0 0.0
        %622 = vmatprep.subr.mxu0 0.0
        %623 = vmatpush1.msra.mxu0 0.0
        %624 = vmatprep.subr.mxu0 0.0
        %625 = vmatpush1.msra.mxu0 0.0
        %626 = vmatprep.subr.mxu0 0.0
        %627 = vmatpush1.msra.mxu0 0.0
        %628 = vmatprep.subr.mxu0 0.0
        %629 = vmatpush1.msra.mxu0 0.0
        %630 = vmatprep.subr.mxu0 0.0
        %631 = vmatpush1.msra.mxu0 0.0
        %632 = vmatprep.subr.mxu0 0.0
        %633 = vmatpush1.msra.mxu0 0.0
        %634 = vmatprep.subr.mxu0 0.0
        %635 = vmatpush1.msra.mxu0 0.0
        %636 = vmatprep.subr.mxu0 0.0
        %637 = vmatpush1.msra.mxu0 0.0
        %638 = vmatprep.subr.mxu0 0.0
        %639 = vmatpush1.msra.mxu0 0.0
        %640 = vmatprep.subr.mxu0 0.0
        %641 = vmatpush1.msra.mxu0 0.0
        %642 = vmatprep.subr.mxu0 0.0
        %643 = vmatpush1.msra.mxu0 0.0
        %644 = vmatprep.subr.mxu0 0.0
        %645 = vmatpush1.msra.mxu0 0.0
        %646 = vmatprep.subr.mxu0 0.0
        %647 = vmatpush1.msra.mxu0 0.0
        %648 = vmatprep.subr.mxu0 0.0
        %649 = vmatpush1.msra.mxu0 0.0
        %650 = vmatprep.subr.mxu0 0.0
        %651 = vmatpush1.msra.mxu0 0.0
        %652 = vmatprep.subr.mxu0 0.0
        %653 = vmatpush1.msra.mxu0 0.0
        %654 = vmatprep.subr.mxu0 0.0
        %655 = vmatpush1.msra.mxu0 0.0
        %656 = vmatprep.subr.mxu0 0.0
        %657 = vmatpush1.msra.mxu0 0.0
        %658 = vmatprep.subr.mxu0 0.0
        %659 = vmatpush1.msra.mxu0 0.0
        %660 = vmatprep.subr.mxu0 0.0
        %661 = vmatpush1.msra.mxu0 0.0
        %662 = vmatprep.subr.mxu0 0.0
        %663 = vmatpush1.msra.mxu0 0.0
        %664 = vmatprep.subr.mxu0 0.0
        %665 = vmatpush1.msra.mxu0 0.0
        %666 = vmatprep.subr.mxu0 0.0
        %667 = vmatpush1.msra.mxu0 0.0
        %668 = vmatprep.subr.mxu0 0.0
        %669 = vmatpush1.msra.mxu0 0.0
        %670 = vmatprep.subr.mxu0 0.0
        %671 = vmatpush1.msra.mxu0 0.0
        %672 = vmatprep.subr.mxu0 0.0
        %673 = vmatpush1.msra.mxu0 0.0
        %674 = vmatprep.subr.mxu0 0.0
        %675 = vmatpush1.msra.mxu0 0.0
        %676 = vmatprep.subr.mxu0 0.0
        %677 = vmatpush1.msra.mxu0 0.0
        %678 = vmatprep.subr.mxu0 0.0
        %679 = vmatpush1.msra.mxu0 0.0
        %680 = vmatprep.subr.mxu0 0.0
        %681 = vmatpush1.msra.mxu0 0.0
        %682 = vmatprep.mubr.f32.mxu0 0.0
        %v683 = vand.u32 %v218, 4294901760
        %684 = vmatmul.mubr.f32.gmra.mrb[0].mxu0 %v683
        %v685 = vpop.f32.mrb[0].mxu0
        %v686 = vadd.f32 %v612, %v685
        %v687 = vpop.f32.mrb[0].mxu0
        %v688 = vadd.f32 %v614, %v687
        %689 = vdwg.mxu0
        %690 = vst [vmem:[%s203] sm:$0xff] %v686
        %691 = vst [vmem:[%s203 + $0x8] sm:$0xff] %v688
        %s692 = scalar_lea.vmem %s184, 8 [#allocation2]
        %v693 = vld [vmem:[%s692] sm:$0xff]
        %v695 = vcombine.high %v693, %v693
        %v696 = vsel %vm220, %v693, 0
        %v698 = vsel %vm220, %v695, 0
        %v700 = vand.u32 %v698, 4294901760
        %701 = vmatprep.subr.mxu0 %v700
        %v702 = vand.u32 %v696, 4294901760
        %703 = vmatpush1.msra.mxu0 %v702
        %704 = vmatprep.subr.mxu0 0.0
        %705 = vmatpush1.msra.mxu0 0.0
        %706 = vmatprep.subr.mxu0 0.0
        %707 = vmatpush1.msra.mxu0 0.0
        %708 = vmatprep.subr.mxu0 0.0
        %709 = vmatpush1.msra.mxu0 0.0
        %710 = vmatprep.subr.mxu0 0.0
        %711 = vmatpush1.msra.mxu0 0.0
        %712 = vmatprep.subr.mxu0 0.0
        %713 = vmatpush1.msra.mxu0 0.0
        %714 = vmatprep.subr.mxu0 0.0
        %715 = vmatpush1.msra.mxu0 0.0
        %716 = vmatprep.subr.mxu0 0.0
        %717 = vmatpush1.msra.mxu0 0.0
        %718 = vmatprep.subr.mxu0 0.0
        %719 = vmatpush1.msra.mxu0 0.0
        %720 = vmatprep.subr.mxu0 0.0
        %721 = vmatpush1.msra.mxu0 0.0
        %722 = vmatprep.subr.mxu0 0.0
        %723 = vmatpush1.msra.mxu0 0.0
        %724 = vmatprep.subr.mxu0 0.0
        %725 = vmatpush1.msra.mxu0 0.0
        %726 = vmatprep.subr.mxu0 0.0
        %727 = vmatpush1.msra.mxu0 0.0
        %728 = vmatprep.subr.mxu0 0.0
        %729 = vmatpush1.msra.mxu0 0.0
        %730 = vmatprep.subr.mxu0 0.0
        %731 = vmatpush1.msra.mxu0 0.0
        %732 = vmatprep.subr.mxu0 0.0
        %733 = vmatpush1.msra.mxu0 0.0
        %734 = vmatprep.subr.mxu0 0.0
        %735 = vmatpush1.msra.mxu0 0.0
        %736 = vmatprep.subr.mxu0 0.0
        %737 = vmatpush1.msra.mxu0 0.0
        %738 = vmatprep.subr.mxu0 0.0
        %739 = vmatpush1.msra.mxu0 0.0
        %740 = vmatprep.subr.mxu0 0.0
        %741 = vmatpush1.msra.mxu0 0.0
        %742 = vmatprep.subr.mxu0 0.0
        %743 = vmatpush1.msra.mxu0 0.0
        %744 = vmatprep.subr.mxu0 0.0
        %745 = vmatpush1.msra.mxu0 0.0
        %746 = vmatprep.subr.mxu0 0.0
        %747 = vmatpush1.msra.mxu0 0.0
        %748 = vmatprep.subr.mxu0 0.0
        %749 = vmatpush1.msra.mxu0 0.0
        %750 = vmatprep.subr.mxu0 0.0
        %751 = vmatpush1.msra.mxu0 0.0
        %752 = vmatprep.subr.mxu0 0.0
        %753 = vmatpush1.msra.mxu0 0.0
        %754 = vmatprep.subr.mxu0 0.0
        %755 = vmatpush1.msra.mxu0 0.0
        %756 = vmatprep.subr.mxu0 0.0
        %757 = vmatpush1.msra.mxu0 0.0
        %758 = vmatprep.subr.mxu0 0.0
        %759 = vmatpush1.msra.mxu0 0.0
        %760 = vmatprep.subr.mxu0 0.0
        %761 = vmatpush1.msra.mxu0 0.0
        %762 = vmatprep.subr.mxu0 0.0
        %763 = vmatpush1.msra.mxu0 0.0
        %764 = vmatprep.subr.mxu0 0.0
        %765 = vmatpush1.msra.mxu0 0.0
        %766 = vmatprep.mubr.f32.mxu0 0.0
        %v767 = vand.u32 %v218, 4294901760
        %v768 = vsub.f32 %v218, %v767
        %v769 = vand.u32 %v768, 4294901760
        %v770 = vsub.f32 %v768, %v769
        %v771 = vand.u32 %v770, 4294901760
        %772 = vmatmul.mubr.f32.gmra.mrb[0].mxu0 %v771
        %v773 = vpop.f32.mrb[0].mxu0
        %v774 = vadd.f32 %v212, %v773
        %v775 = vpop.f32.mrb[0].mxu0
        %v776 = vadd.f32 %v212, %v775
        %777 = vdwg.mxu0
        %v778 = vand.u32 %v698, 4294901760
        %v779 = vsub.f32 %v698, %v778
        %v780 = vand.u32 %v779, 4294901760
        %v781 = vsub.f32 %v779, %v780
        %v782 = vand.u32 %v781, 4294901760
        %783 = vmatprep.subr.mxu0 %v782
        %v784 = vand.u32 %v696, 4294901760
        %v785 = vsub.f32 %v696, %v784
        %v786 = vand.u32 %v785, 4294901760
        %v787 = vsub.f32 %v785, %v786
        %v788 = vand.u32 %v787, 4294901760
        %789 = vmatpush1.msra.mxu0 %v788
        %790 = vmatprep.subr.mxu0 0.0
        %791 = vmatpush1.msra.mxu0 0.0
        %792 = vmatprep.subr.mxu0 0.0
        %793 = vmatpush1.msra.mxu0 0.0
        %794 = vmatprep.subr.mxu0 0.0
        %795 = vmatpush1.msra.mxu0 0.0
        %796 = vmatprep.subr.mxu0 0.0
        %797 = vmatpush1.msra.mxu0 0.0
        %798 = vmatprep.subr.mxu0 0.0
        %799 = vmatpush1.msra.mxu0 0.0
        %800 = vmatprep.subr.mxu0 0.0
        %801 = vmatpush1.msra.mxu0 0.0
        %802 = vmatprep.subr.mxu0 0.0
        %803 = vmatpush1.msra.mxu0 0.0
        %804 = vmatprep.subr.mxu0 0.0
        %805 = vmatpush1.msra.mxu0 0.0
        %806 = vmatprep.subr.mxu0 0.0
        %807 = vmatpush1.msra.mxu0 0.0
        %808 = vmatprep.subr.mxu0 0.0
        %809 = vmatpush1.msra.mxu0 0.0
        %810 = vmatprep.subr.mxu0 0.0
        %811 = vmatpush1.msra.mxu0 0.0
        %812 = vmatprep.subr.mxu0 0.0
        %813 = vmatpush1.msra.mxu0 0.0
        %814 = vmatprep.subr.mxu0 0.0
        %815 = vmatpush1.msra.mxu0 0.0
        %816 = vmatprep.subr.mxu0 0.0
        %817 = vmatpush1.msra.mxu0 0.0
        %818 = vmatprep.subr.mxu0 0.0
        %819 = vmatpush1.msra.mxu0 0.0
        %820 = vmatprep.subr.mxu0 0.0
        %821 = vmatpush1.msra.mxu0 0.0
        %822 = vmatprep.subr.mxu0 0.0
        %823 = vmatpush1.msra.mxu0 0.0
        %824 = vmatprep.subr.mxu0 0.0
        %825 = vmatpush1.msra.mxu0 0.0
        %826 = vmatprep.subr.mxu0 0.0
        %827 = vmatpush1.msra.mxu0 0.0
        %828 = vmatprep.subr.mxu0 0.0
        %829 = vmatpush1.msra.mxu0 0.0
        %830 = vmatprep.subr.mxu0 0.0
        %831 = vmatpush1.msra.mxu0 0.0
        %832 = vmatprep.subr.mxu0 0.0
        %833 = vmatpush1.msra.mxu0 0.0
        %834 = vmatprep.subr.mxu0 0.0
        %835 = vmatpush1.msra.mxu0 0.0
        %836 = vmatprep.subr.mxu0 0.0
        %837 = vmatpush1.msra.mxu0 0.0
        %838 = vmatprep.subr.mxu0 0.0
        %839 = vmatpush1.msra.mxu0 0.0
        %840 = vmatprep.subr.mxu0 0.0
        %841 = vmatpush1.msra.mxu0 0.0
        %842 = vmatprep.subr.mxu0 0.0
        %843 = vmatpush1.msra.mxu0 0.0
        %844 = vmatprep.subr.mxu0 0.0
        %845 = vmatpush1.msra.mxu0 0.0
        %846 = vmatprep.subr.mxu0 0.0
        %847 = vmatpush1.msra.mxu0 0.0
        %848 = vmatprep.subr.mxu0 0.0
        %849 = vmatpush1.msra.mxu0 0.0
        %850 = vmatprep.subr.mxu0 0.0
        %851 = vmatpush1.msra.mxu0 0.0
        %852 = vmatprep.mubr.f32.mxu0 0.0
        %v853 = vand.u32 %v218, 4294901760
        %854 = vmatmul.mubr.f32.gmra.mrb[0].mxu0 %v853
        %v855 = vpop.f32.mrb[0].mxu0
        %v856 = vadd.f32 %v774, %v855
        %v857 = vpop.f32.mrb[0].mxu0
        %v858 = vadd.f32 %v776, %v857
        %859 = vdwg.mxu0
        %v860 = vand.u32 %v698, 4294901760
        %v861 = vsub.f32 %v698, %v860
        %862 = vmatprep.subr.mxu0 %v861
        %v863 = vand.u32 %v696, 4294901760
        %v864 = vsub.f32 %v696, %v863
        %865 = vmatpush1.msra.mxu0 %v864
        %866 = vmatprep.subr.mxu0 0.0
        %867 = vmatpush1.msra.mxu0 0.0
        %868 = vmatprep.subr.mxu0 0.0
        %869 = vmatpush1.msra.mxu0 0.0
        %870 = vmatprep.subr.mxu0 0.0
        %871 = vmatpush1.msra.mxu0 0.0
        %872 = vmatprep.subr.mxu0 0.0
        %873 = vmatpush1.msra.mxu0 0.0
        %874 = vmatprep.subr.mxu0 0.0
        %875 = vmatpush1.msra.mxu0 0.0
        %876 = vmatprep.subr.mxu0 0.0
        %877 = vmatpush1.msra.mxu0 0.0
        %878 = vmatprep.subr.mxu0 0.0
        %879 = vmatpush1.msra.mxu0 0.0
        %880 = vmatprep.subr.mxu0 0.0
        %881 = vmatpush1.msra.mxu0 0.0
        %882 = vmatprep.subr.mxu0 0.0
        %883 = vmatpush1.msra.mxu0 0.0
        %884 = vmatprep.subr.mxu0 0.0
        %885 = vmatpush1.msra.mxu0 0.0
        %886 = vmatprep.subr.mxu0 0.0
        %887 = vmatpush1.msra.mxu0 0.0
        %888 = vmatprep.subr.mxu0 0.0
        %889 = vmatpush1.msra.mxu0 0.0
        %890 = vmatprep.subr.mxu0 0.0
        %891 = vmatpush1.msra.mxu0 0.0
        %892 = vmatprep.subr.mxu0 0.0
        %893 = vmatpush1.msra.mxu0 0.0
        %894 = vmatprep.subr.mxu0 0.0
        %895 = vmatpush1.msra.mxu0 0.0
        %896 = vmatprep.subr.mxu0 0.0
        %897 = vmatpush1.msra.mxu0 0.0
        %898 = vmatprep.subr.mxu0 0.0
        %899 = vmatpush1.msra.mxu0 0.0
        %900 = vmatprep.subr.mxu0 0.0
        %901 = vmatpush1.msra.mxu0 0.0
        %902 = vmatprep.subr.mxu0 0.0
        %903 = vmatpush1.msra.mxu0 0.0
        %904 = vmatprep.subr.mxu0 0.0
        %905 = vmatpush1.msra.mxu0 0.0
        %906 = vmatprep.subr.mxu0 0.0
        %907 = vmatpush1.msra.mxu0 0.0
        %908 = vmatprep.subr.mxu0 0.0
        %909 = vmatpush1.msra.mxu0 0.0
        %910 = vmatprep.subr.mxu0 0.0
        %911 = vmatpush1.msra.mxu0 0.0
        %912 = vmatprep.subr.mxu0 0.0
        %913 = vmatpush1.msra.mxu0 0.0
        %914 = vmatprep.subr.mxu0 0.0
        %915 = vmatpush1.msra.mxu0 0.0
        %916 = vmatprep.subr.mxu0 0.0
        %917 = vmatpush1.msra.mxu0 0.0
        %918 = vmatprep.subr.mxu0 0.0
        %919 = vmatpush1.msra.mxu0 0.0
        %920 = vmatprep.subr.mxu0 0.0
        %921 = vmatpush1.msra.mxu0 0.0
        %922 = vmatprep.subr.mxu0 0.0
        %923 = vmatpush1.msra.mxu0 0.0
        %924 = vmatprep.subr.mxu0 0.0
        %925 = vmatpush1.msra.mxu0 0.0
        %926 = vmatprep.subr.mxu0 0.0
        %927 = vmatpush1.msra.mxu0 0.0
        %928 = vmatprep.mubr.f32.mxu0 0.0
        %v929 = vand.u32 %v218, 4294901760
        %v930 = vsub.f32 %v218, %v929
        %931 = vmatmul.mubr.f32.gmra.mrb[0].mxu0 %v930
        %v932 = vpop.f32.mrb[0].mxu0
        %v933 = vadd.f32 %v856, %v932
        %v934 = vpop.f32.mrb[0].mxu0
        %v935 = vadd.f32 %v858, %v934
        %936 = vdwg.mxu0
        %v937 = vand.u32 %v698, 4294901760
        %938 = vmatprep.subr.mxu0 %v937
        %v939 = vand.u32 %v696, 4294901760
        %940 = vmatpush1.msra.mxu0 %v939
        %941 = vmatprep.subr.mxu0 0.0
        %942 = vmatpush1.msra.mxu0 0.0
        %943 = vmatprep.subr.mxu0 0.0
        %944 = vmatpush1.msra.mxu0 0.0
        %945 = vmatprep.subr.mxu0 0.0
        %946 = vmatpush1.msra.mxu0 0.0
        %947 = vmatprep.subr.mxu0 0.0
        %948 = vmatpush1.msra.mxu0 0.0
        %949 = vmatprep.subr.mxu0 0.0
        %950 = vmatpush1.msra.mxu0 0.0
        %951 = vmatprep.subr.mxu0 0.0
        %952 = vmatpush1.msra.mxu0 0.0
        %953 = vmatprep.subr.mxu0 0.0
        %954 = vmatpush1.msra.mxu0 0.0
        %955 = vmatprep.subr.mxu0 0.0
        %956 = vmatpush1.msra.mxu0 0.0
        %957 = vmatprep.subr.mxu0 0.0
        %958 = vmatpush1.msra.mxu0 0.0
        %959 = vmatprep.subr.mxu0 0.0
        %960 = vmatpush1.msra.mxu0 0.0
        %961 = vmatprep.subr.mxu0 0.0
        %962 = vmatpush1.msra.mxu0 0.0
        %963 = vmatprep.subr.mxu0 0.0
        %964 = vmatpush1.msra.mxu0 0.0
        %965 = vmatprep.subr.mxu0 0.0
        %966 = vmatpush1.msra.mxu0 0.0
        %967 = vmatprep.subr.mxu0 0.0
        %968 = vmatpush1.msra.mxu0 0.0
        %969 = vmatprep.subr.mxu0 0.0
        %970 = vmatpush1.msra.mxu0 0.0
        %971 = vmatprep.subr.mxu0 0.0
        %972 = vmatpush1.msra.mxu0 0.0
        %973 = vmatprep.subr.mxu0 0.0
        %974 = vmatpush1.msra.mxu0 0.0
        %975 = vmatprep.subr.mxu0 0.0
        %976 = vmatpush1.msra.mxu0 0.0
        %977 = vmatprep.subr.mxu0 0.0
        %978 = vmatpush1.msra.mxu0 0.0
        %979 = vmatprep.subr.mxu0 0.0
        %980 = vmatpush1.msra.mxu0 0.0
        %981 = vmatprep.subr.mxu0 0.0
        %982 = vmatpush1.msra.mxu0 0.0
        %983 = vmatprep.subr.mxu0 0.0
        %984 = vmatpush1.msra.mxu0 0.0
        %985 = vmatprep.subr.mxu0 0.0
        %986 = vmatpush1.msra.mxu0 0.0
        %987 = vmatprep.subr.mxu0 0.0
        %988 = vmatpush1.msra.mxu0 0.0
        %989 = vmatprep.subr.mxu0 0.0
        %990 = vmatpush1.msra.mxu0 0.0
        %991 = vmatprep.subr.mxu0 0.0
        %992 = vmatpush1.msra.mxu0 0.0
        %993 = vmatprep.subr.mxu0 0.0
        %994 = vmatpush1.msra.mxu0 0.0
        %995 = vmatprep.subr.mxu0 0.0
        %996 = vmatpush1.msra.mxu0 0.0
        %997 = vmatprep.subr.mxu0 0.0
        %998 = vmatpush1.msra.mxu0 0.0
        %999 = vmatprep.subr.mxu0 0.0
        %1000 = vmatpush1.msra.mxu0 0.0
        %1001 = vmatprep.subr.mxu0 0.0
        %1002 = vmatpush1.msra.mxu0 0.0
        %1003 = vmatprep.mubr.f32.mxu0 0.0
        %v1004 = vand.u32 %v218, 4294901760
        %v1005 = vsub.f32 %v218, %v1004
        %v1006 = vand.u32 %v1005, 4294901760
        %1007 = vmatmul.mubr.f32.gmra.mrb[0].mxu0 %v1006
        %v1008 = vpop.f32.mrb[0].mxu0
        %v1009 = vadd.f32 %v933, %v1008
        %v1010 = vpop.f32.mrb[0].mxu0
        %v1011 = vadd.f32 %v935, %v1010
        %1012 = vdwg.mxu0
        %v1013 = vand.u32 %v698, 4294901760
        %v1014 = vsub.f32 %v698, %v1013
        %v1015 = vand.u32 %v1014, 4294901760
        %1016 = vmatprep.subr.mxu0 %v1015
        %v1017 = vand.u32 %v696, 4294901760
        %v1018 = vsub.f32 %v696, %v1017
        %v1019 = vand.u32 %v1018, 4294901760
        %1020 = vmatpush1.msra.mxu0 %v1019
        %1021 = vmatprep.subr.mxu0 0.0
        %1022 = vmatpush1.msra.mxu0 0.0
        %1023 = vmatprep.subr.mxu0 0.0
        %1024 = vmatpush1.msra.mxu0 0.0
        %1025 = vmatprep.subr.mxu0 0.0
        %1026 = vmatpush1.msra.mxu0 0.0
        %1027 = vmatprep.subr.mxu0 0.0
        %1028 = vmatpush1.msra.mxu0 0.0
        %1029 = vmatprep.subr.mxu0 0.0
        %1030 = vmatpush1.msra.mxu0 0.0
        %1031 = vmatprep.subr.mxu0 0.0
        %1032 = vmatpush1.msra.mxu0 0.0
        %1033 = vmatprep.subr.mxu0 0.0
        %1034 = vmatpush1.msra.mxu0 0.0
        %1035 = vmatprep.subr.mxu0 0.0
        %1036 = vmatpush1.msra.mxu0 0.0
        %1037 = vmatprep.subr.mxu0 0.0
        %1038 = vmatpush1.msra.mxu0 0.0
        %1039 = vmatprep.subr.mxu0 0.0
        %1040 = vmatpush1.msra.mxu0 0.0
        %1041 = vmatprep.subr.mxu0 0.0
        %1042 = vmatpush1.msra.mxu0 0.0
        %1043 = vmatprep.subr.mxu0 0.0
        %1044 = vmatpush1.msra.mxu0 0.0
        %1045 = vmatprep.subr.mxu0 0.0
        %1046 = vmatpush1.msra.mxu0 0.0
        %1047 = vmatprep.subr.mxu0 0.0
        %1048 = vmatpush1.msra.mxu0 0.0
        %1049 = vmatprep.subr.mxu0 0.0
        %1050 = vmatpush1.msra.mxu0 0.0
        %1051 = vmatprep.subr.mxu0 0.0
        %1052 = vmatpush1.msra.mxu0 0.0
        %1053 = vmatprep.subr.mxu0 0.0
        %1054 = vmatpush1.msra.mxu0 0.0
        %1055 = vmatprep.subr.mxu0 0.0
        %1056 = vmatpush1.msra.mxu0 0.0
        %1057 = vmatprep.subr.mxu0 0.0
        %1058 = vmatpush1.msra.mxu0 0.0
        %1059 = vmatprep.subr.mxu0 0.0
        %1060 = vmatpush1.msra.mxu0 0.0
        %1061 = vmatprep.subr.mxu0 0.0
        %1062 = vmatpush1.msra.mxu0 0.0
        %1063 = vmatprep.subr.mxu0 0.0
        %1064 = vmatpush1.msra.mxu0 0.0
        %1065 = vmatprep.subr.mxu0 0.0
        %1066 = vmatpush1.msra.mxu0 0.0
        %1067 = vmatprep.subr.mxu0 0.0
        %1068 = vmatpush1.msra.mxu0 0.0
        %1069 = vmatprep.subr.mxu0 0.0
        %1070 = vmatpush1.msra.mxu0 0.0
        %1071 = vmatprep.subr.mxu0 0.0
        %1072 = vmatpush1.msra.mxu0 0.0
        %1073 = vmatprep.subr.mxu0 0.0
        %1074 = vmatpush1.msra.mxu0 0.0
        %1075 = vmatprep.subr.mxu0 0.0
        %1076 = vmatpush1.msra.mxu0 0.0
        %1077 = vmatprep.subr.mxu0 0.0
        %1078 = vmatpush1.msra.mxu0 0.0
        %1079 = vmatprep.subr.mxu0 0.0
        %1080 = vmatpush1.msra.mxu0 0.0
        %1081 = vmatprep.subr.mxu0 0.0
        %1082 = vmatpush1.msra.mxu0 0.0
        %1083 = vmatprep.mubr.f32.mxu0 0.0
        %v1084 = vand.u32 %v218, 4294901760
        %1085 = vmatmul.mubr.f32.gmra.mrb[0].mxu0 %v1084
        %v1086 = vpop.f32.mrb[0].mxu0
        %v1087 = vadd.f32 %v1009, %v1086
        %v1088 = vpop.f32.mrb[0].mxu0
        %v1089 = vadd.f32 %v1011, %v1088
        %1090 = vdwg.mxu0
        %v1091 = vand.u32 %v698, 4294901760
        %1092 = vmatprep.subr.mxu0 %v1091
        %v1093 = vand.u32 %v696, 4294901760
        %1094 = vmatpush1.msra.mxu0 %v1093
        %1095 = vmatprep.subr.mxu0 0.0
        %1096 = vmatpush1.msra.mxu0 0.0
        %1097 = vmatprep.subr.mxu0 0.0
        %1098 = vmatpush1.msra.mxu0 0.0
        %1099 = vmatprep.subr.mxu0 0.0
        %1100 = vmatpush1.msra.mxu0 0.0
        %1101 = vmatprep.subr.mxu0 0.0
        %1102 = vmatpush1.msra.mxu0 0.0
        %1103 = vmatprep.subr.mxu0 0.0
        %1104 = vmatpush1.msra.mxu0 0.0
        %1105 = vmatprep.subr.mxu0 0.0
        %1106 = vmatpush1.msra.mxu0 0.0
        %1107 = vmatprep.subr.mxu0 0.0
        %1108 = vmatpush1.msra.mxu0 0.0
        %1109 = vmatprep.subr.mxu0 0.0
        %1110 = vmatpush1.msra.mxu0 0.0
        %1111 = vmatprep.subr.mxu0 0.0
        %1112 = vmatpush1.msra.mxu0 0.0
        %1113 = vmatprep.subr.mxu0 0.0
        %1114 = vmatpush1.msra.mxu0 0.0
        %1115 = vmatprep.subr.mxu0 0.0
        %1116 = vmatpush1.msra.mxu0 0.0
        %1117 = vmatprep.subr.mxu0 0.0
        %1118 = vmatpush1.msra.mxu0 0.0
        %1119 = vmatprep.subr.mxu0 0.0
        %1120 = vmatpush1.msra.mxu0 0.0
        %1121 = vmatprep.subr.mxu0 0.0
        %1122 = vmatpush1.msra.mxu0 0.0
        %1123 = vmatprep.subr.mxu0 0.0
        %1124 = vmatpush1.msra.mxu0 0.0
        %1125 = vmatprep.subr.mxu0 0.0
        %1126 = vmatpush1.msra.mxu0 0.0
        %1127 = vmatprep.subr.mxu0 0.0
        %1128 = vmatpush1.msra.mxu0 0.0
        %1129 = vmatprep.subr.mxu0 0.0
        %1130 = vmatpush1.msra.mxu0 0.0
        %1131 = vmatprep.subr.mxu0 0.0
        %1132 = vmatpush1.msra.mxu0 0.0
        %1133 = vmatprep.subr.mxu0 0.0
        %1134 = vmatpush1.msra.mxu0 0.0
        %1135 = vmatprep.subr.mxu0 0.0
        %1136 = vmatpush1.msra.mxu0 0.0
        %1137 = vmatprep.subr.mxu0 0.0
        %1138 = vmatpush1.msra.mxu0 0.0
        %1139 = vmatprep.subr.mxu0 0.0
        %1140 = vmatpush1.msra.mxu0 0.0
        %1141 = vmatprep.subr.mxu0 0.0
        %1142 = vmatpush1.msra.mxu0 0.0
        %1143 = vmatprep.subr.mxu0 0.0
        %1144 = vmatpush1.msra.mxu0 0.0
        %1145 = vmatprep.subr.mxu0 0.0
        %1146 = vmatpush1.msra.mxu0 0.0
        %1147 = vmatprep.subr.mxu0 0.0
        %1148 = vmatpush1.msra.mxu0 0.0
        %1149 = vmatprep.subr.mxu0 0.0
        %1150 = vmatpush1.msra.mxu0 0.0
        %1151 = vmatprep.subr.mxu0 0.0
        %1152 = vmatpush1.msra.mxu0 0.0
        %1153 = vmatprep.subr.mxu0 0.0
        %1154 = vmatpush1.msra.mxu0 0.0
        %1155 = vmatprep.subr.mxu0 0.0
        %1156 = vmatpush1.msra.mxu0 0.0
        %1157 = vmatprep.mubr.f32.mxu0 0.0
        %v1158 = vand.u32 %v218, 4294901760
        %1159 = vmatmul.mubr.f32.gmra.mrb[0].mxu0 %v1158
        %v1160 = vpop.f32.mrb[0].mxu0
        %v1161 = vadd.f32 %v1087, %v1160
        %v1162 = vpop.f32.mrb[0].mxu0
        %v1163 = vadd.f32 %v1089, %v1162
        %1164 = vdwg.mxu0
        %s1165 = scalar_lea.vmem %s203, 16 [#allocation3]
        %1166 = vst [vmem:[%s1165] sm:$0xff] %v1161
        %1167 = vst [vmem:[%s1165 + $0x8] sm:$0xff] %v1163
        %s1168 = sand.u32 %s90, 1
        %s1169 = sand.u32 %s90, 1
        %s1170 = smul.addr %s1169, 32
        %s1171 = scalar_lea.vmem [#allocation3], %s1170
        // Predicated region
        $region71: #{lno3d_forward.5} parent=65 // pred_check
          %p1172 = pneg %p100
        $region72: #{lno3d_forward.5} parent=65 // pred_check_branch
          %1174 = sbr.rel (%p1172) target = $region74
        $region73: #{lno3d_forward.5} parent=65 // pred_region
          %s1175 = smul.u32 2, %s14
          %s1176 = smul.addr %s1175, 8
          %s1177 = scalar_lea.vmem %s3, %s1176
          // Predicated region
          $region75: #{lno3d_forward.5} parent=73 // pred_check
            _
          $region76: #{lno3d_forward.5} parent=73 // pred_check_branch
            %1179 = sbr.rel (0) target = $region78
          $region77: #{lno3d_forward.5} parent=73 // pred_region
            // Predicated region
            $region79: #{lno3d_forward.5} parent=77 // pred_check
              _
            $region80: #{lno3d_forward.5} parent=77 // pred_check_branch
              %1181 = sbr.rel (0) target = $region82
            $region81: #{lno3d_forward.5} parent=77 // pred_region
              loop: start=0, step=1, limit=1
              $region83: #{lno3d_forward.5} parent=81 // loop_pre_header
                _
              $region84: #{lno3d_forward.5} parent=81 // loop_header
                %s1183 = sphi 0, %s1187
                %p1184 = scmp.ge.s32.totalorder %s1183, 1
                %s1188 = sphi %s1171, %s1171
                %s1189 = sphi %s1177, %s1177
              $region85: #{lno3d_forward.5} parent=81 // loop_header_branch
                %1186 = sbr.rel (%p1184) target = $region89
              $region86: #{lno3d_forward.5} parent=81 // loop_body
                %v1190 = vld [vmem:[%s1188] sm:$0xff]
                %1191 = vst [vmem:[%s1189] sm:$0xff] %v1190
                %v1192 = vld [vmem:[%s1188 + $0x8] sm:$0xff]
                %1193 = vst [vmem:[%s1189 + $0x8] sm:$0xff] %v1192
                %v1194 = vld [vmem:[%s1188 + $0x10] sm:$0xff]
                %1195 = vst [vmem:[%s1189 + $0x20] sm:$0xff] %v1194
                %v1196 = vld [vmem:[%s1188 + $0x18] sm:$0xff]
                %1197 = vst [vmem:[%s1189 + $0x28] sm:$0xff] %v1196
              $region87: #{lno3d_forward.5} parent=81 // loop_footer
                %s1187 = sadd.s32 1, %s1183
              $region88: #{lno3d_forward.5} parent=81 // loop_footer_branch
                %1182 = sbr.rel target = $region84
              $region89: #{lno3d_forward.5} parent=81 // loop_exit
                _
            $region82: #{lno3d_forward.5} parent=77 // pred_fallthru
              _
            // Predicated region
            $region90: #{lno3d_forward.5} parent=77 // pred_check
              _
            $region91: #{lno3d_forward.5} parent=77 // pred_check_branch
              %1199 = sbr.rel target = $region93
            $region92: #{lno3d_forward.5} parent=77 // pred_region
              _
            $region93: #{lno3d_forward.5} parent=77 // pred_fallthru
              _
          $region78: #{lno3d_forward.5} parent=73 // pred_fallthru
            _
          %1200 = vnop
        $region74: #{lno3d_forward.5} parent=65 // pred_fallthru
          _
      $region66: #{lno3d_forward.5} parent=5 // pred_fallthru
        _
      %p1201 = scmp.le.s32.totalorder 2, %s9
      // Predicated region
      $region94: #{lno3d_forward.5} parent=5 // pred_check
        %p1202 = pneg %p1201
      $region95: #{lno3d_forward.5} parent=5 // pred_check_branch
        %1204 = sbr.rel (%p1202) target = $region97
      $region96: #{lno3d_forward.5} parent=5 // pred_region
        %s1205 = ssub.s32 %s9, 2
        // Predicated region
        $region98: #{lno3d_forward.5} parent=96 // pred_check
          %p1206 = pneg %p106
        $region99: #{lno3d_forward.5} parent=96 // pred_check_branch
          %1208 = sbr.rel (%p1206) target = $region101
        $region100: #{lno3d_forward.5} parent=96 // pred_region
          %s1209 = sand.u32 %s91, 1
          %s1210 = sand.u32 %s91, 1
          %s1211 = smul.addr %s1210, 32
          %s1212 = scalar_lea.vmem [#allocation3], %s1211
        $region101: #{lno3d_forward.5} parent=96 // pred_fallthru
          _
      $region97: #{lno3d_forward.5} parent=5 // pred_fallthru
        _
    $region6: #{lno3d_forward.5} parent=1 // loop_footer
      %s13 = sadd.s32 1, %s9
    $region7: #{lno3d_forward.5} parent=1 // loop_footer_branch
      %8 = sbr.rel target = $region3
    $region8: #{lno3d_forward.5} parent=1 // loop_exit
      _

// kernel: lno3d_forward.6
$region0: #{lno3d_forward.6}
  #allocation0 [shape = 'u32[]', space=smem, size = 0x4, offset = 0x4, fixed_abs, tag = 'smem constant byte address 0x4 - core index']
  #allocation1 [shape = 'u32[144,128]{1,0:T(1,128)}', space=vmem, size = 0x12000, scoped, tag = 'internal scratch']
  %s0 = inlined_call_operand.vmem [shape: f32[16,512], index: 0, kind: input, shape index: {}]
  %s1 = inlined_call_operand.vmem [shape: f32[16,512], index: 1, kind: output, shape index: {}]
  %s2 = sld [smem:[#allocation0]]
  $region37: #{lno3d_forward.6} parent=0
    _
  %s4 = ssub.s32 1, %s2
  %s5 = scalar_select 0, %s4, %s2
  loop: start=0, step=1, limit=4
  $region2: #{lno3d_forward.6} parent=0 // loop_pre_header
    _
  $region3: #{lno3d_forward.6} parent=0 // loop_header
    %s7 = sphi 0, %s11
    %p8 = scmp.ge.s32.totalorder %s7, 4
    %s17 = sphi 0, %s19
    %s20 = sphi 0, %s17
    %s21 = sphi 0, %s20
    %s37 = sphi 0, %s21
    %s43 = sphi 0, %s45
    %s46 = sphi 0, %s43
    %s47 = sphi 0, %s46
    %s63 = sphi 0, %s47
  $region4: #{lno3d_forward.6} parent=0 // loop_header_branch
    %10 = sbr.rel (%p8) target = $region8
  $region5: #{lno3d_forward.6} parent=0 // loop_body
    %s12 = ssub.s32 %s7, 1
    %s13 = ssub.s32 %s7, 2
    %s14 = sadd.s32 %s7, 1
    %s15 = ssub.s32 %s7, %s14
    %p16 = scmp.eq.s32.totalorder %s15, 0
    %s18 = sadd.s32 %s17, 1
    %s19 = scalar_select %p16, %s17, %s18
    %p22 = pneg %p16
    %p23 = scmp.eq.s32.totalorder %s7, 1
    %p24 = por %p22, %p23
    %p25 = scmp.ne.s32.totalorder %s17, %s20
    %p26 = scmp.eq.s32.totalorder %s7, 0
    %p27 = por %p25, %p26
    %p28 = scmp.ne.s32.totalorder %s17, %s20
    %p29 = scmp.eq.s32.totalorder %s12, 1
    %p30 = por %p28, %p29
    %p31 = scmp.ne.s32.totalorder %s20, %s21
    %p32 = scmp.eq.s32.totalorder %s12, 0
    %p33 = por %p31, %p32
    %p34 = scmp.ne.s32.totalorder %s20, %s21
    %p35 = scmp.eq.s32.totalorder %s13, 1
    %p36 = por %p34, %p35
    %p38 = scmp.ne.s32.totalorder %s21, %s37
    %p39 = scmp.eq.s32.totalorder %s13, 0
    %p40 = por %p38, %p39
    %s41 = ssub.s32 %s7, %s14
    %p42 = scmp.eq.s32.totalorder %s41, 0
    %s44 = sadd.s32 %s43, 1
    %s45 = scalar_select %p42, %s43, %s44
    %p48 = pneg %p42
    %p49 = scmp.eq.s32.totalorder %s7, 1
    %p50 = por %p48, %p49
    %p51 = scmp.ne.s32.totalorder %s43, %s46
    %p52 = scmp.eq.s32.totalorder %s7, 0
    %p53 = por %p51, %p52
    %p54 = scmp.ne.s32.totalorder %s43, %s46
    %p55 = scmp.eq.s32.totalorder %s12, 1
    %p56 = por %p54, %p55
    %p57 = scmp.ne.s32.totalorder %s46, %s47
    %p58 = scmp.eq.s32.totalorder %s12, 0
    %p59 = por %p57, %p58
    %p60 = scmp.ne.s32.totalorder %s46, %s47
    %p61 = scmp.eq.s32.totalorder %s13, 1
    %p62 = por %p60, %p61
    %p64 = scmp.ne.s32.totalorder %s47, %s63
    %p65 = scmp.eq.s32.totalorder %s13, 0
    %p66 = por %p64, %p65
    %p67 = scmp.le.s32.totalorder 1, %s7
    %p68 = scmp.lt.s32.totalorder %s7, 3
    %p69 = pnand %p67, %p68
    %p70 = pneg %p69
    // Predicated region
    $region9: #{lno3d_forward.6} parent=5 // pred_check
      _
    $region10: #{lno3d_forward.6} parent=5 // pred_check_branch
      %72 = sbr.rel (%p69) target = $region12
    $region11: #{lno3d_forward.6} parent=5 // pred_region
      %s73 = ssub.s32 %s7, 1
    $region12: #{lno3d_forward.6} parent=5 // pred_fallthru
      _
    %p74 = scmp.lt.s32.totalorder %s7, 2
    // Predicated region
    $region13: #{lno3d_forward.6} parent=5 // pred_check
      %p75 = pneg %p74
    $region14: #{lno3d_forward.6} parent=5 // pred_check_branch
      %77 = sbr.rel (%p75) target = $region16
    $region15: #{lno3d_forward.6} parent=5 // pred_region
      // Predicated region
      $region17: #{lno3d_forward.6} parent=15 // pred_check
        %p78 = pneg %p27
      $region18: #{lno3d_forward.6} parent=15 // pred_check_branch
        %80 = sbr.rel (%p78) target = $region20
      $region19: #{lno3d_forward.6} parent=15 // pred_region
        %p81 = scmp.lt.s32.totalorder %s7, 1
        %s82 = scalar_select %p81, %s7, 1
        %s83 = smul.addr %s82, 4
        %s84 = smul.addr %s83, 8
        %s85 = scalar_lea.vmem %s0, %s84
      $region20: #{lno3d_forward.6} parent=15 // pred_fallthru
        _
    $region16: #{lno3d_forward.6} parent=5 // pred_fallthru
      _
    %p86 = scmp.le.s32.totalorder 1, %s7
    %p87 = scmp.lt.s32.totalorder %s7, 3
    %p88 = pnand %p86, %p87
    %p89 = pneg %p88
    // Predicated region
    $region21: #{lno3d_forward.6} parent=5 // pred_check
      _
    $region22: #{lno3d_forward.6} parent=5 // pred_check_branch
      %91 = sbr.rel (%p88) target = $region24
    $region23: #{lno3d_forward.6} parent=5 // pred_region
      %s92 = ssub.s32 %s7, 1
      %p93 = scmp.lt.s32.totalorder %s12, 1
      %s94 = scalar_select %p93, %s12, 1
      %s95 = smul.addr %s94, 4
      %s96 = smul.addr %s95, 8
      %s97 = scalar_lea.vmem %s0, %s96
      %p98 = pneg %p33
      %p99 = pneg %p30
      %p100 = pneg %p59
      %p101 = pneg %p56
      %p102 = scmp.lt.s32.totalorder %s12, 1
      %s103 = scalar_select %p102, %s12, 1
      %s104 = smul.addr %s103, 4
      %s105 = smul.addr %s104, 8
      %s106 = scalar_lea.vmem %s1, %s105
      %p107 = scmp.lt.s32.totalorder %s12, 1
      %s108 = scalar_select %p107, %s12, 1
      %s109 = smul.addr %s108, 4
      %s110 = smul.addr %s109, 8
      %s111 = scalar_lea.vmem %s0, %s110
      %p112 = scmp.lt.s32.totalorder %s12, 1
      %s113 = scalar_select %p112, %s12, 1
      %s114 = smul.addr %s113, 4
      %s115 = smul.addr %s114, 8
      %s116 = scalar_lea.vmem %s1, %s115
      %v117 = vld [vmem:[%s111] sm:$0xff]
      %v118 = vld [vmem:[%s111 + $0x8] sm:$0xff]
      %v119 = vld [vmem:[%s111 + $0x10] sm:$0xff]
      %v120 = vld [vmem:[%s111 + $0x18] sm:$0xff]
      %v121 = vadd.f32 %v117, %v118
      %v122 = vadd.f32 %v121, %v119
      %v123 = vadd.f32 %v122, %v120
      %124 = vadd.xlane.f32.xlu0 %v123
      %v125 = vpop.xlane.xlu0 %124
      %v126 = vmul.f32 %v117, %v117
      %v127 = vmul.f32 %v118, %v118
      %v128 = vmul.f32 %v119, %v119
      %v129 = vmul.f32 %v120, %v120
      %v130 = vadd.f32 %v126, %v127
      %v131 = vadd.f32 %v130, %v128
      %v132 = vadd.f32 %v131, %v129
      %133 = vadd.xlane.f32.xlu0 %v132
      %v134 = vpop.xlane.xlu0 %133
      %v135 = vmul.f32 %v125, 0.001953125
      %v136 = vmul.f32 %v134, 0.001953125
      %v137 = vmul.f32 %v135, %v135
      %v138 = vsub.f32 %v136, %v137
      %v139 = vmax.f32 %v138, 0.0
      %v140 = vsub.f32 %v117, %v135
      %v141 = vsub.f32 %v118, %v135
      %v142 = vsub.f32 %v119, %v135
      %v143 = vsub.f32 %v120, %v135
      %v144 = vadd.f32 %v139, 1e-05
      %v145 = vrsqrt.pop %v144
      %v146 = vmul.f32 %v140, %v145
      %v147 = vmul.f32 %v141, %v145
      %v148 = vmul.f32 %v142, %v145
      %v149 = vmul.f32 %v143, %v145
      %150 = vst [vmem:[%s116] sm:$0xff] %v146
      %151 = vst [vmem:[%s116 + $0x8] sm:$0xff] %v147
      %152 = vst [vmem:[%s116 + $0x10] sm:$0xff] %v148
      %153 = vst [vmem:[%s116 + $0x18] sm:$0xff] %v149
      %p154 = scmp.lt.s32.totalorder %s12, 1
      %s155 = scalar_select %p154, %s12, 1
      %s156 = smul.addr %s155, 4
      %s157 = smul.addr %s156, 8
      %s158 = scalar_lea.vmem %s1, %s157
      // Predicated region
      $region25: #{lno3d_forward.6} parent=23 // pred_check
        %p159 = pneg %p56
      $region26: #{lno3d_forward.6} parent=23 // pred_check_branch
        %161 = sbr.rel (%p159) target = $region28
      $region27: #{lno3d_forward.6} parent=23 // pred_region
        _
      $region28: #{lno3d_forward.6} parent=23 // pred_fallthru
        _
    $region24: #{lno3d_forward.6} parent=5 // pred_fallthru
      _
    %p162 = scmp.le.s32.totalorder 2, %s7
    // Predicated region
    $region29: #{lno3d_forward.6} parent=5 // pred_check
      %p163 = pneg %p162
    $region30: #{lno3d_forward.6} parent=5 // pred_check_branch
      %165 = sbr.rel (%p163) target = $region32
    $region31: #{lno3d_forward.6} parent=5 // pred_region
      %s166 = ssub.s32 %s7, 2
      // Predicated region
      $region33: #{lno3d_forward.6} parent=31 // pred_check
        %p167 = pneg %p62
      $region34: #{lno3d_forward.6} parent=31 // pred_check_branch
        %169 = sbr.rel (%p167) target = $region36
      $region35: #{lno3d_forward.6} parent=31 // pred_region
        %p170 = scmp.lt.s32.totalorder %s13, 1
        %s171 = scalar_select %p170, %s13, 1
        %s172 = smul.addr %s171, 4
        %s173 = smul.addr %s172, 8
        %s174 = scalar_lea.vmem %s1, %s173
      $region36: #{lno3d_forward.6} parent=31 // pred_fallthru
        _
    $region32: #{lno3d_forward.6} parent=5 // pred_fallthru
      _
  $region6: #{lno3d_forward.6} parent=0 // loop_footer
    %s11 = sadd.s32 1, %s7
  $region7: #{lno3d_forward.6} parent=0 // loop_footer_branch
    %6 = sbr.rel target = $region3
  $region8: #{lno3d_forward.6} parent=0 // loop_exit
    _

// kernel: lno3d_forward.7
$region0: #{lno3d_forward.7}
  #allocation0 [shape = 'u32[]', space=smem, size = 0x4, offset = 0x4, fixed_abs, tag = 'smem constant byte address 0x4 - core index']
  #allocation1 [shape = 'u32[144,128]{1,0:T(1,128)}', space=vmem, size = 0x12000, scoped, tag = 'internal scratch']
  %s0 = inlined_call_operand.vmem [shape: f32[16,512], index: 0, kind: input, shape index: {}]
  %s1 = inlined_call_operand.vmem [shape: f32[16,512], index: 1, kind: input, shape index: {}]
  %s2 = inlined_call_operand.vmem [shape: f32[8,8,512], index: 2, kind: input, shape index: {}]
  %s3 = inlined_call_operand.vmem [shape: f32[8,8,512], index: 3, kind: input, shape index: {}]
  %s4 = inlined_call_operand.vmem [shape: f32[16,512], index: 4, kind: output, shape index: {0}]
  %s5 = inlined_call_operand.vmem [shape: f32[16,512], index: 5, kind: output, shape index: {1}]
  %6 = xla_tuple %s4, %s5
  %s7 = sld [smem:[#allocation0]]
  $region187: #{lno3d_forward.7} parent=0
    _
  %s9 = ssub.s32 1, %s7
  %s10 = scalar_select 0, %s9, %s7
  $region1: #{lno3d_forward.7} parent=0
    #allocation2 [shape = 'u8[32768]{0}', space=vmem, size = 0x8000, scoped, tag = 'input window, operand 0']
    #allocation3 [shape = 'u8[32768]{0}', space=vmem, size = 0x8000, scoped, tag = 'input window, operand 1']
    #allocation4 [shape = 'u8[131072]{0}', space=vmem, size = 0x20000, scoped, tag = 'input window, operand 2']
    #allocation5 [shape = 'u8[131072]{0}', space=vmem, size = 0x20000, scoped, tag = 'input window, operand 3']
    #allocation6 [shape = 'u8[32768]{0}', space=vmem, size = 0x8000, scoped, tag = 'output window, operand 0']
    #allocation7 [shape = 'u8[32768]{0}', space=vmem, size = 0x8000, scoped, tag = 'output window, operand 1']
    loop: start=0, step=1, limit=4
    $region2: #{lno3d_forward.7} parent=1 // loop_pre_header
      _
    $region3: #{lno3d_forward.7} parent=1 // loop_header
      %s12 = sphi 0, %s16
      %p13 = scmp.ge.s32.totalorder %s12, 4
      %s22 = sphi 0, %s24
      %s25 = sphi 0, %s22
      %s26 = sphi 0, %s25
      %s42 = sphi 0, %s26
      %s48 = sphi 0, %s50
      %s51 = sphi 0, %s48
      %s52 = sphi 0, %s51
      %s68 = sphi 0, %s52
      %s74 = sphi 0, %s76
      %s77 = sphi 0, %s74
      %s78 = sphi 0, %s77
      %s94 = sphi 0, %s78
      %s100 = sphi 0, %s102
      %s103 = sphi 0, %s100
      %s104 = sphi 0, %s103
      %s120 = sphi 0, %s104
      %s126 = sphi 0, %s128
      %s129 = sphi 0, %s126
      %s130 = sphi 0, %s129
      %s146 = sphi 0, %s130
      %s152 = sphi 0, %s154
      %s155 = sphi 0, %s152
      %s156 = sphi 0, %s155
      %s172 = sphi 0, %s156
    $region4: #{lno3d_forward.7} parent=1 // loop_header_branch
      %15 = sbr.rel (%p13) target = $region8
    $region5: #{lno3d_forward.7} parent=1 // loop_body
      %s17 = ssub.s32 %s12, 1
      %s18 = ssub.s32 %s12, 2
      %s19 = sadd.s32 %s12, 1
      %s20 = ssub.s32 %s12, %s19
      %p21 = scmp.eq.s32.totalorder %s20, 0
      %s23 = sadd.s32 %s22, 1
      %s24 = scalar_select %p21, %s22, %s23
      %p27 = pneg %p21
      %p28 = scmp.eq.s32.totalorder %s12, 1
      %p29 = por %p27, %p28
      %p30 = scmp.ne.s32.totalorder %s22, %s25
      %p31 = scmp.eq.s32.totalorder %s12, 0
      %p32 = por %p30, %p31
      %p33 = scmp.ne.s32.totalorder %s22, %s25
      %p34 = scmp.eq.s32.totalorder %s17, 1
      %p35 = por %p33, %p34
      %p36 = scmp.ne.s32.totalorder %s25, %s26
      %p37 = scmp.eq.s32.totalorder %s17, 0
      %p38 = por %p36, %p37
      %p39 = scmp.ne.s32.totalorder %s25, %s26
      %p40 = scmp.eq.s32.totalorder %s18, 1
      %p41 = por %p39, %p40
      %p43 = scmp.ne.s32.totalorder %s26, %s42
      %p44 = scmp.eq.s32.totalorder %s18, 0
      %p45 = por %p43, %p44
      %s46 = ssub.s32 %s12, %s19
      %p47 = scmp.eq.s32.totalorder %s46, 0
      %s49 = sadd.s32 %s48, 1
      %s50 = scalar_select %p47, %s48, %s49
      %p53 = pneg %p47
      %p54 = scmp.eq.s32.totalorder %s12, 1
      %p55 = por %p53, %p54
      %p56 = scmp.ne.s32.totalorder %s48, %s51
      %p57 = scmp.eq.s32.totalorder %s12, 0
      %p58 = por %p56, %p57
      %p59 = scmp.ne.s32.totalorder %s48, %s51
      %p60 = scmp.eq.s32.totalorder %s17, 1
      %p61 = por %p59, %p60
      %p62 = scmp.ne.s32.totalorder %s51, %s52
      %p63 = scmp.eq.s32.totalorder %s17, 0
      %p64 = por %p62, %p63
      %p65 = scmp.ne.s32.totalorder %s51, %s52
      %p66 = scmp.eq.s32.totalorder %s18, 1
      %p67 = por %p65, %p66
      %p69 = scmp.ne.s32.totalorder %s52, %s68
      %p70 = scmp.eq.s32.totalorder %s18, 0
      %p71 = por %p69, %p70
      %s72 = ssub.s32 %s12, %s19
      %p73 = scmp.eq.s32.totalorder %s72, 0
      %s75 = sadd.s32 %s74, 1
      %s76 = scalar_select %p73, %s74, %s75
      %p79 = pneg %p73
      %p80 = scmp.eq.s32.totalorder %s12, 1
      %p81 = por %p79, %p80
      %p82 = scmp.ne.s32.totalorder %s74, %s77
      %p83 = scmp.eq.s32.totalorder %s12, 0
      %p84 = por %p82, %p83
      %p85 = scmp.ne.s32.totalorder %s74, %s77
      %p86 = scmp.eq.s32.totalorder %s17, 1
      %p87 = por %p85, %p86
      %p88 = scmp.ne.s32.totalorder %s77, %s78
      %p89 = scmp.eq.s32.totalorder %s17, 0
      %p90 = por %p88, %p89
      %p91 = scmp.ne.s32.totalorder %s77, %s78
      %p92 = scmp.eq.s32.totalorder %s18, 1
      %p93 = por %p91, %p92
      %p95 = scmp.ne.s32.totalorder %s78, %s94
      %p96 = scmp.eq.s32.totalorder %s18, 0
      %p97 = por %p95, %p96
      %s98 = ssub.s32 %s12, %s19
      %p99 = scmp.eq.s32.totalorder %s98, 0
      %s101 = sadd.s32 %s100, 1
      %s102 = scalar_select %p99, %s100, %s101
      %p105 = pneg %p99
      %p106 = scmp.eq.s32.totalorder %s12, 1
      %p107 = por %p105, %p106
      %p108 = scmp.ne.s32.totalorder %s100, %s103
      %p109 = scmp.eq.s32.totalorder %s12, 0
      %p110 = por %p108, %p109
      %p111 = scmp.ne.s32.totalorder %s100, %s103
      %p112 = scmp.eq.s32.totalorder %s17, 1
      %p113 = por %p111, %p112
      %p114 = scmp.ne.s32.totalorder %s103, %s104
      %p115 = scmp.eq.s32.totalorder %s17, 0
      %p116 = por %p114, %p115
      %p117 = scmp.ne.s32.totalorder %s103, %s104
      %p118 = scmp.eq.s32.totalorder %s18, 1
      %p119 = por %p117, %p118
      %p121 = scmp.ne.s32.totalorder %s104, %s120
      %p122 = scmp.eq.s32.totalorder %s18, 0
      %p123 = por %p121, %p122
      %s124 = ssub.s32 %s12, %s19
      %p125 = scmp.eq.s32.totalorder %s124, 0
      %s127 = sadd.s32 %s126, 1
      %s128 = scalar_select %p125, %s126, %s127
      %p131 = pneg %p125
      %p132 = scmp.eq.s32.totalorder %s12, 1
      %p133 = por %p131, %p132
      %p134 = scmp.ne.s32.totalorder %s126, %s129
      %p135 = scmp.eq.s32.totalorder %s12, 0
      %p136 = por %p134, %p135
      %p137 = scmp.ne.s32.totalorder %s126, %s129
      %p138 = scmp.eq.s32.totalorder %s17, 1
      %p139 = por %p137, %p138
      %p140 = scmp.ne.s32.totalorder %s129, %s130
      %p141 = scmp.eq.s32.totalorder %s17, 0
      %p142 = por %p140, %p141
      %p143 = scmp.ne.s32.totalorder %s129, %s130
      %p144 = scmp.eq.s32.totalorder %s18, 1
      %p145 = por %p143, %p144
      %p147 = scmp.ne.s32.totalorder %s130, %s146
      %p148 = scmp.eq.s32.totalorder %s18, 0
      %p149 = por %p147, %p148
      %s150 = ssub.s32 %s12, %s19
      %p151 = scmp.eq.s32.totalorder %s150, 0
      %s153 = sadd.s32 %s152, 1
      %s154 = scalar_select %p151, %s152, %s153
      %p157 = pneg %p151
      %p158 = scmp.eq.s32.totalorder %s12, 1
      %p159 = por %p157, %p158
      %p160 = scmp.ne.s32.totalorder %s152, %s155
      %p161 = scmp.eq.s32.totalorder %s12, 0
      %p162 = por %p160, %p161
      %p163 = scmp.ne.s32.totalorder %s152, %s155
      %p164 = scmp.eq.s32.totalorder %s17, 1
      %p165 = por %p163, %p164
      %p166 = scmp.ne.s32.totalorder %s155, %s156
      %p167 = scmp.eq.s32.totalorder %s17, 0
      %p168 = por %p166, %p167
      %p169 = scmp.ne.s32.totalorder %s155, %s156
      %p170 = scmp.eq.s32.totalorder %s18, 1
      %p171 = por %p169, %p170
      %p173 = scmp.ne.s32.totalorder %s156, %s172
      %p174 = scmp.eq.s32.totalorder %s18, 0
      %p175 = por %p173, %p174
      %p176 = scmp.le.s32.totalorder 1, %s12
      %p177 = scmp.lt.s32.totalorder %s12, 3
      %p178 = pnand %p176, %p177
      %p179 = pneg %p178
      // Predicated region
      $region9: #{lno3d_forward.7} parent=5 // pred_check
        _
      $region10: #{lno3d_forward.7} parent=5 // pred_check_branch
        %181 = sbr.rel (%p178) target = $region12
      $region11: #{lno3d_forward.7} parent=5 // pred_region
        %s182 = ssub.s32 %s12, 1
      $region12: #{lno3d_forward.7} parent=5 // pred_fallthru
        _
      %p183 = scmp.lt.s32.totalorder %s12, 2
      // Predicated region
      $region13: #{lno3d_forward.7} parent=5 // pred_check
        %p184 = pneg %p183
      $region14: #{lno3d_forward.7} parent=5 // pred_check_branch
        %186 = sbr.rel (%p184) target = $region16
      $region15: #{lno3d_forward.7} parent=5 // pred_region
        // Predicated region
        $region17: #{lno3d_forward.7} parent=15 // pred_check
          %p187 = pneg %p32
        $region18: #{lno3d_forward.7} parent=15 // pred_check_branch
          %189 = sbr.rel (%p187) target = $region20
        $region19: #{lno3d_forward.7} parent=15 // pred_region
          %s190 = sand.u32 %s22, 1
          %s191 = sand.u32 %s22, 1
          %s192 = smul.addr %s191, 32
          %s193 = scalar_lea.vmem [#allocation2], %s192
          %s194 = smul.u32 2, %s12
          %s195 = smul.addr %s194, 8
          %s196 = scalar_lea.vmem %s0, %s195
          // Predicated region
          $region21: #{lno3d_forward.7} parent=19 // pred_check
            _
          $region22: #{lno3d_forward.7} parent=19 // pred_check_branch
            %198 = sbr.rel (0) target = $region24
          $region23: #{lno3d_forward.7} parent=19 // pred_region
            // Predicated region
            $region25: #{lno3d_forward.7} parent=23 // pred_check
              _
            $region26: #{lno3d_forward.7} parent=23 // pred_check_branch
              %200 = sbr.rel (0) target = $region28
            $region27: #{lno3d_forward.7} parent=23 // pred_region
              loop: start=0, step=1, limit=1
              $region29: #{lno3d_forward.7} parent=27 // loop_pre_header
                _
              $region30: #{lno3d_forward.7} parent=27 // loop_header
                %s202 = sphi 0, %s206
                %p203 = scmp.ge.s32.totalorder %s202, 1
                %s207 = sphi %s196, %s196
                %s208 = sphi %s193, %s193
              $region31: #{lno3d_forward.7} parent=27 // loop_header_branch
                %205 = sbr.rel (%p203) target = $region35
              $region32: #{lno3d_forward.7} parent=27 // loop_body
                %v209 = vld [vmem:[%s207] sm:$0xff]
                %210 = vst [vmem:[%s208] sm:$0xff] %v209
                %v211 = vld [vmem:[%s207 + $0x8] sm:$0xff]
                %212 = vst [vmem:[%s208 + $0x8] sm:$0xff] %v211
                %v213 = vld [vmem:[%s207 + $0x20] sm:$0xff]
                %214 = vst [vmem:[%s208 + $0x10] sm:$0xff] %v213
                %v215 = vld [vmem:[%s207 + $0x28] sm:$0xff]
                %216 = vst [vmem:[%s208 + $0x18] sm:$0xff] %v215
              $region33: #{lno3d_forward.7} parent=27 // loop_footer
                %s206 = sadd.s32 1, %s202
              $region34: #{lno3d_forward.7} parent=27 // loop_footer_branch
                %201 = sbr.rel target = $region30
              $region35: #{lno3d_forward.7} parent=27 // loop_exit
                _
            $region28: #{lno3d_forward.7} parent=23 // pred_fallthru
              _
            // Predicated region
            $region36: #{lno3d_forward.7} parent=23 // pred_check
              _
            $region37: #{lno3d_forward.7} parent=23 // pred_check_branch
              %218 = sbr.rel target = $region39
            $region38: #{lno3d_forward.7} parent=23 // pred_region
              _
            $region39: #{lno3d_forward.7} parent=23 // pred_fallthru
              _
          $region24: #{lno3d_forward.7} parent=19 // pred_fallthru
            _
          %219 = vnop
        $region20: #{lno3d_forward.7} parent=15 // pred_fallthru
          _
        // Predicated region
        $region40: #{lno3d_forward.7} parent=15 // pred_check
          %p220 = pneg %p58
        $region41: #{lno3d_forward.7} parent=15 // pred_check_branch
          %222 = sbr.rel (%p220) target = $region43
        $region42: #{lno3d_forward.7} parent=15 // pred_region
          %s223 = sand.u32 %s48, 1
          %s224 = sand.u32 %s48, 1
          %s225 = smul.addr %s224, 32
          %s226 = scalar_lea.vmem [#allocation3], %s225
          %s227 = smul.u32 2, %s12
          %s228 = smul.addr %s227, 8
          %s229 = scalar_lea.vmem %s1, %s228
          // Predicated region
          $region44: #{lno3d_forward.7} parent=42 // pred_check
            _
          $region45: #{lno3d_forward.7} parent=42 // pred_check_branch
            %231 = sbr.rel (0) target = $region47
          $region46: #{lno3d_forward.7} parent=42 // pred_region
            // Predicated region
            $region48: #{lno3d_forward.7} parent=46 // pred_check
              _
            $region49: #{lno3d_forward.7} parent=46 // pred_check_branch
              %233 = sbr.rel (0) target = $region51
            $region50: #{lno3d_forward.7} parent=46 // pred_region
              loop: start=0, step=1, limit=1
              $region52: #{lno3d_forward.7} parent=50 // loop_pre_header
                _
              $region53: #{lno3d_forward.7} parent=50 // loop_header
                %s235 = sphi 0, %s239
                %p236 = scmp.ge.s32.totalorder %s235, 1
                %s240 = sphi %s229, %s229
                %s241 = sphi %s226, %s226
              $region54: #{lno3d_forward.7} parent=50 // loop_header_branch
                %238 = sbr.rel (%p236) target = $region58
              $region55: #{lno3d_forward.7} parent=50 // loop_body
                %v242 = vld [vmem:[%s240] sm:$0xff]
                %243 = vst [vmem:[%s241] sm:$0xff] %v242
                %v244 = vld [vmem:[%s240 + $0x8] sm:$0xff]
                %245 = vst [vmem:[%s241 + $0x8] sm:$0xff] %v244
                %v246 = vld [vmem:[%s240 + $0x20] sm:$0xff]
                %247 = vst [vmem:[%s241 + $0x10] sm:$0xff] %v246
                %v248 = vld [vmem:[%s240 + $0x28] sm:$0xff]
                %249 = vst [vmem:[%s241 + $0x18] sm:$0xff] %v248
              $region56: #{lno3d_forward.7} parent=50 // loop_footer
                %s239 = sadd.s32 1, %s235
              $region57: #{lno3d_forward.7} parent=50 // loop_footer_branch
                %234 = sbr.rel target = $region53
              $region58: #{lno3d_forward.7} parent=50 // loop_exit
                _
            $region51: #{lno3d_forward.7} parent=46 // pred_fallthru
              _
            // Predicated region
            $region59: #{lno3d_forward.7} parent=46 // pred_check
              _
            $region60: #{lno3d_forward.7} parent=46 // pred_check_branch
              %251 = sbr.rel target = $region62
            $region61: #{lno3d_forward.7} parent=46 // pred_region
              _
            $region62: #{lno3d_forward.7} parent=46 // pred_fallthru
              _
          $region47: #{lno3d_forward.7} parent=42 // pred_fallthru
            _
          %252 = vnop
        $region43: #{lno3d_forward.7} parent=15 // pred_fallthru
          _
        // Predicated region
        $region63: #{lno3d_forward.7} parent=15 // pred_check
          %p253 = pneg %p84
        $region64: #{lno3d_forward.7} parent=15 // pred_check_branch
          %255 = sbr.rel (%p253) target = $region66
        $region65: #{lno3d_forward.7} parent=15 // pred_region
          %s256 = sand.u32 %s74, 1
          %s257 = sand.u32 %s74, 1
          %s258 = smul.addr %s257, 128
          %s259 = scalar_lea.vmem [#allocation4], %s258
          %s260 = smul.u32 2, %s12
          %s261 = smul.addr %s260, 8
          %s262 = scalar_lea.vmem %s2, %s261
          // Predicated region
          $region67: #{lno3d_forward.7} parent=65 // pred_check
            _
          $region68: #{lno3d_forward.7} parent=65 // pred_check_branch
            %264 = sbr.rel (0) target = $region70
          $region69: #{lno3d_forward.7} parent=65 // pred_region
            // Predicated region
            $region71: #{lno3d_forward.7} parent=69 // pred_check
              _
            $region72: #{lno3d_forward.7} parent=69 // pred_check_branch
              %266 = sbr.rel (0) target = $region74
            $region73: #{lno3d_forward.7} parent=69 // pred_region
              loop: start=0, step=1, limit=1
              $region75: #{lno3d_forward.7} parent=73 // loop_pre_header
                _
              $region76: #{lno3d_forward.7} parent=73 // loop_header
                %s268 = sphi 0, %s272
                %p269 = scmp.ge.s32.totalorder %s268, 1
                %s273 = sphi %s262, %s262
                %s274 = sphi %s259, %s259
              $region77: #{lno3d_forward.7} parent=73 // loop_header_branch
                %271 = sbr.rel (%p269) target = $region81
              $region78: #{lno3d_forward.7} parent=73 // loop_body
                %v275 = vld [vmem:[%s273] sm:$0xff]
                %276 = vst [vmem:[%s274] sm:$0xff] %v275
                %v277 = vld [vmem:[%s273 + $0x8] sm:$0xff]
                %278 = vst [vmem:[%s274 + $0x8] sm:$0xff] %v277
                %v279 = vld [vmem:[%s273 + $0x20] sm:$0xff]
                %280 = vst [vmem:[%s274 + $0x10] sm:$0xff] %v279
                %v281 = vld [vmem:[%s273 + $0x28] sm:$0xff]
                %282 = vst [vmem:[%s274 + $0x18] sm:$0xff] %v281
                %v283 = vld [vmem:[%s273 + $0x40] sm:$0xff]
                %284 = vst [vmem:[%s274 + $0x20] sm:$0xff] %v283
                %v285 = vld [vmem:[%s273 + $0x48] sm:$0xff]
                %286 = vst [vmem:[%s274 + $0x28] sm:$0xff] %v285
                %v287 = vld [vmem:[%s273 + $0x60] sm:$0xff]
                %288 = vst [vmem:[%s274 + $0x30] sm:$0xff] %v287
                %v289 = vld [vmem:[%s273 + $0x68] sm:$0xff]
                %290 = vst [vmem:[%s274 + $0x38] sm:$0xff] %v289
                %v291 = vld [vmem:[%s273 + $0x80] sm:$0xff]
                %292 = vst [vmem:[%s274 + $0x40] sm:$0xff] %v291
                %v293 = vld [vmem:[%s273 + $0x88] sm:$0xff]
                %294 = vst [vmem:[%s274 + $0x48] sm:$0xff] %v293
                %v295 = vld [vmem:[%s273 + $0xa0] sm:$0xff]
                %296 = vst [vmem:[%s274 + $0x50] sm:$0xff] %v295
                %v297 = vld [vmem:[%s273 + $0xa8] sm:$0xff]
                %298 = vst [vmem:[%s274 + $0x58] sm:$0xff] %v297
                %v299 = vld [vmem:[%s273 + $0xc0] sm:$0xff]
                %300 = vst [vmem:[%s274 + $0x60] sm:$0xff] %v299
                %v301 = vld [vmem:[%s273 + $0xc8] sm:$0xff]
                %302 = vst [vmem:[%s274 + $0x68] sm:$0xff] %v301
                %v303 = vld [vmem:[%s273 + $0xe0] sm:$0xff]
                %304 = vst [vmem:[%s274 + $0x70] sm:$0xff] %v303
                %v305 = vld [vmem:[%s273 + $0xe8] sm:$0xff]
                %306 = vst [vmem:[%s274 + $0x78] sm:$0xff] %v305
              $region79: #{lno3d_forward.7} parent=73 // loop_footer
                %s272 = sadd.s32 1, %s268
              $region80: #{lno3d_forward.7} parent=73 // loop_footer_branch
                %267 = sbr.rel target = $region76
              $region81: #{lno3d_forward.7} parent=73 // loop_exit
                _
            $region74: #{lno3d_forward.7} parent=69 // pred_fallthru
              _
            // Predicated region
            $region82: #{lno3d_forward.7} parent=69 // pred_check
              _
            $region83: #{lno3d_forward.7} parent=69 // pred_check_branch
              %308 = sbr.rel target = $region85
            $region84: #{lno3d_forward.7} parent=69 // pred_region
              _
            $region85: #{lno3d_forward.7} parent=69 // pred_fallthru
              _
          $region70: #{lno3d_forward.7} parent=65 // pred_fallthru
            _
          %309 = vnop
        $region66: #{lno3d_forward.7} parent=15 // pred_fallthru
          _
        // Predicated region
        $region86: #{lno3d_forward.7} parent=15 // pred_check
          %p310 = pneg %p110
        $region87: #{lno3d_forward.7} parent=15 // pred_check_branch
          %312 = sbr.rel (%p310) target = $region89
        $region88: #{lno3d_forward.7} parent=15 // pred_region
          %s313 = sand.u32 %s100, 1
          %s314 = sand.u32 %s100, 1
          %s315 = smul.addr %s314, 128
          %s316 = scalar_lea.vmem [#allocation5], %s315
          %s317 = smul.u32 2, %s12
          %s318 = smul.addr %s317, 8
          %s319 = scalar_lea.vmem %s3, %s318
          // Predicated region
          $region90: #{lno3d_forward.7} parent=88 // pred_check
            _
          $region91: #{lno3d_forward.7} parent=88 // pred_check_branch
            %321 = sbr.rel (0) target = $region93
          $region92: #{lno3d_forward.7} parent=88 // pred_region
            // Predicated region
            $region94: #{lno3d_forward.7} parent=92 // pred_check
              _
            $region95: #{lno3d_forward.7} parent=92 // pred_check_branch
              %323 = sbr.rel (0) target = $region97
            $region96: #{lno3d_forward.7} parent=92 // pred_region
              loop: start=0, step=1, limit=1
              $region98: #{lno3d_forward.7} parent=96 // loop_pre_header
                _
              $region99: #{lno3d_forward.7} parent=96 // loop_header
                %s325 = sphi 0, %s329
                %p326 = scmp.ge.s32.totalorder %s325, 1
                %s330 = sphi %s319, %s319
                %s331 = sphi %s316, %s316
              $region100: #{lno3d_forward.7} parent=96 // loop_header_branch
                %328 = sbr.rel (%p326) target = $region104
              $region101: #{lno3d_forward.7} parent=96 // loop_body
                %v332 = vld [vmem:[%s330] sm:$0xff]
                %333 = vst [vmem:[%s331] sm:$0xff] %v332
                %v334 = vld [vmem:[%s330 + $0x8] sm:$0xff]
                %335 = vst [vmem:[%s331 + $0x8] sm:$0xff] %v334
                %v336 = vld [vmem:[%s330 + $0x20] sm:$0xff]
                %337 = vst [vmem:[%s331 + $0x10] sm:$0xff] %v336
                %v338 = vld [vmem:[%s330 + $0x28] sm:$0xff]
                %339 = vst [vmem:[%s331 + $0x18] sm:$0xff] %v338
                %v340 = vld [vmem:[%s330 + $0x40] sm:$0xff]
                %341 = vst [vmem:[%s331 + $0x20] sm:$0xff] %v340
                %v342 = vld [vmem:[%s330 + $0x48] sm:$0xff]
                %343 = vst [vmem:[%s331 + $0x28] sm:$0xff] %v342
                %v344 = vld [vmem:[%s330 + $0x60] sm:$0xff]
                %345 = vst [vmem:[%s331 + $0x30] sm:$0xff] %v344
                %v346 = vld [vmem:[%s330 + $0x68] sm:$0xff]
                %347 = vst [vmem:[%s331 + $0x38] sm:$0xff] %v346
                %v348 = vld [vmem:[%s330 + $0x80] sm:$0xff]
                %349 = vst [vmem:[%s331 + $0x40] sm:$0xff] %v348
                %v350 = vld [vmem:[%s330 + $0x88] sm:$0xff]
                %351 = vst [vmem:[%s331 + $0x48] sm:$0xff] %v350
                %v352 = vld [vmem:[%s330 + $0xa0] sm:$0xff]
                %353 = vst [vmem:[%s331 + $0x50] sm:$0xff] %v352
                %v354 = vld [vmem:[%s330 + $0xa8] sm:$0xff]
                %355 = vst [vmem:[%s331 + $0x58] sm:$0xff] %v354
                %v356 = vld [vmem:[%s330 + $0xc0] sm:$0xff]
                %357 = vst [vmem:[%s331 + $0x60] sm:$0xff] %v356
                %v358 = vld [vmem:[%s330 + $0xc8] sm:$0xff]
                %359 = vst [vmem:[%s331 + $0x68] sm:$0xff] %v358
                %v360 = vld [vmem:[%s330 + $0xe0] sm:$0xff]
                %361 = vst [vmem:[%s331 + $0x70] sm:$0xff] %v360
                %v362 = vld [vmem:[%s330 + $0xe8] sm:$0xff]
                %363 = vst [vmem:[%s331 + $0x78] sm:$0xff] %v362
              $region102: #{lno3d_forward.7} parent=96 // loop_footer
                %s329 = sadd.s32 1, %s325
              $region103: #{lno3d_forward.7} parent=96 // loop_footer_branch
                %324 = sbr.rel target = $region99
              $region104: #{lno3d_forward.7} parent=96 // loop_exit
                _
            $region97: #{lno3d_forward.7} parent=92 // pred_fallthru
              _
            // Predicated region
            $region105: #{lno3d_forward.7} parent=92 // pred_check
              _
            $region106: #{lno3d_forward.7} parent=92 // pred_check_branch
              %365 = sbr.rel target = $region108
            $region107: #{lno3d_forward.7} parent=92 // pred_region
              _
            $region108: #{lno3d_forward.7} parent=92 // pred_fallthru
              _
          $region93: #{lno3d_forward.7} parent=88 // pred_fallthru
            _
          %366 = vnop
        $region89: #{lno3d_forward.7} parent=15 // pred_fallthru
          _
      $region16: #{lno3d_forward.7} parent=5 // pred_fallthru
        _
      %p367 = scmp.le.s32.totalorder 1, %s12
      %p368 = scmp.lt.s32.totalorder %s12, 3
      %p369 = pnand %p367, %p368
      %p370 = pneg %p369
      // Predicated region
      $region109: #{lno3d_forward.7} parent=5 // pred_check
        _
      $region110: #{lno3d_forward.7} parent=5 // pred_check_branch
        %372 = sbr.rel (%p369) target = $region112
      $region111: #{lno3d_forward.7} parent=5 // pred_region
        %s373 = ssub.s32 %s12, 1
        %s374 = sand.u32 %s25, 1
        %s375 = sand.u32 %s25, 1
        %s376 = smul.addr %s375, 32
        %s377 = scalar_lea.vmem [#allocation2], %s376
        // Predicated region
        $region113: #{lno3d_forward.7} parent=111 // pred_check
          %p378 = pneg %p38
        $region114: #{lno3d_forward.7} parent=111 // pred_check_branch
          %380 = sbr.rel (%p378) target = $region116
        $region115: #{lno3d_forward.7} parent=111 // pred_region
          _
        $region116: #{lno3d_forward.7} parent=111 // pred_fallthru
          _
        %s381 = sand.u32 %s51, 1
        %s382 = sand.u32 %s51, 1
        %s383 = smul.addr %s382, 32
        %s384 = scalar_lea.vmem [#allocation3], %s383
        // Predicated region
        $region117: #{lno3d_forward.7} parent=111 // pred_check
          %p385 = pneg %p64
        $region118: #{lno3d_forward.7} parent=111 // pred_check_branch
          %387 = sbr.rel (%p385) target = $region120
        $region119: #{lno3d_forward.7} parent=111 // pred_region
          _
        $region120: #{lno3d_forward.7} parent=111 // pred_fallthru
          _
        %s388 = sand.u32 %s77, 1
        %s389 = sand.u32 %s77, 1
        %s390 = smul.addr %s389, 128
        %s391 = scalar_lea.vmem [#allocation4], %s390
        // Predicated region
        $region121: #{lno3d_forward.7} parent=111 // pred_check
          %p392 = pneg %p90
        $region122: #{lno3d_forward.7} parent=111 // pred_check_branch
          %394 = sbr.rel (%p392) target = $region124
        $region123: #{lno3d_forward.7} parent=111 // pred_region
          _
        $region124: #{lno3d_forward.7} parent=111 // pred_fallthru
          _
        %s395 = sand.u32 %s103, 1
        %s396 = sand.u32 %s103, 1
        %s397 = smul.addr %s396, 128
        %s398 = scalar_lea.vmem [#allocation5], %s397
        // Predicated region
        $region125: #{lno3d_forward.7} parent=111 // pred_check
          %p399 = pneg %p116
        $region126: #{lno3d_forward.7} parent=111 // pred_check_branch
          %401 = sbr.rel (%p399) target = $region128
        $region127: #{lno3d_forward.7} parent=111 // pred_region
          _
        $region128: #{lno3d_forward.7} parent=111 // pred_fallthru
          _
        %s402 = sand.u32 %s25, 1
        %s403 = sand.u32 %s25, 1
        %s404 = smul.addr %s403, 32
        %s405 = scalar_lea.vmem [#allocation2], %s404
        %p406 = pneg %p38
        %p407 = pneg %p35
        %s408 = sand.u32 %s51, 1
        %s409 = sand.u32 %s51, 1
        %s410 = smul.addr %s409, 32
        %s411 = scalar_lea.vmem [#allocation3], %s410
        %p412 = pneg %p64
        %p413 = pneg %p61
        %s414 = sand.u32 %s77, 1
        %s415 = sand.u32 %s77, 1
        %s416 = smul.addr %s415, 128
        %s417 = scalar_lea.vmem [#allocation4], %s416
        %p418 = pneg %p90
        %p419 = pneg %p87
        %s420 = sand.u32 %s103, 1
        %s421 = sand.u32 %s103, 1
        %s422 = smul.addr %s421, 128
        %s423 = scalar_lea.vmem [#allocation5], %s422
        %p424 = pneg %p116
        %p425 = pneg %p113
        %p426 = pneg %p142
        %p427 = pneg %p139
        %s428 = sand.u32 %s129, 1
        %s429 = sand.u32 %s129, 1
        %s430 = smul.addr %s429, 32
        %s431 = scalar_lea.vmem [#allocation6], %s430
        %p432 = pneg %p168
        %p433 = pneg %p165
        %s434 = sand.u32 %s155, 1
        %s435 = sand.u32 %s155, 1
        %s436 = smul.addr %s435, 32
        %s437 = scalar_lea.vmem [#allocation7], %s436
        %s438 = smul.u32 2, %s17
        %s439 = smul.u32 2, %s17
        %s440 = smul.u32 2, %s17
        %s441 = smul.u32 2, %s17
        %s442 = smul.u32 2, %s17
        %s443 = smul.u32 2, %s17
        %v444 = vld [vmem:[%s391] sm:$0xff]
        %v445 = vld [vmem:[%s391 + $0x8] sm:$0xff]
        %v446 = vld [vmem:[%s398] sm:$0xff]
        %v447 = vld [vmem:[%s398 + $0x8] sm:$0xff]
        %v448 = vld [vmem:[%s377] ss:$8 sm:$0x3]
        %v449 = vld [vmem:[%s384] ss:$8 sm:$0x3]
        %v451 = vlaneseq
        %v452 = vshrl.u32 %v451, 7
        %v453 = vsub.s32 0, %v452
        %v454 = vrot.slane %v448, %v453
        %v455 = vlaneseq
        %v456 = vshrl.u32 %v455, 7
        %v457 = vsub.s32 1, %v456
        %v458 = vrot.slane %v448, %v457
        %v461 = vmul.f32 %v454, %v444
        %v462 = vmul.f32 %v458, %v445
        %v463 = vadd.f32 %v461, 0.0
        %v464 = vadd.f32 %v462, 0.0
        %v466 = vlaneseq
        %v467 = vshrl.u32 %v466, 7
        %v468 = vsub.s32 0, %v467
        %v469 = vrot.slane %v449, %v468
        %v470 = vlaneseq
        %v471 = vshrl.u32 %v470, 7
        %v472 = vsub.s32 1, %v471
        %v473 = vrot.slane %v449, %v472
        %v476 = vmul.f32 %v469, %v446
        %v477 = vmul.f32 %v473, %v447
        %v478 = vsub.f32 %v463, %v476
        %v479 = vsub.f32 %v464, %v477
        %v480 = vmul.f32 %v454, %v446
        %v481 = vmul.f32 %v458, %v447
        %v482 = vadd.f32 %v480, 0.0
        %v483 = vadd.f32 %v481, 0.0
        %v484 = vmul.f32 %v469, %v444
        %v485 = vmul.f32 %v473, %v445
        %v486 = vadd.f32 %v482, %v484
        %v487 = vadd.f32 %v483, %v485
        %s488 = scalar_lea.vmem %s391, 16 [#allocation4]
        %v489 = vld [vmem:[%s488] sm:$0xff]
        %v490 = vld [vmem:[%s488 + $0x8] sm:$0xff]
        %s491 = scalar_lea.vmem %s398, 16 [#allocation5]
        %v492 = vld [vmem:[%s491] sm:$0xff]
        %v493 = vld [vmem:[%s491 + $0x8] sm:$0xff]
        %s494 = scalar_lea.vmem %s377, 1 [#allocation2]
        %v495 = vld [vmem:[%s494] ss:$8 sm:$0x3]
        %s496 = scalar_lea.vmem %s384, 1 [#allocation3]
        %v497 = vld [vmem:[%s496] ss:$8 sm:$0x3]
        %v499 = vlaneseq
        %v500 = vshrl.u32 %v499, 7
        %v501 = vsub.s32 0, %v500
        %v502 = vrot.slane %v495, %v501
        %v503 = vlaneseq
        %v504 = vshrl.u32 %v503, 7
        %v505 = vsub.s32 1, %v504
        %v506 = vrot.slane %v495, %v505
        %v509 = vmul.f32 %v502, %v489
        %v510 = vmul.f32 %v506, %v490
        %v511 = vadd.f32 %v478, %v509
        %v512 = vadd.f32 %v479, %v510
        %v514 = vlaneseq
        %v515 = vshrl.u32 %v514, 7
        %v516 = vsub.s32 0, %v515
        %v517 = vrot.slane %v497, %v516
        %v518 = vlaneseq
        %v519 = vshrl.u32 %v518, 7
        %v520 = vsub.s32 1, %v519
        %v521 = vrot.slane %v497, %v520
        %v524 = vmul.f32 %v517, %v492
        %v525 = vmul.f32 %v521, %v493
        %v526 = vsub.f32 %v511, %v524
        %v527 = vsub.f32 %v512, %v525
        %v528 = vmul.f32 %v502, %v492
        %v529 = vmul.f32 %v506, %v493
        %v530 = vadd.f32 %v486, %v528
        %v531 = vadd.f32 %v487, %v529
        %v532 = vmul.f32 %v517, %v489
        %v533 = vmul.f32 %v521, %v490
        %v534 = vadd.f32 %v530, %v532
        %v535 = vadd.f32 %v531, %v533
        %s536 = scalar_lea.vmem %s391, 32 [#allocation4]
        %v537 = vld [vmem:[%s536] sm:$0xff]
        %v538 = vld [vmem:[%s536 + $0x8] sm:$0xff]
        %s539 = scalar_lea.vmem %s398, 32 [#allocation5]
        %v540 = vld [vmem:[%s539] sm:$0xff]
        %v541 = vld [vmem:[%s539 + $0x8] sm:$0xff]
        %s542 = scalar_lea.vmem %s377, 2 [#allocation2]
        %v543 = vld [vmem:[%s542] ss:$8 sm:$0x3]
        %s544 = scalar_lea.vmem %s384, 2 [#allocation3]
        %v545 = vld [vmem:[%s544] ss:$8 sm:$0x3]
        %v547 = vlaneseq
        %v548 = vshrl.u32 %v547, 7
        %v549 = vsub.s32 0, %v548
        %v550 = vrot.slane %v543, %v549
        %v551 = vlaneseq
        %v552 = vshrl.u32 %v551, 7
        %v553 = vsub.s32 1, %v552
        %v554 = vrot.slane %v543, %v553
        %v557 = vmul.f32 %v550, %v537
        %v558 = vmul.f32 %v554, %v538
        %v559 = vadd.f32 %v526, %v557
        %v560 = vadd.f32 %v527, %v558
        %v562 = vlaneseq
        %v563 = vshrl.u32 %v562, 7
        %v564 = vsub.s32 0, %v563
        %v565 = vrot.slane %v545, %v564
        %v566 = vlaneseq
        %v567 = vshrl.u32 %v566, 7
        %v568 = vsub.s32 1, %v567
        %v569 = vrot.slane %v545, %v568
        %v572 = vmul.f32 %v565, %v540
        %v573 = vmul.f32 %v569, %v541
        %v574 = vsub.f32 %v559, %v572
        %v575 = vsub.f32 %v560, %v573
        %v576 = vmul.f32 %v550, %v540
        %v577 = vmul.f32 %v554, %v541
        %v578 = vadd.f32 %v534, %v576
        %v579 = vadd.f32 %v535, %v577
        %v580 = vmul.f32 %v565, %v537
        %v581 = vmul.f32 %v569, %v538
        %v582 = vadd.f32 %v578, %v580
        %v583 = vadd.f32 %v579, %v581
        %s584 = scalar_lea.vmem %s391, 48 [#allocation4]
        %v585 = vld [vmem:[%s584] sm:$0xff]
        %v586 = vld [vmem:[%s584 + $0x8] sm:$0xff]
        %s587 = scalar_lea.vmem %s398, 48 [#allocation5]
        %v588 = vld [vmem:[%s587] sm:$0xff]
        %v589 = vld [vmem:[%s587 + $0x8] sm:$0xff]
        %s590 = scalar_lea.vmem %s377, 3 [#allocation2]
        %v591 = vld [vmem:[%s590] ss:$8 sm:$0x3]
        %s592 = scalar_lea.vmem %s384, 3 [#allocation3]
        %v593 = vld [vmem:[%s592] ss:$8 sm:$0x3]
        %v595 = vlaneseq
        %v596 = vshrl.u32 %v595, 7
        %v597 = vsub.s32 0, %v596
        %v598 = vrot.slane %v591, %v597
        %v599 = vlaneseq
        %v600 = vshrl.u32 %v599, 7
        %v601 = vsub.s32 1, %v600
        %v602 = vrot.slane %v591, %v601
        %v605 = vmul.f32 %v598, %v585
        %v606 = vmul.f32 %v602, %v586
        %v607 = vadd.f32 %v574, %v605
        %v608 = vadd.f32 %v575, %v606
        %v610 = vlaneseq
        %v611 = vshrl.u32 %v610, 7
        %v612 = vsub.s32 0, %v611
        %v613 = vrot.slane %v593, %v612
        %v614 = vlaneseq
        %v615 = vshrl.u32 %v614, 7
        %v616 = vsub.s32 1, %v615
        %v617 = vrot.slane %v593, %v616
        %v620 = vmul.f32 %v613, %v588
        %v621 = vmul.f32 %v617, %v589
        %v622 = vsub.f32 %v607, %v620
        %v623 = vsub.f32 %v608, %v621
        %v624 = vmul.f32 %v598, %v588
        %v625 = vmul.f32 %v602, %v589
        %v626 = vadd.f32 %v582, %v624
        %v627 = vadd.f32 %v583, %v625
        %v628 = vmul.f32 %v613, %v585
        %v629 = vmul.f32 %v617, %v586
        %v630 = vadd.f32 %v626, %v628
        %v631 = vadd.f32 %v627, %v629
        %s632 = scalar_lea.vmem %s391, 64 [#allocation4]
        %v633 = vld [vmem:[%s632] sm:$0xff]
        %v634 = vld [vmem:[%s632 + $0x8] sm:$0xff]
        %s635 = scalar_lea.vmem %s398, 64 [#allocation5]
        %v636 = vld [vmem:[%s635] sm:$0xff]
        %v637 = vld [vmem:[%s635 + $0x8] sm:$0xff]
        %s638 = scalar_lea.vmem %s377, 4 [#allocation2]
        %v639 = vld [vmem:[%s638] ss:$8 sm:$0x3]
        %s640 = scalar_lea.vmem %s384, 4 [#allocation3]
        %v641 = vld [vmem:[%s640] ss:$8 sm:$0x3]
        %v643 = vlaneseq
        %v644 = vshrl.u32 %v643, 7
        %v645 = vsub.s32 0, %v644
        %v646 = vrot.slane %v639, %v645
        %v647 = vlaneseq
        %v648 = vshrl.u32 %v647, 7
        %v649 = vsub.s32 1, %v648
        %v650 = vrot.slane %v639, %v649
        %v653 = vmul.f32 %v646, %v633
        %v654 = vmul.f32 %v650, %v634
        %v655 = vadd.f32 %v622, %v653
        %v656 = vadd.f32 %v623, %v654
        %v658 = vlaneseq
        %v659 = vshrl.u32 %v658, 7
        %v660 = vsub.s32 0, %v659
        %v661 = vrot.slane %v641, %v660
        %v662 = vlaneseq
        %v663 = vshrl.u32 %v662, 7
        %v664 = vsub.s32 1, %v663
        %v665 = vrot.slane %v641, %v664
        %v668 = vmul.f32 %v661, %v636
        %v669 = vmul.f32 %v665, %v637
        %v670 = vsub.f32 %v655, %v668
        %v671 = vsub.f32 %v656, %v669
        %v672 = vmul.f32 %v646, %v636
        %v673 = vmul.f32 %v650, %v637
        %v674 = vadd.f32 %v630, %v672
        %v675 = vadd.f32 %v631, %v673
        %v676 = vmul.f32 %v661, %v633
        %v677 = vmul.f32 %v665, %v634
        %v678 = vadd.f32 %v674, %v676
        %v679 = vadd.f32 %v675, %v677
        %s680 = scalar_lea.vmem %s391, 80 [#allocation4]
        %v681 = vld [vmem:[%s680] sm:$0xff]
        %v682 = vld [vmem:[%s680 + $0x8] sm:$0xff]
        %s683 = scalar_lea.vmem %s398, 80 [#allocation5]
        %v684 = vld [vmem:[%s683] sm:$0xff]
        %v685 = vld [vmem:[%s683 + $0x8] sm:$0xff]
        %s686 = scalar_lea.vmem %s377, 5 [#allocation2]
        %v687 = vld [vmem:[%s686] ss:$8 sm:$0x3]
        %s688 = scalar_lea.vmem %s384, 5 [#allocation3]
        %v689 = vld [vmem:[%s688] ss:$8 sm:$0x3]
        %v691 = vlaneseq
        %v692 = vshrl.u32 %v691, 7
        %v693 = vsub.s32 0, %v692
        %v694 = vrot.slane %v687, %v693
        %v695 = vlaneseq
        %v696 = vshrl.u32 %v695, 7
        %v697 = vsub.s32 1, %v696
        %v698 = vrot.slane %v687, %v697
        %v701 = vmul.f32 %v694, %v681
        %v702 = vmul.f32 %v698, %v682
        %v703 = vadd.f32 %v670, %v701
        %v704 = vadd.f32 %v671, %v702
        %v706 = vlaneseq
        %v707 = vshrl.u32 %v706, 7
        %v708 = vsub.s32 0, %v707
        %v709 = vrot.slane %v689, %v708
        %v710 = vlaneseq
        %v711 = vshrl.u32 %v710, 7
        %v712 = vsub.s32 1, %v711
        %v713 = vrot.slane %v689, %v712
        %v716 = vmul.f32 %v709, %v684
        %v717 = vmul.f32 %v713, %v685
        %v718 = vsub.f32 %v703, %v716
        %v719 = vsub.f32 %v704, %v717
        %v720 = vmul.f32 %v694, %v684
        %v721 = vmul.f32 %v698, %v685
        %v722 = vadd.f32 %v678, %v720
        %v723 = vadd.f32 %v679, %v721
        %v724 = vmul.f32 %v709, %v681
        %v725 = vmul.f32 %v713, %v682
        %v726 = vadd.f32 %v722, %v724
        %v727 = vadd.f32 %v723, %v725
        %s728 = scalar_lea.vmem %s391, 96 [#allocation4]
        %v729 = vld [vmem:[%s728] sm:$0xff]
        %v730 = vld [vmem:[%s728 + $0x8] sm:$0xff]
        %s731 = scalar_lea.vmem %s398, 96 [#allocation5]
        %v732 = vld [vmem:[%s731] sm:$0xff]
        %v733 = vld [vmem:[%s731 + $0x8] sm:$0xff]
        %s734 = scalar_lea.vmem %s377, 6 [#allocation2]
        %v735 = vld [vmem:[%s734] ss:$8 sm:$0x3]
        %s736 = scalar_lea.vmem %s384, 6 [#allocation3]
        %v737 = vld [vmem:[%s736] ss:$8 sm:$0x3]
        %v739 = vlaneseq
        %v740 = vshrl.u32 %v739, 7
        %v741 = vsub.s32 0, %v740
        %v742 = vrot.slane %v735, %v741
        %v743 = vlaneseq
        %v744 = vshrl.u32 %v743, 7
        %v745 = vsub.s32 1, %v744
        %v746 = vrot.slane %v735, %v745
        %v749 = vmul.f32 %v742, %v729
        %v750 = vmul.f32 %v746, %v730
        %v751 = vadd.f32 %v718, %v749
        %v752 = vadd.f32 %v719, %v750
        %v754 = vlaneseq
        %v755 = vshrl.u32 %v754, 7
        %v756 = vsub.s32 0, %v755
        %v757 = vrot.slane %v737, %v756
        %v758 = vlaneseq
        %v759 = vshrl.u32 %v758, 7
        %v760 = vsub.s32 1, %v759
        %v761 = vrot.slane %v737, %v760
        %v764 = vmul.f32 %v757, %v732
        %v765 = vmul.f32 %v761, %v733
        %v766 = vsub.f32 %v751, %v764
        %v767 = vsub.f32 %v752, %v765
        %v768 = vmul.f32 %v742, %v732
        %v769 = vmul.f32 %v746, %v733
        %v770 = vadd.f32 %v726, %v768
        %v771 = vadd.f32 %v727, %v769
        %v772 = vmul.f32 %v757, %v729
        %v773 = vmul.f32 %v761, %v730
        %v774 = vadd.f32 %v770, %v772
        %v775 = vadd.f32 %v771, %v773
        %s776 = scalar_lea.vmem %s391, 112 [#allocation4]
        %v777 = vld [vmem:[%s776] sm:$0xff]
        %v778 = vld [vmem:[%s776 + $0x8] sm:$0xff]
        %s779 = scalar_lea.vmem %s398, 112 [#allocation5]
        %v780 = vld [vmem:[%s779] sm:$0xff]
        %v781 = vld [vmem:[%s779 + $0x8] sm:$0xff]
        %s782 = scalar_lea.vmem %s377, 7 [#allocation2]
        %v783 = vld [vmem:[%s782] ss:$8 sm:$0x3]
        %s784 = scalar_lea.vmem %s384, 7 [#allocation3]
        %v785 = vld [vmem:[%s784] ss:$8 sm:$0x3]
        %v787 = vlaneseq
        %v788 = vshrl.u32 %v787, 7
        %v789 = vsub.s32 0, %v788
        %v790 = vrot.slane %v783, %v789
        %v791 = vlaneseq
        %v792 = vshrl.u32 %v791, 7
        %v793 = vsub.s32 1, %v792
        %v794 = vrot.slane %v783, %v793
        %v797 = vmul.f32 %v790, %v777
        %v798 = vmul.f32 %v794, %v778
        %v799 = vadd.f32 %v766, %v797
        %v800 = vadd.f32 %v767, %v798
        %v802 = vlaneseq
        %v803 = vshrl.u32 %v802, 7
        %v804 = vsub.s32 0, %v803
        %v805 = vrot.slane %v785, %v804
        %v806 = vlaneseq
        %v807 = vshrl.u32 %v806, 7
        %v808 = vsub.s32 1, %v807
        %v809 = vrot.slane %v785, %v808
        %v812 = vmul.f32 %v805, %v780
        %v813 = vmul.f32 %v809, %v781
        %v814 = vsub.f32 %v799, %v812
        %v815 = vsub.f32 %v800, %v813
        %v816 = vmul.f32 %v790, %v780
        %v817 = vmul.f32 %v794, %v781
        %v818 = vadd.f32 %v774, %v816
        %v819 = vadd.f32 %v775, %v817
        %v820 = vmul.f32 %v805, %v777
        %v821 = vmul.f32 %v809, %v778
        %v822 = vadd.f32 %v818, %v820
        %v823 = vadd.f32 %v819, %v821
        %824 = vst [vmem:[%s431] sm:$0xff] %v814
        %825 = vst [vmem:[%s431 + $0x8] sm:$0xff] %v815
        %826 = vst [vmem:[%s437] sm:$0xff] %v822
        %827 = vst [vmem:[%s437 + $0x8] sm:$0xff] %v823
        %v828 = vld [vmem:[%s391] sm:$0xff]
        %v829 = vld [vmem:[%s391 + $0x8] sm:$0xff]
        %v830 = vld [vmem:[%s398] sm:$0xff]
        %v831 = vld [vmem:[%s398 + $0x8] sm:$0xff]
        %s832 = scalar_lea.vmem %s377, 16 [#allocation2]
        %v833 = vld [vmem:[%s832] ss:$8 sm:$0x3]
        %s834 = scalar_lea.vmem %s384, 16 [#allocation3]
        %v835 = vld [vmem:[%s834] ss:$8 sm:$0x3]
        %v837 = vlaneseq
        %v838 = vshrl.u32 %v837, 7
        %v839 = vsub.s32 0, %v838
        %v840 = vrot.slane %v833, %v839
        %v841 = vlaneseq
        %v842 = vshrl.u32 %v841, 7
        %v843 = vsub.s32 1, %v842
        %v844 = vrot.slane %v833, %v843
        %v847 = vmul.f32 %v840, %v828
        %v848 = vmul.f32 %v844, %v829
        %v849 = vadd.f32 %v847, 0.0
        %v850 = vadd.f32 %v848, 0.0
        %v852 = vlaneseq
        %v853 = vshrl.u32 %v852, 7
        %v854 = vsub.s32 0, %v853
        %v855 = vrot.slane %v835, %v854
        %v856 = vlaneseq
        %v857 = vshrl.u32 %v856, 7
        %v858 = vsub.s32 1, %v857
        %v859 = vrot.slane %v835, %v858
        %v862 = vmul.f32 %v855, %v830
        %v863 = vmul.f32 %v859, %v831
        %v864 = vsub.f32 %v849, %v862
        %v865 = vsub.f32 %v850, %v863
        %v866 = vmul.f32 %v840, %v830
        %v867 = vmul.f32 %v844, %v831
        %v868 = vadd.f32 %v866, 0.0
        %v869 = vadd.f32 %v867, 0.0
        %v870 = vmul.f32 %v855, %v828
        %v871 = vmul.f32 %v859, %v829
        %v872 = vadd.f32 %v868, %v870
        %v873 = vadd.f32 %v869, %v871
        %v874 = vld [vmem:[%s488] sm:$0xff]
        %v875 = vld [vmem:[%s488 + $0x8] sm:$0xff]
        %v876 = vld [vmem:[%s491] sm:$0xff]
        %v877 = vld [vmem:[%s491 + $0x8] sm:$0xff]
        %s878 = scalar_lea.vmem %s377, 17 [#allocation2]
        %v879 = vld [vmem:[%s878] ss:$8 sm:$0x3]
        %s880 = scalar_lea.vmem %s384, 17 [#allocation3]
        %v881 = vld [vmem:[%s880] ss:$8 sm:$0x3]
        %v883 = vlaneseq
        %v884 = vshrl.u32 %v883, 7
        %v885 = vsub.s32 0, %v884
        %v886 = vrot.slane %v879, %v885
        %v887 = vlaneseq
        %v888 = vshrl.u32 %v887, 7
        %v889 = vsub.s32 1, %v888
        %v890 = vrot.slane %v879, %v889
        %v893 = vmul.f32 %v886, %v874
        %v894 = vmul.f32 %v890, %v875
        %v895 = vadd.f32 %v864, %v893
        %v896 = vadd.f32 %v865, %v894
        %v898 = vlaneseq
        %v899 = vshrl.u32 %v898, 7
        %v900 = vsub.s32 0, %v899
        %v901 = vrot.slane %v881, %v900
        %v902 = vlaneseq
        %v903 = vshrl.u32 %v902, 7
        %v904 = vsub.s32 1, %v903
        %v905 = vrot.slane %v881, %v904
        %v908 = vmul.f32 %v901, %v876
        %v909 = vmul.f32 %v905, %v877
        %v910 = vsub.f32 %v895, %v908
        %v911 = vsub.f32 %v896, %v909
        %v912 = vmul.f32 %v886, %v876
        %v913 = vmul.f32 %v890, %v877
        %v914 = vadd.f32 %v872, %v912
        %v915 = vadd.f32 %v873, %v913
        %v916 = vmul.f32 %v901, %v874
        %v917 = vmul.f32 %v905, %v875
        %v918 = vadd.f32 %v914, %v916
        %v919 = vadd.f32 %v915, %v917
        %v920 = vld [vmem:[%s536] sm:$0xff]
        %v921 = vld [vmem:[%s536 + $0x8] sm:$0xff]
        %v922 = vld [vmem:[%s539] sm:$0xff]
        %v923 = vld [vmem:[%s539 + $0x8] sm:$0xff]
        %s924 = scalar_lea.vmem %s377, 18 [#allocation2]
        %v925 = vld [vmem:[%s924] ss:$8 sm:$0x3]
        %s926 = scalar_lea.vmem %s384, 18 [#allocation3]
        %v927 = vld [vmem:[%s926] ss:$8 sm:$0x3]
        %v929 = vlaneseq
        %v930 = vshrl.u32 %v929, 7
        %v931 = vsub.s32 0, %v930
        %v932 = vrot.slane %v925, %v931
        %v933 = vlaneseq
        %v934 = vshrl.u32 %v933, 7
        %v935 = vsub.s32 1, %v934
        %v936 = vrot.slane %v925, %v935
        %v939 = vmul.f32 %v932, %v920
        %v940 = vmul.f32 %v936, %v921
        %v941 = vadd.f32 %v910, %v939
        %v942 = vadd.f32 %v911, %v940
        %v944 = vlaneseq
        %v945 = vshrl.u32 %v944, 7
        %v946 = vsub.s32 0, %v945
        %v947 = vrot.slane %v927, %v946
        %v948 = vlaneseq
        %v949 = vshrl.u32 %v948, 7
        %v950 = vsub.s32 1, %v949
        %v951 = vrot.slane %v927, %v950
        %v954 = vmul.f32 %v947, %v922
        %v955 = vmul.f32 %v951, %v923
        %v956 = vsub.f32 %v941, %v954
        %v957 = vsub.f32 %v942, %v955
        %v958 = vmul.f32 %v932, %v922
        %v959 = vmul.f32 %v936, %v923
        %v960 = vadd.f32 %v918, %v958
        %v961 = vadd.f32 %v919, %v959
        %v962 = vmul.f32 %v947, %v920
        %v963 = vmul.f32 %v951, %v921
        %v964 = vadd.f32 %v960, %v962
        %v965 = vadd.f32 %v961, %v963
        %v966 = vld [vmem:[%s584] sm:$0xff]
        %v967 = vld [vmem:[%s584 + $0x8] sm:$0xff]
        %v968 = vld [vmem:[%s587] sm:$0xff]
        %v969 = vld [vmem:[%s587 + $0x8] sm:$0xff]
        %s970 = scalar_lea.vmem %s377, 19 [#allocation2]
        %v971 = vld [vmem:[%s970] ss:$8 sm:$0x3]
        %s972 = scalar_lea.vmem %s384, 19 [#allocation3]
        %v973 = vld [vmem:[%s972] ss:$8 sm:$0x3]
        %v975 = vlaneseq
        %v976 = vshrl.u32 %v975, 7
        %v977 = vsub.s32 0, %v976
        %v978 = vrot.slane %v971, %v977
        %v979 = vlaneseq
        %v980 = vshrl.u32 %v979, 7
        %v981 = vsub.s32 1, %v980
        %v982 = vrot.slane %v971, %v981
        %v985 = vmul.f32 %v978, %v966
        %v986 = vmul.f32 %v982, %v967
        %v987 = vadd.f32 %v956, %v985
        %v988 = vadd.f32 %v957, %v986
        %v990 = vlaneseq
        %v991 = vshrl.u32 %v990, 7
        %v992 = vsub.s32 0, %v991
        %v993 = vrot.slane %v973, %v992
        %v994 = vlaneseq
        %v995 = vshrl.u32 %v994, 7
        %v996 = vsub.s32 1, %v995
        %v997 = vrot.slane %v973, %v996
        %v1000 = vmul.f32 %v993, %v968
        %v1001 = vmul.f32 %v997, %v969
        %v1002 = vsub.f32 %v987, %v1000
        %v1003 = vsub.f32 %v988, %v1001
        %v1004 = vmul.f32 %v978, %v968
        %v1005 = vmul.f32 %v982, %v969
        %v1006 = vadd.f32 %v964, %v1004
        %v1007 = vadd.f32 %v965, %v1005
        %v1008 = vmul.f32 %v993, %v966
        %v1009 = vmul.f32 %v997, %v967
        %v1010 = vadd.f32 %v1006, %v1008
        %v1011 = vadd.f32 %v1007, %v1009
        %v1012 = vld [vmem:[%s632] sm:$0xff]
        %v1013 = vld [vmem:[%s632 + $0x8] sm:$0xff]
        %v1014 = vld [vmem:[%s635] sm:$0xff]
        %v1015 = vld [vmem:[%s635 + $0x8] sm:$0xff]
        %s1016 = scalar_lea.vmem %s377, 20 [#allocation2]
        %v1017 = vld [vmem:[%s1016] ss:$8 sm:$0x3]
        %s1018 = scalar_lea.vmem %s384, 20 [#allocation3]
        %v1019 = vld [vmem:[%s1018] ss:$8 sm:$0x3]
        %v1021 = vlaneseq
        %v1022 = vshrl.u32 %v1021, 7
        %v1023 = vsub.s32 0, %v1022
        %v1024 = vrot.slane %v1017, %v1023
        %v1025 = vlaneseq
        %v1026 = vshrl.u32 %v1025, 7
        %v1027 = vsub.s32 1, %v1026
        %v1028 = vrot.slane %v1017, %v1027
        %v1031 = vmul.f32 %v1024, %v1012
        %v1032 = vmul.f32 %v1028, %v1013
        %v1033 = vadd.f32 %v1002, %v1031
        %v1034 = vadd.f32 %v1003, %v1032
        %v1036 = vlaneseq
        %v1037 = vshrl.u32 %v1036, 7
        %v1038 = vsub.s32 0, %v1037
        %v1039 = vrot.slane %v1019, %v1038
        %v1040 = vlaneseq
        %v1041 = vshrl.u32 %v1040, 7
        %v1042 = vsub.s32 1, %v1041
        %v1043 = vrot.slane %v1019, %v1042
        %v1046 = vmul.f32 %v1039, %v1014
        %v1047 = vmul.f32 %v1043, %v1015
        %v1048 = vsub.f32 %v1033, %v1046
        %v1049 = vsub.f32 %v1034, %v1047
        %v1050 = vmul.f32 %v1024, %v1014
        %v1051 = vmul.f32 %v1028, %v1015
        %v1052 = vadd.f32 %v1010, %v1050
        %v1053 = vadd.f32 %v1011, %v1051
        %v1054 = vmul.f32 %v1039, %v1012
        %v1055 = vmul.f32 %v1043, %v1013
        %v1056 = vadd.f32 %v1052, %v1054
        %v1057 = vadd.f32 %v1053, %v1055
        %v1058 = vld [vmem:[%s680] sm:$0xff]
        %v1059 = vld [vmem:[%s680 + $0x8] sm:$0xff]
        %v1060 = vld [vmem:[%s683] sm:$0xff]
        %v1061 = vld [vmem:[%s683 + $0x8] sm:$0xff]
        %s1062 = scalar_lea.vmem %s377, 21 [#allocation2]
        %v1063 = vld [vmem:[%s1062] ss:$8 sm:$0x3]
        %s1064 = scalar_lea.vmem %s384, 21 [#allocation3]
        %v1065 = vld [vmem:[%s1064] ss:$8 sm:$0x3]
        %v1067 = vlaneseq
        %v1068 = vshrl.u32 %v1067, 7
        %v1069 = vsub.s32 0, %v1068
        %v1070 = vrot.slane %v1063, %v1069
        %v1071 = vlaneseq
        %v1072 = vshrl.u32 %v1071, 7
        %v1073 = vsub.s32 1, %v1072
        %v1074 = vrot.slane %v1063, %v1073
        %v1077 = vmul.f32 %v1070, %v1058
        %v1078 = vmul.f32 %v1074, %v1059
        %v1079 = vadd.f32 %v1048, %v1077
        %v1080 = vadd.f32 %v1049, %v1078
        %v1082 = vlaneseq
        %v1083 = vshrl.u32 %v1082, 7
        %v1084 = vsub.s32 0, %v1083
        %v1085 = vrot.slane %v1065, %v1084
        %v1086 = vlaneseq
        %v1087 = vshrl.u32 %v1086, 7
        %v1088 = vsub.s32 1, %v1087
        %v1089 = vrot.slane %v1065, %v1088
        %v1092 = vmul.f32 %v1085, %v1060
        %v1093 = vmul.f32 %v1089, %v1061
        %v1094 = vsub.f32 %v1079, %v1092
        %v1095 = vsub.f32 %v1080, %v1093
        %v1096 = vmul.f32 %v1070, %v1060
        %v1097 = vmul.f32 %v1074, %v1061
        %v1098 = vadd.f32 %v1056, %v1096
        %v1099 = vadd.f32 %v1057, %v1097
        %v1100 = vmul.f32 %v1085, %v1058
        %v1101 = vmul.f32 %v1089, %v1059
        %v1102 = vadd.f32 %v1098, %v1100
        %v1103 = vadd.f32 %v1099, %v1101
        %v1104 = vld [vmem:[%s728] sm:$0xff]
        %v1105 = vld [vmem:[%s728 + $0x8] sm:$0xff]
        %v1106 = vld [vmem:[%s731] sm:$0xff]
        %v1107 = vld [vmem:[%s731 + $0x8] sm:$0xff]
        %s1108 = scalar_lea.vmem %s377, 22 [#allocation2]
        %v1109 = vld [vmem:[%s1108] ss:$8 sm:$0x3]
        %s1110 = scalar_lea.vmem %s384, 22 [#allocation3]
        %v1111 = vld [vmem:[%s1110] ss:$8 sm:$0x3]
        %v1113 = vlaneseq
        %v1114 = vshrl.u32 %v1113, 7
        %v1115 = vsub.s32 0, %v1114
        %v1116 = vrot.slane %v1109, %v1115
        %v1117 = vlaneseq
        %v1118 = vshrl.u32 %v1117, 7
        %v1119 = vsub.s32 1, %v1118
        %v1120 = vrot.slane %v1109, %v1119
        %v1123 = vmul.f32 %v1116, %v1104
        %v1124 = vmul.f32 %v1120, %v1105
        %v1125 = vadd.f32 %v1094, %v1123
        %v1126 = vadd.f32 %v1095, %v1124
        %v1128 = vlaneseq
        %v1129 = vshrl.u32 %v1128, 7
        %v1130 = vsub.s32 0, %v1129
        %v1131 = vrot.slane %v1111, %v1130
        %v1132 = vlaneseq
        %v1133 = vshrl.u32 %v1132, 7
        %v1134 = vsub.s32 1, %v1133
        %v1135 = vrot.slane %v1111, %v1134
        %v1138 = vmul.f32 %v1131, %v1106
        %v1139 = vmul.f32 %v1135, %v1107
        %v1140 = vsub.f32 %v1125, %v1138
        %v1141 = vsub.f32 %v1126, %v1139
        %v1142 = vmul.f32 %v1116, %v1106
        %v1143 = vmul.f32 %v1120, %v1107
        %v1144 = vadd.f32 %v1102, %v1142
        %v1145 = vadd.f32 %v1103, %v1143
        %v1146 = vmul.f32 %v1131, %v1104
        %v1147 = vmul.f32 %v1135, %v1105
        %v1148 = vadd.f32 %v1144, %v1146
        %v1149 = vadd.f32 %v1145, %v1147
        %v1150 = vld [vmem:[%s776] sm:$0xff]
        %v1151 = vld [vmem:[%s776 + $0x8] sm:$0xff]
        %v1152 = vld [vmem:[%s779] sm:$0xff]
        %v1153 = vld [vmem:[%s779 + $0x8] sm:$0xff]
        %s1154 = scalar_lea.vmem %s377, 23 [#allocation2]
        %v1155 = vld [vmem:[%s1154] ss:$8 sm:$0x3]
        %s1156 = scalar_lea.vmem %s384, 23 [#allocation3]
        %v1157 = vld [vmem:[%s1156] ss:$8 sm:$0x3]
        %v1159 = vlaneseq
        %v1160 = vshrl.u32 %v1159, 7
        %v1161 = vsub.s32 0, %v1160
        %v1162 = vrot.slane %v1155, %v1161
        %v1163 = vlaneseq
        %v1164 = vshrl.u32 %v1163, 7
        %v1165 = vsub.s32 1, %v1164
        %v1166 = vrot.slane %v1155, %v1165
        %v1169 = vmul.f32 %v1162, %v1150
        %v1170 = vmul.f32 %v1166, %v1151
        %v1171 = vadd.f32 %v1140, %v1169
        %v1172 = vadd.f32 %v1141, %v1170
        %v1174 = vlaneseq
        %v1175 = vshrl.u32 %v1174, 7
        %v1176 = vsub.s32 0, %v1175
        %v1177 = vrot.slane %v1157, %v1176
        %v1178 = vlaneseq
        %v1179 = vshrl.u32 %v1178, 7
        %v1180 = vsub.s32 1, %v1179
        %v1181 = vrot.slane %v1157, %v1180
        %v1184 = vmul.f32 %v1177, %v1152
        %v1185 = vmul.f32 %v1181, %v1153
        %v1186 = vsub.f32 %v1171, %v1184
        %v1187 = vsub.f32 %v1172, %v1185
        %v1188 = vmul.f32 %v1162, %v1152
        %v1189 = vmul.f32 %v1166, %v1153
        %v1190 = vadd.f32 %v1148, %v1188
        %v1191 = vadd.f32 %v1149, %v1189
        %v1192 = vmul.f32 %v1177, %v1150
        %v1193 = vmul.f32 %v1181, %v1151
        %v1194 = vadd.f32 %v1190, %v1192
        %v1195 = vadd.f32 %v1191, %v1193
        %1196 = vst [vmem:[%s431 + $0x10] sm:$0xff] %v1186
        %1197 = vst [vmem:[%s431 + $0x18] sm:$0xff] %v1187
        %1198 = vst [vmem:[%s437 + $0x10] sm:$0xff] %v1194
        %1199 = vst [vmem:[%s437 + $0x18] sm:$0xff] %v1195
        %s1200 = sand.u32 %s129, 1
        %s1201 = sand.u32 %s129, 1
        %s1202 = smul.addr %s1201, 32
        %s1203 = scalar_lea.vmem [#allocation6], %s1202
        %s1204 = sand.u32 %s155, 1
        %s1205 = sand.u32 %s155, 1
        %s1206 = smul.addr %s1205, 32
        %s1207 = scalar_lea.vmem [#allocation7], %s1206
        // Predicated region
        $region129: #{lno3d_forward.7} parent=111 // pred_check
          %p1208 = pneg %p139
        $region130: #{lno3d_forward.7} parent=111 // pred_check_branch
          %1210 = sbr.rel (%p1208) target = $region132
        $region131: #{lno3d_forward.7} parent=111 // pred_region
          %s1211 = smul.u32 2, %s17
          %s1212 = smul.addr %s1211, 8
          %s1213 = scalar_lea.vmem %s4, %s1212
          // Predicated region
          $region133: #{lno3d_forward.7} parent=131 // pred_check
            _
          $region134: #{lno3d_forward.7} parent=131 // pred_check_branch
            %1215 = sbr.rel (0) target = $region136
          $region135: #{lno3d_forward.7} parent=131 // pred_region
            // Predicated region
            $region137: #{lno3d_forward.7} parent=135 // pred_check
              _
            $region138: #{lno3d_forward.7} parent=135 // pred_check_branch
              %1217 = sbr.rel (0) target = $region140
            $region139: #{lno3d_forward.7} parent=135 // pred_region
              loop: start=0, step=1, limit=1
              $region141: #{lno3d_forward.7} parent=139 // loop_pre_header
                _
              $region142: #{lno3d_forward.7} parent=139 // loop_header
                %s1219 = sphi 0, %s1223
                %p1220 = scmp.ge.s32.totalorder %s1219, 1
                %s1224 = sphi %s1203, %s1203
                %s1225 = sphi %s1213, %s1213
              $region143: #{lno3d_forward.7} parent=139 // loop_header_branch
                %1222 = sbr.rel (%p1220) target = $region147
              $region144: #{lno3d_forward.7} parent=139 // loop_body
                %v1226 = vld [vmem:[%s1224] sm:$0xff]
                %1227 = vst [vmem:[%s1225] sm:$0xff] %v1226
                %v1228 = vld [vmem:[%s1224 + $0x8] sm:$0xff]
                %1229 = vst [vmem:[%s1225 + $0x8] sm:$0xff] %v1228
                %v1230 = vld [vmem:[%s1224 + $0x10] sm:$0xff]
                %1231 = vst [vmem:[%s1225 + $0x20] sm:$0xff] %v1230
                %v1232 = vld [vmem:[%s1224 + $0x18] sm:$0xff]
                %1233 = vst [vmem:[%s1225 + $0x28] sm:$0xff] %v1232
              $region145: #{lno3d_forward.7} parent=139 // loop_footer
                %s1223 = sadd.s32 1, %s1219
              $region146: #{lno3d_forward.7} parent=139 // loop_footer_branch
                %1218 = sbr.rel target = $region142
              $region147: #{lno3d_forward.7} parent=139 // loop_exit
                _
            $region140: #{lno3d_forward.7} parent=135 // pred_fallthru
              _
            // Predicated region
            $region148: #{lno3d_forward.7} parent=135 // pred_check
              _
            $region149: #{lno3d_forward.7} parent=135 // pred_check_branch
              %1235 = sbr.rel target = $region151
            $region150: #{lno3d_forward.7} parent=135 // pred_region
              _
            $region151: #{lno3d_forward.7} parent=135 // pred_fallthru
              _
          $region136: #{lno3d_forward.7} parent=131 // pred_fallthru
            _
          %1236 = vnop
        $region132: #{lno3d_forward.7} parent=111 // pred_fallthru
          _
        // Predicated region
        $region152: #{lno3d_forward.7} parent=111 // pred_check
          %p1237 = pneg %p165
        $region153: #{lno3d_forward.7} parent=111 // pred_check_branch
          %1239 = sbr.rel (%p1237) target = $region155
        $region154: #{lno3d_forward.7} parent=111 // pred_region
          %s1240 = smul.u32 2, %s17
          %s1241 = smul.addr %s1240, 8
          %s1242 = scalar_lea.vmem %s5, %s1241
          // Predicated region
          $region156: #{lno3d_forward.7} parent=154 // pred_check
            _
          $region157: #{lno3d_forward.7} parent=154 // pred_check_branch
            %1244 = sbr.rel (0) target = $region159
          $region158: #{lno3d_forward.7} parent=154 // pred_region
            // Predicated region
            $region160: #{lno3d_forward.7} parent=158 // pred_check
              _
            $region161: #{lno3d_forward.7} parent=158 // pred_check_branch
              %1246 = sbr.rel (0) target = $region163
            $region162: #{lno3d_forward.7} parent=158 // pred_region
              loop: start=0, step=1, limit=1
              $region164: #{lno3d_forward.7} parent=162 // loop_pre_header
                _
              $region165: #{lno3d_forward.7} parent=162 // loop_header
                %s1248 = sphi 0, %s1252
                %p1249 = scmp.ge.s32.totalorder %s1248, 1
                %s1253 = sphi %s1207, %s1207
                %s1254 = sphi %s1242, %s1242
              $region166: #{lno3d_forward.7} parent=162 // loop_header_branch
                %1251 = sbr.rel (%p1249) target = $region170
              $region167: #{lno3d_forward.7} parent=162 // loop_body
                %v1255 = vld [vmem:[%s1253] sm:$0xff]
                %1256 = vst [vmem:[%s1254] sm:$0xff] %v1255
                %v1257 = vld [vmem:[%s1253 + $0x8] sm:$0xff]
                %1258 = vst [vmem:[%s1254 + $0x8] sm:$0xff] %v1257
                %v1259 = vld [vmem:[%s1253 + $0x10] sm:$0xff]
                %1260 = vst [vmem:[%s1254 + $0x20] sm:$0xff] %v1259
                %v1261 = vld [vmem:[%s1253 + $0x18] sm:$0xff]
                %1262 = vst [vmem:[%s1254 + $0x28] sm:$0xff] %v1261
              $region168: #{lno3d_forward.7} parent=162 // loop_footer
                %s1252 = sadd.s32 1, %s1248
              $region169: #{lno3d_forward.7} parent=162 // loop_footer_branch
                %1247 = sbr.rel target = $region165
              $region170: #{lno3d_forward.7} parent=162 // loop_exit
                _
            $region163: #{lno3d_forward.7} parent=158 // pred_fallthru
              _
            // Predicated region
            $region171: #{lno3d_forward.7} parent=158 // pred_check
              _
            $region172: #{lno3d_forward.7} parent=158 // pred_check_branch
              %1264 = sbr.rel target = $region174
            $region173: #{lno3d_forward.7} parent=158 // pred_region
              _
            $region174: #{lno3d_forward.7} parent=158 // pred_fallthru
              _
          $region159: #{lno3d_forward.7} parent=154 // pred_fallthru
            _
          %1265 = vnop
        $region155: #{lno3d_forward.7} parent=111 // pred_fallthru
          _
      $region112: #{lno3d_forward.7} parent=5 // pred_fallthru
        _
      %p1266 = scmp.le.s32.totalorder 2, %s12
      // Predicated region
      $region175: #{lno3d_forward.7} parent=5 // pred_check
        %p1267 = pneg %p1266
      $region176: #{lno3d_forward.7} parent=5 // pred_check_branch
        %1269 = sbr.rel (%p1267) target = $region178
      $region177: #{lno3d_forward.7} parent=5 // pred_region
        %s1270 = ssub.s32 %s12, 2
        // Predicated region
        $region179: #{lno3d_forward.7} parent=177 // pred_check
          %p1271 = pneg %p145
        $region180: #{lno3d_forward.7} parent=177 // pred_check_branch
          %1273 = sbr.rel (%p1271) target = $region182
        $region181: #{lno3d_forward.7} parent=177 // pred_region
          %s1274 = sand.u32 %s130, 1
          %s1275 = sand.u32 %s130, 1
          %s1276 = smul.addr %s1275, 32
          %s1277 = scalar_lea.vmem [#allocation6], %s1276
        $region182: #{lno3d_forward.7} parent=177 // pred_fallthru
          _
        // Predicated region
        $region183: #{lno3d_forward.7} parent=177 // pred_check
          %p1278 = pneg %p171
        $region184: #{lno3d_forward.7} parent=177 // pred_check_branch
          %1280 = sbr.rel (%p1278) target = $region186
        $region185: #{lno3d_forward.7} parent=177 // pred_region
          %s1281 = sand.u32 %s156, 1
          %s1282 = sand.u32 %s156, 1
          %s1283 = smul.addr %s1282, 32
          %s1284 = scalar_lea.vmem [#allocation7], %s1283
        $region186: #{lno3d_forward.7} parent=177 // pred_fallthru
          _
      $region178: #{lno3d_forward.7} parent=5 // pred_fallthru
        _
    $region6: #{lno3d_forward.7} parent=1 // loop_footer
      %s16 = sadd.s32 1, %s12
    $region7: #{lno3d_forward.7} parent=1 // loop_footer_branch
      %11 = sbr.rel target = $region3
    $region8: #{lno3d_forward.7} parent=1 // loop_exit
      _

// kernel: lno3d_forward.8
$region0: #{lno3d_forward.8}
  #allocation0 [shape = 'u32[]', space=smem, size = 0x4, offset = 0x4, fixed_abs, tag = 'smem constant byte address 0x4 - core index']
  #allocation1 [shape = 'u32[144,128]{1,0:T(1,128)}', space=vmem, size = 0x12000, scoped, tag = 'internal scratch']
  %s0 = inlined_call_operand.vmem [shape: f32[16,512], index: 0, kind: input, shape index: {}]
  %s1 = inlined_call_operand.vmem [shape: f32[16,1], index: 1, kind: output, shape index: {0}]
  %s2 = inlined_call_operand.vmem [shape: f32[16,1], index: 2, kind: output, shape index: {1}]
  %3 = xla_tuple %s1, %s2
  %s4 = sld [smem:[#allocation0]]
  $region45: #{lno3d_forward.8} parent=0
    _
  %s6 = ssub.s32 1, %s4
  %s7 = scalar_select 0, %s6, %s4
  loop: start=0, step=1, limit=4
  $region2: #{lno3d_forward.8} parent=0 // loop_pre_header
    _
  $region3: #{lno3d_forward.8} parent=0 // loop_header
    %s9 = sphi 0, %s13
    %p10 = scmp.ge.s32.totalorder %s9, 4
    %s19 = sphi 0, %s21
    %s22 = sphi 0, %s19
    %s23 = sphi 0, %s22
    %s39 = sphi 0, %s23
    %s45 = sphi 0, %s47
    %s48 = sphi 0, %s45
    %s49 = sphi 0, %s48
    %s65 = sphi 0, %s49
    %s71 = sphi 0, %s73
    %s74 = sphi 0, %s71
    %s75 = sphi 0, %s74
    %s91 = sphi 0, %s75
  $region4: #{lno3d_forward.8} parent=0 // loop_header_branch
    %12 = sbr.rel (%p10) target = $region8
  $region5: #{lno3d_forward.8} parent=0 // loop_body
    %s14 = ssub.s32 %s9, 1
    %s15 = ssub.s32 %s9, 2
    %s16 = sadd.s32 %s9, 1
    %s17 = ssub.s32 %s9, %s16
    %p18 = scmp.eq.s32.totalorder %s17, 0
    %s20 = sadd.s32 %s19, 1
    %s21 = scalar_select %p18, %s19, %s20
    %p24 = pneg %p18
    %p25 = scmp.eq.s32.totalorder %s9, 1
    %p26 = por %p24, %p25
    %p27 = scmp.ne.s32.totalorder %s19, %s22
    %p28 = scmp.eq.s32.totalorder %s9, 0
    %p29 = por %p27, %p28
    %p30 = scmp.ne.s32.totalorder %s19, %s22
    %p31 = scmp.eq.s32.totalorder %s14, 1
    %p32 = por %p30, %p31
    %p33 = scmp.ne.s32.totalorder %s22, %s23
    %p34 = scmp.eq.s32.totalorder %s14, 0
    %p35 = por %p33, %p34
    %p36 = scmp.ne.s32.totalorder %s22, %s23
    %p37 = scmp.eq.s32.totalorder %s15, 1
    %p38 = por %p36, %p37
    %p40 = scmp.ne.s32.totalorder %s23, %s39
    %p41 = scmp.eq.s32.totalorder %s15, 0
    %p42 = por %p40, %p41
    %s43 = ssub.s32 %s9, %s16
    %p44 = scmp.eq.s32.totalorder %s43, 0
    %s46 = sadd.s32 %s45, 1
    %s47 = scalar_select %p44, %s45, %s46
    %p50 = pneg %p44
    %p51 = scmp.eq.s32.totalorder %s9, 1
    %p52 = por %p50, %p51
    %p53 = scmp.ne.s32.totalorder %s45, %s48
    %p54 = scmp.eq.s32.totalorder %s9, 0
    %p55 = por %p53, %p54
    %p56 = scmp.ne.s32.totalorder %s45, %s48
    %p57 = scmp.eq.s32.totalorder %s14, 1
    %p58 = por %p56, %p57
    %p59 = scmp.ne.s32.totalorder %s48, %s49
    %p60 = scmp.eq.s32.totalorder %s14, 0
    %p61 = por %p59, %p60
    %p62 = scmp.ne.s32.totalorder %s48, %s49
    %p63 = scmp.eq.s32.totalorder %s15, 1
    %p64 = por %p62, %p63
    %p66 = scmp.ne.s32.totalorder %s49, %s65
    %p67 = scmp.eq.s32.totalorder %s15, 0
    %p68 = por %p66, %p67
    %s69 = ssub.s32 %s9, %s16
    %p70 = scmp.eq.s32.totalorder %s69, 0
    %s72 = sadd.s32 %s71, 1
    %s73 = scalar_select %p70, %s71, %s72
    %p76 = pneg %p70
    %p77 = scmp.eq.s32.totalorder %s9, 1
    %p78 = por %p76, %p77
    %p79 = scmp.ne.s32.totalorder %s71, %s74
    %p80 = scmp.eq.s32.totalorder %s9, 0
    %p81 = por %p79, %p80
    %p82 = scmp.ne.s32.totalorder %s71, %s74
    %p83 = scmp.eq.s32.totalorder %s14, 1
    %p84 = por %p82, %p83
    %p85 = scmp.ne.s32.totalorder %s74, %s75
    %p86 = scmp.eq.s32.totalorder %s14, 0
    %p87 = por %p85, %p86
    %p88 = scmp.ne.s32.totalorder %s74, %s75
    %p89 = scmp.eq.s32.totalorder %s15, 1
    %p90 = por %p88, %p89
    %p92 = scmp.ne.s32.totalorder %s75, %s91
    %p93 = scmp.eq.s32.totalorder %s15, 0
    %p94 = por %p92, %p93
    %p95 = scmp.le.s32.totalorder 1, %s9
    %p96 = scmp.lt.s32.totalorder %s9, 3
    %p97 = pnand %p95, %p96
    %p98 = pneg %p97
    // Predicated region
    $region9: #{lno3d_forward.8} parent=5 // pred_check
      _
    $region10: #{lno3d_forward.8} parent=5 // pred_check_branch
      %100 = sbr.rel (%p97) target = $region12
    $region11: #{lno3d_forward.8} parent=5 // pred_region
      %s101 = ssub.s32 %s9, 1
    $region12: #{lno3d_forward.8} parent=5 // pred_fallthru
      _
    %p102 = scmp.lt.s32.totalorder %s9, 2
    // Predicated region
    $region13: #{lno3d_forward.8} parent=5 // pred_check
      %p103 = pneg %p102
    $region14: #{lno3d_forward.8} parent=5 // pred_check_branch
      %105 = sbr.rel (%p103) target = $region16
    $region15: #{lno3d_forward.8} parent=5 // pred_region
      // Predicated region
      $region17: #{lno3d_forward.8} parent=15 // pred_check
        %p106 = pneg %p29
      $region18: #{lno3d_forward.8} parent=15 // pred_check_branch
        %108 = sbr.rel (%p106) target = $region20
      $region19: #{lno3d_forward.8} parent=15 // pred_region
        %p109 = scmp.lt.s32.totalorder %s9, 1
        %s110 = scalar_select %p109, %s9, 1
        %s111 = smul.addr %s110, 4
        %s112 = smul.addr %s111, 8
        %s113 = scalar_lea.vmem %s0, %s112
      $region20: #{lno3d_forward.8} parent=15 // pred_fallthru
        _
    $region16: #{lno3d_forward.8} parent=5 // pred_fallthru
      _
    %p114 = scmp.le.s32.totalorder 1, %s9
    %p115 = scmp.lt.s32.totalorder %s9, 3
    %p116 = pnand %p114, %p115
    %p117 = pneg %p116
    // Predicated region
    $region21: #{lno3d_forward.8} parent=5 // pred_check
      _
    $region22: #{lno3d_forward.8} parent=5 // pred_check_branch
      %119 = sbr.rel (%p116) target = $region24
    $region23: #{lno3d_forward.8} parent=5 // pred_region
      %s120 = ssub.s32 %s9, 1
      %p121 = scmp.lt.s32.totalorder %s14, 1
      %s122 = scalar_select %p121, %s14, 1
      %s123 = smul.addr %s122, 4
      %s124 = smul.addr %s123, 8
      %s125 = scalar_lea.vmem %s0, %s124
      %p126 = pneg %p35
      %p127 = pneg %p32
      %p128 = pneg %p61
      %p129 = pneg %p58
      %p130 = scmp.lt.s32.totalorder %s14, 1
      %s131 = scalar_select %p130, %s14, 1
      %s132 = smul.addr %s131, 8
      %s133 = scalar_lea.vmem %s1, %s132
      %p134 = pneg %p87
      %p135 = pneg %p84
      %p136 = scmp.lt.s32.totalorder %s14, 1
      %s137 = scalar_select %p136, %s14, 1
      %s138 = smul.addr %s137, 8
      %s139 = scalar_lea.vmem %s2, %s138
      %p140 = scmp.lt.s32.totalorder %s14, 1
      %s141 = scalar_select %p140, %s14, 1
      %s142 = smul.addr %s141, 4
      %s143 = smul.addr %s142, 8
      %s144 = scalar_lea.vmem %s0, %s143
      %p145 = scmp.lt.s32.totalorder %s14, 1
      %s146 = scalar_select %p145, %s14, 1
      %s147 = smul.addr %s146, 8
      %s148 = scalar_lea.vmem %s1, %s147
      %p149 = scmp.lt.s32.totalorder %s14, 1
      %s150 = scalar_select %p149, %s14, 1
      %s151 = smul.addr %s150, 8
      %s152 = scalar_lea.vmem %s2, %s151
      %v153 = vld [vmem:[%s144] sm:$0xff]
      %v154 = vld [vmem:[%s144 + $0x8] sm:$0xff]
      %v155 = vld [vmem:[%s144 + $0x10] sm:$0xff]
      %v156 = vld [vmem:[%s144 + $0x18] sm:$0xff]
      %v157 = vadd.f32 %v153, %v154
      %v158 = vadd.f32 %v157, %v155
      %v159 = vadd.f32 %v158, %v156
      %160 = vadd.xlane.f32.xlu0 %v159
      %v161 = vpop.xlane.xlu0 %160
      %v162 = vmul.f32 %v153, %v153
      %v163 = vmul.f32 %v154, %v154
      %v164 = vmul.f32 %v155, %v155
      %v165 = vmul.f32 %v156, %v156
      %v166 = vadd.f32 %v162, %v163
      %v167 = vadd.f32 %v166, %v164
      %v168 = vadd.f32 %v167, %v165
      %169 = vadd.xlane.f32.xlu0 %v168
      %v170 = vpop.xlane.xlu0 %169
      %v171 = vmul.f32 %v161, 0.001953125
      %v172 = vmul.f32 %v170, 0.001953125
      %v173 = vmul.f32 %v171, %v171
      %v174 = vsub.f32 %v172, %v173
      %v175 = vmax.f32 %v174, 0.0
      %vm176 = vcmask 7168
      %177 = vst.msk [vmem:[%s148] sm:$0xff] %vm176, %v171
      %v178 = vadd.f32 %v175, 1e-05
      %v179 = vrsqrt.pop %v178
      %180 = vst.msk [vmem:[%s152] sm:$0xff] %vm176, %v179
      %p181 = scmp.lt.s32.totalorder %s14, 1
      %s182 = scalar_select %p181, %s14, 1
      %s183 = smul.addr %s182, 8
      %s184 = scalar_lea.vmem %s1, %s183
      %p185 = scmp.lt.s32.totalorder %s14, 1
      %s186 = scalar_select %p185, %s14, 1
      %s187 = smul.addr %s186, 8
      %s188 = scalar_lea.vmem %s2, %s187
      // Predicated region
      $region25: #{lno3d_forward.8} parent=23 // pred_check
        %p189 = pneg %p58
      $region26: #{lno3d_forward.8} parent=23 // pred_check_branch
        %191 = sbr.rel (%p189) target = $region28
      $region27: #{lno3d_forward.8} parent=23 // pred_region
        _
      $region28: #{lno3d_forward.8} parent=23 // pred_fallthru
        _
      // Predicated region
      $region29: #{lno3d_forward.8} parent=23 // pred_check
        %p192 = pneg %p84
      $region30: #{lno3d_forward.8} parent=23 // pred_check_branch
        %194 = sbr.rel (%p192) target = $region32
      $region31: #{lno3d_forward.8} parent=23 // pred_region
        _
      $region32: #{lno3d_forward.8} parent=23 // pred_fallthru
        _
    $region24: #{lno3d_forward.8} parent=5 // pred_fallthru
      _
    %p195 = scmp.le.s32.totalorder 2, %s9
    // Predicated region
    $region33: #{lno3d_forward.8} parent=5 // pred_check
      %p196 = pneg %p195
    $region34: #{lno3d_forward.8} parent=5 // pred_check_branch
      %198 = sbr.rel (%p196) target = $region36
    $region35: #{lno3d_forward.8} parent=5 // pred_region
      %s199 = ssub.s32 %s9, 2
      // Predicated region
      $region37: #{lno3d_forward.8} parent=35 // pred_check
        %p200 = pneg %p64
      $region38: #{lno3d_forward.8} parent=35 // pred_check_branch
        %202 = sbr.rel (%p200) target = $region40
      $region39: #{lno3d_forward.8} parent=35 // pred_region
        %p203 = scmp.lt.s32.totalorder %s15, 1
        %s204 = scalar_select %p203, %s15, 1
        %s205 = smul.addr %s204, 8
        %s206 = scalar_lea.vmem %s1, %s205
      $region40: #{lno3d_forward.8} parent=35 // pred_fallthru
        _
      // Predicated region
      $region41: #{lno3d_forward.8} parent=35 // pred_check
        %p207 = pneg %p90
      $region42: #{lno3d_forward.8} parent=35 // pred_check_branch
        %209 = sbr.rel (%p207) target = $region44
      $region43: #{lno3d_forward.8} parent=35 // pred_region
        %p210 = scmp.lt.s32.totalorder %s15, 1
        %s211 = scalar_select %p210, %s15, 1
        %s212 = smul.addr %s211, 8
        %s213 = scalar_lea.vmem %s2, %s212
      $region44: #{lno3d_forward.8} parent=35 // pred_fallthru
        _
    $region36: #{lno3d_forward.8} parent=5 // pred_fallthru
      _
  $region6: #{lno3d_forward.8} parent=0 // loop_footer
    %s13 = sadd.s32 1, %s9
  $region7: #{lno3d_forward.8} parent=0 // loop_footer_branch
    %8 = sbr.rel target = $region3
  $region8: #{lno3d_forward.8} parent=0 // loop_exit
    _

// kernel: lno3d_forward.9
$region0: #{lno3d_forward.9}
  #allocation0 [shape = 'u32[]', space=smem, size = 0x4, offset = 0x4, fixed_abs, tag = 'smem constant byte address 0x4 - core index']
  #allocation1 [shape = 'u32[144,128]{1,0:T(1,128)}', space=vmem, size = 0x12000, scoped, tag = 'internal scratch']
  #allocation2 [shape = 'f32[1,1]{1,0:T(1,128)S(1)}', space=vmem, size = 0x200, scoped, tag = 'scoped memory for lno3d_forward.9']
  %s0 = inlined_call_operand.vmem [shape: f32[2,8,512], index: 0, kind: input, shape index: {}]
  %s1 = inlined_call_operand.vmem [shape: f32[2,8,512], index: 1, kind: input, shape index: {}]
  %s2 = inlined_call_operand.vmem [shape: f32[2,8,1], index: 2, kind: input, shape index: {}]
  %s3 = inlined_call_operand.vmem [shape: f32[2,8,1], index: 3, kind: input, shape index: {}]
  %s4 = inlined_call_operand.vmem [shape: f32[64,8], index: 4, kind: input, shape index: {}]
  %s5 = inlined_call_operand.vmem [shape: f32[64,8], index: 5, kind: input, shape index: {}]
  %s6 = inlined_call_operand.vmem [shape: f32[64,1], index: 6, kind: input, shape index: {}]
  %s7 = inlined_call_operand.vmem [shape: f32[1,64], index: 7, kind: input, shape index: {}]
  %s8 = inlined_call_operand.<no memory space> [shape: f32[1,1], index: 8, kind: input, shape index: {}]
  %s9 = inlined_call_operand.vmem [shape: f32[2,512], index: 9, kind: output, shape index: {}]
  %s10 = sld [smem:[#allocation0]]
  $region115: #{lno3d_forward.9} parent=0
    _
  %s12 = ssub.s32 1, %s10
  %s13 = scalar_select 0, %s12, %s10
  %v14 = vstv %s8
  %15 = vst [vmem:[#allocation2] sm:$0x1] %v14
  $region1: #{lno3d_forward.9} parent=0
    #allocation3 [shape = 'u8[32768]{0}', space=vmem, size = 0x8000, scoped, tag = 'input window, operand 0']
    #allocation4 [shape = 'u8[32768]{0}', space=vmem, size = 0x8000, scoped, tag = 'input window, operand 1']
    loop: start=0, step=1, limit=4
    $region2: #{lno3d_forward.9} parent=1 // loop_pre_header
      _
    $region3: #{lno3d_forward.9} parent=1 // loop_header
      %s17 = sphi 0, %s21
      %p18 = scmp.ge.s32.totalorder %s17, 4
      %s27 = sphi 0, %s29
      %s30 = sphi 0, %s27
      %s31 = sphi 0, %s30
      %s47 = sphi 0, %s31
      %s53 = sphi 0, %s55
      %s56 = sphi 0, %s53
      %s57 = sphi 0, %s56
      %s73 = sphi 0, %s57
      %s77 = sphi 0, %s77
      %s79 = sphi 0, %s77
      %s80 = sphi 0, %s79
      %s94 = sphi 0, %s80
      %s98 = sphi 0, %s98
      %s100 = sphi 0, %s98
      %s101 = sphi 0, %s100
      %s115 = sphi 0, %s101
      %s119 = sphi 0, %s119
      %s121 = sphi 0, %s119
      %s122 = sphi 0, %s121
      %s136 = sphi 0, %s122
      %s140 = sphi 0, %s140
      %s142 = sphi 0, %s140
      %s143 = sphi 0, %s142
      %s157 = sphi 0, %s143
      %s161 = sphi 0, %s161
      %s163 = sphi 0, %s161
      %s164 = sphi 0, %s163
      %s178 = sphi 0, %s164
      %s182 = sphi 0, %s182
      %s184 = sphi 0, %s182
      %s185 = sphi 0, %s184
      %s199 = sphi 0, %s185
      %s203 = sphi 0, %s203
      %s205 = sphi 0, %s203
      %s206 = sphi 0, %s205
      %s220 = sphi 0, %s206
      %s226 = sphi 0, %s228
      %s229 = sphi 0, %s226
      %s230 = sphi 0, %s229
      %s246 = sphi 0, %s230
    $region4: #{lno3d_forward.9} parent=1 // loop_header_branch
      %20 = sbr.rel (%p18) target = $region8
    $region5: #{lno3d_forward.9} parent=1 // loop_body
      %s22 = ssub.s32 %s17, 1
      %s23 = ssub.s32 %s17, 2
      %s24 = sadd.s32 %s17, 1
      %s25 = ssub.s32 %s17, %s24
      %p26 = scmp.eq.s32.totalorder %s25, 0
      %s28 = sadd.s32 %s27, 1
      %s29 = scalar_select %p26, %s27, %s28
      %p32 = pneg %p26
      %p33 = scmp.eq.s32.totalorder %s17, 1
      %p34 = por %p32, %p33
      %p35 = scmp.ne.s32.totalorder %s27, %s30
      %p36 = scmp.eq.s32.totalorder %s17, 0
      %p37 = por %p35, %p36
      %p38 = scmp.ne.s32.totalorder %s27, %s30
      %p39 = scmp.eq.s32.totalorder %s22, 1
      %p40 = por %p38, %p39
      %p41 = scmp.ne.s32.totalorder %s30, %s31
      %p42 = scmp.eq.s32.totalorder %s22, 0
      %p43 = por %p41, %p42
      %p44 = scmp.ne.s32.totalorder %s30, %s31
      %p45 = scmp.eq.s32.totalorder %s23, 1
      %p46 = por %p44, %p45
      %p48 = scmp.ne.s32.totalorder %s31, %s47
      %p49 = scmp.eq.s32.totalorder %s23, 0
      %p50 = por %p48, %p49
      %s51 = ssub.s32 %s17, %s24
      %p52 = scmp.eq.s32.totalorder %s51, 0
      %s54 = sadd.s32 %s53, 1
      %s55 = scalar_select %p52, %s53, %s54
      %p58 = pneg %p52
      %p59 = scmp.eq.s32.totalorder %s17, 1
      %p60 = por %p58, %p59
      %p61 = scmp.ne.s32.totalorder %s53, %s56
      %p62 = scmp.eq.s32.totalorder %s17, 0
      %p63 = por %p61, %p62
      %p64 = scmp.ne.s32.totalorder %s53, %s56
      %p65 = scmp.eq.s32.totalorder %s22, 1
      %p66 = por %p64, %p65
      %p67 = scmp.ne.s32.totalorder %s56, %s57
      %p68 = scmp.eq.s32.totalorder %s22, 0
      %p69 = por %p67, %p68
      %p70 = scmp.ne.s32.totalorder %s56, %s57
      %p71 = scmp.eq.s32.totalorder %s23, 1
      %p72 = por %p70, %p71
      %p74 = scmp.ne.s32.totalorder %s57, %s73
      %p75 = scmp.eq.s32.totalorder %s23, 0
      %p76 = por %p74, %p75
      %s78 = sadd.s32 %s77, 1
      %p81 = scmp.eq.s32.totalorder %s17, 1
      %p82 = scmp.ne.s32.totalorder %s77, %s79
      %p83 = scmp.eq.s32.totalorder %s17, 0
      %p84 = por %p82, %p83
      %p85 = scmp.ne.s32.totalorder %s77, %s79
      %p86 = scmp.eq.s32.totalorder %s22, 1
      %p87 = por %p85, %p86
      %p88 = scmp.ne.s32.totalorder %s79, %s80
      %p89 = scmp.eq.s32.totalorder %s22, 0
      %p90 = por %p88, %p89
      %p91 = scmp.ne.s32.totalorder %s79, %s80
      %p92 = scmp.eq.s32.totalorder %s23, 1
      %p93 = por %p91, %p92
      %p95 = scmp.ne.s32.totalorder %s80, %s94
      %p96 = scmp.eq.s32.totalorder %s23, 0
      %p97 = por %p95, %p96
      %s99 = sadd.s32 %s98, 1
      %p102 = scmp.eq.s32.totalorder %s17, 1
      %p103 = scmp.ne.s32.totalorder %s98, %s100
      %p104 = scmp.eq.s32.totalorder %s17, 0
      %p105 = por %p103, %p104
      %p106 = scmp.ne.s32.totalorder %s98, %s100
      %p107 = scmp.eq.s32.totalorder %s22, 1
      %p108 = por %p106, %p107
      %p109 = scmp.ne.s32.totalorder %s100, %s101
      %p110 = scmp.eq.s32.totalorder %s22, 0
      %p111 = por %p109, %p110
      %p112 = scmp.ne.s32.totalorder %s100, %s101
      %p113 = scmp.eq.s32.totalorder %s23, 1
      %p114 = por %p112, %p113
      %p116 = scmp.ne.s32.totalorder %s101, %s115
      %p117 = scmp.eq.s32.totalorder %s23, 0
      %p118 = por %p116, %p117
      %s120 = sadd.s32 %s119, 1
      %p123 = scmp.eq.s32.totalorder %s17, 1
      %p124 = scmp.ne.s32.totalorder %s119, %s121
      %p125 = scmp.eq.s32.totalorder %s17, 0
      %p126 = por %p124, %p125
      %p127 = scmp.ne.s32.totalorder %s119, %s121
      %p128 = scmp.eq.s32.totalorder %s22, 1
      %p129 = por %p127, %p128
      %p130 = scmp.ne.s32.totalorder %s121, %s122
      %p131 = scmp.eq.s32.totalorder %s22, 0
      %p132 = por %p130, %p131
      %p133 = scmp.ne.s32.totalorder %s121, %s122
      %p134 = scmp.eq.s32.totalorder %s23, 1
      %p135 = por %p133, %p134
      %p137 = scmp.ne.s32.totalorder %s122, %s136
      %p138 = scmp.eq.s32.totalorder %s23, 0
      %p139 = por %p137, %p138
      %s141 = sadd.s32 %s140, 1
      %p144 = scmp.eq.s32.totalorder %s17, 1
      %p145 = scmp.ne.s32.totalorder %s140, %s142
      %p146 = scmp.eq.s32.totalorder %s17, 0
      %p147 = por %p145, %p146
      %p148 = scmp.ne.s32.totalorder %s140, %s142
      %p149 = scmp.eq.s32.totalorder %s22, 1
      %p150 = por %p148, %p149
      %p151 = scmp.ne.s32.totalorder %s142, %s143
      %p152 = scmp.eq.s32.totalorder %s22, 0
      %p153 = por %p151, %p152
      %p154 = scmp.ne.s32.totalorder %s142, %s143
      %p155 = scmp.eq.s32.totalorder %s23, 1
      %p156 = por %p154, %p155
      %p158 = scmp.ne.s32.totalorder %s143, %s157
      %p159 = scmp.eq.s32.totalorder %s23, 0
      %p160 = por %p158, %p159
      %s162 = sadd.s32 %s161, 1
      %p165 = scmp.eq.s32.totalorder %s17, 1
      %p166 = scmp.ne.s32.totalorder %s161, %s163
      %p167 = scmp.eq.s32.totalorder %s17, 0
      %p168 = por %p166, %p167
      %p169 = scmp.ne.s32.totalorder %s161, %s163
      %p170 = scmp.eq.s32.totalorder %s22, 1
      %p171 = por %p169, %p170
      %p172 = scmp.ne.s32.totalorder %s163, %s164
      %p173 = scmp.eq.s32.totalorder %s22, 0
      %p174 = por %p172, %p173
      %p175 = scmp.ne.s32.totalorder %s163, %s164
      %p176 = scmp.eq.s32.totalorder %s23, 1
      %p177 = por %p175, %p176
      %p179 = scmp.ne.s32.totalorder %s164, %s178
      %p180 = scmp.eq.s32.totalorder %s23, 0
      %p181 = por %p179, %p180
      %s183 = sadd.s32 %s182, 1
      %p186 = scmp.eq.s32.totalorder %s17, 1
      %p187 = scmp.ne.s32.totalorder %s182, %s184
      %p188 = scmp.eq.s32.totalorder %s17, 0
      %p189 = por %p187, %p188
      %p190 = scmp.ne.s32.totalorder %s182, %s184
      %p191 = scmp.eq.s32.totalorder %s22, 1
      %p192 = por %p190, %p191
      %p193 = scmp.ne.s32.totalorder %s184, %s185
      %p194 = scmp.eq.s32.totalorder %s22, 0
      %p195 = por %p193, %p194
      %p196 = scmp.ne.s32.totalorder %s184, %s185
      %p197 = scmp.eq.s32.totalorder %s23, 1
      %p198 = por %p196, %p197
      %p200 = scmp.ne.s32.totalorder %s185, %s199
      %p201 = scmp.eq.s32.totalorder %s23, 0
      %p202 = por %p200, %p201
      %s204 = sadd.s32 %s203, 1
      %p207 = scmp.eq.s32.totalorder %s17, 1
      %p208 = scmp.ne.s32.totalorder %s203, %s205
      %p209 = scmp.eq.s32.totalorder %s17, 0
      %p210 = por %p208, %p209
      %p211 = scmp.ne.s32.totalorder %s203, %s205
      %p212 = scmp.eq.s32.totalorder %s22, 1
      %p213 = por %p211, %p212
      %p214 = scmp.ne.s32.totalorder %s205, %s206
      %p215 = scmp.eq.s32.totalorder %s22, 0
      %p216 = por %p214, %p215
      %p217 = scmp.ne.s32.totalorder %s205, %s206
      %p218 = scmp.eq.s32.totalorder %s23, 1
      %p219 = por %p217, %p218
      %p221 = scmp.ne.s32.totalorder %s206, %s220
      %p222 = scmp.eq.s32.totalorder %s23, 0
      %p223 = por %p221, %p222
      %s224 = ssub.s32 %s17, %s24
      %p225 = scmp.eq.s32.totalorder %s224, 0
      %s227 = sadd.s32 %s226, 1
      %s228 = scalar_select %p225, %s226, %s227
      %p231 = pneg %p225
      %p232 = scmp.eq.s32.totalorder %s17, 1
      %p233 = por %p231, %p232
      %p234 = scmp.ne.s32.totalorder %s226, %s229
      %p235 = scmp.eq.s32.totalorder %s17, 0
      %p236 = por %p234, %p235
      %p237 = scmp.ne.s32.totalorder %s226, %s229
      %p238 = scmp.eq.s32.totalorder %s22, 1
      %p239 = por %p237, %p238
      %p240 = scmp.ne.s32.totalorder %s229, %s230
      %p241 = scmp.eq.s32.totalorder %s22, 0
      %p242 = por %p240, %p241
      %p243 = scmp.ne.s32.totalorder %s229, %s230
      %p244 = scmp.eq.s32.totalorder %s23, 1
      %p245 = por %p243, %p244
      %p247 = scmp.ne.s32.totalorder %s230, %s246
      %p248 = scmp.eq.s32.totalorder %s23, 0
      %p249 = por %p247, %p248
      %p250 = scmp.le.s32.totalorder 1, %s17
      %p251 = scmp.lt.s32.totalorder %s17, 3
      %p252 = pnand %p250, %p251
      %p253 = pneg %p252
      // Predicated region
      $region9: #{lno3d_forward.9} parent=5 // pred_check
        _
      $region10: #{lno3d_forward.9} parent=5 // pred_check_branch
        %255 = sbr.rel (%p252) target = $region12
      $region11: #{lno3d_forward.9} parent=5 // pred_region
        %s256 = ssub.s32 %s17, 1
        // Predicated region
        $region13: #{lno3d_forward.9} parent=11 // pred_check
          %p257 = pneg %p90
        $region14: #{lno3d_forward.9} parent=11 // pred_check_branch
          %259 = sbr.rel (%p257) target = $region16
        $region15: #{lno3d_forward.9} parent=11 // pred_region
          _
        $region16: #{lno3d_forward.9} parent=11 // pred_fallthru
          _
        // Predicated region
        $region17: #{lno3d_forward.9} parent=11 // pred_check
          %p260 = pneg %p111
        $region18: #{lno3d_forward.9} parent=11 // pred_check_branch
          %262 = sbr.rel (%p260) target = $region20
        $region19: #{lno3d_forward.9} parent=11 // pred_region
          _
        $region20: #{lno3d_forward.9} parent=11 // pred_fallthru
          _
        // Predicated region
        $region21: #{lno3d_forward.9} parent=11 // pred_check
          %p263 = pneg %p132
        $region22: #{lno3d_forward.9} parent=11 // pred_check_branch
          %265 = sbr.rel (%p263) target = $region24
        $region23: #{lno3d_forward.9} parent=11 // pred_region
          _
        $region24: #{lno3d_forward.9} parent=11 // pred_fallthru
          _
        // Predicated region
        $region25: #{lno3d_forward.9} parent=11 // pred_check
          %p266 = pneg %p153
        $region26: #{lno3d_forward.9} parent=11 // pred_check_branch
          %268 = sbr.rel (%p266) target = $region28
        $region27: #{lno3d_forward.9} parent=11 // pred_region
          _
        $region28: #{lno3d_forward.9} parent=11 // pred_fallthru
          _
        // Predicated region
        $region29: #{lno3d_forward.9} parent=11 // pred_check
          %p269 = pneg %p174
        $region30: #{lno3d_forward.9} parent=11 // pred_check_branch
          %271 = sbr.rel (%p269) target = $region32
        $region31: #{lno3d_forward.9} parent=11 // pred_region
          _
        $region32: #{lno3d_forward.9} parent=11 // pred_fallthru
          _
        // Predicated region
        $region33: #{lno3d_forward.9} parent=11 // pred_check
          %p272 = pneg %p195
        $region34: #{lno3d_forward.9} parent=11 // pred_check_branch
          %274 = sbr.rel (%p272) target = $region36
        $region35: #{lno3d_forward.9} parent=11 // pred_region
          _
        $region36: #{lno3d_forward.9} parent=11 // pred_fallthru
          _
        // Predicated region
        $region37: #{lno3d_forward.9} parent=11 // pred_check
          %p275 = pneg %p216
        $region38: #{lno3d_forward.9} parent=11 // pred_check_branch
          %277 = sbr.rel (%p275) target = $region40
        $region39: #{lno3d_forward.9} parent=11 // pred_region
          _
        $region40: #{lno3d_forward.9} parent=11 // pred_fallthru
          _
      $region12: #{lno3d_forward.9} parent=5 // pred_fallthru
        _
      %p278 = scmp.lt.s32.totalorder %s17, 2
      // Predicated region
      $region41: #{lno3d_forward.9} parent=5 // pred_check
        %p279 = pneg %p278
      $region42: #{lno3d_forward.9} parent=5 // pred_check_branch
        %281 = sbr.rel (%p279) target = $region44
      $region43: #{lno3d_forward.9} parent=5 // pred_region
        // Predicated region
        $region45: #{lno3d_forward.9} parent=43 // pred_check
          %p282 = pneg %p37
        $region46: #{lno3d_forward.9} parent=43 // pred_check_branch
          %284 = sbr.rel (%p282) target = $region48
        $region47: #{lno3d_forward.9} parent=43 // pred_region
          %s285 = sand.u32 %s27, 1
          %s286 = sand.u32 %s27, 1
          %s287 = smul.addr %s286, 32
          %s288 = scalar_lea.vmem [#allocation3], %s287
          %s289 = smul.u32 2, %s17
          %s290 = smul.addr %s289, 8
          %s291 = scalar_lea.vmem %s0, %s290
          // Predicated region
          $region49: #{lno3d_forward.9} parent=47 // pred_check
            _
          $region50: #{lno3d_forward.9} parent=47 // pred_check_branch
            %293 = sbr.rel (0) target = $region52
          $region51: #{lno3d_forward.9} parent=47 // pred_region
            // Predicated region
            $region53: #{lno3d_forward.9} parent=51 // pred_check
              _
            $region54: #{lno3d_forward.9} parent=51 // pred_check_branch
              %295 = sbr.rel (0) target = $region56
            $region55: #{lno3d_forward.9} parent=51 // pred_region
              loop: start=0, step=1, limit=1
              $region57: #{lno3d_forward.9} parent=55 // loop_pre_header
                _
              $region58: #{lno3d_forward.9} parent=55 // loop_header
                %s297 = sphi 0, %s301
                %p298 = scmp.ge.s32.totalorder %s297, 1
                %s302 = sphi %s291, %s291
                %s303 = sphi %s288, %s288
              $region59: #{lno3d_forward.9} parent=55 // loop_header_branch
                %300 = sbr.rel (%p298) target = $region63
              $region60: #{lno3d_forward.9} parent=55 // loop_body
                %v304 = vld [vmem:[%s302] sm:$0xff]
                %305 = vst [vmem:[%s303] sm:$0xff] %v304
                %v306 = vld [vmem:[%s302 + $0x8] sm:$0xff]
                %307 = vst [vmem:[%s303 + $0x8] sm:$0xff] %v306
                %v308 = vld [vmem:[%s302 + $0x20] sm:$0xff]
                %309 = vst [vmem:[%s303 + $0x10] sm:$0xff] %v308
                %v310 = vld [vmem:[%s302 + $0x28] sm:$0xff]
                %311 = vst [vmem:[%s303 + $0x18] sm:$0xff] %v310
              $region61: #{lno3d_forward.9} parent=55 // loop_footer
                %s301 = sadd.s32 1, %s297
              $region62: #{lno3d_forward.9} parent=55 // loop_footer_branch
                %296 = sbr.rel target = $region58
              $region63: #{lno3d_forward.9} parent=55 // loop_exit
                _
            $region56: #{lno3d_forward.9} parent=51 // pred_fallthru
              _
            // Predicated region
            $region64: #{lno3d_forward.9} parent=51 // pred_check
              _
            $region65: #{lno3d_forward.9} parent=51 // pred_check_branch
              %313 = sbr.rel target = $region67
            $region66: #{lno3d_forward.9} parent=51 // pred_region
              _
            $region67: #{lno3d_forward.9} parent=51 // pred_fallthru
              _
          $region52: #{lno3d_forward.9} parent=47 // pred_fallthru
            _
          %314 = vnop
        $region48: #{lno3d_forward.9} parent=43 // pred_fallthru
          _
        // Predicated region
        $region68: #{lno3d_forward.9} parent=43 // pred_check
          %p315 = pneg %p63
        $region69: #{lno3d_forward.9} parent=43 // pred_check_branch
          %317 = sbr.rel (%p315) target = $region71
        $region70: #{lno3d_forward.9} parent=43 // pred_region
          %s318 = sand.u32 %s53, 1
          %s319 = sand.u32 %s53, 1
          %s320 = smul.addr %s319, 32
          %s321 = scalar_lea.vmem [#allocation4], %s320
          %s322 = smul.u32 2, %s17
          %s323 = smul.addr %s322, 8
          %s324 = scalar_lea.vmem %s1, %s323
          // Predicated region
          $region72: #{lno3d_forward.9} parent=70 // pred_check
            _
          $region73: #{lno3d_forward.9} parent=70 // pred_check_branch
            %326 = sbr.rel (0) target = $region75
          $region74: #{lno3d_forward.9} parent=70 // pred_region
            // Predicated region
            $region76: #{lno3d_forward.9} parent=74 // pred_check
              _
            $region77: #{lno3d_forward.9} parent=74 // pred_check_branch
              %328 = sbr.rel (0) target = $region79
            $region78: #{lno3d_forward.9} parent=74 // pred_region
              loop: start=0, step=1, limit=1
              $region80: #{lno3d_forward.9} parent=78 // loop_pre_header
                _
              $region81: #{lno3d_forward.9} parent=78 // loop_header
                %s330 = sphi 0, %s334
                %p331 = scmp.ge.s32.totalorder %s330, 1
                %s335 = sphi %s324, %s324
                %s336 = sphi %s321, %s321
              $region82: #{lno3d_forward.9} parent=78 // loop_header_branch
                %333 = sbr.rel (%p331) target = $region86
              $region83: #{lno3d_forward.9} parent=78 // loop_body
                %v337 = vld [vmem:[%s335] sm:$0xff]
                %338 = vst [vmem:[%s336] sm:$0xff] %v337
                %v339 = vld [vmem:[%s335 + $0x8] sm:$0xff]
                %340 = vst [vmem:[%s336 + $0x8] sm:$0xff] %v339
                %v341 = vld [vmem:[%s335 + $0x20] sm:$0xff]
                %342 = vst [vmem:[%s336 + $0x10] sm:$0xff] %v341
                %v343 = vld [vmem:[%s335 + $0x28] sm:$0xff]
                %344 = vst [vmem:[%s336 + $0x18] sm:$0xff] %v343
              $region84: #{lno3d_forward.9} parent=78 // loop_footer
                %s334 = sadd.s32 1, %s330
              $region85: #{lno3d_forward.9} parent=78 // loop_footer_branch
                %329 = sbr.rel target = $region81
              $region86: #{lno3d_forward.9} parent=78 // loop_exit
                _
            $region79: #{lno3d_forward.9} parent=74 // pred_fallthru
              _
            // Predicated region
            $region87: #{lno3d_forward.9} parent=74 // pred_check
              _
            $region88: #{lno3d_forward.9} parent=74 // pred_check_branch
              %346 = sbr.rel target = $region90
            $region89: #{lno3d_forward.9} parent=74 // pred_region
              _
            $region90: #{lno3d_forward.9} parent=74 // pred_fallthru
              _
          $region75: #{lno3d_forward.9} parent=70 // pred_fallthru
            _
          %347 = vnop
        $region71: #{lno3d_forward.9} parent=43 // pred_fallthru
          _
      $region44: #{lno3d_forward.9} parent=5 // pred_fallthru
        _
      %p348 = scmp.le.s32.totalorder 1, %s17
      %p349 = scmp.lt.s32.totalorder %s17, 3
      %p350 = pnand %p348, %p349
      %p351 = pneg %p350
      // Predicated region
      $region91: #{lno3d_forward.9} parent=5 // pred_check
        _
      $region92: #{lno3d_forward.9} parent=5 // pred_check_branch
        %353 = sbr.rel (%p350) target = $region94
      $region93: #{lno3d_forward.9} parent=5 // pred_region
        %s354 = ssub.s32 %s17, 1
        %s355 = sand.u32 %s30, 1
        %s356 = sand.u32 %s30, 1
        %s357 = smul.addr %s356, 32
        %s358 = scalar_lea.vmem [#allocation3], %s357
        // Predicated region
        $region95: #{lno3d_forward.9} parent=93 // pred_check
          %p359 = pneg %p43
        $region96: #{lno3d_forward.9} parent=93 // pred_check_branch
          %361 = sbr.rel (%p359) target = $region98
        $region97: #{lno3d_forward.9} parent=93 // pred_region
          _
        $region98: #{lno3d_forward.9} parent=93 // pred_fallthru
          _
        %s362 = sand.u32 %s56, 1
        %s363 = sand.u32 %s56, 1
        %s364 = smul.addr %s363, 32
        %s365 = scalar_lea.vmem [#allocation4], %s364
        // Predicated region
        $region99: #{lno3d_forward.9} parent=93 // pred_check
          %p366 = pneg %p69
        $region100: #{lno3d_forward.9} parent=93 // pred_check_branch
          %368 = sbr.rel (%p366) target = $region102
        $region101: #{lno3d_forward.9} parent=93 // pred_region
          _
        $region102: #{lno3d_forward.9} parent=93 // pred_fallthru
          _
        %s369 = sand.u32 %s30, 1
        %s370 = sand.u32 %s30, 1
        %s371 = smul.addr %s370, 32
        %s372 = scalar_lea.vmem [#allocation3], %s371
        %p373 = pneg %p43
        %p374 = pneg %p40
        %s375 = sand.u32 %s56, 1
        %s376 = sand.u32 %s56, 1
        %s377 = smul.addr %s376, 32
        %s378 = scalar_lea.vmem [#allocation4], %s377
        %p379 = pneg %p69
        %p380 = pneg %p66
        %p381 = pneg %p90
        %p382 = pneg %p87
        %p383 = pneg %p111
        %p384 = pneg %p108
        %p385 = pneg %p132
        %p386 = pneg %p129
        %p387 = pneg %p153
        %p388 = pneg %p150
        %p389 = pneg %p174
        %p390 = pneg %p171
        %p391 = pneg %p195
        %p392 = pneg %p192
        %p393 = pneg %p216
        %p394 = pneg %p213
        %p395 = pneg %p242
        %p396 = pneg %p239
        %s397 = smul.u32 2, %s22
        %p398 = scmp.lt.s32.totalorder %s397, 3
        %s399 = scalar_select %p398, %s397, 3
        %s400 = smul.addr %s399, 2
        %s401 = scalar_lea.vmem %s9, %s400
        %s402 = smul.u32 2, %s22
        %s403 = smul.u32 2, %s22
        %s404 = smul.u32 2, %s22
        %p405 = scmp.lt.s32.totalorder %s404, 3
        %s406 = scalar_select %p405, %s404, 3
        %s407 = smul.addr %s406, 2
        %s408 = scalar_lea.vmem %s9, %s407
        %s409 = smul.u32 2, %s22
        %v410 = vld [vmem:[%s4] sm:$0xff]
        %v411 = vld [vmem:[%s4 + $0x8] sm:$0xff]
        %v412 = vld [vmem:[%s4 + $0x10] sm:$0xff]
        %v413 = vld [vmem:[%s4 + $0x18] sm:$0xff]
        %v414 = vld [vmem:[%s4 + $0x20] sm:$0xff]
        %v415 = vld [vmem:[%s4 + $0x28] sm:$0xff]
        %v416 = vld [vmem:[%s4 + $0x30] sm:$0xff]
        %v417 = vld [vmem:[%s4 + $0x38] sm:$0xff]
        %v418 = vld [vmem:[%s5] sm:$0xff]
        %v419 = vld [vmem:[%s5 + $0x8] sm:$0xff]
        %v420 = vld [vmem:[%s5 + $0x10] sm:$0xff]
        %v421 = vld [vmem:[%s5 + $0x18] sm:$0xff]
        %v422 = vld [vmem:[%s5 + $0x20] sm:$0xff]
        %v423 = vld [vmem:[%s5 + $0x28] sm:$0xff]
        %v424 = vld [vmem:[%s5 + $0x30] sm:$0xff]
        %v425 = vld [vmem:[%s5 + $0x38] sm:$0xff]
        %v426 = vld [vmem:[%s6] sm:$0xff]
        %v427 = vld [vmem:[%s6 + $0x8] sm:$0xff]
        %v428 = vld [vmem:[%s6 + $0x10] sm:$0xff]
        %v429 = vld [vmem:[%s6 + $0x18] sm:$0xff]
        %v430 = vld [vmem:[%s6 + $0x20] sm:$0xff]
        %v431 = vld [vmem:[%s6 + $0x28] sm:$0xff]
        %v432 = vld [vmem:[%s6 + $0x30] sm:$0xff]
        %v433 = vld [vmem:[%s6 + $0x38] sm:$0xff]
        %v434 = vld [vmem:[%s7] sm:$0x1]
        %v435 = vld [vmem:[#allocation2] sm:$0x1]
        %v436 = vld [vmem:[%s358] sm:$0xff]
        %v437 = vld [vmem:[%s358 + $0x8] sm:$0xff]
        %v438 = vld [vmem:[%s2] sm:$0xff]
        %440 = vset.pattern.permute.xlu0 0
        %441 = vperm.xlu0 %440, %v438
        %v442 = vpop.permute.xlu0 %441
        %v444 = vsub.f32 %v436, %v442
        %v445 = vsub.f32 %v437, %v442
        %v446 = vld [vmem:[%s3] sm:$0xff]
        %448 = vset.pattern.permute.xlu0 0
        %449 = vperm.xlu0 %448, %v446
        %v450 = vpop.permute.xlu0 %449
        %v452 = vmul.f32 %v444, %v450
        %v453 = vmul.f32 %v445, %v450
        %v454 = vld [vmem:[%s365] sm:$0xff]
        %v455 = vld [vmem:[%s365 + $0x8] sm:$0xff]
        %vm456 = vcmask 64512
        %v458 = vsel %vm456, %v418, 0
        %v461 = vsel %vm456, %v419, 0
        %v464 = vsel %vm456, %v420, 0
        %v467 = vsel %vm456, %v421, 0
        %v470 = vsel %vm456, %v422, 0
        %v473 = vsel %vm456, %v423, 0
        %v476 = vsel %vm456, %v424, 0
        %v479 = vsel %vm456, %v425, 0
        %v481 = vand.u32 %v455, 4294901760
        %482 = vmatprep.subr.mxu0 %v481
        %v483 = vand.u32 %v454, 4294901760
        %484 = vmatpush1.msra.mxu0 %v483
        %485 = vmatprep.subr.mxu0 0.0
        %486 = vmatpush1.msra.mxu0 0.0
        %487 = vmatprep.subr.mxu0 0.0
        %488 = vmatpush1.msra.mxu0 0.0
        %489 = vmatprep.subr.mxu0 0.0
        %490 = vmatpush1.msra.mxu0 0.0
        %491 = vmatprep.subr.mxu0 0.0
        %492 = vmatpush1.msra.mxu0 0.0
        %493 = vmatprep.subr.mxu0 0.0
        %494 = vmatpush1.msra.mxu0 0.0
        %495 = vmatprep.subr.mxu0 0.0
        %496 = vmatpush1.msra.mxu0 0.0
        %497 = vmatprep.subr.mxu0 0.0
        %498 = vmatpush1.msra.mxu0 0.0
        %499 = vmatprep.subr.mxu0 0.0
        %500 = vmatpush1.msra.mxu0 0.0
        %501 = vmatprep.subr.mxu0 0.0
        %502 = vmatpush1.msra.mxu0 0.0
        %503 = vmatprep.subr.mxu0 0.0
        %504 = vmatpush1.msra.mxu0 0.0
        %505 = vmatprep.subr.mxu0 0.0
        %506 = vmatpush1.msra.mxu0 0.0
        %507 = vmatprep.subr.mxu0 0.0
        %508 = vmatpush1.msra.mxu0 0.0
        %509 = vmatprep.subr.mxu0 0.0
        %510 = vmatpush1.msra.mxu0 0.0
        %511 = vmatprep.subr.mxu0 0.0
        %512 = vmatpush1.msra.mxu0 0.0
        %513 = vmatprep.subr.mxu0 0.0
        %514 = vmatpush1.msra.mxu0 0.0
        %515 = vmatprep.subr.mxu0 0.0
        %516 = vmatpush1.msra.mxu0 0.0
        %517 = vmatprep.subr.mxu0 0.0
        %518 = vmatpush1.msra.mxu0 0.0
        %519 = vmatprep.subr.mxu0 0.0
        %520 = vmatpush1.msra.mxu0 0.0
        %521 = vmatprep.subr.mxu0 0.0
        %522 = vmatpush1.msra.mxu0 0.0
        %523 = vmatprep.subr.mxu0 0.0
        %524 = vmatpush1.msra.mxu0 0.0
        %525 = vmatprep.subr.mxu0 0.0
        %526 = vmatpush1.msra.mxu0 0.0
        %527 = vmatprep.subr.mxu0 0.0
        %528 = vmatpush1.msra.mxu0 0.0
        %529 = vmatprep.subr.mxu0 0.0
        %530 = vmatpush1.msra.mxu0 0.0
        %531 = vmatprep.subr.mxu0 0.0
        %532 = vmatpush1.msra.mxu0 0.0
        %533 = vmatprep.subr.mxu0 0.0
        %534 = vmatpush1.msra.mxu0 0.0
        %535 = vmatprep.subr.mxu0 0.0
        %536 = vmatpush1.msra.mxu0 0.0
        %537 = vmatprep.subr.mxu0 0.0
        %538 = vmatpush1.msra.mxu0 0.0
        %539 = vmatprep.subr.mxu0 0.0
        %540 = vmatpush1.msra.mxu0 0.0
        %541 = vmatprep.subr.mxu0 0.0
        %542 = vmatpush1.msra.mxu0 0.0
        %543 = vmatprep.subr.mxu0 0.0
        %544 = vmatpush1.msra.mxu0 0.0
        %545 = vmatprep.subr.mxu0 0.0
        %546 = vmatpush1.msra.mxu0 0.0
        %547 = vmatprep.mubr.f32.mxu0 0.0
        %v548 = vand.u32 %v458, 4294901760
        %v549 = vsub.f32 %v458, %v548
        %v550 = vand.u32 %v549, 4294901760
        %v551 = vsub.f32 %v549, %v550
        %v552 = vand.u32 %v551, 4294901760
        %553 = vmatmul.mubr.f32.gmra.mrb[0].mxu0 %v552
        %v554 = vpop.f32.mrb[0].mxu0
        %v555 = vadd.f32 0.0, %v554
        %v556 = vpop.f32.mrb[0].mxu0
        %v557 = vadd.f32 0.0, %v556
        %558 = vmatprep.mubr.f32.mxu0 0.0
        %v559 = vand.u32 %v461, 4294901760
        %v560 = vsub.f32 %v461, %v559
        %v561 = vand.u32 %v560, 4294901760
        %v562 = vsub.f32 %v560, %v561
        %v563 = vand.u32 %v562, 4294901760
        %564 = vmatmul.mubr.f32.gmra.mrb[0].mxu0 %v563
        %v565 = vpop.f32.mrb[0].mxu0
        %v566 = vadd.f32 0.0, %v565
        %v567 = vpop.f32.mrb[0].mxu0
        %v568 = vadd.f32 0.0, %v567
        %569 = vmatprep.mubr.f32.mxu0 0.0
        %v570 = vand.u32 %v464, 4294901760
        %v571 = vsub.f32 %v464, %v570
        %v572 = vand.u32 %v571, 4294901760
        %v573 = vsub.f32 %v571, %v572
        %v574 = vand.u32 %v573, 4294901760
        %575 = vmatmul.mubr.f32.gmra.mrb[0].mxu0 %v574
        %v576 = vpop.f32.mrb[0].mxu0
        %v577 = vadd.f32 0.0, %v576
        %v578 = vpop.f32.mrb[0].mxu0
        %v579 = vadd.f32 0.0, %v578
        %580 = vmatprep.mubr.f32.mxu0 0.0
        %v581 = vand.u32 %v467, 4294901760
        %v582 = vsub.f32 %v467, %v581
        %v583 = vand.u32 %v582, 4294901760
        %v584 = vsub.f32 %v582, %v583
        %v585 = vand.u32 %v584, 4294901760
        %586 = vmatmul.mubr.f32.gmra.mrb[0].mxu0 %v585
        %v587 = vpop.f32.mrb[0].mxu0
        %v588 = vadd.f32 0.0, %v587
        %v589 = vpop.f32.mrb[0].mxu0
        %v590 = vadd.f32 0.0, %v589
        %591 = vmatprep.mubr.f32.mxu0 0.0
        %v592 = vand.u32 %v470, 4294901760
        %v593 = vsub.f32 %v470, %v592
        %v594 = vand.u32 %v593, 4294901760
        %v595 = vsub.f32 %v593, %v594
        %v596 = vand.u32 %v595, 4294901760
        %597 = vmatmul.mubr.f32.gmra.mrb[0].mxu0 %v596
        %v598 = vpop.f32.mrb[0].mxu0
        %v599 = vadd.f32 0.0, %v598
        %v600 = vpop.f32.mrb[0].mxu0
        %v601 = vadd.f32 0.0, %v600
        %602 = vmatprep.mubr.f32.mxu0 0.0
        %v603 = vand.u32 %v473, 4294901760
        %v604 = vsub.f32 %v473, %v603
        %v605 = vand.u32 %v604, 4294901760
        %v606 = vsub.f32 %v604, %v605
        %v607 = vand.u32 %v606, 4294901760
        %608 = vmatmul.mubr.f32.gmra.mrb[0].mxu0 %v607
        %v609 = vpop.f32.mrb[0].mxu0
        %v610 = vadd.f32 0.0, %v609
        %v611 = vpop.f32.mrb[0].mxu0
        %v612 = vadd.f32 0.0, %v611
        %613 = vmatprep.mubr.f32.mxu0 0.0
        %v614 = vand.u32 %v476, 4294901760
        %v615 = vsub.f32 %v476, %v614
        %v616 = vand.u32 %v615, 4294901760
        %v617 = vsub.f32 %v615, %v616
        %v618 = vand.u32 %v617, 4294901760
        %619 = vmatmul.mubr.f32.gmra.mrb[0].mxu0 %v618
        %v620 = vpop.f32.mrb[0].mxu0
        %v621 = vadd.f32 0.0, %v620
        %v622 = vpop.f32.mrb[0].mxu0
        %v623 = vadd.f32 0.0, %v622
        %624 = vmatprep.mubr.f32.mxu0 0.0
        %v625 = vand.u32 %v479, 4294901760
        %v626 = vsub.f32 %v479, %v625
        %v627 = vand.u32 %v626, 4294901760
        %v628 = vsub.f32 %v626, %v627
        %v629 = vand.u32 %v628, 4294901760
        %630 = vmatmul.mubr.f32.gmra.mrb[0].mxu0 %v629
        %v631 = vpop.f32.mrb[0].mxu0
        %v632 = vadd.f32 0.0, %v631
        %v633 = vpop.f32.mrb[0].mxu0
        %v634 = vadd.f32 0.0, %v633
        %635 = vdwg.mxu0
        %v636 = vand.u32 %v455, 4294901760
        %v637 = vsub.f32 %v455, %v636
        %v638 = vand.u32 %v637, 4294901760
        %v639 = vsub.f32 %v637, %v638
        %v640 = vand.u32 %v639, 4294901760
        %641 = vmatprep.subr.mxu0 %v640
        %v642 = vand.u32 %v454, 4294901760
        %v643 = vsub.f32 %v454, %v642
        %v644 = vand.u32 %v643, 4294901760
        %v645 = vsub.f32 %v643, %v644
        %v646 = vand.u32 %v645, 4294901760
        %647 = vmatpush1.msra.mxu0 %v646
        %648 = vmatprep.subr.mxu0 0.0
        %649 = vmatpush1.msra.mxu0 0.0
        %650 = vmatprep.subr.mxu0 0.0
        %651 = vmatpush1.msra.mxu0 0.0
        %652 = vmatprep.subr.mxu0 0.0
        %653 = vmatpush1.msra.mxu0 0.0
        %654 = vmatprep.subr.mxu0 0.0
        %655 = vmatpush1.msra.mxu0 0.0
        %656 = vmatprep.subr.mxu0 0.0
        %657 = vmatpush1.msra.mxu0 0.0
        %658 = vmatprep.subr.mxu0 0.0
        %659 = vmatpush1.msra.mxu0 0.0
        %660 = vmatprep.subr.mxu0 0.0
        %661 = vmatpush1.msra.mxu0 0.0
        %662 = vmatprep.subr.mxu0 0.0
        %663 = vmatpush1.msra.mxu0 0.0
        %664 = vmatprep.subr.mxu0 0.0
        %665 = vmatpush1.msra.mxu0 0.0
        %666 = vmatprep.subr.mxu0 0.0
        %667 = vmatpush1.msra.mxu0 0.0
        %668 = vmatprep.subr.mxu0 0.0
        %669 = vmatpush1.msra.mxu0 0.0
        %670 = vmatprep.subr.mxu0 0.0
        %671 = vmatpush1.msra.mxu0 0.0
        %672 = vmatprep.subr.mxu0 0.0
        %673 = vmatpush1.msra.mxu0 0.0
        %674 = vmatprep.subr.mxu0 0.0
        %675 = vmatpush1.msra.mxu0 0.0
        %676 = vmatprep.subr.mxu0 0.0
        %677 = vmatpush1.msra.mxu0 0.0
        %678 = vmatprep.subr.mxu0 0.0
        %679 = vmatpush1.msra.mxu0 0.0
        %680 = vmatprep.subr.mxu0 0.0
        %681 = vmatpush1.msra.mxu0 0.0
        %682 = vmatprep.subr.mxu0 0.0
        %683 = vmatpush1.msra.mxu0 0.0
        %684 = vmatprep.subr.mxu0 0.0
        %685 = vmatpush1.msra.mxu0 0.0
        %686 = vmatprep.subr.mxu0 0.0
        %687 = vmatpush1.msra.mxu0 0.0
        %688 = vmatprep.subr.mxu0 0.0
        %689 = vmatpush1.msra.mxu0 0.0
        %690 = vmatprep.subr.mxu0 0.0
        %691 = vmatpush1.msra.mxu0 0.0
        %692 = vmatprep.subr.mxu0 0.0
        %693 = vmatpush1.msra.mxu0 0.0
        %694 = vmatprep.subr.mxu0 0.0
        %695 = vmatpush1.msra.mxu0 0.0
        %696 = vmatprep.subr.mxu0 0.0
        %697 = vmatpush1.msra.mxu0 0.0
        %698 = vmatprep.subr.mxu0 0.0
        %699 = vmatpush1.msra.mxu0 0.0
        %700 = vmatprep.subr.mxu0 0.0
        %701 = vmatpush1.msra.mxu0 0.0
        %702 = vmatprep.subr.mxu0 0.0
        %703 = vmatpush1.msra.mxu0 0.0
        %704 = vmatprep.subr.mxu0 0.0
        %705 = vmatpush1.msra.mxu0 0.0
        %706 = vmatprep.subr.mxu0 0.0
        %707 = vmatpush1.msra.mxu0 0.0
        %708 = vmatprep.subr.mxu0 0.0
        %709 = vmatpush1.msra.mxu0 0.0
        %710 = vmatprep.mubr.f32.mxu0 0.0
        %v711 = vand.u32 %v458, 4294901760
        %712 = vmatmul.mubr.f32.gmra.mrb[0].mxu0 %v711
        %v713 = vpop.f32.mrb[0].mxu0
        %v714 = vadd.f32 %v555, %v713
        %v715 = vpop.f32.mrb[0].mxu0
        %v716 = vadd.f32 %v557, %v715
        %717 = vmatprep.mubr.f32.mxu0 0.0
        %v718 = vand.u32 %v461, 4294901760
        %719 = vmatmul.mubr.f32.gmra.mrb[0].mxu0 %v718
        %v720 = vpop.f32.mrb[0].mxu0
        %v721 = vadd.f32 %v566, %v720
        %v722 = vpop.f32.mrb[0].mxu0
        %v723 = vadd.f32 %v568, %v722
        %724 = vmatprep.mubr.f32.mxu0 0.0
        %v725 = vand.u32 %v464, 4294901760
        %726 = vmatmul.mubr.f32.gmra.mrb[0].mxu0 %v725
        %v727 = vpop.f32.mrb[0].mxu0
        %v728 = vadd.f32 %v577, %v727
        %v729 = vpop.f32.mrb[0].mxu0
        %v730 = vadd.f32 %v579, %v729
        %731 = vmatprep.mubr.f32.mxu0 0.0
        %v732 = vand.u32 %v467, 4294901760
        %733 = vmatmul.mubr.f32.gmra.mrb[0].mxu0 %v732
        %v734 = vpop.f32.mrb[0].mxu0
        %v735 = vadd.f32 %v588, %v734
        %v736 = vpop.f32.mrb[0].mxu0
        %v737 = vadd.f32 %v590, %v736
        %738 = vmatprep.mubr.f32.mxu0 0.0
        %v739 = vand.u32 %v470, 4294901760
        %740 = vmatmul.mubr.f32.gmra.mrb[0].mxu0 %v739
        %v741 = vpop.f32.mrb[0].mxu0
        %v742 = vadd.f32 %v599, %v741
        %v743 = vpop.f32.mrb[0].mxu0
        %v744 = vadd.f32 %v601, %v743
        %745 = vmatprep.mubr.f32.mxu0 0.0
        %v746 = vand.u32 %v473, 4294901760
        %747 = vmatmul.mubr.f32.gmra.mrb[0].mxu0 %v746
        %v748 = vpop.f32.mrb[0].mxu0
        %v749 = vadd.f32 %v610, %v748
        %v750 = vpop.f32.mrb[0].mxu0
        %v751 = vadd.f32 %v612, %v750
        %752 = vmatprep.mubr.f32.mxu0 0.0
        %v753 = vand.u32 %v476, 4294901760
        %754 = vmatmul.mubr.f32.gmra.mrb[0].mxu0 %v753
        %v755 = vpop.f32.mrb[0].mxu0
        %v756 = vadd.f32 %v621, %v755
        %v757 = vpop.f32.mrb[0].mxu0
        %v758 = vadd.f32 %v623, %v757
        %759 = vmatprep.mubr.f32.mxu0 0.0
        %v760 = vand.u32 %v479, 4294901760
        %761 = vmatmul.mubr.f32.gmra.mrb[0].mxu0 %v760
        %v762 = vpop.f32.mrb[0].mxu0
        %v763 = vadd.f32 %v632, %v762
        %v764 = vpop.f32.mrb[0].mxu0
        %v765 = vadd.f32 %v634, %v764
        %766 = vdwg.mxu0
        %v767 = vand.u32 %v455, 4294901760
        %v768 = vsub.f32 %v455, %v767
        %769 = vmatprep.subr.mxu0 %v768
        %v770 = vand.u32 %v454, 4294901760
        %v771 = vsub.f32 %v454, %v770
        %772 = vmatpush1.msra.mxu0 %v771
        %773 = vmatprep.subr.mxu0 0.0
        %774 = vmatpush1.msra.mxu0 0.0
        %775 = vmatprep.subr.mxu0 0.0
        %776 = vmatpush1.msra.mxu0 0.0
        %777 = vmatprep.subr.mxu0 0.0
        %778 = vmatpush1.msra.mxu0 0.0
        %779 = vmatprep.subr.mxu0 0.0
        %780 = vmatpush1.msra.mxu0 0.0
        %781 = vmatprep.subr.mxu0 0.0
        %782 = vmatpush1.msra.mxu0 0.0
        %783 = vmatprep.subr.mxu0 0.0
        %784 = vmatpush1.msra.mxu0 0.0
        %785 = vmatprep.subr.mxu0 0.0
        %786 = vmatpush1.msra.mxu0 0.0
        %787 = vmatprep.subr.mxu0 0.0
        %788 = vmatpush1.msra.mxu0 0.0
        %789 = vmatprep.subr.mxu0 0.0
        %790 = vmatpush1.msra.mxu0 0.0
        %791 = vmatprep.subr.mxu0 0.0
        %792 = vmatpush1.msra.mxu0 0.0
        %793 = vmatprep.subr.mxu0 0.0
        %794 = vmatpush1.msra.mxu0 0.0
        %795 = vmatprep.subr.mxu0 0.0
        %796 = vmatpush1.msra.mxu0 0.0
        %797 = vmatprep.subr.mxu0 0.0
        %798 = vmatpush1.msra.mxu0 0.0
        %799 = vmatprep.subr.mxu0 0.0
        %800 = vmatpush1.msra.mxu0 0.0
        %801 = vmatprep.subr.mxu0 0.0
        %802 = vmatpush1.msra.mxu0 0.0
        %803 = vmatprep.subr.mxu0 0.0
        %804 = vmatpush1.msra.mxu0 0.0
        %805 = vmatprep.subr.mxu0 0.0
        %806 = vmatpush1.msra.mxu0 0.0
        %807 = vmatprep.subr.mxu0 0.0
        %808 = vmatpush1.msra.mxu0 0.0
        %809 = vmatprep.subr.mxu0 0.0
        %810 = vmatpush1.msra.mxu0 0.0
        %811 = vmatprep.subr.mxu0 0.0
        %812 = vmatpush1.msra.mxu0 0.0
        %813 = vmatprep.subr.mxu0 0.0
        %814 = vmatpush1.msra.mxu0 0.0
        %815 = vmatprep.subr.mxu0 0.0
        %816 = vmatpush1.msra.mxu0 0.0
        %817 = vmatprep.subr.mxu0 0.0
        %818 = vmatpush1.msra.mxu0 0.0
        %819 = vmatprep.subr.mxu0 0.0
        %820 = vmatpush1.msra.mxu0 0.0
        %821 = vmatprep.subr.mxu0 0.0
        %822 = vmatpush1.msra.mxu0 0.0
        %823 = vmatprep.subr.mxu0 0.0
        %824 = vmatpush1.msra.mxu0 0.0
        %825 = vmatprep.subr.mxu0 0.0
        %826 = vmatpush1.msra.mxu0 0.0
        %827 = vmatprep.subr.mxu0 0.0
        %828 = vmatpush1.msra.mxu0 0.0
        %829 = vmatprep.subr.mxu0 0.0
        %830 = vmatpush1.msra.mxu0 0.0
        %831 = vmatprep.subr.mxu0 0.0
        %832 = vmatpush1.msra.mxu0 0.0
        %833 = vmatprep.subr.mxu0 0.0
        %834 = vmatpush1.msra.mxu0 0.0
        %835 = vmatprep.mubr.f32.mxu0 0.0
        %v836 = vand.u32 %v458, 4294901760
        %v837 = vsub.f32 %v458, %v836
        %838 = vmatmul.mubr.f32.gmra.mrb[0].mxu0 %v837
        %v839 = vpop.f32.mrb[0].mxu0
        %v840 = vadd.f32 %v714, %v839
        %v841 = vpop.f32.mrb[0].mxu0
        %v842 = vadd.f32 %v716, %v841
        %843 = vmatprep.mubr.f32.mxu0 0.0
        %v844 = vand.u32 %v461, 4294901760
        %v845 = vsub.f32 %v461, %v844
        %846 = vmatmul.mubr.f32.gmra.mrb[0].mxu0 %v845
        %v847 = vpop.f32.mrb[0].mxu0
        %v848 = vadd.f32 %v721, %v847
        %v849 = vpop.f32.mrb[0].mxu0
        %v850 = vadd.f32 %v723, %v849
        %851 = vmatprep.mubr.f32.mxu0 0.0
        %v852 = vand.u32 %v464, 4294901760
        %v853 = vsub.f32 %v464, %v852
        %854 = vmatmul.mubr.f32.gmra.mrb[0].mxu0 %v853
        %v855 = vpop.f32.mrb[0].mxu0
        %v856 = vadd.f32 %v728, %v855
        %v857 = vpop.f32.mrb[0].mxu0
        %v858 = vadd.f32 %v730, %v857
        %859 = vmatprep.mubr.f32.mxu0 0.0
        %v860 = vand.u32 %v467, 4294901760
        %v861 = vsub.f32 %v467, %v860
        %862 = vmatmul.mubr.f32.gmra.mrb[0].mxu0 %v861
        %v863 = vpop.f32.mrb[0].mxu0
        %v864 = vadd.f32 %v735, %v863
        %v865 = vpop.f32.mrb[0].mxu0
        %v866 = vadd.f32 %v737, %v865
        %867 = vmatprep.mubr.f32.mxu0 0.0
        %v868 = vand.u32 %v470, 4294901760
        %v869 = vsub.f32 %v470, %v868
        %870 = vmatmul.mubr.f32.gmra.mrb[0].mxu0 %v869
        %v871 = vpop.f32.mrb[0].mxu0
        %v872 = vadd.f32 %v742, %v871
        %v873 = vpop.f32.mrb[0].mxu0
        %v874 = vadd.f32 %v744, %v873
        %875 = vmatprep.mubr.f32.mxu0 0.0
        %v876 = vand.u32 %v473, 4294901760
        %v877 = vsub.f32 %v473, %v876
        %878 = vmatmul.mubr.f32.gmra.mrb[0].mxu0 %v877
        %v879 = vpop.f32.mrb[0].mxu0
        %v880 = vadd.f32 %v749, %v879
        %v881 = vpop.f32.mrb[0].mxu0
        %v882 = vadd.f32 %v751, %v881
        %883 = vmatprep.mubr.f32.mxu0 0.0
        %v884 = vand.u32 %v476, 4294901760
        %v885 = vsub.f32 %v476, %v884
        %886 = vmatmul.mubr.f32.gmra.mrb[0].mxu0 %v885
        %v887 = vpop.f32.mrb[0].mxu0
        %v888 = vadd.f32 %v756, %v887
        %v889 = vpop.f32.mrb[0].mxu0
        %v890 = vadd.f32 %v758, %v889
        %891 = vmatprep.mubr.f32.mxu0 0.0
        %v892 = vand.u32 %v479, 4294901760
        %v893 = vsub.f32 %v479, %v892
        %894 = vmatmul.mubr.f32.gmra.mrb[0].mxu0 %v893
        %v895 = vpop.f32.mrb[0].mxu0
        %v896 = vadd.f32 %v763, %v895
        %v897 = vpop.f32.mrb[0].mxu0
        %v898 = vadd.f32 %v765, %v897
        %899 = vdwg.mxu0
        %v900 = vand.u32 %v455, 4294901760
        %901 = vmatprep.subr.mxu0 %v900
        %v902 = vand.u32 %v454, 4294901760
        %903 = vmatpush1.msra.mxu0 %v902
        %904 = vmatprep.subr.mxu0 0.0
        %905 = vmatpush1.msra.mxu0 0.0
        %906 = vmatprep.subr.mxu0 0.0
        %907 = vmatpush1.msra.mxu0 0.0
        %908 = vmatprep.subr.mxu0 0.0
        %909 = vmatpush1.msra.mxu0 0.0
        %910 = vmatprep.subr.mxu0 0.0
        %911 = vmatpush1.msra.mxu0 0.0
        %912 = vmatprep.subr.mxu0 0.0
        %913 = vmatpush1.msra.mxu0 0.0
        %914 = vmatprep.subr.mxu0 0.0
        %915 = vmatpush1.msra.mxu0 0.0
        %916 = vmatprep.subr.mxu0 0.0
        %917 = vmatpush1.msra.mxu0 0.0
        %918 = vmatprep.subr.mxu0 0.0
        %919 = vmatpush1.msra.mxu0 0.0
        %920 = vmatprep.subr.mxu0 0.0
        %921 = vmatpush1.msra.mxu0 0.0
        %922 = vmatprep.subr.mxu0 0.0
        %923 = vmatpush1.msra.mxu0 0.0
        %924 = vmatprep.subr.mxu0 0.0
        %925 = vmatpush1.msra.mxu0 0.0
        %926 = vmatprep.subr.mxu0 0.0
        %927 = vmatpush1.msra.mxu0 0.0
        %928 = vmatprep.subr.mxu0 0.0
        %929 = vmatpush1.msra.mxu0 0.0
        %930 = vmatprep.subr.mxu0 0.0
        %931 = vmatpush1.msra.mxu0 0.0
        %932 = vmatprep.subr.mxu0 0.0
        %933 = vmatpush1.msra.mxu0 0.0
        %934 = vmatprep.subr.mxu0 0.0
        %935 = vmatpush1.msra.mxu0 0.0
        %936 = vmatprep.subr.mxu0 0.0
        %937 = vmatpush1.msra.mxu0 0.0
        %938 = vmatprep.subr.mxu0 0.0
        %939 = vmatpush1.msra.mxu0 0.0
        %940 = vmatprep.subr.mxu0 0.0
        %941 = vmatpush1.msra.mxu0 0.0
        %942 = vmatprep.subr.mxu0 0.0
        %943 = vmatpush1.msra.mxu0 0.0
        %944 = vmatprep.subr.mxu0 0.0
        %945 = vmatpush1.msra.mxu0 0.0
        %946 = vmatprep.subr.mxu0 0.0
        %947 = vmatpush1.msra.mxu0 0.0
        %948 = vmatprep.subr.mxu0 0.0
        %949 = vmatpush1.msra.mxu0 0.0
        %950 = vmatprep.subr.mxu0 0.0
        %951 = vmatpush1.msra.mxu0 0.0
        %952 = vmatprep.subr.mxu0 0.0
        %953 = vmatpush1.msra.mxu0 0.0
        %954 = vmatprep.subr.mxu0 0.0
        %955 = vmatpush1.msra.mxu0 0.0
        %956 = vmatprep.subr.mxu0 0.0
        %957 = vmatpush1.msra.mxu0 0.0
        %958 = vmatprep.subr.mxu0 0.0
        %959 = vmatpush1.msra.mxu0 0.0
        %960 = vmatprep.subr.mxu0 0.0
        %961 = vmatpush1.msra.mxu0 0.0
        %962 = vmatprep.subr.mxu0 0.0
        %963 = vmatpush1.msra.mxu0 0.0
        %964 = vmatprep.subr.mxu0 0.0
        %965 = vmatpush1.msra.mxu0 0.0
        %966 = vmatprep.mubr.f32.mxu0 0.0
        %v967 = vand.u32 %v458, 4294901760
        %v968 = vsub.f32 %v458, %v967
        %v969 = vand.u32 %v968, 4294901760
        %970 = vmatmul.mubr.f32.gmra.mrb[0].mxu0 %v969
        %v971 = vpop.f32.mrb[0].mxu0
        %v972 = vadd.f32 %v840, %v971
        %v973 = vpop.f32.mrb[0].mxu0
        %v974 = vadd.f32 %v842, %v973
        %975 = vmatprep.mubr.f32.mxu0 0.0
        %v976 = vand.u32 %v461, 4294901760
        %v977 = vsub.f32 %v461, %v976
        %v978 = vand.u32 %v977, 4294901760
        %979 = vmatmul.mubr.f32.gmra.mrb[0].mxu0 %v978
        %v980 = vpop.f32.mrb[0].mxu0
        %v981 = vadd.f32 %v848, %v980
        %v982 = vpop.f32.mrb[0].mxu0
        %v983 = vadd.f32 %v850, %v982
        %984 = vmatprep.mubr.f32.mxu0 0.0
        %v985 = vand.u32 %v464, 4294901760
        %v986 = vsub.f32 %v464, %v985
        %v987 = vand.u32 %v986, 4294901760
        %988 = vmatmul.mubr.f32.gmra.mrb[0].mxu0 %v987
        %v989 = vpop.f32.mrb[0].mxu0
        %v990 = vadd.f32 %v856, %v989
        %v991 = vpop.f32.mrb[0].mxu0
        %v992 = vadd.f32 %v858, %v991
        %993 = vmatprep.mubr.f32.mxu0 0.0
        %v994 = vand.u32 %v467, 4294901760
        %v995 = vsub.f32 %v467, %v994
        %v996 = vand.u32 %v995, 4294901760
        %997 = vmatmul.mubr.f32.gmra.mrb[0].mxu0 %v996
        %v998 = vpop.f32.mrb[0].mxu0
        %v999 = vadd.f32 %v864, %v998
        %v1000 = vpop.f32.mrb[0].mxu0
        %v1001 = vadd.f32 %v866, %v1000
        %1002 = vmatprep.mubr.f32.mxu0 0.0
        %v1003 = vand.u32 %v470, 4294901760
        %v1004 = vsub.f32 %v470, %v1003
        %v1005 = vand.u32 %v1004, 4294901760
        %1006 = vmatmul.mubr.f32.gmra.mrb[0].mxu0 %v1005
        %v1007 = vpop.f32.mrb[0].mxu0
        %v1008 = vadd.f32 %v872, %v1007
        %v1009 = vpop.f32.mrb[0].mxu0
        %v1010 = vadd.f32 %v874, %v1009
        %1011 = vmatprep.mubr.f32.mxu0 0.0
        %v1012 = vand.u32 %v473, 4294901760
        %v1013 = vsub.f32 %v473, %v1012
        %v1014 = vand.u32 %v1013, 4294901760
        %1015 = vmatmul.mubr.f32.gmra.mrb[0].mxu0 %v1014
        %v1016 = vpop.f32.mrb[0].mxu0
        %v1017 = vadd.f32 %v880, %v1016
        %v1018 = vpop.f32.mrb[0].mxu0
        %v1019 = vadd.f32 %v882, %v1018
        %1020 = vmatprep.mubr.f32.mxu0 0.0
        %v1021 = vand.u32 %v476, 4294901760
        %v1022 = vsub.f32 %v476, %v1021
        %v1023 = vand.u32 %v1022, 4294901760
        %1024 = vmatmul.mubr.f32.gmra.mrb[0].mxu0 %v1023
        %v1025 = vpop.f32.mrb[0].mxu0
        %v1026 = vadd.f32 %v888, %v1025
        %v1027 = vpop.f32.mrb[0].mxu0
        %v1028 = vadd.f32 %v890, %v1027
        %1029 = vmatprep.mubr.f32.mxu0 0.0
        %v1030 = vand.u32 %v479, 4294901760
        %v1031 = vsub.f32 %v479, %v1030
        %v1032 = vand.u32 %v1031, 4294901760
        %1033 = vmatmul.mubr.f32.gmra.mrb[0].mxu0 %v1032
        %v1034 = vpop.f32.mrb[0].mxu0
        %v1035 = vadd.f32 %v896, %v1034
        %v1036 = vpop.f32.mrb[0].mxu0
        %v1037 = vadd.f32 %v898, %v1036
        %1038 = vdwg.mxu0
        %v1039 = vand.u32 %v455, 4294901760
        %v1040 = vsub.f32 %v455, %v1039
        %v1041 = vand.u32 %v1040, 4294901760
        %1042 = vmatprep.subr.mxu0 %v1041
        %v1043 = vand.u32 %v454, 4294901760
        %v1044 = vsub.f32 %v454, %v1043
        %v1045 = vand.u32 %v1044, 4294901760
        %1046 = vmatpush1.msra.mxu0 %v1045
        %1047 = vmatprep.subr.mxu0 0.0
        %1048 = vmatpush1.msra.mxu0 0.0
        %1049 = vmatprep.subr.mxu0 0.0
        %1050 = vmatpush1.msra.mxu0 0.0
        %1051 = vmatprep.subr.mxu0 0.0
        %1052 = vmatpush1.msra.mxu0 0.0
        %1053 = vmatprep.subr.mxu0 0.0
        %1054 = vmatpush1.msra.mxu0 0.0
        %1055 = vmatprep.subr.mxu0 0.0
        %1056 = vmatpush1.msra.mxu0 0.0
        %1057 = vmatprep.subr.mxu0 0.0
        %1058 = vmatpush1.msra.mxu0 0.0
        %1059 = vmatprep.subr.mxu0 0.0
        %1060 = vmatpush1.msra.mxu0 0.0
        %1061 = vmatprep.subr.mxu0 0.0
        %1062 = vmatpush1.msra.mxu0 0.0
        %1063 = vmatprep.subr.mxu0 0.0
        %1064 = vmatpush1.msra.mxu0 0.0
        %1065 = vmatprep.subr.mxu0 0.0
        %1066 = vmatpush1.msra.mxu0 0.0
        %1067 = vmatprep.subr.mxu0 0.0
        %1068 = vmatpush1.msra.mxu0 0.0
        %1069 = vmatprep.subr.mxu0 0.0
        %1070 = vmatpush1.msra.mxu0 0.0
        %1071 = vmatprep.subr.mxu0 0.0
        %1072 = vmatpush1.msra.mxu0 0.0
        %1073 = vmatprep.subr.mxu0 0.0
        %1074 = vmatpush1.msra.mxu0 0.0
        %1075 = vmatprep.subr.mxu0 0.0
        %1076 = vmatpush1.msra.mxu0 0.0
        %1077 = vmatprep.subr.mxu0 0.0
        %1078 = vmatpush1.msra.mxu0 0.0
        %1079 = vmatprep.subr.mxu0 0.0
        %1080 = vmatpush1.msra.mxu0 0.0
        %1081 = vmatprep.subr.mxu0 0.0
        %1082 = vmatpush1.msra.mxu0 0.0
        %1083 = vmatprep.subr.mxu0 0.0
        %1084 = vmatpush1.msra.mxu0 0.0
        %1085 = vmatprep.subr.mxu0 0.0
        %1086 = vmatpush1.msra.mxu0 0.0
        %1087 = vmatprep.subr.mxu0 0.0
        %1088 = vmatpush1.msra.mxu0 0.0
        %1089 = vmatprep.subr.mxu0 0.0
        %1090 = vmatpush1.msra.mxu0 0.0
        %1091 = vmatprep.subr.mxu0 0.0
        %1092 = vmatpush1.msra.mxu0 0.0
        %1093 = vmatprep.subr.mxu0 0.0
        %1094 = vmatpush1.msra.mxu0 0.0
        %1095 = vmatprep.subr.mxu0 0.0
        %1096 = vmatpush1.msra.mxu0 0.0
        %1097 = vmatprep.subr.mxu0 0.0
        %1098 = vmatpush1.msra.mxu0 0.0
        %1099 = vmatprep.subr.mxu0 0.0
        %1100 = vmatpush1.msra.mxu0 0.0
        %1101 = vmatprep.subr.mxu0 0.0
        %1102 = vmatpush1.msra.mxu0 0.0
        %1103 = vmatprep.subr.mxu0 0.0
        %1104 = vmatpush1.msra.mxu0 0.0
        %1105 = vmatprep.subr.mxu0 0.0
        %1106 = vmatpush1.msra.mxu0 0.0
        %1107 = vmatprep.subr.mxu0 0.0
        %1108 = vmatpush1.msra.mxu0 0.0
        %1109 = vmatprep.mubr.f32.mxu0 0.0
        %v1110 = vand.u32 %v458, 4294901760
        %1111 = vmatmul.mubr.f32.gmra.mrb[0].mxu0 %v1110
        %v1112 = vpop.f32.mrb[0].mxu0
        %v1113 = vadd.f32 %v972, %v1112
        %v1114 = vpop.f32.mrb[0].mxu0
        %v1115 = vadd.f32 %v974, %v1114
        %1116 = vmatprep.mubr.f32.mxu0 0.0
        %v1117 = vand.u32 %v461, 4294901760
        %1118 = vmatmul.mubr.f32.gmra.mrb[0].mxu0 %v1117
        %v1119 = vpop.f32.mrb[0].mxu0
        %v1120 = vadd.f32 %v981, %v1119
        %v1121 = vpop.f32.mrb[0].mxu0
        %v1122 = vadd.f32 %v983, %v1121
        %1123 = vmatprep.mubr.f32.mxu0 0.0
        %v1124 = vand.u32 %v464, 4294901760
        %1125 = vmatmul.mubr.f32.gmra.mrb[0].mxu0 %v1124
        %v1126 = vpop.f32.mrb[0].mxu0
        %v1127 = vadd.f32 %v990, %v1126
        %v1128 = vpop.f32.mrb[0].mxu0
        %v1129 = vadd.f32 %v992, %v1128
        %1130 = vmatprep.mubr.f32.mxu0 0.0
        %v1131 = vand.u32 %v467, 4294901760
        %1132 = vmatmul.mubr.f32.gmra.mrb[0].mxu0 %v1131
        %v1133 = vpop.f32.mrb[0].mxu0
        %v1134 = vadd.f32 %v999, %v1133
        %v1135 = vpop.f32.mrb[0].mxu0
        %v1136 = vadd.f32 %v1001, %v1135
        %1137 = vmatprep.mubr.f32.mxu0 0.0
        %v1138 = vand.u32 %v470, 4294901760
        %1139 = vmatmul.mubr.f32.gmra.mrb[0].mxu0 %v1138
        %v1140 = vpop.f32.mrb[0].mxu0
        %v1141 = vadd.f32 %v1008, %v1140
        %v1142 = vpop.f32.mrb[0].mxu0
        %v1143 = vadd.f32 %v1010, %v1142
        %1144 = vmatprep.mubr.f32.mxu0 0.0
        %v1145 = vand.u32 %v473, 4294901760
        %1146 = vmatmul.mubr.f32.gmra.mrb[0].mxu0 %v1145
        %v1147 = vpop.f32.mrb[0].mxu0
        %v1148 = vadd.f32 %v1017, %v1147
        %v1149 = vpop.f32.mrb[0].mxu0
        %v1150 = vadd.f32 %v1019, %v1149
        %1151 = vmatprep.mubr.f32.mxu0 0.0
        %v1152 = vand.u32 %v476, 4294901760
        %1153 = vmatmul.mubr.f32.gmra.mrb[0].mxu0 %v1152
        %v1154 = vpop.f32.mrb[0].mxu0
        %v1155 = vadd.f32 %v1026, %v1154
        %v1156 = vpop.f32.mrb[0].mxu0
        %v1157 = vadd.f32 %v1028, %v1156
        %1158 = vmatprep.mubr.f32.mxu0 0.0
        %v1159 = vand.u32 %v479, 4294901760
        %1160 = vmatmul.mubr.f32.gmra.mrb[0].mxu0 %v1159
        %v1161 = vpop.f32.mrb[0].mxu0
        %v1162 = vadd.f32 %v1035, %v1161
        %v1163 = vpop.f32.mrb[0].mxu0
        %v1164 = vadd.f32 %v1037, %v1163
        %1165 = vdwg.mxu0
        %v1166 = vand.u32 %v455, 4294901760
        %1167 = vmatprep.subr.mxu0 %v1166
        %v1168 = vand.u32 %v454, 4294901760
        %1169 = vmatpush1.msra.mxu0 %v1168
        %1170 = vmatprep.subr.mxu0 0.0
        %1171 = vmatpush1.msra.mxu0 0.0
        %1172 = vmatprep.subr.mxu0 0.0
        %1173 = vmatpush1.msra.mxu0 0.0
        %1174 = vmatprep.subr.mxu0 0.0
        %1175 = vmatpush1.msra.mxu0 0.0
        %1176 = vmatprep.subr.mxu0 0.0
        %1177 = vmatpush1.msra.mxu0 0.0
        %1178 = vmatprep.subr.mxu0 0.0
        %1179 = vmatpush1.msra.mxu0 0.0
        %1180 = vmatprep.subr.mxu0 0.0
        %1181 = vmatpush1.msra.mxu0 0.0
        %1182 = vmatprep.subr.mxu0 0.0
        %1183 = vmatpush1.msra.mxu0 0.0
        %1184 = vmatprep.subr.mxu0 0.0
        %1185 = vmatpush1.msra.mxu0 0.0
        %1186 = vmatprep.subr.mxu0 0.0
        %1187 = vmatpush1.msra.mxu0 0.0
        %1188 = vmatprep.subr.mxu0 0.0
        %1189 = vmatpush1.msra.mxu0 0.0
        %1190 = vmatprep.subr.mxu0 0.0
        %1191 = vmatpush1.msra.mxu0 0.0
        %1192 = vmatprep.subr.mxu0 0.0
        %1193 = vmatpush1.msra.mxu0 0.0
        %1194 = vmatprep.subr.mxu0 0.0
        %1195 = vmatpush1.msra.mxu0 0.0
        %1196 = vmatprep.subr.mxu0 0.0
        %1197 = vmatpush1.msra.mxu0 0.0
        %1198 = vmatprep.subr.mxu0 0.0
        %1199 = vmatpush1.msra.mxu0 0.0
        %1200 = vmatprep.subr.mxu0 0.0
        %1201 = vmatpush1.msra.mxu0 0.0
        %1202 = vmatprep.subr.mxu0 0.0
        %1203 = vmatpush1.msra.mxu0 0.0
        %1204 = vmatprep.subr.mxu0 0.0
        %1205 = vmatpush1.msra.mxu0 0.0
        %1206 = vmatprep.subr.mxu0 0.0
        %1207 = vmatpush1.msra.mxu0 0.0
        %1208 = vmatprep.subr.mxu0 0.0
        %1209 = vmatpush1.msra.mxu0 0.0
        %1210 = vmatprep.subr.mxu0 0.0
        %1211 = vmatpush1.msra.mxu0 0.0
        %1212 = vmatprep.subr.mxu0 0.0
        %1213 = vmatpush1.msra.mxu0 0.0
        %1214 = vmatprep.subr.mxu0 0.0
        %1215 = vmatpush1.msra.mxu0 0.0
        %1216 = vmatprep.subr.mxu0 0.0
        %1217 = vmatpush1.msra.mxu0 0.0
        %1218 = vmatprep.subr.mxu0 0.0
        %1219 = vmatpush1.msra.mxu0 0.0
        %1220 = vmatprep.subr.mxu0 0.0
        %1221 = vmatpush1.msra.mxu0 0.0
        %1222 = vmatprep.subr.mxu0 0.0
        %1223 = vmatpush1.msra.mxu0 0.0
        %1224 = vmatprep.subr.mxu0 0.0
        %1225 = vmatpush1.msra.mxu0 0.0
        %1226 = vmatprep.subr.mxu0 0.0
        %1227 = vmatpush1.msra.mxu0 0.0
        %1228 = vmatprep.subr.mxu0 0.0
        %1229 = vmatpush1.msra.mxu0 0.0
        %1230 = vmatprep.subr.mxu0 0.0
        %1231 = vmatpush1.msra.mxu0 0.0
        %1232 = vmatprep.mubr.f32.mxu0 0.0
        %v1233 = vand.u32 %v458, 4294901760
        %1234 = vmatmul.mubr.f32.gmra.mrb[0].mxu0 %v1233
        %v1235 = vpop.f32.mrb[0].mxu0
        %v1236 = vadd.f32 %v1113, %v1235
        %v1237 = vpop.f32.mrb[0].mxu0
        %v1238 = vadd.f32 %v1115, %v1237
        %1239 = vmatprep.mubr.f32.mxu0 0.0
        %v1240 = vand.u32 %v461, 4294901760
        %1241 = vmatmul.mubr.f32.gmra.mrb[0].mxu0 %v1240
        %v1242 = vpop.f32.mrb[0].mxu0
        %v1243 = vadd.f32 %v1120, %v1242
        %v1244 = vpop.f32.mrb[0].mxu0
        %v1245 = vadd.f32 %v1122, %v1244
        %1246 = vmatprep.mubr.f32.mxu0 0.0
        %v1247 = vand.u32 %v464, 4294901760
        %1248 = vmatmul.mubr.f32.gmra.mrb[0].mxu0 %v1247
        %v1249 = vpop.f32.mrb[0].mxu0
        %v1250 = vadd.f32 %v1127, %v1249
        %v1251 = vpop.f32.mrb[0].mxu0
        %v1252 = vadd.f32 %v1129, %v1251
        %1253 = vmatprep.mubr.f32.mxu0 0.0
        %v1254 = vand.u32 %v467, 4294901760
        %1255 = vmatmul.mubr.f32.gmra.mrb[0].mxu0 %v1254
        %v1256 = vpop.f32.mrb[0].mxu0
        %v1257 = vadd.f32 %v1134, %v1256
        %v1258 = vpop.f32.mrb[0].mxu0
        %v1259 = vadd.f32 %v1136, %v1258
        %1260 = vmatprep.mubr.f32.mxu0 0.0
        %v1261 = vand.u32 %v470, 4294901760
        %1262 = vmatmul.mubr.f32.gmra.mrb[0].mxu0 %v1261
        %v1263 = vpop.f32.mrb[0].mxu0
        %v1264 = vadd.f32 %v1141, %v1263
        %v1265 = vpop.f32.mrb[0].mxu0
        %v1266 = vadd.f32 %v1143, %v1265
        %1267 = vmatprep.mubr.f32.mxu0 0.0
        %v1268 = vand.u32 %v473, 4294901760
        %1269 = vmatmul.mubr.f32.gmra.mrb[0].mxu0 %v1268
        %v1270 = vpop.f32.mrb[0].mxu0
        %v1271 = vadd.f32 %v1148, %v1270
        %v1272 = vpop.f32.mrb[0].mxu0
        %v1273 = vadd.f32 %v1150, %v1272
        %1274 = vmatprep.mubr.f32.mxu0 0.0
        %v1275 = vand.u32 %v476, 4294901760
        %1276 = vmatmul.mubr.f32.gmra.mrb[0].mxu0 %v1275
        %v1277 = vpop.f32.mrb[0].mxu0
        %v1278 = vadd.f32 %v1155, %v1277
        %v1279 = vpop.f32.mrb[0].mxu0
        %v1280 = vadd.f32 %v1157, %v1279
        %1281 = vmatprep.mubr.f32.mxu0 0.0
        %v1282 = vand.u32 %v479, 4294901760
        %1283 = vmatmul.mubr.f32.gmra.mrb[0].mxu0 %v1282
        %v1284 = vpop.f32.mrb[0].mxu0
        %v1285 = vadd.f32 %v1162, %v1284
        %v1286 = vpop.f32.mrb[0].mxu0
        %v1287 = vadd.f32 %v1164, %v1286
        %1288 = vdwg.mxu0
        %v1290 = vsel %vm456, %v410, 0
        %v1293 = vsel %vm456, %v411, 0
        %v1296 = vsel %vm456, %v412, 0
        %v1299 = vsel %vm456, %v413, 0
        %v1302 = vsel %vm456, %v414, 0
        %v1305 = vsel %vm456, %v415, 0
        %v1308 = vsel %vm456, %v416, 0
        %v1311 = vsel %vm456, %v417, 0
        %v1313 = vand.u32 %v453, 4294901760
        %1314 = vmatprep.subr.mxu0 %v1313
        %v1315 = vand.u32 %v452, 4294901760
        %1316 = vmatpush1.msra.mxu0 %v1315
        %1317 = vmatprep.subr.mxu0 0.0
        %1318 = vmatpush1.msra.mxu0 0.0
        %1319 = vmatprep.subr.mxu0 0.0
        %1320 = vmatpush1.msra.mxu0 0.0
        %1321 = vmatprep.subr.mxu0 0.0
        %1322 = vmatpush1.msra.mxu0 0.0
        %1323 = vmatprep.subr.mxu0 0.0
        %1324 = vmatpush1.msra.mxu0 0.0
        %1325 = vmatprep.subr.mxu0 0.0
        %1326 = vmatpush1.msra.mxu0 0.0
        %1327 = vmatprep.subr.mxu0 0.0
        %1328 = vmatpush1.msra.mxu0 0.0
        %1329 = vmatprep.subr.mxu0 0.0
        %1330 = vmatpush1.msra.mxu0 0.0
        %1331 = vmatprep.subr.mxu0 0.0
        %1332 = vmatpush1.msra.mxu0 0.0
        %1333 = vmatprep.subr.mxu0 0.0
        %1334 = vmatpush1.msra.mxu0 0.0
        %1335 = vmatprep.subr.mxu0 0.0
        %1336 = vmatpush1.msra.mxu0 0.0
        %1337 = vmatprep.subr.mxu0 0.0
        %1338 = vmatpush1.msra.mxu0 0.0
        %1339 = vmatprep.subr.mxu0 0.0
        %1340 = vmatpush1.msra.mxu0 0.0
        %1341 = vmatprep.subr.mxu0 0.0
        %1342 = vmatpush1.msra.mxu0 0.0
        %1343 = vmatprep.subr.mxu0 0.0
        %1344 = vmatpush1.msra.mxu0 0.0
        %1345 = vmatprep.subr.mxu0 0.0
        %1346 = vmatpush1.msra.mxu0 0.0
        %1347 = vmatprep.subr.mxu0 0.0
        %1348 = vmatpush1.msra.mxu0 0.0
        %1349 = vmatprep.subr.mxu0 0.0
        %1350 = vmatpush1.msra.mxu0 0.0
        %1351 = vmatprep.subr.mxu0 0.0
        %1352 = vmatpush1.msra.mxu0 0.0
        %1353 = vmatprep.subr.mxu0 0.0
        %1354 = vmatpush1.msra.mxu0 0.0
        %1355 = vmatprep.subr.mxu0 0.0
        %1356 = vmatpush1.msra.mxu0 0.0
        %1357 = vmatprep.subr.mxu0 0.0
        %1358 = vmatpush1.msra.mxu0 0.0
        %1359 = vmatprep.subr.mxu0 0.0
        %1360 = vmatpush1.msra.mxu0 0.0
        %1361 = vmatprep.subr.mxu0 0.0
        %1362 = vmatpush1.msra.mxu0 0.0
        %1363 = vmatprep.subr.mxu0 0.0
        %1364 = vmatpush1.msra.mxu0 0.0
        %1365 = vmatprep.subr.mxu0 0.0
        %1366 = vmatpush1.msra.mxu0 0.0
        %1367 = vmatprep.subr.mxu0 0.0
        %1368 = vmatpush1.msra.mxu0 0.0
        %1369 = vmatprep.subr.mxu0 0.0
        %1370 = vmatpush1.msra.mxu0 0.0
        %1371 = vmatprep.subr.mxu0 0.0
        %1372 = vmatpush1.msra.mxu0 0.0
        %1373 = vmatprep.subr.mxu0 0.0
        %1374 = vmatpush1.msra.mxu0 0.0
        %1375 = vmatprep.subr.mxu0 0.0
        %1376 = vmatpush1.msra.mxu0 0.0
        %1377 = vmatprep.subr.mxu0 0.0
        %1378 = vmatpush1.msra.mxu0 0.0
        %1379 = vmatprep.mubr.f32.mxu0 0.0
        %v1380 = vand.u32 %v1290, 4294901760
        %v1381 = vsub.f32 %v1290, %v1380
        %v1382 = vand.u32 %v1381, 4294901760
        %v1383 = vsub.f32 %v1381, %v1382
        %v1384 = vand.u32 %v1383, 4294901760
        %1385 = vmatmul.mubr.f32.gmra.mrb[0].mxu0 %v1384
        %v1386 = vpop.f32.mrb[0].mxu0
        %v1387 = vadd.f32 %v1236, %v1386
        %v1388 = vpop.f32.mrb[0].mxu0
        %v1389 = vadd.f32 %v1238, %v1388
        %1390 = vmatprep.mubr.f32.mxu0 0.0
        %v1391 = vand.u32 %v1293, 4294901760
        %v1392 = vsub.f32 %v1293, %v1391
        %v1393 = vand.u32 %v1392, 4294901760
        %v1394 = vsub.f32 %v1392, %v1393
        %v1395 = vand.u32 %v1394, 4294901760
        %1396 = vmatmul.mubr.f32.gmra.mrb[0].mxu0 %v1395
        %v1397 = vpop.f32.mrb[0].mxu0
        %v1398 = vadd.f32 %v1243, %v1397
        %v1399 = vpop.f32.mrb[0].mxu0
        %v1400 = vadd.f32 %v1245, %v1399
        %1401 = vmatprep.mubr.f32.mxu0 0.0
        %v1402 = vand.u32 %v1296, 4294901760
        %v1403 = vsub.f32 %v1296, %v1402
        %v1404 = vand.u32 %v1403, 4294901760
        %v1405 = vsub.f32 %v1403, %v1404
        %v1406 = vand.u32 %v1405, 4294901760
        %1407 = vmatmul.mubr.f32.gmra.mrb[0].mxu0 %v1406
        %v1408 = vpop.f32.mrb[0].mxu0
        %v1409 = vadd.f32 %v1250, %v1408
        %v1410 = vpop.f32.mrb[0].mxu0
        %v1411 = vadd.f32 %v1252, %v1410
        %1412 = vmatprep.mubr.f32.mxu0 0.0
        %v1413 = vand.u32 %v1299, 4294901760
        %v1414 = vsub.f32 %v1299, %v1413
        %v1415 = vand.u32 %v1414, 4294901760
        %v1416 = vsub.f32 %v1414, %v1415
        %v1417 = vand.u32 %v1416, 4294901760
        %1418 = vmatmul.mubr.f32.gmra.mrb[0].mxu0 %v1417
        %v1419 = vpop.f32.mrb[0].mxu0
        %v1420 = vadd.f32 %v1257, %v1419
        %v1421 = vpop.f32.mrb[0].mxu0
        %v1422 = vadd.f32 %v1259, %v1421
        %1423 = vmatprep.mubr.f32.mxu0 0.0
        %v1424 = vand.u32 %v1302, 4294901760
        %v1425 = vsub.f32 %v1302, %v1424
        %v1426 = vand.u32 %v1425, 4294901760
        %v1427 = vsub.f32 %v1425, %v1426
        %v1428 = vand.u32 %v1427, 4294901760
        %1429 = vmatmul.mubr.f32.gmra.mrb[0].mxu0 %v1428
        %v1430 = vpop.f32.mrb[0].mxu0
        %v1431 = vadd.f32 %v1264, %v1430
        %v1432 = vpop.f32.mrb[0].mxu0
        %v1433 = vadd.f32 %v1266, %v1432
        %1434 = vmatprep.mubr.f32.mxu0 0.0
        %v1435 = vand.u32 %v1305, 4294901760
        %v1436 = vsub.f32 %v1305, %v1435
        %v1437 = vand.u32 %v1436, 4294901760
        %v1438 = vsub.f32 %v1436, %v1437
        %v1439 = vand.u32 %v1438, 4294901760
        %1440 = vmatmul.mubr.f32.gmra.mrb[0].mxu0 %v1439
        %v1441 = vpop.f32.mrb[0].mxu0
        %v1442 = vadd.f32 %v1271, %v1441
        %v1443 = vpop.f32.mrb[0].mxu0
        %v1444 = vadd.f32 %v1273, %v1443
        %1445 = vmatprep.mubr.f32.mxu0 0.0
        %v1446 = vand.u32 %v1308, 4294901760
        %v1447 = vsub.f32 %v1308, %v1446
        %v1448 = vand.u32 %v1447, 4294901760
        %v1449 = vsub.f32 %v1447, %v1448
        %v1450 = vand.u32 %v1449, 4294901760
        %1451 = vmatmul.mubr.f32.gmra.mrb[0].mxu0 %v1450
        %v1452 = vpop.f32.mrb[0].mxu0
        %v1453 = vadd.f32 %v1278, %v1452
        %v1454 = vpop.f32.mrb[0].mxu0
        %v1455 = vadd.f32 %v1280, %v1454
        %1456 = vmatprep.mubr.f32.mxu0 0.0
        %v1457 = vand.u32 %v1311, 4294901760
        %v1458 = vsub.f32 %v1311, %v1457
        %v1459 = vand.u32 %v1458, 4294901760
        %v1460 = vsub.f32 %v1458, %v1459
        %v1461 = vand.u32 %v1460, 4294901760
        %1462 = vmatmul.mubr.f32.gmra.mrb[0].mxu0 %v1461
        %v1463 = vpop.f32.mrb[0].mxu0
        %v1464 = vadd.f32 %v1285, %v1463
        %v1465 = vpop.f32.mrb[0].mxu0
        %v1466 = vadd.f32 %v1287, %v1465
        %1467 = vdwg.mxu0
        %v1468 = vand.u32 %v453, 4294901760
        %v1469 = vsub.f32 %v453, %v1468
        %v1470 = vand.u32 %v1469, 4294901760
        %v1471 = vsub.f32 %v1469, %v1470
        %v1472 = vand.u32 %v1471, 4294901760
        %1473 = vmatprep.subr.mxu0 %v1472
        %v1474 = vand.u32 %v452, 4294901760
        %v1475 = vsub.f32 %v452, %v1474
        %v1476 = vand.u32 %v1475, 4294901760
        %v1477 = vsub.f32 %v1475, %v1476
        %v1478 = vand.u32 %v1477, 4294901760
        %1479 = vmatpush1.msra.mxu0 %v1478
        %1480 = vmatprep.subr.mxu0 0.0
        %1481 = vmatpush1.msra.mxu0 0.0
        %1482 = vmatprep.subr.mxu0 0.0
        %1483 = vmatpush1.msra.mxu0 0.0
        %1484 = vmatprep.subr.mxu0 0.0
        %1485 = vmatpush1.msra.mxu0 0.0
        %1486 = vmatprep.subr.mxu0 0.0
        %1487 = vmatpush1.msra.mxu0 0.0
        %1488 = vmatprep.subr.mxu0 0.0
        %1489 = vmatpush1.msra.mxu0 0.0
        %1490 = vmatprep.subr.mxu0 0.0
        %1491 = vmatpush1.msra.mxu0 0.0
        %1492 = vmatprep.subr.mxu0 0.0
        %1493 = vmatpush1.msra.mxu0 0.0
        %1494 = vmatprep.subr.mxu0 0.0
        %1495 = vmatpush1.msra.mxu0 0.0
        %1496 = vmatprep.subr.mxu0 0.0
        %1497 = vmatpush1.msra.mxu0 0.0
        %1498 = vmatprep.subr.mxu0 0.0
        %1499 = vmatpush1.msra.mxu0 0.0
        %1500 = vmatprep.subr.mxu0 0.0
        %1501 = vmatpush1.msra.mxu0 0.0
        %1502 = vmatprep.subr.mxu0 0.0
        %1503 = vmatpush1.msra.mxu0 0.0
        %1504 = vmatprep.subr.mxu0 0.0
        %1505 = vmatpush1.msra.mxu0 0.0
        %1506 = vmatprep.subr.mxu0 0.0
        %1507 = vmatpush1.msra.mxu0 0.0
        %1508 = vmatprep.subr.mxu0 0.0
        %1509 = vmatpush1.msra.mxu0 0.0
        %1510 = vmatprep.subr.mxu0 0.0
        %1511 = vmatpush1.msra.mxu0 0.0
        %1512 = vmatprep.subr.mxu0 0.0
        %1513 = vmatpush1.msra.mxu0 0.0
        %1514 = vmatprep.subr.mxu0 0.0
        %1515 = vmatpush1.msra.mxu0 0.0
        %1516 = vmatprep.subr.mxu0 0.0
        %1517 = vmatpush1.msra.mxu0 0.0
        %1518 = vmatprep.subr.mxu0 0.0
        %1519 = vmatpush1.msra.mxu0 0.0
        %1520 = vmatprep.subr.mxu0 0.0
        %1521 = vmatpush1.msra.mxu0 0.0
        %1522 = vmatprep.subr.mxu0 0.0
        %1523 = vmatpush1.msra.mxu0 0.0
        %1524 = vmatprep.subr.mxu0 0.0
        %1525 = vmatpush1.msra.mxu0 0.0
        %1526 = vmatprep.subr.mxu0 0.0
        %1527 = vmatpush1.msra.mxu0 0.0
        %1528 = vmatprep.subr.mxu0 0.0
        %1529 = vmatpush1.msra.mxu0 0.0
        %1530 = vmatprep.subr.mxu0 0.0
        %1531 = vmatpush1.msra.mxu0 0.0
        %1532 = vmatprep.subr.mxu0 0.0
        %1533 = vmatpush1.msra.mxu0 0.0
        %1534 = vmatprep.subr.mxu0 0.0
        %1535 = vmatpush1.msra.mxu0 0.0
        %1536 = vmatprep.subr.mxu0 0.0
        %1537 = vmatpush1.msra.mxu0 0.0
        %1538 = vmatprep.subr.mxu0 0.0
        %1539 = vmatpush1.msra.mxu0 0.0
        %1540 = vmatprep.subr.mxu0 0.0
        %1541 = vmatpush1.msra.mxu0 0.0
        %1542 = vmatprep.mubr.f32.mxu0 0.0
        %v1543 = vand.u32 %v1290, 4294901760
        %1544 = vmatmul.mubr.f32.gmra.mrb[0].mxu0 %v1543
        %v1545 = vpop.f32.mrb[0].mxu0
        %v1546 = vadd.f32 %v1387, %v1545
        %v1547 = vpop.f32.mrb[0].mxu0
        %v1548 = vadd.f32 %v1389, %v1547
        %1549 = vmatprep.mubr.f32.mxu0 0.0
        %v1550 = vand.u32 %v1293, 4294901760
        %1551 = vmatmul.mubr.f32.gmra.mrb[0].mxu0 %v1550
        %v1552 = vpop.f32.mrb[0].mxu0
        %v1553 = vadd.f32 %v1398, %v1552
        %v1554 = vpop.f32.mrb[0].mxu0
        %v1555 = vadd.f32 %v1400, %v1554
        %1556 = vmatprep.mubr.f32.mxu0 0.0
        %v1557 = vand.u32 %v1296, 4294901760
        %1558 = vmatmul.mubr.f32.gmra.mrb[0].mxu0 %v1557
        %v1559 = vpop.f32.mrb[0].mxu0
        %v1560 = vadd.f32 %v1409, %v1559
        %v1561 = vpop.f32.mrb[0].mxu0
        %v1562 = vadd.f32 %v1411, %v1561
        %1563 = vmatprep.mubr.f32.mxu0 0.0
        %v1564 = vand.u32 %v1299, 4294901760
        %1565 = vmatmul.mubr.f32.gmra.mrb[0].mxu0 %v1564
        %v1566 = vpop.f32.mrb[0].mxu0
        %v1567 = vadd.f32 %v1420, %v1566
        %v1568 = vpop.f32.mrb[0].mxu0
        %v1569 = vadd.f32 %v1422, %v1568
        %1570 = vmatprep.mubr.f32.mxu0 0.0
        %v1571 = vand.u32 %v1302, 4294901760
        %1572 = vmatmul.mubr.f32.gmra.mrb[0].mxu0 %v1571
        %v1573 = vpop.f32.mrb[0].mxu0
        %v1574 = vadd.f32 %v1431, %v1573
        %v1575 = vpop.f32.mrb[0].mxu0
        %v1576 = vadd.f32 %v1433, %v1575
        %1577 = vmatprep.mubr.f32.mxu0 0.0
        %v1578 = vand.u32 %v1305, 4294901760
        %1579 = vmatmul.mubr.f32.gmra.mrb[0].mxu0 %v1578
        %v1580 = vpop.f32.mrb[0].mxu0
        %v1581 = vadd.f32 %v1442, %v1580
        %v1582 = vpop.f32.mrb[0].mxu0
        %v1583 = vadd.f32 %v1444, %v1582
        %1584 = vmatprep.mubr.f32.mxu0 0.0
        %v1585 = vand.u32 %v1308, 4294901760
        %1586 = vmatmul.mubr.f32.gmra.mrb[0].mxu0 %v1585
        %v1587 = vpop.f32.mrb[0].mxu0
        %v1588 = vadd.f32 %v1453, %v1587
        %v1589 = vpop.f32.mrb[0].mxu0
        %v1590 = vadd.f32 %v1455, %v1589
        %1591 = vmatprep.mubr.f32.mxu0 0.0
        %v1592 = vand.u32 %v1311, 4294901760
        %1593 = vmatmul.mubr.f32.gmra.mrb[0].mxu0 %v1592
        %v1594 = vpop.f32.mrb[0].mxu0
        %v1595 = vadd.f32 %v1464, %v1594
        %v1596 = vpop.f32.mrb[0].mxu0
        %v1597 = vadd.f32 %v1466, %v1596
        %1598 = vdwg.mxu0
        %v1599 = vand.u32 %v453, 4294901760
        %v1600 = vsub.f32 %v453, %v1599
        %1601 = vmatprep.subr.mxu0 %v1600
        %v1602 = vand.u32 %v452, 4294901760
        %v1603 = vsub.f32 %v452, %v1602
        %1604 = vmatpush1.msra.mxu0 %v1603
        %1605 = vmatprep.subr.mxu0 0.0
        %1606 = vmatpush1.msra.mxu0 0.0
        %1607 = vmatprep.subr.mxu0 0.0
        %1608 = vmatpush1.msra.mxu0 0.0
        %1609 = vmatprep.subr.mxu0 0.0
        %1610 = vmatpush1.msra.mxu0 0.0
        %1611 = vmatprep.subr.mxu0 0.0
        %1612 = vmatpush1.msra.mxu0 0.0
        %1613 = vmatprep.subr.mxu0 0.0
        %1614 = vmatpush1.msra.mxu0 0.0
        %1615 = vmatprep.subr.mxu0 0.0
        %1616 = vmatpush1.msra.mxu0 0.0
        %1617 = vmatprep.subr.mxu0 0.0
        %1618 = vmatpush1.msra.mxu0 0.0
        %1619 = vmatprep.subr.mxu0 0.0
        %1620 = vmatpush1.msra.mxu0 0.0
        %1621 = vmatprep.subr.mxu0 0.0
        %1622 = vmatpush1.msra.mxu0 0.0
        %1623 = vmatprep.subr.mxu0 0.0
        %1624 = vmatpush1.msra.mxu0 0.0
        %1625 = vmatprep.subr.mxu0 0.0
        %1626 = vmatpush1.msra.mxu0 0.0
        %1627 = vmatprep.subr.mxu0 0.0
        %1628 = vmatpush1.msra.mxu0 0.0
        %1629 = vmatprep.subr.mxu0 0.0
        %1630 = vmatpush1.msra.mxu0 0.0
        %1631 = vmatprep.subr.mxu0 0.0
        %1632 = vmatpush1.msra.mxu0 0.0
        %1633 = vmatprep.subr.mxu0 0.0
        %1634 = vmatpush1.msra.mxu0 0.0
        %1635 = vmatprep.subr.mxu0 0.0
        %1636 = vmatpush1.msra.mxu0 0.0
        %1637 = vmatprep.subr.mxu0 0.0
        %1638 = vmatpush1.msra.mxu0 0.0
        %1639 = vmatprep.subr.mxu0 0.0
        %1640 = vmatpush1.msra.mxu0 0.0
        %1641 = vmatprep.subr.mxu0 0.0
        %1642 = vmatpush1.msra.mxu0 0.0
        %1643 = vmatprep.subr.mxu0 0.0
        %1644 = vmatpush1.msra.mxu0 0.0
        %1645 = vmatprep.subr.mxu0 0.0
        %1646 = vmatpush1.msra.mxu0 0.0
        %1647 = vmatprep.subr.mxu0 0.0
        %1648 = vmatpush1.msra.mxu0 0.0
        %1649 = vmatprep.subr.mxu0 0.0
        %1650 = vmatpush1.msra.mxu0 0.0
        %1651 = vmatprep.subr.mxu0 0.0
        %1652 = vmatpush1.msra.mxu0 0.0
        %1653 = vmatprep.subr.mxu0 0.0
        %1654 = vmatpush1.msra.mxu0 0.0
        %1655 = vmatprep.subr.mxu0 0.0
        %1656 = vmatpush1.msra.mxu0 0.0
        %1657 = vmatprep.subr.mxu0 0.0
        %1658 = vmatpush1.msra.mxu0 0.0
        %1659 = vmatprep.subr.mxu0 0.0
        %1660 = vmatpush1.msra.mxu0 0.0
        %1661 = vmatprep.subr.mxu0 0.0
        %1662 = vmatpush1.msra.mxu0 0.0
        %1663 = vmatprep.subr.mxu0 0.0
        %1664 = vmatpush1.msra.mxu0 0.0
        %1665 = vmatprep.subr.mxu0 0.0
        %1666 = vmatpush1.msra.mxu0 0.0
        %1667 = vmatprep.mubr.f32.mxu0 0.0
        %v1668 = vand.u32 %v1290, 4294901760
        %v1669 = vsub.f32 %v1290, %v1668
        %1670 = vmatmul.mubr.f32.gmra.mrb[0].mxu0 %v1669
        %v1671 = vpop.f32.mrb[0].mxu0
        %v1672 = vadd.f32 %v1546, %v1671
        %v1673 = vpop.f32.mrb[0].mxu0
        %v1674 = vadd.f32 %v1548, %v1673
        %1675 = vmatprep.mubr.f32.mxu0 0.0
        %v1676 = vand.u32 %v1293, 4294901760
        %v1677 = vsub.f32 %v1293, %v1676
        %1678 = vmatmul.mubr.f32.gmra.mrb[0].mxu0 %v1677
        %v1679 = vpop.f32.mrb[0].mxu0
        %v1680 = vadd.f32 %v1553, %v1679
        %v1681 = vpop.f32.mrb[0].mxu0
        %v1682 = vadd.f32 %v1555, %v1681
        %1683 = vmatprep.mubr.f32.mxu0 0.0
        %v1684 = vand.u32 %v1296, 4294901760
        %v1685 = vsub.f32 %v1296, %v1684
        %1686 = vmatmul.mubr.f32.gmra.mrb[0].mxu0 %v1685
        %v1687 = vpop.f32.mrb[0].mxu0
        %v1688 = vadd.f32 %v1560, %v1687
        %v1689 = vpop.f32.mrb[0].mxu0
        %v1690 = vadd.f32 %v1562, %v1689
        %1691 = vmatprep.mubr.f32.mxu0 0.0
        %v1692 = vand.u32 %v1299, 4294901760
        %v1693 = vsub.f32 %v1299, %v1692
        %1694 = vmatmul.mubr.f32.gmra.mrb[0].mxu0 %v1693
        %v1695 = vpop.f32.mrb[0].mxu0
        %v1696 = vadd.f32 %v1567, %v1695
        %v1697 = vpop.f32.mrb[0].mxu0
        %v1698 = vadd.f32 %v1569, %v1697
        %1699 = vmatprep.mubr.f32.mxu0 0.0
        %v1700 = vand.u32 %v1302, 4294901760
        %v1701 = vsub.f32 %v1302, %v1700
        %1702 = vmatmul.mubr.f32.gmra.mrb[0].mxu0 %v1701
        %v1703 = vpop.f32.mrb[0].mxu0
        %v1704 = vadd.f32 %v1574, %v1703
        %v1705 = vpop.f32.mrb[0].mxu0
        %v1706 = vadd.f32 %v1576, %v1705
        %1707 = vmatprep.mubr.f32.mxu0 0.0
        %v1708 = vand.u32 %v1305, 4294901760
        %v1709 = vsub.f32 %v1305, %v1708
        %1710 = vmatmul.mubr.f32.gmra.mrb[0].mxu0 %v1709
        %v1711 = vpop.f32.mrb[0].mxu0
        %v1712 = vadd.f32 %v1581, %v1711
        %v1713 = vpop.f32.mrb[0].mxu0
        %v1714 = vadd.f32 %v1583, %v1713
        %1715 = vmatprep.mubr.f32.mxu0 0.0
        %v1716 = vand.u32 %v1308, 4294901760
        %v1717 = vsub.f32 %v1308, %v1716
        %1718 = vmatmul.mubr.f32.gmra.mrb[0].mxu0 %v1717
        %v1719 = vpop.f32.mrb[0].mxu0
        %v1720 = vadd.f32 %v1588, %v1719
        %v1721 = vpop.f32.mrb[0].mxu0
        %v1722 = vadd.f32 %v1590, %v1721
        %1723 = vmatprep.mubr.f32.mxu0 0.0
        %v1724 = vand.u32 %v1311, 4294901760
        %v1725 = vsub.f32 %v1311, %v1724
        %1726 = vmatmul.mubr.f32.gmra.mrb[0].mxu0 %v1725
        %v1727 = vpop.f32.mrb[0].mxu0
        %v1728 = vadd.f32 %v1595, %v1727
        %v1729 = vpop.f32.mrb[0].mxu0
        %v1730 = vadd.f32 %v1597, %v1729
        %1731 = vdwg.mxu0
        %v1732 = vand.u32 %v453, 4294901760
        %1733 = vmatprep.subr.mxu0 %v1732
        %v1734 = vand.u32 %v452, 4294901760
        %1735 = vmatpush1.msra.mxu0 %v1734
        %1736 = vmatprep.subr.mxu0 0.0
        %1737 = vmatpush1.msra.mxu0 0.0
        %1738 = vmatprep.subr.mxu0 0.0
        %1739 = vmatpush1.msra.mxu0 0.0
        %1740 = vmatprep.subr.mxu0 0.0
        %1741 = vmatpush1.msra.mxu0 0.0
        %1742 = vmatprep.subr.mxu0 0.0
        %1743 = vmatpush1.msra.mxu0 0.0
        %1744 = vmatprep.subr.mxu0 0.0
        %1745 = vmatpush1.msra.mxu0 0.0
        %1746 = vmatprep.subr.mxu0 0.0
        %1747 = vmatpush1.msra.mxu0 0.0
        %1748 = vmatprep.subr.mxu0 0.0
        %1749 = vmatpush1.msra.mxu0 0.0
        %1750 = vmatprep.subr.mxu0 0.0
        %1751 = vmatpush1.msra.mxu0 0.0
        %1752 = vmatprep.subr.mxu0 0.0
        %1753 = vmatpush1.msra.mxu0 0.0
        %1754 = vmatprep.subr.mxu0 0.0
        %1755 = vmatpush1.msra.mxu0 0.0
        %1756 = vmatprep.subr.mxu0 0.0
        %1757 = vmatpush1.msra.mxu0 0.0
        %1758 = vmatprep.subr.mxu0 0.0
        %1759 = vmatpush1.msra.mxu0 0.0
        %1760 = vmatprep.subr.mxu0 0.0
        %1761 = vmatpush1.msra.mxu0 0.0
        %1762 = vmatprep.subr.mxu0 0.0
        %1763 = vmatpush1.msra.mxu0 0.0
        %1764 = vmatprep.subr.mxu0 0.0
        %1765 = vmatpush1.msra.mxu0 0.0
        %1766 = vmatprep.subr.mxu0 0.0
        %1767 = vmatpush1.msra.mxu0 0.0
        %1768 = vmatprep.subr.mxu0 0.0
        %1769 = vmatpush1.msra.mxu0 0.0
        %1770 = vmatprep.subr.mxu0 0.0
        %1771 = vmatpush1.msra.mxu0 0.0
        %1772 = vmatprep.subr.mxu0 0.0
        %1773 = vmatpush1.msra.mxu0 0.0
        %1774 = vmatprep.subr.mxu0 0.0
        %1775 = vmatpush1.msra.mxu0 0.0
        %1776 = vmatprep.subr.mxu0 0.0
        %1777 = vmatpush1.msra.mxu0 0.0
        %1778 = vmatprep.subr.mxu0 0.0
        %1779 = vmatpush1.msra.mxu0 0.0
        %1780 = vmatprep.subr.mxu0 0.0
        %1781 = vmatpush1.msra.mxu0 0.0
        %1782 = vmatprep.subr.mxu0 0.0
        %1783 = vmatpush1.msra.mxu0 0.0
        %1784 = vmatprep.subr.mxu0 0.0
        %1785 = vmatpush1.msra.mxu0 0.0
        %1786 = vmatprep.subr.mxu0 0.0
        %1787 = vmatpush1.msra.mxu0 0.0
        %1788 = vmatprep.subr.mxu0 0.0
        %1789 = vmatpush1.msra.mxu0 0.0
        %1790 = vmatprep.subr.mxu0 0.0
        %1791 = vmatpush1.msra.mxu0 0.0
        %1792 = vmatprep.subr.mxu0 0.0
        %1793 = vmatpush1.msra.mxu0 0.0
        %1794 = vmatprep.subr.mxu0 0.0
        %1795 = vmatpush1.msra.mxu0 0.0
        %1796 = vmatprep.subr.mxu0 0.0
        %1797 = vmatpush1.msra.mxu0 0.0
        %1798 = vmatprep.mubr.f32.mxu0 0.0
        %v1799 = vand.u32 %v1290, 4294901760
        %v1800 = vsub.f32 %v1290, %v1799
        %v1801 = vand.u32 %v1800, 4294901760
        %1802 = vmatmul.mubr.f32.gmra.mrb[0].mxu0 %v1801
        %v1803 = vpop.f32.mrb[0].mxu0
        %v1804 = vadd.f32 %v1672, %v1803
        %v1805 = vpop.f32.mrb[0].mxu0
        %v1806 = vadd.f32 %v1674, %v1805
        %1807 = vmatprep.mubr.f32.mxu0 0.0
        %v1808 = vand.u32 %v1293, 4294901760
        %v1809 = vsub.f32 %v1293, %v1808
        %v1810 = vand.u32 %v1809, 4294901760
        %1811 = vmatmul.mubr.f32.gmra.mrb[0].mxu0 %v1810
        %v1812 = vpop.f32.mrb[0].mxu0
        %v1813 = vadd.f32 %v1680, %v1812
        %v1814 = vpop.f32.mrb[0].mxu0
        %v1815 = vadd.f32 %v1682, %v1814
        %1816 = vmatprep.mubr.f32.mxu0 0.0
        %v1817 = vand.u32 %v1296, 4294901760
        %v1818 = vsub.f32 %v1296, %v1817
        %v1819 = vand.u32 %v1818, 4294901760
        %1820 = vmatmul.mubr.f32.gmra.mrb[0].mxu0 %v1819
        %v1821 = vpop.f32.mrb[0].mxu0
        %v1822 = vadd.f32 %v1688, %v1821
        %v1823 = vpop.f32.mrb[0].mxu0
        %v1824 = vadd.f32 %v1690, %v1823
        %1825 = vmatprep.mubr.f32.mxu0 0.0
        %v1826 = vand.u32 %v1299, 4294901760
        %v1827 = vsub.f32 %v1299, %v1826
        %v1828 = vand.u32 %v1827, 4294901760
        %1829 = vmatmul.mubr.f32.gmra.mrb[0].mxu0 %v1828
        %v1830 = vpop.f32.mrb[0].mxu0
        %v1831 = vadd.f32 %v1696, %v1830
        %v1832 = vpop.f32.mrb[0].mxu0
        %v1833 = vadd.f32 %v1698, %v1832
        %1834 = vmatprep.mubr.f32.mxu0 0.0
        %v1835 = vand.u32 %v1302, 4294901760
        %v1836 = vsub.f32 %v1302, %v1835
        %v1837 = vand.u32 %v1836, 4294901760
        %1838 = vmatmul.mubr.f32.gmra.mrb[0].mxu0 %v1837
        %v1839 = vpop.f32.mrb[0].mxu0
        %v1840 = vadd.f32 %v1704, %v1839
        %v1841 = vpop.f32.mrb[0].mxu0
        %v1842 = vadd.f32 %v1706, %v1841
        %1843 = vmatprep.mubr.f32.mxu0 0.0
        %v1844 = vand.u32 %v1305, 4294901760
        %v1845 = vsub.f32 %v1305, %v1844
        %v1846 = vand.u32 %v1845, 4294901760
        %1847 = vmatmul.mubr.f32.gmra.mrb[0].mxu0 %v1846
        %v1848 = vpop.f32.mrb[0].mxu0
        %v1849 = vadd.f32 %v1712, %v1848
        %v1850 = vpop.f32.mrb[0].mxu0
        %v1851 = vadd.f32 %v1714, %v1850
        %1852 = vmatprep.mubr.f32.mxu0 0.0
        %v1853 = vand.u32 %v1308, 4294901760
        %v1854 = vsub.f32 %v1308, %v1853
        %v1855 = vand.u32 %v1854, 4294901760
        %1856 = vmatmul.mubr.f32.gmra.mrb[0].mxu0 %v1855
        %v1857 = vpop.f32.mrb[0].mxu0
        %v1858 = vadd.f32 %v1720, %v1857
        %v1859 = vpop.f32.mrb[0].mxu0
        %v1860 = vadd.f32 %v1722, %v1859
        %1861 = vmatprep.mubr.f32.mxu0 0.0
        %v1862 = vand.u32 %v1311, 4294901760
        %v1863 = vsub.f32 %v1311, %v1862
        %v1864 = vand.u32 %v1863, 4294901760
        %1865 = vmatmul.mubr.f32.gmra.mrb[0].mxu0 %v1864
        %v1866 = vpop.f32.mrb[0].mxu0
        %v1867 = vadd.f32 %v1728, %v1866
        %v1868 = vpop.f32.mrb[0].mxu0
        %v1869 = vadd.f32 %v1730, %v1868
        %1870 = vdwg.mxu0
        %v1871 = vand.u32 %v453, 4294901760
        %v1872 = vsub.f32 %v453, %v1871
        %v1873 = vand.u32 %v1872, 4294901760
        %1874 = vmatprep.subr.mxu0 %v1873
        %v1875 = vand.u32 %v452, 4294901760
        %v1876 = vsub.f32 %v452, %v1875
        %v1877 = vand.u32 %v1876, 4294901760
        %1878 = vmatpush1.msra.mxu0 %v1877
        %1879 = vmatprep.subr.mxu0 0.0
        %1880 = vmatpush1.msra.mxu0 0.0
        %1881 = vmatprep.subr.mxu0 0.0
        %1882 = vmatpush1.msra.mxu0 0.0
        %1883 = vmatprep.subr.mxu0 0.0
        %1884 = vmatpush1.msra.mxu0 0.0
        %1885 = vmatprep.subr.mxu0 0.0
        %1886 = vmatpush1.msra.mxu0 0.0
        %1887 = vmatprep.subr.mxu0 0.0
        %1888 = vmatpush1.msra.mxu0 0.0
        %1889 = vmatprep.subr.mxu0 0.0
        %1890 = vmatpush1.msra.mxu0 0.0
        %1891 = vmatprep.subr.mxu0 0.0
        %1892 = vmatpush1.msra.mxu0 0.0
        %1893 = vmatprep.subr.mxu0 0.0
        %1894 = vmatpush1.msra.mxu0 0.0
        %1895 = vmatprep.subr.mxu0 0.0
        %1896 = vmatpush1.msra.mxu0 0.0
        %1897 = vmatprep.subr.mxu0 0.0
        %1898 = vmatpush1.msra.mxu0 0.0
        %1899 = vmatprep.subr.mxu0 0.0
        %1900 = vmatpush1.msra.mxu0 0.0
        %1901 = vmatprep.subr.mxu0 0.0
        %1902 = vmatpush1.msra.mxu0 0.0
        %1903 = vmatprep.subr.mxu0 0.0
        %1904 = vmatpush1.msra.mxu0 0.0
        %1905 = vmatprep.subr.mxu0 0.0
        %1906 = vmatpush1.msra.mxu0 0.0
        %1907 = vmatprep.subr.mxu0 0.0
        %1908 = vmatpush1.msra.mxu0 0.0
        %1909 = vmatprep.subr.mxu0 0.0
        %1910 = vmatpush1.msra.mxu0 0.0
        %1911 = vmatprep.subr.mxu0 0.0
        %1912 = vmatpush1.msra.mxu0 0.0
        %1913 = vmatprep.subr.mxu0 0.0
        %1914 = vmatpush1.msra.mxu0 0.0
        %1915 = vmatprep.subr.mxu0 0.0
        %1916 = vmatpush1.msra.mxu0 0.0
        %1917 = vmatprep.subr.mxu0 0.0
        %1918 = vmatpush1.msra.mxu0 0.0
        %1919 = vmatprep.subr.mxu0 0.0
        %1920 = vmatpush1.msra.mxu0 0.0
        %1921 = vmatprep.subr.mxu0 0.0
        %1922 = vmatpush1.msra.mxu0 0.0
        %1923 = vmatprep.subr.mxu0 0.0
        %1924 = vmatpush1.msra.mxu0 0.0
        %1925 = vmatprep.subr.mxu0 0.0
        %1926 = vmatpush1.msra.mxu0 0.0
        %1927 = vmatprep.subr.mxu0 0.0
        %1928 = vmatpush1.msra.mxu0 0.0
        %1929 = vmatprep.subr.mxu0 0.0
        %1930 = vmatpush1.msra.mxu0 0.0
        %1931 = vmatprep.subr.mxu0 0.0
        %1932 = vmatpush1.msra.mxu0 0.0
        %1933 = vmatprep.subr.mxu0 0.0
        %1934 = vmatpush1.msra.mxu0 0.0
        %1935 = vmatprep.subr.mxu0 0.0
        %1936 = vmatpush1.msra.mxu0 0.0
        %1937 = vmatprep.subr.mxu0 0.0
        %1938 = vmatpush1.msra.mxu0 0.0
        %1939 = vmatprep.subr.mxu0 0.0
        %1940 = vmatpush1.msra.mxu0 0.0
        %1941 = vmatprep.mubr.f32.mxu0 0.0
        %v1942 = vand.u32 %v1290, 4294901760
        %1943 = vmatmul.mubr.f32.gmra.mrb[0].mxu0 %v1942
        %v1944 = vpop.f32.mrb[0].mxu0
        %v1945 = vadd.f32 %v1804, %v1944
        %v1946 = vpop.f32.mrb[0].mxu0
        %v1947 = vadd.f32 %v1806, %v1946
        %1948 = vmatprep.mubr.f32.mxu0 0.0
        %v1949 = vand.u32 %v1293, 4294901760
        %1950 = vmatmul.mubr.f32.gmra.mrb[0].mxu0 %v1949
        %v1951 = vpop.f32.mrb[0].mxu0
        %v1952 = vadd.f32 %v1813, %v1951
        %v1953 = vpop.f32.mrb[0].mxu0
        %v1954 = vadd.f32 %v1815, %v1953
        %1955 = vmatprep.mubr.f32.mxu0 0.0
        %v1956 = vand.u32 %v1296, 4294901760
        %1957 = vmatmul.mubr.f32.gmra.mrb[0].mxu0 %v1956
        %v1958 = vpop.f32.mrb[0].mxu0
        %v1959 = vadd.f32 %v1822, %v1958
        %v1960 = vpop.f32.mrb[0].mxu0
        %v1961 = vadd.f32 %v1824, %v1960
        %1962 = vmatprep.mubr.f32.mxu0 0.0
        %v1963 = vand.u32 %v1299, 4294901760
        %1964 = vmatmul.mubr.f32.gmra.mrb[0].mxu0 %v1963
        %v1965 = vpop.f32.mrb[0].mxu0
        %v1966 = vadd.f32 %v1831, %v1965
        %v1967 = vpop.f32.mrb[0].mxu0
        %v1968 = vadd.f32 %v1833, %v1967
        %1969 = vmatprep.mubr.f32.mxu0 0.0
        %v1970 = vand.u32 %v1302, 4294901760
        %1971 = vmatmul.mubr.f32.gmra.mrb[0].mxu0 %v1970
        %v1972 = vpop.f32.mrb[0].mxu0
        %v1973 = vadd.f32 %v1840, %v1972
        %v1974 = vpop.f32.mrb[0].mxu0
        %v1975 = vadd.f32 %v1842, %v1974
        %1976 = vmatprep.mubr.f32.mxu0 0.0
        %v1977 = vand.u32 %v1305, 4294901760
        %1978 = vmatmul.mubr.f32.gmra.mrb[0].mxu0 %v1977
        %v1979 = vpop.f32.mrb[0].mxu0
        %v1980 = vadd.f32 %v1849, %v1979
        %v1981 = vpop.f32.mrb[0].mxu0
        %v1982 = vadd.f32 %v1851, %v1981
        %1983 = vmatprep.mubr.f32.mxu0 0.0
        %v1984 = vand.u32 %v1308, 4294901760
        %1985 = vmatmul.mubr.f32.gmra.mrb[0].mxu0 %v1984
        %v1986 = vpop.f32.mrb[0].mxu0
        %v1987 = vadd.f32 %v1858, %v1986
        %v1988 = vpop.f32.mrb[0].mxu0
        %v1989 = vadd.f32 %v1860, %v1988
        %1990 = vmatprep.mubr.f32.mxu0 0.0
        %v1991 = vand.u32 %v1311, 4294901760
        %1992 = vmatmul.mubr.f32.gmra.mrb[0].mxu0 %v1991
        %v1993 = vpop.f32.mrb[0].mxu0
        %v1994 = vadd.f32 %v1867, %v1993
        %v1995 = vpop.f32.mrb[0].mxu0
        %v1996 = vadd.f32 %v1869, %v1995
        %1997 = vdwg.mxu0
        %v1998 = vand.u32 %v453, 4294901760
        %1999 = vmatprep.subr.mxu0 %v1998
        %v2000 = vand.u32 %v452, 4294901760
        %2001 = vmatpush1.msra.mxu0 %v2000
        %2002 = vmatprep.subr.mxu0 0.0
        %2003 = vmatpush1.msra.mxu0 0.0
        %2004 = vmatprep.subr.mxu0 0.0
        %2005 = vmatpush1.msra.mxu0 0.0
        %2006 = vmatprep.subr.mxu0 0.0
        %2007 = vmatpush1.msra.mxu0 0.0
        %2008 = vmatprep.subr.mxu0 0.0
        %2009 = vmatpush1.msra.mxu0 0.0
        %2010 = vmatprep.subr.mxu0 0.0
        %2011 = vmatpush1.msra.mxu0 0.0
        %2012 = vmatprep.subr.mxu0 0.0
        %2013 = vmatpush1.msra.mxu0 0.0
        %2014 = vmatprep.subr.mxu0 0.0
        %2015 = vmatpush1.msra.mxu0 0.0
        %2016 = vmatprep.subr.mxu0 0.0
        %2017 = vmatpush1.msra.mxu0 0.0
        %2018 = vmatprep.subr.mxu0 0.0
        %2019 = vmatpush1.msra.mxu0 0.0
        %2020 = vmatprep.subr.mxu0 0.0
        %2021 = vmatpush1.msra.mxu0 0.0
        %2022 = vmatprep.subr.mxu0 0.0
        %2023 = vmatpush1.msra.mxu0 0.0
        %2024 = vmatprep.subr.mxu0 0.0
        %2025 = vmatpush1.msra.mxu0 0.0
        %2026 = vmatprep.subr.mxu0 0.0
        %2027 = vmatpush1.msra.mxu0 0.0
        %2028 = vmatprep.subr.mxu0 0.0
        %2029 = vmatpush1.msra.mxu0 0.0
        %2030 = vmatprep.subr.mxu0 0.0
        %2031 = vmatpush1.msra.mxu0 0.0
        %2032 = vmatprep.subr.mxu0 0.0
        %2033 = vmatpush1.msra.mxu0 0.0
        %2034 = vmatprep.subr.mxu0 0.0
        %2035 = vmatpush1.msra.mxu0 0.0
        %2036 = vmatprep.subr.mxu0 0.0
        %2037 = vmatpush1.msra.mxu0 0.0
        %2038 = vmatprep.subr.mxu0 0.0
        %2039 = vmatpush1.msra.mxu0 0.0
        %2040 = vmatprep.subr.mxu0 0.0
        %2041 = vmatpush1.msra.mxu0 0.0
        %2042 = vmatprep.subr.mxu0 0.0
        %2043 = vmatpush1.msra.mxu0 0.0
        %2044 = vmatprep.subr.mxu0 0.0
        %2045 = vmatpush1.msra.mxu0 0.0
        %2046 = vmatprep.subr.mxu0 0.0
        %2047 = vmatpush1.msra.mxu0 0.0
        %2048 = vmatprep.subr.mxu0 0.0
        %2049 = vmatpush1.msra.mxu0 0.0
        %2050 = vmatprep.subr.mxu0 0.0
        %2051 = vmatpush1.msra.mxu0 0.0
        %2052 = vmatprep.subr.mxu0 0.0
        %2053 = vmatpush1.msra.mxu0 0.0
        %2054 = vmatprep.subr.mxu0 0.0
        %2055 = vmatpush1.msra.mxu0 0.0
        %2056 = vmatprep.subr.mxu0 0.0
        %2057 = vmatpush1.msra.mxu0 0.0
        %2058 = vmatprep.subr.mxu0 0.0
        %2059 = vmatpush1.msra.mxu0 0.0
        %2060 = vmatprep.subr.mxu0 0.0
        %2061 = vmatpush1.msra.mxu0 0.0
        %2062 = vmatprep.subr.mxu0 0.0
        %2063 = vmatpush1.msra.mxu0 0.0
        %2064 = vmatprep.mubr.f32.mxu0 0.0
        %v2065 = vand.u32 %v1290, 4294901760
        %2066 = vmatmul.mubr.f32.gmra.mrb[0].mxu0 %v2065
        %v2067 = vpop.f32.mrb[0].mxu0
        %v2068 = vadd.f32 %v1945, %v2067
        %v2069 = vpop.f32.mrb[0].mxu0
        %v2070 = vadd.f32 %v1947, %v2069
        %2071 = vmatprep.mubr.f32.mxu0 0.0
        %v2072 = vand.u32 %v1293, 4294901760
        %2073 = vmatmul.mubr.f32.gmra.mrb[0].mxu0 %v2072
        %v2074 = vpop.f32.mrb[0].mxu0
        %v2075 = vadd.f32 %v1952, %v2074
        %v2076 = vpop.f32.mrb[0].mxu0
        %v2077 = vadd.f32 %v1954, %v2076
        %2078 = vmatprep.mubr.f32.mxu0 0.0
        %v2079 = vand.u32 %v1296, 4294901760
        %2080 = vmatmul.mubr.f32.gmra.mrb[0].mxu0 %v2079
        %v2081 = vpop.f32.mrb[0].mxu0
        %v2082 = vadd.f32 %v1959, %v2081
        %v2083 = vpop.f32.mrb[0].mxu0
        %v2084 = vadd.f32 %v1961, %v2083
        %2085 = vmatprep.mubr.f32.mxu0 0.0
        %v2086 = vand.u32 %v1299, 4294901760
        %2087 = vmatmul.mubr.f32.gmra.mrb[0].mxu0 %v2086
        %v2088 = vpop.f32.mrb[0].mxu0
        %v2089 = vadd.f32 %v1966, %v2088
        %v2090 = vpop.f32.mrb[0].mxu0
        %v2091 = vadd.f32 %v1968, %v2090
        %2092 = vmatprep.mubr.f32.mxu0 0.0
        %v2093 = vand.u32 %v1302, 4294901760
        %2094 = vmatmul.mubr.f32.gmra.mrb[0].mxu0 %v2093
        %v2095 = vpop.f32.mrb[0].mxu0
        %v2096 = vadd.f32 %v1973, %v2095
        %v2097 = vpop.f32.mrb[0].mxu0
        %v2098 = vadd.f32 %v1975, %v2097
        %2099 = vmatprep.mubr.f32.mxu0 0.0
        %v2100 = vand.u32 %v1305, 4294901760
        %2101 = vmatmul.mubr.f32.gmra.mrb[0].mxu0 %v2100
        %v2102 = vpop.f32.mrb[0].mxu0
        %v2103 = vadd.f32 %v1980, %v2102
        %v2104 = vpop.f32.mrb[0].mxu0
        %v2105 = vadd.f32 %v1982, %v2104
        %2106 = vmatprep.mubr.f32.mxu0 0.0
        %v2107 = vand.u32 %v1308, 4294901760
        %2108 = vmatmul.mubr.f32.gmra.mrb[0].mxu0 %v2107
        %v2109 = vpop.f32.mrb[0].mxu0
        %v2110 = vadd.f32 %v1987, %v2109
        %v2111 = vpop.f32.mrb[0].mxu0
        %v2112 = vadd.f32 %v1989, %v2111
        %2113 = vmatprep.mubr.f32.mxu0 0.0
        %v2114 = vand.u32 %v1311, 4294901760
        %2115 = vmatmul.mubr.f32.gmra.mrb[0].mxu0 %v2114
        %v2116 = vpop.f32.mrb[0].mxu0
        %v2117 = vadd.f32 %v1994, %v2116
        %v2118 = vpop.f32.mrb[0].mxu0
        %v2119 = vadd.f32 %v1996, %v2118
        %2120 = vdwg.mxu0
        %2122 = vset.pattern.permute.xlu0 0
        %2123 = vperm.xlu0 %2122, %v426
        %v2124 = vpop.permute.xlu0 %2123
        %2127 = vset.pattern.permute.xlu0 0
        %2128 = vperm.xlu0 %2127, %v427
        %v2129 = vpop.permute.xlu0 %2128
        %2132 = vset.pattern.permute.xlu0 0
        %2133 = vperm.xlu0 %2132, %v428
        %v2134 = vpop.permute.xlu0 %2133
        %2137 = vset.pattern.permute.xlu0 0
        %2138 = vperm.xlu0 %2137, %v429
        %v2139 = vpop.permute.xlu0 %2138
        %2142 = vset.pattern.permute.xlu0 0
        %2143 = vperm.xlu0 %2142, %v430
        %v2144 = vpop.permute.xlu0 %2143
        %2147 = vset.pattern.permute.xlu0 0
        %2148 = vperm.xlu0 %2147, %v431
        %v2149 = vpop.permute.xlu0 %2148
        %2152 = vset.pattern.permute.xlu0 0
        %2153 = vperm.xlu0 %2152, %v432
        %v2154 = vpop.permute.xlu0 %2153
        %2157 = vset.pattern.permute.xlu0 0
        %2158 = vperm.xlu0 %2157, %v433
        %v2159 = vpop.permute.xlu0 %2158
        %v2161 = vadd.f32 %v2068, %v2124
        %v2162 = vadd.f32 %v2070, %v2124
        %v2163 = vadd.f32 %v2075, %v2129
        %v2164 = vadd.f32 %v2077, %v2129
        %v2165 = vadd.f32 %v2082, %v2134
        %v2166 = vadd.f32 %v2084, %v2134
        %v2167 = vadd.f32 %v2089, %v2139
        %v2168 = vadd.f32 %v2091, %v2139
        %v2169 = vadd.f32 %v2096, %v2144
        %v2170 = vadd.f32 %v2098, %v2144
        %v2171 = vadd.f32 %v2103, %v2149
        %v2172 = vadd.f32 %v2105, %v2149
        %v2173 = vadd.f32 %v2110, %v2154
        %v2174 = vadd.f32 %v2112, %v2154
        %v2175 = vadd.f32 %v2117, %v2159
        %v2176 = vadd.f32 %v2119, %v2159
        %v2177 = vmax.f32 %v2161, 0.0
        %v2178 = vmax.f32 %v2162, 0.0
        %v2179 = vmax.f32 %v2163, 0.0
        %v2180 = vmax.f32 %v2164, 0.0
        %v2181 = vmax.f32 %v2165, 0.0
        %v2182 = vmax.f32 %v2166, 0.0
        %v2183 = vmax.f32 %v2167, 0.0
        %v2184 = vmax.f32 %v2168, 0.0
        %v2185 = vmax.f32 %v2169, 0.0
        %v2186 = vmax.f32 %v2170, 0.0
        %v2187 = vmax.f32 %v2171, 0.0
        %v2188 = vmax.f32 %v2172, 0.0
        %v2189 = vmax.f32 %v2173, 0.0
        %v2190 = vmax.f32 %v2174, 0.0
        %v2191 = vmax.f32 %v2175, 0.0
        %v2192 = vmax.f32 %v2176, 0.0
        %2194 = vset.pattern.permute.xlu0 0
        %2195 = vperm.xlu0 %2194, %v435
        %v2196 = vpop.permute.xlu0 %2195
        %v2198 = vlaneseq
        %v2199 = vshrl.u32 %v2198, 7
        %v2200 = vsub.s32 0, %v2199
        %v2201 = vrot.slane %v2196, %v2200
        %vm2202 = vcmask 523264
        %v2204 = vsel %vm2202, %v434, 0
        %v2206 = vand.u32 %v2178, 4294901760
        %2207 = vmatprep.subr.mxu0 %v2206
        %v2208 = vand.u32 %v2177, 4294901760
        %2209 = vmatpush1.msra.mxu0 %v2208
        %v2210 = vand.u32 %v2180, 4294901760
        %2211 = vmatprep.subr.mxu0 %v2210
        %v2212 = vand.u32 %v2179, 4294901760
        %2213 = vmatpush1.msra.mxu0 %v2212
        %v2214 = vand.u32 %v2182, 4294901760
        %2215 = vmatprep.subr.mxu0 %v2214
        %v2216 = vand.u32 %v2181, 4294901760
        %2217 = vmatpush1.msra.mxu0 %v2216
        %v2218 = vand.u32 %v2184, 4294901760
        %2219 = vmatprep.subr.mxu0 %v2218
        %v2220 = vand.u32 %v2183, 4294901760
        %2221 = vmatpush1.msra.mxu0 %v2220
        %v2222 = vand.u32 %v2186, 4294901760
        %2223 = vmatprep.subr.mxu0 %v2222
        %v2224 = vand.u32 %v2185, 4294901760
        %2225 = vmatpush1.msra.mxu0 %v2224
        %v2226 = vand.u32 %v2188, 4294901760
        %2227 = vmatprep.subr.mxu0 %v2226
        %v2228 = vand.u32 %v2187, 4294901760
        %2229 = vmatpush1.msra.mxu0 %v2228
        %v2230 = vand.u32 %v2190, 4294901760
        %2231 = vmatprep.subr.mxu0 %v2230
        %v2232 = vand.u32 %v2189, 4294901760
        %2233 = vmatpush1.msra.mxu0 %v2232
        %v2234 = vand.u32 %v2192, 4294901760
        %2235 = vmatprep.subr.mxu0 %v2234
        %v2236 = vand.u32 %v2191, 4294901760
        %2237 = vmatpush1.msra.mxu0 %v2236
        %2238 = vmatprep.subr.mxu0 0.0
        %2239 = vmatpush1.msra.mxu0 0.0
        %2240 = vmatprep.subr.mxu0 0.0
        %2241 = vmatpush1.msra.mxu0 0.0
        %2242 = vmatprep.subr.mxu0 0.0
        %2243 = vmatpush1.msra.mxu0 0.0
        %2244 = vmatprep.subr.mxu0 0.0
        %2245 = vmatpush1.msra.mxu0 0.0
        %2246 = vmatprep.subr.mxu0 0.0
        %2247 = vmatpush1.msra.mxu0 0.0
        %2248 = vmatprep.subr.mxu0 0.0
        %2249 = vmatpush1.msra.mxu0 0.0
        %2250 = vmatprep.subr.mxu0 0.0
        %2251 = vmatpush1.msra.mxu0 0.0
        %2252 = vmatprep.subr.mxu0 0.0
        %2253 = vmatpush1.msra.mxu0 0.0
        %2254 = vmatprep.subr.mxu0 0.0
        %2255 = vmatpush1.msra.mxu0 0.0
        %2256 = vmatprep.subr.mxu0 0.0
        %2257 = vmatpush1.msra.mxu0 0.0
        %2258 = vmatprep.subr.mxu0 0.0
        %2259 = vmatpush1.msra.mxu0 0.0
        %2260 = vmatprep.subr.mxu0 0.0
        %2261 = vmatpush1.msra.mxu0 0.0
        %2262 = vmatprep.subr.mxu0 0.0
        %2263 = vmatpush1.msra.mxu0 0.0
        %2264 = vmatprep.subr.mxu0 0.0
        %2265 = vmatpush1.msra.mxu0 0.0
        %2266 = vmatprep.subr.mxu0 0.0
        %2267 = vmatpush1.msra.mxu0 0.0
        %2268 = vmatprep.subr.mxu0 0.0
        %2269 = vmatpush1.msra.mxu0 0.0
        %2270 = vmatprep.subr.mxu0 0.0
        %2271 = vmatpush1.msra.mxu0 0.0
        %2272 = vmatprep.subr.mxu0 0.0
        %2273 = vmatpush1.msra.mxu0 0.0
        %2274 = vmatprep.subr.mxu0 0.0
        %2275 = vmatpush1.msra.mxu0 0.0
        %2276 = vmatprep.subr.mxu0 0.0
        %2277 = vmatpush1.msra.mxu0 0.0
        %2278 = vmatprep.subr.mxu0 0.0
        %2279 = vmatpush1.msra.mxu0 0.0
        %2280 = vmatprep.subr.mxu0 0.0
        %2281 = vmatpush1.msra.mxu0 0.0
        %2282 = vmatprep.subr.mxu0 0.0
        %2283 = vmatpush1.msra.mxu0 0.0
        %2284 = vmatprep.subr.mxu0 0.0
        %2285 = vmatpush1.msra.mxu0 0.0
        %2286 = vmatprep.mubr.f32.mxu0 0.0
        %v2287 = vand.u32 %v2204, 4294901760
        %v2288 = vsub.f32 %v2204, %v2287
        %v2289 = vand.u32 %v2288, 4294901760
        %v2290 = vsub.f32 %v2288, %v2289
        %v2291 = vand.u32 %v2290, 4294901760
        %2292 = vmatmul.mubr.f32.gmra.mrb[0].mxu0 %v2291
        %v2293 = vpop.f32.mrb[0].mxu0
        %v2294 = vadd.f32 %v2201, %v2293
        %v2295 = vpop.f32.mrb[0].mxu0
        %v2296 = vadd.f32 %v2201, %v2295
        %2297 = vdwg.mxu0
        %v2298 = vand.u32 %v2178, 4294901760
        %v2299 = vsub.f32 %v2178, %v2298
        %v2300 = vand.u32 %v2299, 4294901760
        %v2301 = vsub.f32 %v2299, %v2300
        %v2302 = vand.u32 %v2301, 4294901760
        %2303 = vmatprep.subr.mxu0 %v2302
        %v2304 = vand.u32 %v2177, 4294901760
        %v2305 = vsub.f32 %v2177, %v2304
        %v2306 = vand.u32 %v2305, 4294901760
        %v2307 = vsub.f32 %v2305, %v2306
        %v2308 = vand.u32 %v2307, 4294901760
        %2309 = vmatpush1.msra.mxu0 %v2308
        %v2310 = vand.u32 %v2180, 4294901760
        %v2311 = vsub.f32 %v2180, %v2310
        %v2312 = vand.u32 %v2311, 4294901760
        %v2313 = vsub.f32 %v2311, %v2312
        %v2314 = vand.u32 %v2313, 4294901760
        %2315 = vmatprep.subr.mxu0 %v2314
        %v2316 = vand.u32 %v2179, 4294901760
        %v2317 = vsub.f32 %v2179, %v2316
        %v2318 = vand.u32 %v2317, 4294901760
        %v2319 = vsub.f32 %v2317, %v2318
        %v2320 = vand.u32 %v2319, 4294901760
        %2321 = vmatpush1.msra.mxu0 %v2320
        %v2322 = vand.u32 %v2182, 4294901760
        %v2323 = vsub.f32 %v2182, %v2322
        %v2324 = vand.u32 %v2323, 4294901760
        %v2325 = vsub.f32 %v2323, %v2324
        %v2326 = vand.u32 %v2325, 4294901760
        %2327 = vmatprep.subr.mxu0 %v2326
        %v2328 = vand.u32 %v2181, 4294901760
        %v2329 = vsub.f32 %v2181, %v2328
        %v2330 = vand.u32 %v2329, 4294901760
        %v2331 = vsub.f32 %v2329, %v2330
        %v2332 = vand.u32 %v2331, 4294901760
        %2333 = vmatpush1.msra.mxu0 %v2332
        %v2334 = vand.u32 %v2184, 4294901760
        %v2335 = vsub.f32 %v2184, %v2334
        %v2336 = vand.u32 %v2335, 4294901760
        %v2337 = vsub.f32 %v2335, %v2336
        %v2338 = vand.u32 %v2337, 4294901760
        %2339 = vmatprep.subr.mxu0 %v2338
        %v2340 = vand.u32 %v2183, 4294901760
        %v2341 = vsub.f32 %v2183, %v2340
        %v2342 = vand.u32 %v2341, 4294901760
        %v2343 = vsub.f32 %v2341, %v2342
        %v2344 = vand.u32 %v2343, 4294901760
        %2345 = vmatpush1.msra.mxu0 %v2344
        %v2346 = vand.u32 %v2186, 4294901760
        %v2347 = vsub.f32 %v2186, %v2346
        %v2348 = vand.u32 %v2347, 4294901760
        %v2349 = vsub.f32 %v2347, %v2348
        %v2350 = vand.u32 %v2349, 4294901760
        %2351 = vmatprep.subr.mxu0 %v2350
        %v2352 = vand.u32 %v2185, 4294901760
        %v2353 = vsub.f32 %v2185, %v2352
        %v2354 = vand.u32 %v2353, 4294901760
        %v2355 = vsub.f32 %v2353, %v2354
        %v2356 = vand.u32 %v2355, 4294901760
        %2357 = vmatpush1.msra.mxu0 %v2356
        %v2358 = vand.u32 %v2188, 4294901760
        %v2359 = vsub.f32 %v2188, %v2358
        %v2360 = vand.u32 %v2359, 4294901760
        %v2361 = vsub.f32 %v2359, %v2360
        %v2362 = vand.u32 %v2361, 4294901760
        %2363 = vmatprep.subr.mxu0 %v2362
        %v2364 = vand.u32 %v2187, 4294901760
        %v2365 = vsub.f32 %v2187, %v2364
        %v2366 = vand.u32 %v2365, 4294901760
        %v2367 = vsub.f32 %v2365, %v2366
        %v2368 = vand.u32 %v2367, 4294901760
        %2369 = vmatpush1.msra.mxu0 %v2368
        %v2370 = vand.u32 %v2190, 4294901760
        %v2371 = vsub.f32 %v2190, %v2370
        %v2372 = vand.u32 %v2371, 4294901760
        %v2373 = vsub.f32 %v2371, %v2372
        %v2374 = vand.u32 %v2373, 4294901760
        %2375 = vmatprep.subr.mxu0 %v2374
        %v2376 = vand.u32 %v2189, 4294901760
        %v2377 = vsub.f32 %v2189, %v2376
        %v2378 = vand.u32 %v2377, 4294901760
        %v2379 = vsub.f32 %v2377, %v2378
        %v2380 = vand.u32 %v2379, 4294901760
        %2381 = vmatpush1.msra.mxu0 %v2380
        %v2382 = vand.u32 %v2192, 4294901760
        %v2383 = vsub.f32 %v2192, %v2382
        %v2384 = vand.u32 %v2383, 4294901760
        %v2385 = vsub.f32 %v2383, %v2384
        %v2386 = vand.u32 %v2385, 4294901760
        %2387 = vmatprep.subr.mxu0 %v2386
        %v2388 = vand.u32 %v2191, 4294901760
        %v2389 = vsub.f32 %v2191, %v2388
        %v2390 = vand.u32 %v2389, 4294901760
        %v2391 = vsub.f32 %v2389, %v2390
        %v2392 = vand.u32 %v2391, 4294901760
        %2393 = vmatpush1.msra.mxu0 %v2392
        %2394 = vmatprep.subr.mxu0 0.0
        %2395 = vmatpush1.msra.mxu0 0.0
        %2396 = vmatprep.subr.mxu0 0.0
        %2397 = vmatpush1.msra.mxu0 0.0
        %2398 = vmatprep.subr.mxu0 0.0
        %2399 = vmatpush1.msra.mxu0 0.0
        %2400 = vmatprep.subr.mxu0 0.0
        %2401 = vmatpush1.msra.mxu0 0.0
        %2402 = vmatprep.subr.mxu0 0.0
        %2403 = vmatpush1.msra.mxu0 0.0
        %2404 = vmatprep.subr.mxu0 0.0
        %2405 = vmatpush1.msra.mxu0 0.0
        %2406 = vmatprep.subr.mxu0 0.0
        %2407 = vmatpush1.msra.mxu0 0.0
        %2408 = vmatprep.subr.mxu0 0.0
        %2409 = vmatpush1.msra.mxu0 0.0
        %2410 = vmatprep.subr.mxu0 0.0
        %2411 = vmatpush1.msra.mxu0 0.0
        %2412 = vmatprep.subr.mxu0 0.0
        %2413 = vmatpush1.msra.mxu0 0.0
        %2414 = vmatprep.subr.mxu0 0.0
        %2415 = vmatpush1.msra.mxu0 0.0
        %2416 = vmatprep.subr.mxu0 0.0
        %2417 = vmatpush1.msra.mxu0 0.0
        %2418 = vmatprep.subr.mxu0 0.0
        %2419 = vmatpush1.msra.mxu0 0.0
        %2420 = vmatprep.subr.mxu0 0.0
        %2421 = vmatpush1.msra.mxu0 0.0
        %2422 = vmatprep.subr.mxu0 0.0
        %2423 = vmatpush1.msra.mxu0 0.0
        %2424 = vmatprep.subr.mxu0 0.0
        %2425 = vmatpush1.msra.mxu0 0.0
        %2426 = vmatprep.subr.mxu0 0.0
        %2427 = vmatpush1.msra.mxu0 0.0
        %2428 = vmatprep.subr.mxu0 0.0
        %2429 = vmatpush1.msra.mxu0 0.0
        %2430 = vmatprep.subr.mxu0 0.0
        %2431 = vmatpush1.msra.mxu0 0.0
        %2432 = vmatprep.subr.mxu0 0.0
        %2433 = vmatpush1.msra.mxu0 0.0
        %2434 = vmatprep.subr.mxu0 0.0
        %2435 = vmatpush1.msra.mxu0 0.0
        %2436 = vmatprep.subr.mxu0 0.0
        %2437 = vmatpush1.msra.mxu0 0.0
        %2438 = vmatprep.subr.mxu0 0.0
        %2439 = vmatpush1.msra.mxu0 0.0
        %2440 = vmatprep.subr.mxu0 0.0
        %2441 = vmatpush1.msra.mxu0 0.0
        %2442 = vmatprep.mubr.f32.mxu0 0.0
        %v2443 = vand.u32 %v2204, 4294901760
        %2444 = vmatmul.mubr.f32.gmra.mrb[0].mxu0 %v2443
        %v2445 = vpop.f32.mrb[0].mxu0
        %v2446 = vadd.f32 %v2294, %v2445
        %v2447 = vpop.f32.mrb[0].mxu0
        %v2448 = vadd.f32 %v2296, %v2447
        %2449 = vdwg.mxu0
        %v2450 = vand.u32 %v2178, 4294901760
        %v2451 = vsub.f32 %v2178, %v2450
        %2452 = vmatprep.subr.mxu0 %v2451
        %v2453 = vand.u32 %v2177, 4294901760
        %v2454 = vsub.f32 %v2177, %v2453
        %2455 = vmatpush1.msra.mxu0 %v2454
        %v2456 = vand.u32 %v2180, 4294901760
        %v2457 = vsub.f32 %v2180, %v2456
        %2458 = vmatprep.subr.mxu0 %v2457
        %v2459 = vand.u32 %v2179, 4294901760
        %v2460 = vsub.f32 %v2179, %v2459
        %2461 = vmatpush1.msra.mxu0 %v2460
        %v2462 = vand.u32 %v2182, 4294901760
        %v2463 = vsub.f32 %v2182, %v2462
        %2464 = vmatprep.subr.mxu0 %v2463
        %v2465 = vand.u32 %v2181, 4294901760
        %v2466 = vsub.f32 %v2181, %v2465
        %2467 = vmatpush1.msra.mxu0 %v2466
        %v2468 = vand.u32 %v2184, 4294901760
        %v2469 = vsub.f32 %v2184, %v2468
        %2470 = vmatprep.subr.mxu0 %v2469
        %v2471 = vand.u32 %v2183, 4294901760
        %v2472 = vsub.f32 %v2183, %v2471
        %2473 = vmatpush1.msra.mxu0 %v2472
        %v2474 = vand.u32 %v2186, 4294901760
        %v2475 = vsub.f32 %v2186, %v2474
        %2476 = vmatprep.subr.mxu0 %v2475
        %v2477 = vand.u32 %v2185, 4294901760
        %v2478 = vsub.f32 %v2185, %v2477
        %2479 = vmatpush1.msra.mxu0 %v2478
        %v2480 = vand.u32 %v2188, 4294901760
        %v2481 = vsub.f32 %v2188, %v2480
        %2482 = vmatprep.subr.mxu0 %v2481
        %v2483 = vand.u32 %v2187, 4294901760
        %v2484 = vsub.f32 %v2187, %v2483
        %2485 = vmatpush1.msra.mxu0 %v2484
        %v2486 = vand.u32 %v2190, 4294901760
        %v2487 = vsub.f32 %v2190, %v2486
        %2488 = vmatprep.subr.mxu0 %v2487
        %v2489 = vand.u32 %v2189, 4294901760
        %v2490 = vsub.f32 %v2189, %v2489
        %2491 = vmatpush1.msra.mxu0 %v2490
        %v2492 = vand.u32 %v2192, 4294901760
        %v2493 = vsub.f32 %v2192, %v2492
        %2494 = vmatprep.subr.mxu0 %v2493
        %v2495 = vand.u32 %v2191, 4294901760
        %v2496 = vsub.f32 %v2191, %v2495
        %2497 = vmatpush1.msra.mxu0 %v2496
        %2498 = vmatprep.subr.mxu0 0.0
        %2499 = vmatpush1.msra.mxu0 0.0
        %2500 = vmatprep.subr.mxu0 0.0
        %2501 = vmatpush1.msra.mxu0 0.0
        %2502 = vmatprep.subr.mxu0 0.0
        %2503 = vmatpush1.msra.mxu0 0.0
        %2504 = vmatprep.subr.mxu0 0.0
        %2505 = vmatpush1.msra.mxu0 0.0
        %2506 = vmatprep.subr.mxu0 0.0
        %2507 = vmatpush1.msra.mxu0 0.0
        %2508 = vmatprep.subr.mxu0 0.0
        %2509 = vmatpush1.msra.mxu0 0.0
        %2510 = vmatprep.subr.mxu0 0.0
        %2511 = vmatpush1.msra.mxu0 0.0
        %2512 = vmatprep.subr.mxu0 0.0
        %2513 = vmatpush1.msra.mxu0 0.0
        %2514 = vmatprep.subr.mxu0 0.0
        %2515 = vmatpush1.msra.mxu0 0.0
        %2516 = vmatprep.subr.mxu0 0.0
        %2517 = vmatpush1.msra.mxu0 0.0
        %2518 = vmatprep.subr.mxu0 0.0
        %2519 = vmatpush1.msra.mxu0 0.0
        %2520 = vmatprep.subr.mxu0 0.0
        %2521 = vmatpush1.msra.mxu0 0.0
        %2522 = vmatprep.subr.mxu0 0.0
        %2523 = vmatpush1.msra.mxu0 0.0
        %2524 = vmatprep.subr.mxu0 0.0
        %2525 = vmatpush1.msra.mxu0 0.0
        %2526 = vmatprep.subr.mxu0 0.0
        %2527 = vmatpush1.msra.mxu0 0.0
        %2528 = vmatprep.subr.mxu0 0.0
        %2529 = vmatpush1.msra.mxu0 0.0
        %2530 = vmatprep.subr.mxu0 0.0
        %2531 = vmatpush1.msra.mxu0 0.0
        %2532 = vmatprep.subr.mxu0 0.0
        %2533 = vmatpush1.msra.mxu0 0.0
        %2534 = vmatprep.subr.mxu0 0.0
        %2535 = vmatpush1.msra.mxu0 0.0
        %2536 = vmatprep.subr.mxu0 0.0
        %2537 = vmatpush1.msra.mxu0 0.0
        %2538 = vmatprep.subr.mxu0 0.0
        %2539 = vmatpush1.msra.mxu0 0.0
        %2540 = vmatprep.subr.mxu0 0.0
        %2541 = vmatpush1.msra.mxu0 0.0
        %2542 = vmatprep.subr.mxu0 0.0
        %2543 = vmatpush1.msra.mxu0 0.0
        %2544 = vmatprep.subr.mxu0 0.0
        %2545 = vmatpush1.msra.mxu0 0.0
        %2546 = vmatprep.mubr.f32.mxu0 0.0
        %v2547 = vand.u32 %v2204, 4294901760
        %v2548 = vsub.f32 %v2204, %v2547
        %2549 = vmatmul.mubr.f32.gmra.mrb[0].mxu0 %v2548
        %v2550 = vpop.f32.mrb[0].mxu0
        %v2551 = vadd.f32 %v2446, %v2550
        %v2552 = vpop.f32.mrb[0].mxu0
        %v2553 = vadd.f32 %v2448, %v2552
        %2554 = vdwg.mxu0
        %v2555 = vand.u32 %v2178, 4294901760
        %2556 = vmatprep.subr.mxu0 %v2555
        %v2557 = vand.u32 %v2177, 4294901760
        %2558 = vmatpush1.msra.mxu0 %v2557
        %v2559 = vand.u32 %v2180, 4294901760
        %2560 = vmatprep.subr.mxu0 %v2559
        %v2561 = vand.u32 %v2179, 4294901760
        %2562 = vmatpush1.msra.mxu0 %v2561
        %v2563 = vand.u32 %v2182, 4294901760
        %2564 = vmatprep.subr.mxu0 %v2563
        %v2565 = vand.u32 %v2181, 4294901760
        %2566 = vmatpush1.msra.mxu0 %v2565
        %v2567 = vand.u32 %v2184, 4294901760
        %2568 = vmatprep.subr.mxu0 %v2567
        %v2569 = vand.u32 %v2183, 4294901760
        %2570 = vmatpush1.msra.mxu0 %v2569
        %v2571 = vand.u32 %v2186, 4294901760
        %2572 = vmatprep.subr.mxu0 %v2571
        %v2573 = vand.u32 %v2185, 4294901760
        %2574 = vmatpush1.msra.mxu0 %v2573
        %v2575 = vand.u32 %v2188, 4294901760
        %2576 = vmatprep.subr.mxu0 %v2575
        %v2577 = vand.u32 %v2187, 4294901760
        %2578 = vmatpush1.msra.mxu0 %v2577
        %v2579 = vand.u32 %v2190, 4294901760
        %2580 = vmatprep.subr.mxu0 %v2579
        %v2581 = vand.u32 %v2189, 4294901760
        %2582 = vmatpush1.msra.mxu0 %v2581
        %v2583 = vand.u32 %v2192, 4294901760
        %2584 = vmatprep.subr.mxu0 %v2583
        %v2585 = vand.u32 %v2191, 4294901760
        %2586 = vmatpush1.msra.mxu0 %v2585
        %2587 = vmatprep.subr.mxu0 0.0
        %2588 = vmatpush1.msra.mxu0 0.0
        %2589 = vmatprep.subr.mxu0 0.0
        %2590 = vmatpush1.msra.mxu0 0.0
        %2591 = vmatprep.subr.mxu0 0.0
        %2592 = vmatpush1.msra.mxu0 0.0
        %2593 = vmatprep.subr.mxu0 0.0
        %2594 = vmatpush1.msra.mxu0 0.0
        %2595 = vmatprep.subr.mxu0 0.0
        %2596 = vmatpush1.msra.mxu0 0.0
        %2597 = vmatprep.subr.mxu0 0.0
        %2598 = vmatpush1.msra.mxu0 0.0
        %2599 = vmatprep.subr.mxu0 0.0
        %2600 = vmatpush1.msra.mxu0 0.0
        %2601 = vmatprep.subr.mxu0 0.0
        %2602 = vmatpush1.msra.mxu0 0.0
        %2603 = vmatprep.subr.mxu0 0.0
        %2604 = vmatpush1.msra.mxu0 0.0
        %2605 = vmatprep.subr.mxu0 0.0
        %2606 = vmatpush1.msra.mxu0 0.0
        %2607 = vmatprep.subr.mxu0 0.0
        %2608 = vmatpush1.msra.mxu0 0.0
        %2609 = vmatprep.subr.mxu0 0.0
        %2610 = vmatpush1.msra.mxu0 0.0
        %2611 = vmatprep.subr.mxu0 0.0
        %2612 = vmatpush1.msra.mxu0 0.0
        %2613 = vmatprep.subr.mxu0 0.0
        %2614 = vmatpush1.msra.mxu0 0.0
        %2615 = vmatprep.subr.mxu0 0.0
        %2616 = vmatpush1.msra.mxu0 0.0
        %2617 = vmatprep.subr.mxu0 0.0
        %2618 = vmatpush1.msra.mxu0 0.0
        %2619 = vmatprep.subr.mxu0 0.0
        %2620 = vmatpush1.msra.mxu0 0.0
        %2621 = vmatprep.subr.mxu0 0.0
        %2622 = vmatpush1.msra.mxu0 0.0
        %2623 = vmatprep.subr.mxu0 0.0
        %2624 = vmatpush1.msra.mxu0 0.0
        %2625 = vmatprep.subr.mxu0 0.0
        %2626 = vmatpush1.msra.mxu0 0.0
        %2627 = vmatprep.subr.mxu0 0.0
        %2628 = vmatpush1.msra.mxu0 0.0
        %2629 = vmatprep.subr.mxu0 0.0
        %2630 = vmatpush1.msra.mxu0 0.0
        %2631 = vmatprep.subr.mxu0 0.0
        %2632 = vmatpush1.msra.mxu0 0.0
        %2633 = vmatprep.subr.mxu0 0.0
        %2634 = vmatpush1.msra.mxu0 0.0
        %2635 = vmatprep.mubr.f32.mxu0 0.0
        %v2636 = vand.u32 %v2204, 4294901760
        %v2637 = vsub.f32 %v2204, %v2636
        %v2638 = vand.u32 %v2637, 4294901760
        %2639 = vmatmul.mubr.f32.gmra.mrb[0].mxu0 %v2638
        %v2640 = vpop.f32.mrb[0].mxu0
        %v2641 = vadd.f32 %v2551, %v2640
        %v2642 = vpop.f32.mrb[0].mxu0
        %v2643 = vadd.f32 %v2553, %v2642
        %2644 = vdwg.mxu0
        %v2645 = vand.u32 %v2178, 4294901760
        %v2646 = vsub.f32 %v2178, %v2645
        %v2647 = vand.u32 %v2646, 4294901760
        %2648 = vmatprep.subr.mxu0 %v2647
        %v2649 = vand.u32 %v2177, 4294901760
        %v2650 = vsub.f32 %v2177, %v2649
        %v2651 = vand.u32 %v2650, 4294901760
        %2652 = vmatpush1.msra.mxu0 %v2651
        %v2653 = vand.u32 %v2180, 4294901760
        %v2654 = vsub.f32 %v2180, %v2653
        %v2655 = vand.u32 %v2654, 4294901760
        %2656 = vmatprep.subr.mxu0 %v2655
        %v2657 = vand.u32 %v2179, 4294901760
        %v2658 = vsub.f32 %v2179, %v2657
        %v2659 = vand.u32 %v2658, 4294901760
        %2660 = vmatpush1.msra.mxu0 %v2659
        %v2661 = vand.u32 %v2182, 4294901760
        %v2662 = vsub.f32 %v2182, %v2661
        %v2663 = vand.u32 %v2662, 4294901760
        %2664 = vmatprep.subr.mxu0 %v2663
        %v2665 = vand.u32 %v2181, 4294901760
        %v2666 = vsub.f32 %v2181, %v2665
        %v2667 = vand.u32 %v2666, 4294901760
        %2668 = vmatpush1.msra.mxu0 %v2667
        %v2669 = vand.u32 %v2184, 4294901760
        %v2670 = vsub.f32 %v2184, %v2669
        %v2671 = vand.u32 %v2670, 4294901760
        %2672 = vmatprep.subr.mxu0 %v2671
        %v2673 = vand.u32 %v2183, 4294901760
        %v2674 = vsub.f32 %v2183, %v2673
        %v2675 = vand.u32 %v2674, 4294901760
        %2676 = vmatpush1.msra.mxu0 %v2675
        %v2677 = vand.u32 %v2186, 4294901760
        %v2678 = vsub.f32 %v2186, %v2677
        %v2679 = vand.u32 %v2678, 4294901760
        %2680 = vmatprep.subr.mxu0 %v2679
        %v2681 = vand.u32 %v2185, 4294901760
        %v2682 = vsub.f32 %v2185, %v2681
        %v2683 = vand.u32 %v2682, 4294901760
        %2684 = vmatpush1.msra.mxu0 %v2683
        %v2685 = vand.u32 %v2188, 4294901760
        %v2686 = vsub.f32 %v2188, %v2685
        %v2687 = vand.u32 %v2686, 4294901760
        %2688 = vmatprep.subr.mxu0 %v2687
        %v2689 = vand.u32 %v2187, 4294901760
        %v2690 = vsub.f32 %v2187, %v2689
        %v2691 = vand.u32 %v2690, 4294901760
        %2692 = vmatpush1.msra.mxu0 %v2691
        %v2693 = vand.u32 %v2190, 4294901760
        %v2694 = vsub.f32 %v2190, %v2693
        %v2695 = vand.u32 %v2694, 4294901760
        %2696 = vmatprep.subr.mxu0 %v2695
        %v2697 = vand.u32 %v2189, 4294901760
        %v2698 = vsub.f32 %v2189, %v2697
        %v2699 = vand.u32 %v2698, 4294901760
        %2700 = vmatpush1.msra.mxu0 %v2699
        %v2701 = vand.u32 %v2192, 4294901760
        %v2702 = vsub.f32 %v2192, %v2701
        %v2703 = vand.u32 %v2702, 4294901760
        %2704 = vmatprep.subr.mxu0 %v2703
        %v2705 = vand.u32 %v2191, 4294901760
        %v2706 = vsub.f32 %v2191, %v2705
        %v2707 = vand.u32 %v2706, 4294901760
        %2708 = vmatpush1.msra.mxu0 %v2707
        %2709 = vmatprep.subr.mxu0 0.0
        %2710 = vmatpush1.msra.mxu0 0.0
        %2711 = vmatprep.subr.mxu0 0.0
        %2712 = vmatpush1.msra.mxu0 0.0
        %2713 = vmatprep.subr.mxu0 0.0
        %2714 = vmatpush1.msra.mxu0 0.0
        %2715 = vmatprep.subr.mxu0 0.0
        %2716 = vmatpush1.msra.mxu0 0.0
        %2717 = vmatprep.subr.mxu0 0.0
        %2718 = vmatpush1.msra.mxu0 0.0
        %2719 = vmatprep.subr.mxu0 0.0
        %2720 = vmatpush1.msra.mxu0 0.0
        %2721 = vmatprep.subr.mxu0 0.0
        %2722 = vmatpush1.msra.mxu0 0.0
        %2723 = vmatprep.subr.mxu0 0.0
        %2724 = vmatpush1.msra.mxu0 0.0
        %2725 = vmatprep.subr.mxu0 0.0
        %2726 = vmatpush1.msra.mxu0 0.0
        %2727 = vmatprep.subr.mxu0 0.0
        %2728 = vmatpush1.msra.mxu0 0.0
        %2729 = vmatprep.subr.mxu0 0.0
        %2730 = vmatpush1.msra.mxu0 0.0
        %2731 = vmatprep.subr.mxu0 0.0
        %2732 = vmatpush1.msra.mxu0 0.0
        %2733 = vmatprep.subr.mxu0 0.0
        %2734 = vmatpush1.msra.mxu0 0.0
        %2735 = vmatprep.subr.mxu0 0.0
        %2736 = vmatpush1.msra.mxu0 0.0
        %2737 = vmatprep.subr.mxu0 0.0
        %2738 = vmatpush1.msra.mxu0 0.0
        %2739 = vmatprep.subr.mxu0 0.0
        %2740 = vmatpush1.msra.mxu0 0.0
        %2741 = vmatprep.subr.mxu0 0.0
        %2742 = vmatpush1.msra.mxu0 0.0
        %2743 = vmatprep.subr.mxu0 0.0
        %2744 = vmatpush1.msra.mxu0 0.0
        %2745 = vmatprep.subr.mxu0 0.0
        %2746 = vmatpush1.msra.mxu0 0.0
        %2747 = vmatprep.subr.mxu0 0.0
        %2748 = vmatpush1.msra.mxu0 0.0
        %2749 = vmatprep.subr.mxu0 0.0
        %2750 = vmatpush1.msra.mxu0 0.0
        %2751 = vmatprep.subr.mxu0 0.0
        %2752 = vmatpush1.msra.mxu0 0.0
        %2753 = vmatprep.subr.mxu0 0.0
        %2754 = vmatpush1.msra.mxu0 0.0
        %2755 = vmatprep.subr.mxu0 0.0
        %2756 = vmatpush1.msra.mxu0 0.0
        %2757 = vmatprep.mubr.f32.mxu0 0.0
        %v2758 = vand.u32 %v2204, 4294901760
        %2759 = vmatmul.mubr.f32.gmra.mrb[0].mxu0 %v2758
        %v2760 = vpop.f32.mrb[0].mxu0
        %v2761 = vadd.f32 %v2641, %v2760
        %v2762 = vpop.f32.mrb[0].mxu0
        %v2763 = vadd.f32 %v2643, %v2762
        %2764 = vdwg.mxu0
        %v2765 = vand.u32 %v2178, 4294901760
        %2766 = vmatprep.subr.mxu0 %v2765
        %v2767 = vand.u32 %v2177, 4294901760
        %2768 = vmatpush1.msra.mxu0 %v2767
        %v2769 = vand.u32 %v2180, 4294901760
        %2770 = vmatprep.subr.mxu0 %v2769
        %v2771 = vand.u32 %v2179, 4294901760
        %2772 = vmatpush1.msra.mxu0 %v2771
        %v2773 = vand.u32 %v2182, 4294901760
        %2774 = vmatprep.subr.mxu0 %v2773
        %v2775 = vand.u32 %v2181, 4294901760
        %2776 = vmatpush1.msra.mxu0 %v2775
        %v2777 = vand.u32 %v2184, 4294901760
        %2778 = vmatprep.subr.mxu0 %v2777
        %v2779 = vand.u32 %v2183, 4294901760
        %2780 = vmatpush1.msra.mxu0 %v2779
        %v2781 = vand.u32 %v2186, 4294901760
        %2782 = vmatprep.subr.mxu0 %v2781
        %v2783 = vand.u32 %v2185, 4294901760
        %2784 = vmatpush1.msra.mxu0 %v2783
        %v2785 = vand.u32 %v2188, 4294901760
        %2786 = vmatprep.subr.mxu0 %v2785
        %v2787 = vand.u32 %v2187, 4294901760
        %2788 = vmatpush1.msra.mxu0 %v2787
        %v2789 = vand.u32 %v2190, 4294901760
        %2790 = vmatprep.subr.mxu0 %v2789
        %v2791 = vand.u32 %v2189, 4294901760
        %2792 = vmatpush1.msra.mxu0 %v2791
        %v2793 = vand.u32 %v2192, 4294901760
        %2794 = vmatprep.subr.mxu0 %v2793
        %v2795 = vand.u32 %v2191, 4294901760
        %2796 = vmatpush1.msra.mxu0 %v2795
        %2797 = vmatprep.subr.mxu0 0.0
        %2798 = vmatpush1.msra.mxu0 0.0
        %2799 = vmatprep.subr.mxu0 0.0
        %2800 = vmatpush1.msra.mxu0 0.0
        %2801 = vmatprep.subr.mxu0 0.0
        %2802 = vmatpush1.msra.mxu0 0.0
        %2803 = vmatprep.subr.mxu0 0.0
        %2804 = vmatpush1.msra.mxu0 0.0
        %2805 = vmatprep.subr.mxu0 0.0
        %2806 = vmatpush1.msra.mxu0 0.0
        %2807 = vmatprep.subr.mxu0 0.0
        %2808 = vmatpush1.msra.mxu0 0.0
        %2809 = vmatprep.subr.mxu0 0.0
        %2810 = vmatpush1.msra.mxu0 0.0
        %2811 = vmatprep.subr.mxu0 0.0
        %2812 = vmatpush1.msra.mxu0 0.0
        %2813 = vmatprep.subr.mxu0 0.0
        %2814 = vmatpush1.msra.mxu0 0.0
        %2815 = vmatprep.subr.mxu0 0.0
        %2816 = vmatpush1.msra.mxu0 0.0
        %2817 = vmatprep.subr.mxu0 0.0
        %2818 = vmatpush1.msra.mxu0 0.0
        %2819 = vmatprep.subr.mxu0 0.0
        %2820 = vmatpush1.msra.mxu0 0.0
        %2821 = vmatprep.subr.mxu0 0.0
        %2822 = vmatpush1.msra.mxu0 0.0
        %2823 = vmatprep.subr.mxu0 0.0
        %2824 = vmatpush1.msra.mxu0 0.0
        %2825 = vmatprep.subr.mxu0 0.0
        %2826 = vmatpush1.msra.mxu0 0.0
        %2827 = vmatprep.subr.mxu0 0.0
        %2828 = vmatpush1.msra.mxu0 0.0
        %2829 = vmatprep.subr.mxu0 0.0
        %2830 = vmatpush1.msra.mxu0 0.0
        %2831 = vmatprep.subr.mxu0 0.0
        %2832 = vmatpush1.msra.mxu0 0.0
        %2833 = vmatprep.subr.mxu0 0.0
        %2834 = vmatpush1.msra.mxu0 0.0
        %2835 = vmatprep.subr.mxu0 0.0
        %2836 = vmatpush1.msra.mxu0 0.0
        %2837 = vmatprep.subr.mxu0 0.0
        %2838 = vmatpush1.msra.mxu0 0.0
        %2839 = vmatprep.subr.mxu0 0.0
        %2840 = vmatpush1.msra.mxu0 0.0
        %2841 = vmatprep.subr.mxu0 0.0
        %2842 = vmatpush1.msra.mxu0 0.0
        %2843 = vmatprep.subr.mxu0 0.0
        %2844 = vmatpush1.msra.mxu0 0.0
        %2845 = vmatprep.mubr.f32.mxu0 0.0
        %v2846 = vand.u32 %v2204, 4294901760
        %2847 = vmatmul.mubr.f32.gmra.mrb[0].mxu0 %v2846
        %v2848 = vpop.f32.mrb[0].mxu0
        %v2849 = vadd.f32 %v2761, %v2848
        %v2850 = vpop.f32.mrb[0].mxu0
        %v2851 = vadd.f32 %v2763, %v2850
        %2852 = vdwg.mxu0
        %s2853 = scalar_lea.vmem %s358, 16 [#allocation3]
        %v2854 = vld [vmem:[%s2853] sm:$0xff]
        %v2855 = vld [vmem:[%s2853 + $0x8] sm:$0xff]
        %s2856 = scalar_lea.vmem %s2, 8
        %v2857 = vld [vmem:[%s2856] sm:$0xff]
        %2859 = vset.pattern.permute.xlu0 0
        %2860 = vperm.xlu0 %2859, %v2857
        %v2861 = vpop.permute.xlu0 %2860
        %v2863 = vsub.f32 %v2854, %v2861
        %v2864 = vsub.f32 %v2855, %v2861
        %s2865 = scalar_lea.vmem %s3, 8
        %v2866 = vld [vmem:[%s2865] sm:$0xff]
        %2868 = vset.pattern.permute.xlu0 0
        %2869 = vperm.xlu0 %2868, %v2866
        %v2870 = vpop.permute.xlu0 %2869
        %v2872 = vmul.f32 %v2863, %v2870
        %v2873 = vmul.f32 %v2864, %v2870
        %s2874 = scalar_lea.vmem %s365, 16 [#allocation4]
        %v2875 = vld [vmem:[%s2874] sm:$0xff]
        %v2876 = vld [vmem:[%s2874 + $0x8] sm:$0xff]
        %v2877 = vand.u32 %v2876, 4294901760
        %2878 = vmatprep.subr.mxu0 %v2877
        %v2879 = vand.u32 %v2875, 4294901760
        %2880 = vmatpush1.msra.mxu0 %v2879
        %2881 = vmatprep.subr.mxu0 0.0
        %2882 = vmatpush1.msra.mxu0 0.0
        %2883 = vmatprep.subr.mxu0 0.0
        %2884 = vmatpush1.msra.mxu0 0.0
        %2885 = vmatprep.subr.mxu0 0.0
        %2886 = vmatpush1.msra.mxu0 0.0
        %2887 = vmatprep.subr.mxu0 0.0
        %2888 = vmatpush1.msra.mxu0 0.0
        %2889 = vmatprep.subr.mxu0 0.0
        %2890 = vmatpush1.msra.mxu0 0.0
        %2891 = vmatprep.subr.mxu0 0.0
        %2892 = vmatpush1.msra.mxu0 0.0
        %2893 = vmatprep.subr.mxu0 0.0
        %2894 = vmatpush1.msra.mxu0 0.0
        %2895 = vmatprep.subr.mxu0 0.0
        %2896 = vmatpush1.msra.mxu0 0.0
        %2897 = vmatprep.subr.mxu0 0.0
        %2898 = vmatpush1.msra.mxu0 0.0
        %2899 = vmatprep.subr.mxu0 0.0
        %2900 = vmatpush1.msra.mxu0 0.0
        %2901 = vmatprep.subr.mxu0 0.0
        %2902 = vmatpush1.msra.mxu0 0.0
        %2903 = vmatprep.subr.mxu0 0.0
        %2904 = vmatpush1.msra.mxu0 0.0
        %2905 = vmatprep.subr.mxu0 0.0
        %2906 = vmatpush1.msra.mxu0 0.0
        %2907 = vmatprep.subr.mxu0 0.0
        %2908 = vmatpush1.msra.mxu0 0.0
        %2909 = vmatprep.subr.mxu0 0.0
        %2910 = vmatpush1.msra.mxu0 0.0
        %2911 = vmatprep.subr.mxu0 0.0
        %2912 = vmatpush1.msra.mxu0 0.0
        %2913 = vmatprep.subr.mxu0 0.0
        %2914 = vmatpush1.msra.mxu0 0.0
        %2915 = vmatprep.subr.mxu0 0.0
        %2916 = vmatpush1.msra.mxu0 0.0
        %2917 = vmatprep.subr.mxu0 0.0
        %2918 = vmatpush1.msra.mxu0 0.0
        %2919 = vmatprep.subr.mxu0 0.0
        %2920 = vmatpush1.msra.mxu0 0.0
        %2921 = vmatprep.subr.mxu0 0.0
        %2922 = vmatpush1.msra.mxu0 0.0
        %2923 = vmatprep.subr.mxu0 0.0
        %2924 = vmatpush1.msra.mxu0 0.0
        %2925 = vmatprep.subr.mxu0 0.0
        %2926 = vmatpush1.msra.mxu0 0.0
        %2927 = vmatprep.subr.mxu0 0.0
        %2928 = vmatpush1.msra.mxu0 0.0
        %2929 = vmatprep.subr.mxu0 0.0
        %2930 = vmatpush1.msra.mxu0 0.0
        %2931 = vmatprep.subr.mxu0 0.0
        %2932 = vmatpush1.msra.mxu0 0.0
        %2933 = vmatprep.subr.mxu0 0.0
        %2934 = vmatpush1.msra.mxu0 0.0
        %2935 = vmatprep.subr.mxu0 0.0
        %2936 = vmatpush1.msra.mxu0 0.0
        %2937 = vmatprep.subr.mxu0 0.0
        %2938 = vmatpush1.msra.mxu0 0.0
        %2939 = vmatprep.subr.mxu0 0.0
        %2940 = vmatpush1.msra.mxu0 0.0
        %2941 = vmatprep.subr.mxu0 0.0
        %2942 = vmatpush1.msra.mxu0 0.0
        %2943 = vmatprep.mubr.f32.mxu0 0.0
        %v2944 = vand.u32 %v458, 4294901760
        %v2945 = vsub.f32 %v458, %v2944
        %v2946 = vand.u32 %v2945, 4294901760
        %v2947 = vsub.f32 %v2945, %v2946
        %v2948 = vand.u32 %v2947, 4294901760
        %2949 = vmatmul.mubr.f32.gmra.mrb[0].mxu0 %v2948
        %v2950 = vpop.f32.mrb[0].mxu0
        %v2951 = vadd.f32 0.0, %v2950
        %v2952 = vpop.f32.mrb[0].mxu0
        %v2953 = vadd.f32 0.0, %v2952
        %2954 = vmatprep.mubr.f32.mxu0 0.0
        %v2955 = vand.u32 %v461, 4294901760
        %v2956 = vsub.f32 %v461, %v2955
        %v2957 = vand.u32 %v2956, 4294901760
        %v2958 = vsub.f32 %v2956, %v2957
        %v2959 = vand.u32 %v2958, 4294901760
        %2960 = vmatmul.mubr.f32.gmra.mrb[0].mxu0 %v2959
        %v2961 = vpop.f32.mrb[0].mxu0
        %v2962 = vadd.f32 0.0, %v2961
        %v2963 = vpop.f32.mrb[0].mxu0
        %v2964 = vadd.f32 0.0, %v2963
        %2965 = vmatprep.mubr.f32.mxu0 0.0
        %v2966 = vand.u32 %v464, 4294901760
        %v2967 = vsub.f32 %v464, %v2966
        %v2968 = vand.u32 %v2967, 4294901760
        %v2969 = vsub.f32 %v2967, %v2968
        %v2970 = vand.u32 %v2969, 4294901760
        %2971 = vmatmul.mubr.f32.gmra.mrb[0].mxu0 %v2970
        %v2972 = vpop.f32.mrb[0].mxu0
        %v2973 = vadd.f32 0.0, %v2972
        %v2974 = vpop.f32.mrb[0].mxu0
        %v2975 = vadd.f32 0.0, %v2974
        %2976 = vmatprep.mubr.f32.mxu0 0.0
        %v2977 = vand.u32 %v467, 4294901760
        %v2978 = vsub.f32 %v467, %v2977
        %v2979 = vand.u32 %v2978, 4294901760
        %v2980 = vsub.f32 %v2978, %v2979
        %v2981 = vand.u32 %v2980, 4294901760
        %2982 = vmatmul.mubr.f32.gmra.mrb[0].mxu0 %v2981
        %v2983 = vpop.f32.mrb[0].mxu0
        %v2984 = vadd.f32 0.0, %v2983
        %v2985 = vpop.f32.mrb[0].mxu0
        %v2986 = vadd.f32 0.0, %v2985
        %2987 = vmatprep.mubr.f32.mxu0 0.0
        %v2988 = vand.u32 %v470, 4294901760
        %v2989 = vsub.f32 %v470, %v2988
        %v2990 = vand.u32 %v2989, 4294901760
        %v2991 = vsub.f32 %v2989, %v2990
        %v2992 = vand.u32 %v2991, 4294901760
        %2993 = vmatmul.mubr.f32.gmra.mrb[0].mxu0 %v2992
        %v2994 = vpop.f32.mrb[0].mxu0
        %v2995 = vadd.f32 0.0, %v2994
        %v2996 = vpop.f32.mrb[0].mxu0
        %v2997 = vadd.f32 0.0, %v2996
        %2998 = vmatprep.mubr.f32.mxu0 0.0
        %v2999 = vand.u32 %v473, 4294901760
        %v3000 = vsub.f32 %v473, %v2999
        %v3001 = vand.u32 %v3000, 4294901760
        %v3002 = vsub.f32 %v3000, %v3001
        %v3003 = vand.u32 %v3002, 4294901760
        %3004 = vmatmul.mubr.f32.gmra.mrb[0].mxu0 %v3003
        %v3005 = vpop.f32.mrb[0].mxu0
        %v3006 = vadd.f32 0.0, %v3005
        %v3007 = vpop.f32.mrb[0].mxu0
        %v3008 = vadd.f32 0.0, %v3007
        %3009 = vmatprep.mubr.f32.mxu0 0.0
        %v3010 = vand.u32 %v476, 4294901760
        %v3011 = vsub.f32 %v476, %v3010
        %v3012 = vand.u32 %v3011, 4294901760
        %v3013 = vsub.f32 %v3011, %v3012
        %v3014 = vand.u32 %v3013, 4294901760
        %3015 = vmatmul.mubr.f32.gmra.mrb[0].mxu0 %v3014
        %v3016 = vpop.f32.mrb[0].mxu0
        %v3017 = vadd.f32 0.0, %v3016
        %v3018 = vpop.f32.mrb[0].mxu0
        %v3019 = vadd.f32 0.0, %v3018
        %3020 = vmatprep.mubr.f32.mxu0 0.0
        %v3021 = vand.u32 %v479, 4294901760
        %v3022 = vsub.f32 %v479, %v3021
        %v3023 = vand.u32 %v3022, 4294901760
        %v3024 = vsub.f32 %v3022, %v3023
        %v3025 = vand.u32 %v3024, 4294901760
        %3026 = vmatmul.mubr.f32.gmra.mrb[0].mxu0 %v3025
        %v3027 = vpop.f32.mrb[0].mxu0
        %v3028 = vadd.f32 0.0, %v3027
        %v3029 = vpop.f32.mrb[0].mxu0
        %v3030 = vadd.f32 0.0, %v3029
        %3031 = vdwg.mxu0
        %v3032 = vand.u32 %v2876, 4294901760
        %v3033 = vsub.f32 %v2876, %v3032
        %v3034 = vand.u32 %v3033, 4294901760
        %v3035 = vsub.f32 %v3033, %v3034
        %v3036 = vand.u32 %v3035, 4294901760
        %3037 = vmatprep.subr.mxu0 %v3036
        %v3038 = vand.u32 %v2875, 4294901760
        %v3039 = vsub.f32 %v2875, %v3038
        %v3040 = vand.u32 %v3039, 4294901760
        %v3041 = vsub.f32 %v3039, %v3040
        %v3042 = vand.u32 %v3041, 4294901760
        %3043 = vmatpush1.msra.mxu0 %v3042
        %3044 = vmatprep.subr.mxu0 0.0
        %3045 = vmatpush1.msra.mxu0 0.0
        %3046 = vmatprep.subr.mxu0 0.0
        %3047 = vmatpush1.msra.mxu0 0.0
        %3048 = vmatprep.subr.mxu0 0.0
        %3049 = vmatpush1.msra.mxu0 0.0
        %3050 = vmatprep.subr.mxu0 0.0
        %3051 = vmatpush1.msra.mxu0 0.0
        %3052 = vmatprep.subr.mxu0 0.0
        %3053 = vmatpush1.msra.mxu0 0.0
        %3054 = vmatprep.subr.mxu0 0.0
        %3055 = vmatpush1.msra.mxu0 0.0
        %3056 = vmatprep.subr.mxu0 0.0
        %3057 = vmatpush1.msra.mxu0 0.0
        %3058 = vmatprep.subr.mxu0 0.0
        %3059 = vmatpush1.msra.mxu0 0.0
        %3060 = vmatprep.subr.mxu0 0.0
        %3061 = vmatpush1.msra.mxu0 0.0
        %3062 = vmatprep.subr.mxu0 0.0
        %3063 = vmatpush1.msra.mxu0 0.0
        %3064 = vmatprep.subr.mxu0 0.0
        %3065 = vmatpush1.msra.mxu0 0.0
        %3066 = vmatprep.subr.mxu0 0.0
        %3067 = vmatpush1.msra.mxu0 0.0
        %3068 = vmatprep.subr.mxu0 0.0
        %3069 = vmatpush1.msra.mxu0 0.0
        %3070 = vmatprep.subr.mxu0 0.0
        %3071 = vmatpush1.msra.mxu0 0.0
        %3072 = vmatprep.subr.mxu0 0.0
        %3073 = vmatpush1.msra.mxu0 0.0
        %3074 = vmatprep.subr.mxu0 0.0
        %3075 = vmatpush1.msra.mxu0 0.0
        %3076 = vmatprep.subr.mxu0 0.0
        %3077 = vmatpush1.msra.mxu0 0.0
        %3078 = vmatprep.subr.mxu0 0.0
        %3079 = vmatpush1.msra.mxu0 0.0
        %3080 = vmatprep.subr.mxu0 0.0
        %3081 = vmatpush1.msra.mxu0 0.0
        %3082 = vmatprep.subr.mxu0 0.0
        %3083 = vmatpush1.msra.mxu0 0.0
        %3084 = vmatprep.subr.mxu0 0.0
        %3085 = vmatpush1.msra.mxu0 0.0
        %3086 = vmatprep.subr.mxu0 0.0
        %3087 = vmatpush1.msra.mxu0 0.0
        %3088 = vmatprep.subr.mxu0 0.0
        %3089 = vmatpush1.msra.mxu0 0.0
        %3090 = vmatprep.subr.mxu0 0.0
        %3091 = vmatpush1.msra.mxu0 0.0
        %3092 = vmatprep.subr.mxu0 0.0
        %3093 = vmatpush1.msra.mxu0 0.0
        %3094 = vmatprep.subr.mxu0 0.0
        %3095 = vmatpush1.msra.mxu0 0.0
        %3096 = vmatprep.subr.mxu0 0.0
        %3097 = vmatpush1.msra.mxu0 0.0
        %3098 = vmatprep.subr.mxu0 0.0
        %3099 = vmatpush1.msra.mxu0 0.0
        %3100 = vmatprep.subr.mxu0 0.0
        %3101 = vmatpush1.msra.mxu0 0.0
        %3102 = vmatprep.subr.mxu0 0.0
        %3103 = vmatpush1.msra.mxu0 0.0
        %3104 = vmatprep.subr.mxu0 0.0
        %3105 = vmatpush1.msra.mxu0 0.0
        %3106 = vmatprep.mubr.f32.mxu0 0.0
        %v3107 = vand.u32 %v458, 4294901760
        %3108 = vmatmul.mubr.f32.gmra.mrb[0].mxu0 %v3107
        %v3109 = vpop.f32.mrb[0].mxu0
        %v3110 = vadd.f32 %v2951, %v3109
        %v3111 = vpop.f32.mrb[0].mxu0
        %v3112 = vadd.f32 %v2953, %v3111
        %3113 = vmatprep.mubr.f32.mxu0 0.0
        %v3114 = vand.u32 %v461, 4294901760
        %3115 = vmatmul.mubr.f32.gmra.mrb[0].mxu0 %v3114
        %v3116 = vpop.f32.mrb[0].mxu0
        %v3117 = vadd.f32 %v2962, %v3116
        %v3118 = vpop.f32.mrb[0].mxu0
        %v3119 = vadd.f32 %v2964, %v3118
        %3120 = vmatprep.mubr.f32.mxu0 0.0
        %v3121 = vand.u32 %v464, 4294901760
        %3122 = vmatmul.mubr.f32.gmra.mrb[0].mxu0 %v3121
        %v3123 = vpop.f32.mrb[0].mxu0
        %v3124 = vadd.f32 %v2973, %v3123
        %v3125 = vpop.f32.mrb[0].mxu0
        %v3126 = vadd.f32 %v2975, %v3125
        %3127 = vmatprep.mubr.f32.mxu0 0.0
        %v3128 = vand.u32 %v467, 4294901760
        %3129 = vmatmul.mubr.f32.gmra.mrb[0].mxu0 %v3128
        %v3130 = vpop.f32.mrb[0].mxu0
        %v3131 = vadd.f32 %v2984, %v3130
        %v3132 = vpop.f32.mrb[0].mxu0
        %v3133 = vadd.f32 %v2986, %v3132
        %3134 = vmatprep.mubr.f32.mxu0 0.0
        %v3135 = vand.u32 %v470, 4294901760
        %3136 = vmatmul.mubr.f32.gmra.mrb[0].mxu0 %v3135
        %v3137 = vpop.f32.mrb[0].mxu0
        %v3138 = vadd.f32 %v2995, %v3137
        %v3139 = vpop.f32.mrb[0].mxu0
        %v3140 = vadd.f32 %v2997, %v3139
        %3141 = vmatprep.mubr.f32.mxu0 0.0
        %v3142 = vand.u32 %v473, 4294901760
        %3143 = vmatmul.mubr.f32.gmra.mrb[0].mxu0 %v3142
        %v3144 = vpop.f32.mrb[0].mxu0
        %v3145 = vadd.f32 %v3006, %v3144
        %v3146 = vpop.f32.mrb[0].mxu0
        %v3147 = vadd.f32 %v3008, %v3146
        %3148 = vmatprep.mubr.f32.mxu0 0.0
        %v3149 = vand.u32 %v476, 4294901760
        %3150 = vmatmul.mubr.f32.gmra.mrb[0].mxu0 %v3149
        %v3151 = vpop.f32.mrb[0].mxu0
        %v3152 = vadd.f32 %v3017, %v3151
        %v3153 = vpop.f32.mrb[0].mxu0
        %v3154 = vadd.f32 %v3019, %v3153
        %3155 = vmatprep.mubr.f32.mxu0 0.0
        %v3156 = vand.u32 %v479, 4294901760
        %3157 = vmatmul.mubr.f32.gmra.mrb[0].mxu0 %v3156
        %v3158 = vpop.f32.mrb[0].mxu0
        %v3159 = vadd.f32 %v3028, %v3158
        %v3160 = vpop.f32.mrb[0].mxu0
        %v3161 = vadd.f32 %v3030, %v3160
        %3162 = vdwg.mxu0
        %v3163 = vand.u32 %v2876, 4294901760
        %v3164 = vsub.f32 %v2876, %v3163
        %3165 = vmatprep.subr.mxu0 %v3164
        %v3166 = vand.u32 %v2875, 4294901760
        %v3167 = vsub.f32 %v2875, %v3166
        %3168 = vmatpush1.msra.mxu0 %v3167
        %3169 = vmatprep.subr.mxu0 0.0
        %3170 = vmatpush1.msra.mxu0 0.0
        %3171 = vmatprep.subr.mxu0 0.0
        %3172 = vmatpush1.msra.mxu0 0.0
        %3173 = vmatprep.subr.mxu0 0.0
        %3174 = vmatpush1.msra.mxu0 0.0
        %3175 = vmatprep.subr.mxu0 0.0
        %3176 = vmatpush1.msra.mxu0 0.0
        %3177 = vmatprep.subr.mxu0 0.0
        %3178 = vmatpush1.msra.mxu0 0.0
        %3179 = vmatprep.subr.mxu0 0.0
        %3180 = vmatpush1.msra.mxu0 0.0
        %3181 = vmatprep.subr.mxu0 0.0
        %3182 = vmatpush1.msra.mxu0 0.0
        %3183 = vmatprep.subr.mxu0 0.0
        %3184 = vmatpush1.msra.mxu0 0.0
        %3185 = vmatprep.subr.mxu0 0.0
        %3186 = vmatpush1.msra.mxu0 0.0
        %3187 = vmatprep.subr.mxu0 0.0
        %3188 = vmatpush1.msra.mxu0 0.0
        %3189 = vmatprep.subr.mxu0 0.0
        %3190 = vmatpush1.msra.mxu0 0.0
        %3191 = vmatprep.subr.mxu0 0.0
        %3192 = vmatpush1.msra.mxu0 0.0
        %3193 = vmatprep.subr.mxu0 0.0
        %3194 = vmatpush1.msra.mxu0 0.0
        %3195 = vmatprep.subr.mxu0 0.0
        %3196 = vmatpush1.msra.mxu0 0.0
        %3197 = vmatprep.subr.mxu0 0.0
        %3198 = vmatpush1.msra.mxu0 0.0
        %3199 = vmatprep.subr.mxu0 0.0
        %3200 = vmatpush1.msra.mxu0 0.0
        %3201 = vmatprep.subr.mxu0 0.0
        %3202 = vmatpush1.msra.mxu0 0.0
        %3203 = vmatprep.subr.mxu0 0.0
        %3204 = vmatpush1.msra.mxu0 0.0
        %3205 = vmatprep.subr.mxu0 0.0
        %3206 = vmatpush1.msra.mxu0 0.0
        %3207 = vmatprep.subr.mxu0 0.0
        %3208 = vmatpush1.msra.mxu0 0.0
        %3209 = vmatprep.subr.mxu0 0.0
        %3210 = vmatpush1.msra.mxu0 0.0
        %3211 = vmatprep.subr.mxu0 0.0
        %3212 = vmatpush1.msra.mxu0 0.0
        %3213 = vmatprep.subr.mxu0 0.0
        %3214 = vmatpush1.msra.mxu0 0.0
        %3215 = vmatprep.subr.mxu0 0.0
        %3216 = vmatpush1.msra.mxu0 0.0
        %3217 = vmatprep.subr.mxu0 0.0
        %3218 = vmatpush1.msra.mxu0 0.0
        %3219 = vmatprep.subr.mxu0 0.0
        %3220 = vmatpush1.msra.mxu0 0.0
        %3221 = vmatprep.subr.mxu0 0.0
        %3222 = vmatpush1.msra.mxu0 0.0
        %3223 = vmatprep.subr.mxu0 0.0
        %3224 = vmatpush1.msra.mxu0 0.0
        %3225 = vmatprep.subr.mxu0 0.0
        %3226 = vmatpush1.msra.mxu0 0.0
        %3227 = vmatprep.subr.mxu0 0.0
        %3228 = vmatpush1.msra.mxu0 0.0
        %3229 = vmatprep.subr.mxu0 0.0
        %3230 = vmatpush1.msra.mxu0 0.0
        %3231 = vmatprep.mubr.f32.mxu0 0.0
        %v3232 = vand.u32 %v458, 4294901760
        %v3233 = vsub.f32 %v458, %v3232
        %3234 = vmatmul.mubr.f32.gmra.mrb[0].mxu0 %v3233
        %v3235 = vpop.f32.mrb[0].mxu0
        %v3236 = vadd.f32 %v3110, %v3235
        %v3237 = vpop.f32.mrb[0].mxu0
        %v3238 = vadd.f32 %v3112, %v3237
        %3239 = vmatprep.mubr.f32.mxu0 0.0
        %v3240 = vand.u32 %v461, 4294901760
        %v3241 = vsub.f32 %v461, %v3240
        %3242 = vmatmul.mubr.f32.gmra.mrb[0].mxu0 %v3241
        %v3243 = vpop.f32.mrb[0].mxu0
        %v3244 = vadd.f32 %v3117, %v3243
        %v3245 = vpop.f32.mrb[0].mxu0
        %v3246 = vadd.f32 %v3119, %v3245
        %3247 = vmatprep.mubr.f32.mxu0 0.0
        %v3248 = vand.u32 %v464, 4294901760
        %v3249 = vsub.f32 %v464, %v3248
        %3250 = vmatmul.mubr.f32.gmra.mrb[0].mxu0 %v3249
        %v3251 = vpop.f32.mrb[0].mxu0
        %v3252 = vadd.f32 %v3124, %v3251
        %v3253 = vpop.f32.mrb[0].mxu0
        %v3254 = vadd.f32 %v3126, %v3253
        %3255 = vmatprep.mubr.f32.mxu0 0.0
        %v3256 = vand.u32 %v467, 4294901760
        %v3257 = vsub.f32 %v467, %v3256
        %3258 = vmatmul.mubr.f32.gmra.mrb[0].mxu0 %v3257
        %v3259 = vpop.f32.mrb[0].mxu0
        %v3260 = vadd.f32 %v3131, %v3259
        %v3261 = vpop.f32.mrb[0].mxu0
        %v3262 = vadd.f32 %v3133, %v3261
        %3263 = vmatprep.mubr.f32.mxu0 0.0
        %v3264 = vand.u32 %v470, 4294901760
        %v3265 = vsub.f32 %v470, %v3264
        %3266 = vmatmul.mubr.f32.gmra.mrb[0].mxu0 %v3265
        %v3267 = vpop.f32.mrb[0].mxu0
        %v3268 = vadd.f32 %v3138, %v3267
        %v3269 = vpop.f32.mrb[0].mxu0
        %v3270 = vadd.f32 %v3140, %v3269
        %3271 = vmatprep.mubr.f32.mxu0 0.0
        %v3272 = vand.u32 %v473, 4294901760
        %v3273 = vsub.f32 %v473, %v3272
        %3274 = vmatmul.mubr.f32.gmra.mrb[0].mxu0 %v3273
        %v3275 = vpop.f32.mrb[0].mxu0
        %v3276 = vadd.f32 %v3145, %v3275
        %v3277 = vpop.f32.mrb[0].mxu0
        %v3278 = vadd.f32 %v3147, %v3277
        %3279 = vmatprep.mubr.f32.mxu0 0.0
        %v3280 = vand.u32 %v476, 4294901760
        %v3281 = vsub.f32 %v476, %v3280
        %3282 = vmatmul.mubr.f32.gmra.mrb[0].mxu0 %v3281
        %v3283 = vpop.f32.mrb[0].mxu0
        %v3284 = vadd.f32 %v3152, %v3283
        %v3285 = vpop.f32.mrb[0].mxu0
        %v3286 = vadd.f32 %v3154, %v3285
        %3287 = vmatprep.mubr.f32.mxu0 0.0
        %v3288 = vand.u32 %v479, 4294901760
        %v3289 = vsub.f32 %v479, %v3288
        %3290 = vmatmul.mubr.f32.gmra.mrb[0].mxu0 %v3289
        %v3291 = vpop.f32.mrb[0].mxu0
        %v3292 = vadd.f32 %v3159, %v3291
        %v3293 = vpop.f32.mrb[0].mxu0
        %v3294 = vadd.f32 %v3161, %v3293
        %3295 = vdwg.mxu0
        %v3296 = vand.u32 %v2876, 4294901760
        %3297 = vmatprep.subr.mxu0 %v3296
        %v3298 = vand.u32 %v2875, 4294901760
        %3299 = vmatpush1.msra.mxu0 %v3298
        %3300 = vmatprep.subr.mxu0 0.0
        %3301 = vmatpush1.msra.mxu0 0.0
        %3302 = vmatprep.subr.mxu0 0.0
        %3303 = vmatpush1.msra.mxu0 0.0
        %3304 = vmatprep.subr.mxu0 0.0
        %3305 = vmatpush1.msra.mxu0 0.0
        %3306 = vmatprep.subr.mxu0 0.0
        %3307 = vmatpush1.msra.mxu0 0.0
        %3308 = vmatprep.subr.mxu0 0.0
        %3309 = vmatpush1.msra.mxu0 0.0
        %3310 = vmatprep.subr.mxu0 0.0
        %3311 = vmatpush1.msra.mxu0 0.0
        %3312 = vmatprep.subr.mxu0 0.0
        %3313 = vmatpush1.msra.mxu0 0.0
        %3314 = vmatprep.subr.mxu0 0.0
        %3315 = vmatpush1.msra.mxu0 0.0
        %3316 = vmatprep.subr.mxu0 0.0
        %3317 = vmatpush1.msra.mxu0 0.0
        %3318 = vmatprep.subr.mxu0 0.0
        %3319 = vmatpush1.msra.mxu0 0.0
        %3320 = vmatprep.subr.mxu0 0.0
        %3321 = vmatpush1.msra.mxu0 0.0
        %3322 = vmatprep.subr.mxu0 0.0
        %3323 = vmatpush1.msra.mxu0 0.0
        %3324 = vmatprep.subr.mxu0 0.0
        %3325 = vmatpush1.msra.mxu0 0.0
        %3326 = vmatprep.subr.mxu0 0.0
        %3327 = vmatpush1.msra.mxu0 0.0
        %3328 = vmatprep.subr.mxu0 0.0
        %3329 = vmatpush1.msra.mxu0 0.0
        %3330 = vmatprep.subr.mxu0 0.0
        %3331 = vmatpush1.msra.mxu0 0.0
        %3332 = vmatprep.subr.mxu0 0.0
        %3333 = vmatpush1.msra.mxu0 0.0
        %3334 = vmatprep.subr.mxu0 0.0
        %3335 = vmatpush1.msra.mxu0 0.0
        %3336 = vmatprep.subr.mxu0 0.0
        %3337 = vmatpush1.msra.mxu0 0.0
        %3338 = vmatprep.subr.mxu0 0.0
        %3339 = vmatpush1.msra.mxu0 0.0
        %3340 = vmatprep.subr.mxu0 0.0
        %3341 = vmatpush1.msra.mxu0 0.0
        %3342 = vmatprep.subr.mxu0 0.0
        %3343 = vmatpush1.msra.mxu0 0.0
        %3344 = vmatprep.subr.mxu0 0.0
        %3345 = vmatpush1.msra.mxu0 0.0
        %3346 = vmatprep.subr.mxu0 0.0
        %3347 = vmatpush1.msra.mxu0 0.0
        %3348 = vmatprep.subr.mxu0 0.0
        %3349 = vmatpush1.msra.mxu0 0.0
        %3350 = vmatprep.subr.mxu0 0.0
        %3351 = vmatpush1.msra.mxu0 0.0
        %3352 = vmatprep.subr.mxu0 0.0
        %3353 = vmatpush1.msra.mxu0 0.0
        %3354 = vmatprep.subr.mxu0 0.0
        %3355 = vmatpush1.msra.mxu0 0.0
        %3356 = vmatprep.subr.mxu0 0.0
        %3357 = vmatpush1.msra.mxu0 0.0
        %3358 = vmatprep.subr.mxu0 0.0
        %3359 = vmatpush1.msra.mxu0 0.0
        %3360 = vmatprep.subr.mxu0 0.0
        %3361 = vmatpush1.msra.mxu0 0.0
        %3362 = vmatprep.mubr.f32.mxu0 0.0
        %v3363 = vand.u32 %v458, 4294901760
        %v3364 = vsub.f32 %v458, %v3363
        %v3365 = vand.u32 %v3364, 4294901760
        %3366 = vmatmul.mubr.f32.gmra.mrb[0].mxu0 %v3365
        %v3367 = vpop.f32.mrb[0].mxu0
        %v3368 = vadd.f32 %v3236, %v3367
        %v3369 = vpop.f32.mrb[0].mxu0
        %v3370 = vadd.f32 %v3238, %v3369
        %3371 = vmatprep.mubr.f32.mxu0 0.0
        %v3372 = vand.u32 %v461, 4294901760
        %v3373 = vsub.f32 %v461, %v3372
        %v3374 = vand.u32 %v3373, 4294901760
        %3375 = vmatmul.mubr.f32.gmra.mrb[0].mxu0 %v3374
        %v3376 = vpop.f32.mrb[0].mxu0
        %v3377 = vadd.f32 %v3244, %v3376
        %v3378 = vpop.f32.mrb[0].mxu0
        %v3379 = vadd.f32 %v3246, %v3378
        %3380 = vmatprep.mubr.f32.mxu0 0.0
        %v3381 = vand.u32 %v464, 4294901760
        %v3382 = vsub.f32 %v464, %v3381
        %v3383 = vand.u32 %v3382, 4294901760
        %3384 = vmatmul.mubr.f32.gmra.mrb[0].mxu0 %v3383
        %v3385 = vpop.f32.mrb[0].mxu0
        %v3386 = vadd.f32 %v3252, %v3385
        %v3387 = vpop.f32.mrb[0].mxu0
        %v3388 = vadd.f32 %v3254, %v3387
        %3389 = vmatprep.mubr.f32.mxu0 0.0
        %v3390 = vand.u32 %v467, 4294901760
        %v3391 = vsub.f32 %v467, %v3390
        %v3392 = vand.u32 %v3391, 4294901760
        %3393 = vmatmul.mubr.f32.gmra.mrb[0].mxu0 %v3392
        %v3394 = vpop.f32.mrb[0].mxu0
        %v3395 = vadd.f32 %v3260, %v3394
        %v3396 = vpop.f32.mrb[0].mxu0
        %v3397 = vadd.f32 %v3262, %v3396
        %3398 = vmatprep.mubr.f32.mxu0 0.0
        %v3399 = vand.u32 %v470, 4294901760
        %v3400 = vsub.f32 %v470, %v3399
        %v3401 = vand.u32 %v3400, 4294901760
        %3402 = vmatmul.mubr.f32.gmra.mrb[0].mxu0 %v3401
        %v3403 = vpop.f32.mrb[0].mxu0
        %v3404 = vadd.f32 %v3268, %v3403
        %v3405 = vpop.f32.mrb[0].mxu0
        %v3406 = vadd.f32 %v3270, %v3405
        %3407 = vmatprep.mubr.f32.mxu0 0.0
        %v3408 = vand.u32 %v473, 4294901760
        %v3409 = vsub.f32 %v473, %v3408
        %v3410 = vand.u32 %v3409, 4294901760
        %3411 = vmatmul.mubr.f32.gmra.mrb[0].mxu0 %v3410
        %v3412 = vpop.f32.mrb[0].mxu0
        %v3413 = vadd.f32 %v3276, %v3412
        %v3414 = vpop.f32.mrb[0].mxu0
        %v3415 = vadd.f32 %v3278, %v3414
        %3416 = vmatprep.mubr.f32.mxu0 0.0
        %v3417 = vand.u32 %v476, 4294901760
        %v3418 = vsub.f32 %v476, %v3417
        %v3419 = vand.u32 %v3418, 4294901760
        %3420 = vmatmul.mubr.f32.gmra.mrb[0].mxu0 %v3419
        %v3421 = vpop.f32.mrb[0].mxu0
        %v3422 = vadd.f32 %v3284, %v3421
        %v3423 = vpop.f32.mrb[0].mxu0
        %v3424 = vadd.f32 %v3286, %v3423
        %3425 = vmatprep.mubr.f32.mxu0 0.0
        %v3426 = vand.u32 %v479, 4294901760
        %v3427 = vsub.f32 %v479, %v3426
        %v3428 = vand.u32 %v3427, 4294901760
        %3429 = vmatmul.mubr.f32.gmra.mrb[0].mxu0 %v3428
        %v3430 = vpop.f32.mrb[0].mxu0
        %v3431 = vadd.f32 %v3292, %v3430
        %v3432 = vpop.f32.mrb[0].mxu0
        %v3433 = vadd.f32 %v3294, %v3432
        %3434 = vdwg.mxu0
        %v3435 = vand.u32 %v2876, 4294901760
        %v3436 = vsub.f32 %v2876, %v3435
        %v3437 = vand.u32 %v3436, 4294901760
        %3438 = vmatprep.subr.mxu0 %v3437
        %v3439 = vand.u32 %v2875, 4294901760
        %v3440 = vsub.f32 %v2875, %v3439
        %v3441 = vand.u32 %v3440, 4294901760
        %3442 = vmatpush1.msra.mxu0 %v3441
        %3443 = vmatprep.subr.mxu0 0.0
        %3444 = vmatpush1.msra.mxu0 0.0
        %3445 = vmatprep.subr.mxu0 0.0
        %3446 = vmatpush1.msra.mxu0 0.0
        %3447 = vmatprep.subr.mxu0 0.0
        %3448 = vmatpush1.msra.mxu0 0.0
        %3449 = vmatprep.subr.mxu0 0.0
        %3450 = vmatpush1.msra.mxu0 0.0
        %3451 = vmatprep.subr.mxu0 0.0
        %3452 = vmatpush1.msra.mxu0 0.0
        %3453 = vmatprep.subr.mxu0 0.0
        %3454 = vmatpush1.msra.mxu0 0.0
        %3455 = vmatprep.subr.mxu0 0.0
        %3456 = vmatpush1.msra.mxu0 0.0
        %3457 = vmatprep.subr.mxu0 0.0
        %3458 = vmatpush1.msra.mxu0 0.0
        %3459 = vmatprep.subr.mxu0 0.0
        %3460 = vmatpush1.msra.mxu0 0.0
        %3461 = vmatprep.subr.mxu0 0.0
        %3462 = vmatpush1.msra.mxu0 0.0
        %3463 = vmatprep.subr.mxu0 0.0
        %3464 = vmatpush1.msra.mxu0 0.0
        %3465 = vmatprep.subr.mxu0 0.0
        %3466 = vmatpush1.msra.mxu0 0.0
        %3467 = vmatprep.subr.mxu0 0.0
        %3468 = vmatpush1.msra.mxu0 0.0
        %3469 = vmatprep.subr.mxu0 0.0
        %3470 = vmatpush1.msra.mxu0 0.0
        %3471 = vmatprep.subr.mxu0 0.0
        %3472 = vmatpush1.msra.mxu0 0.0
        %3473 = vmatprep.subr.mxu0 0.0
        %3474 = vmatpush1.msra.mxu0 0.0
        %3475 = vmatprep.subr.mxu0 0.0
        %3476 = vmatpush1.msra.mxu0 0.0
        %3477 = vmatprep.subr.mxu0 0.0
        %3478 = vmatpush1.msra.mxu0 0.0
        %3479 = vmatprep.subr.mxu0 0.0
        %3480 = vmatpush1.msra.mxu0 0.0
        %3481 = vmatprep.subr.mxu0 0.0
        %3482 = vmatpush1.msra.mxu0 0.0
        %3483 = vmatprep.subr.mxu0 0.0
        %3484 = vmatpush1.msra.mxu0 0.0
        %3485 = vmatprep.subr.mxu0 0.0
        %3486 = vmatpush1.msra.mxu0 0.0
        %3487 = vmatprep.subr.mxu0 0.0
        %3488 = vmatpush1.msra.mxu0 0.0
        %3489 = vmatprep.subr.mxu0 0.0
        %3490 = vmatpush1.msra.mxu0 0.0
        %3491 = vmatprep.subr.mxu0 0.0
        %3492 = vmatpush1.msra.mxu0 0.0
        %3493 = vmatprep.subr.mxu0 0.0
        %3494 = vmatpush1.msra.mxu0 0.0
        %3495 = vmatprep.subr.mxu0 0.0
        %3496 = vmatpush1.msra.mxu0 0.0
        %3497 = vmatprep.subr.mxu0 0.0
        %3498 = vmatpush1.msra.mxu0 0.0
        %3499 = vmatprep.subr.mxu0 0.0
        %3500 = vmatpush1.msra.mxu0 0.0
        %3501 = vmatprep.subr.mxu0 0.0
        %3502 = vmatpush1.msra.mxu0 0.0
        %3503 = vmatprep.subr.mxu0 0.0
        %3504 = vmatpush1.msra.mxu0 0.0
        %3505 = vmatprep.mubr.f32.mxu0 0.0
        %v3506 = vand.u32 %v458, 4294901760
        %3507 = vmatmul.mubr.f32.gmra.mrb[0].mxu0 %v3506
        %v3508 = vpop.f32.mrb[0].mxu0
        %v3509 = vadd.f32 %v3368, %v3508
        %v3510 = vpop.f32.mrb[0].mxu0
        %v3511 = vadd.f32 %v3370, %v3510
        %3512 = vmatprep.mubr.f32.mxu0 0.0
        %v3513 = vand.u32 %v461, 4294901760
        %3514 = vmatmul.mubr.f32.gmra.mrb[0].mxu0 %v3513
        %v3515 = vpop.f32.mrb[0].mxu0
        %v3516 = vadd.f32 %v3377, %v3515
        %v3517 = vpop.f32.mrb[0].mxu0
        %v3518 = vadd.f32 %v3379, %v3517
        %3519 = vmatprep.mubr.f32.mxu0 0.0
        %v3520 = vand.u32 %v464, 4294901760
        %3521 = vmatmul.mubr.f32.gmra.mrb[0].mxu0 %v3520
        %v3522 = vpop.f32.mrb[0].mxu0
        %v3523 = vadd.f32 %v3386, %v3522
        %v3524 = vpop.f32.mrb[0].mxu0
        %v3525 = vadd.f32 %v3388, %v3524
        %3526 = vmatprep.mubr.f32.mxu0 0.0
        %v3527 = vand.u32 %v467, 4294901760
        %3528 = vmatmul.mubr.f32.gmra.mrb[0].mxu0 %v3527
        %v3529 = vpop.f32.mrb[0].mxu0
        %v3530 = vadd.f32 %v3395, %v3529
        %v3531 = vpop.f32.mrb[0].mxu0
        %v3532 = vadd.f32 %v3397, %v3531
        %3533 = vmatprep.mubr.f32.mxu0 0.0
        %v3534 = vand.u32 %v470, 4294901760
        %3535 = vmatmul.mubr.f32.gmra.mrb[0].mxu0 %v3534
        %v3536 = vpop.f32.mrb[0].mxu0
        %v3537 = vadd.f32 %v3404, %v3536
        %v3538 = vpop.f32.mrb[0].mxu0
        %v3539 = vadd.f32 %v3406, %v3538
        %3540 = vmatprep.mubr.f32.mxu0 0.0
        %v3541 = vand.u32 %v473, 4294901760
        %3542 = vmatmul.mubr.f32.gmra.mrb[0].mxu0 %v3541
        %v3543 = vpop.f32.mrb[0].mxu0
        %v3544 = vadd.f32 %v3413, %v3543
        %v3545 = vpop.f32.mrb[0].mxu0
        %v3546 = vadd.f32 %v3415, %v3545
        %3547 = vmatprep.mubr.f32.mxu0 0.0
        %v3548 = vand.u32 %v476, 4294901760
        %3549 = vmatmul.mubr.f32.gmra.mrb[0].mxu0 %v3548
        %v3550 = vpop.f32.mrb[0].mxu0
        %v3551 = vadd.f32 %v3422, %v3550
        %v3552 = vpop.f32.mrb[0].mxu0
        %v3553 = vadd.f32 %v3424, %v3552
        %3554 = vmatprep.mubr.f32.mxu0 0.0
        %v3555 = vand.u32 %v479, 4294901760
        %3556 = vmatmul.mubr.f32.gmra.mrb[0].mxu0 %v3555
        %v3557 = vpop.f32.mrb[0].mxu0
        %v3558 = vadd.f32 %v3431, %v3557
        %v3559 = vpop.f32.mrb[0].mxu0
        %v3560 = vadd.f32 %v3433, %v3559
        %3561 = vdwg.mxu0
        %v3562 = vand.u32 %v2876, 4294901760
        %3563 = vmatprep.subr.mxu0 %v3562
        %v3564 = vand.u32 %v2875, 4294901760
        %3565 = vmatpush1.msra.mxu0 %v3564
        %3566 = vmatprep.subr.mxu0 0.0
        %3567 = vmatpush1.msra.mxu0 0.0
        %3568 = vmatprep.subr.mxu0 0.0
        %3569 = vmatpush1.msra.mxu0 0.0
        %3570 = vmatprep.subr.mxu0 0.0
        %3571 = vmatpush1.msra.mxu0 0.0
        %3572 = vmatprep.subr.mxu0 0.0
        %3573 = vmatpush1.msra.mxu0 0.0
        %3574 = vmatprep.subr.mxu0 0.0
        %3575 = vmatpush1.msra.mxu0 0.0
        %3576 = vmatprep.subr.mxu0 0.0
        %3577 = vmatpush1.msra.mxu0 0.0
        %3578 = vmatprep.subr.mxu0 0.0
        %3579 = vmatpush1.msra.mxu0 0.0
        %3580 = vmatprep.subr.mxu0 0.0
        %3581 = vmatpush1.msra.mxu0 0.0
        %3582 = vmatprep.subr.mxu0 0.0
        %3583 = vmatpush1.msra.mxu0 0.0
        %3584 = vmatprep.subr.mxu0 0.0
        %3585 = vmatpush1.msra.mxu0 0.0
        %3586 = vmatprep.subr.mxu0 0.0
        %3587 = vmatpush1.msra.mxu0 0.0
        %3588 = vmatprep.subr.mxu0 0.0
        %3589 = vmatpush1.msra.mxu0 0.0
        %3590 = vmatprep.subr.mxu0 0.0
        %3591 = vmatpush1.msra.mxu0 0.0
        %3592 = vmatprep.subr.mxu0 0.0
        %3593 = vmatpush1.msra.mxu0 0.0
        %3594 = vmatprep.subr.mxu0 0.0
        %3595 = vmatpush1.msra.mxu0 0.0
        %3596 = vmatprep.subr.mxu0 0.0
        %3597 = vmatpush1.msra.mxu0 0.0
        %3598 = vmatprep.subr.mxu0 0.0
        %3599 = vmatpush1.msra.mxu0 0.0
        %3600 = vmatprep.subr.mxu0 0.0
        %3601 = vmatpush1.msra.mxu0 0.0
        %3602 = vmatprep.subr.mxu0 0.0
        %3603 = vmatpush1.msra.mxu0 0.0
        %3604 = vmatprep.subr.mxu0 0.0
        %3605 = vmatpush1.msra.mxu0 0.0
        %3606 = vmatprep.subr.mxu0 0.0
        %3607 = vmatpush1.msra.mxu0 0.0
        %3608 = vmatprep.subr.mxu0 0.0
        %3609 = vmatpush1.msra.mxu0 0.0
        %3610 = vmatprep.subr.mxu0 0.0
        %3611 = vmatpush1.msra.mxu0 0.0
        %3612 = vmatprep.subr.mxu0 0.0
        %3613 = vmatpush1.msra.mxu0 0.0
        %3614 = vmatprep.subr.mxu0 0.0
        %3615 = vmatpush1.msra.mxu0 0.0
        %3616 = vmatprep.subr.mxu0 0.0
        %3617 = vmatpush1.msra.mxu0 0.0
        %3618 = vmatprep.subr.mxu0 0.0
        %3619 = vmatpush1.msra.mxu0 0.0
        %3620 = vmatprep.subr.mxu0 0.0
        %3621 = vmatpush1.msra.mxu0 0.0
        %3622 = vmatprep.subr.mxu0 0.0
        %3623 = vmatpush1.msra.mxu0 0.0
        %3624 = vmatprep.subr.mxu0 0.0
        %3625 = vmatpush1.msra.mxu0 0.0
        %3626 = vmatprep.subr.mxu0 0.0
        %3627 = vmatpush1.msra.mxu0 0.0
        %3628 = vmatprep.mubr.f32.mxu0 0.0
        %v3629 = vand.u32 %v458, 4294901760
        %3630 = vmatmul.mubr.f32.gmra.mrb[0].mxu0 %v3629
        %v3631 = vpop.f32.mrb[0].mxu0
        %v3632 = vadd.f32 %v3509, %v3631
        %v3633 = vpop.f32.mrb[0].mxu0
        %v3634 = vadd.f32 %v3511, %v3633
        %3635 = vmatprep.mubr.f32.mxu0 0.0
        %v3636 = vand.u32 %v461, 4294901760
        %3637 = vmatmul.mubr.f32.gmra.mrb[0].mxu0 %v3636
        %v3638 = vpop.f32.mrb[0].mxu0
        %v3639 = vadd.f32 %v3516, %v3638
        %v3640 = vpop.f32.mrb[0].mxu0
        %v3641 = vadd.f32 %v3518, %v3640
        %3642 = vmatprep.mubr.f32.mxu0 0.0
        %v3643 = vand.u32 %v464, 4294901760
        %3644 = vmatmul.mubr.f32.gmra.mrb[0].mxu0 %v3643
        %v3645 = vpop.f32.mrb[0].mxu0
        %v3646 = vadd.f32 %v3523, %v3645
        %v3647 = vpop.f32.mrb[0].mxu0
        %v3648 = vadd.f32 %v3525, %v3647
        %3649 = vmatprep.mubr.f32.mxu0 0.0
        %v3650 = vand.u32 %v467, 4294901760
        %3651 = vmatmul.mubr.f32.gmra.mrb[0].mxu0 %v3650
        %v3652 = vpop.f32.mrb[0].mxu0
        %v3653 = vadd.f32 %v3530, %v3652
        %v3654 = vpop.f32.mrb[0].mxu0
        %v3655 = vadd.f32 %v3532, %v3654
        %3656 = vmatprep.mubr.f32.mxu0 0.0
        %v3657 = vand.u32 %v470, 4294901760
        %3658 = vmatmul.mubr.f32.gmra.mrb[0].mxu0 %v3657
        %v3659 = vpop.f32.mrb[0].mxu0
        %v3660 = vadd.f32 %v3537, %v3659
        %v3661 = vpop.f32.mrb[0].mxu0
        %v3662 = vadd.f32 %v3539, %v3661
        %3663 = vmatprep.mubr.f32.mxu0 0.0
        %v3664 = vand.u32 %v473, 4294901760
        %3665 = vmatmul.mubr.f32.gmra.mrb[0].mxu0 %v3664
        %v3666 = vpop.f32.mrb[0].mxu0
        %v3667 = vadd.f32 %v3544, %v3666
        %v3668 = vpop.f32.mrb[0].mxu0
        %v3669 = vadd.f32 %v3546, %v3668
        %3670 = vmatprep.mubr.f32.mxu0 0.0
        %v3671 = vand.u32 %v476, 4294901760
        %3672 = vmatmul.mubr.f32.gmra.mrb[0].mxu0 %v3671
        %v3673 = vpop.f32.mrb[0].mxu0
        %v3674 = vadd.f32 %v3551, %v3673
        %v3675 = vpop.f32.mrb[0].mxu0
        %v3676 = vadd.f32 %v3553, %v3675
        %3677 = vmatprep.mubr.f32.mxu0 0.0
        %v3678 = vand.u32 %v479, 4294901760
        %3679 = vmatmul.mubr.f32.gmra.mrb[0].mxu0 %v3678
        %v3680 = vpop.f32.mrb[0].mxu0
        %v3681 = vadd.f32 %v3558, %v3680
        %v3682 = vpop.f32.mrb[0].mxu0
        %v3683 = vadd.f32 %v3560, %v3682
        %3684 = vdwg.mxu0
        %v3685 = vand.u32 %v2873, 4294901760
        %3686 = vmatprep.subr.mxu0 %v3685
        %v3687 = vand.u32 %v2872, 4294901760
        %3688 = vmatpush1.msra.mxu0 %v3687
        %3689 = vmatprep.subr.mxu0 0.0
        %3690 = vmatpush1.msra.mxu0 0.0
        %3691 = vmatprep.subr.mxu0 0.0
        %3692 = vmatpush1.msra.mxu0 0.0
        %3693 = vmatprep.subr.mxu0 0.0
        %3694 = vmatpush1.msra.mxu0 0.0
        %3695 = vmatprep.subr.mxu0 0.0
        %3696 = vmatpush1.msra.mxu0 0.0
        %3697 = vmatprep.subr.mxu0 0.0
        %3698 = vmatpush1.msra.mxu0 0.0
        %3699 = vmatprep.subr.mxu0 0.0
        %3700 = vmatpush1.msra.mxu0 0.0
        %3701 = vmatprep.subr.mxu0 0.0
        %3702 = vmatpush1.msra.mxu0 0.0
        %3703 = vmatprep.subr.mxu0 0.0
        %3704 = vmatpush1.msra.mxu0 0.0
        %3705 = vmatprep.subr.mxu0 0.0
        %3706 = vmatpush1.msra.mxu0 0.0
        %3707 = vmatprep.subr.mxu0 0.0
        %3708 = vmatpush1.msra.mxu0 0.0
        %3709 = vmatprep.subr.mxu0 0.0
        %3710 = vmatpush1.msra.mxu0 0.0
        %3711 = vmatprep.subr.mxu0 0.0
        %3712 = vmatpush1.msra.mxu0 0.0
        %3713 = vmatprep.subr.mxu0 0.0
        %3714 = vmatpush1.msra.mxu0 0.0
        %3715 = vmatprep.subr.mxu0 0.0
        %3716 = vmatpush1.msra.mxu0 0.0
        %3717 = vmatprep.subr.mxu0 0.0
        %3718 = vmatpush1.msra.mxu0 0.0
        %3719 = vmatprep.subr.mxu0 0.0
        %3720 = vmatpush1.msra.mxu0 0.0
        %3721 = vmatprep.subr.mxu0 0.0
        %3722 = vmatpush1.msra.mxu0 0.0
        %3723 = vmatprep.subr.mxu0 0.0
        %3724 = vmatpush1.msra.mxu0 0.0
        %3725 = vmatprep.subr.mxu0 0.0
        %3726 = vmatpush1.msra.mxu0 0.0
        %3727 = vmatprep.subr.mxu0 0.0
        %3728 = vmatpush1.msra.mxu0 0.0
        %3729 = vmatprep.subr.mxu0 0.0
        %3730 = vmatpush1.msra.mxu0 0.0
        %3731 = vmatprep.subr.mxu0 0.0
        %3732 = vmatpush1.msra.mxu0 0.0
        %3733 = vmatprep.subr.mxu0 0.0
        %3734 = vmatpush1.msra.mxu0 0.0
        %3735 = vmatprep.subr.mxu0 0.0
        %3736 = vmatpush1.msra.mxu0 0.0
        %3737 = vmatprep.subr.mxu0 0.0
        %3738 = vmatpush1.msra.mxu0 0.0
        %3739 = vmatprep.subr.mxu0 0.0
        %3740 = vmatpush1.msra.mxu0 0.0
        %3741 = vmatprep.subr.mxu0 0.0
        %3742 = vmatpush1.msra.mxu0 0.0
        %3743 = vmatprep.subr.mxu0 0.0
        %3744 = vmatpush1.msra.mxu0 0.0
        %3745 = vmatprep.subr.mxu0 0.0
        %3746 = vmatpush1.msra.mxu0 0.0
        %3747 = vmatprep.subr.mxu0 0.0
        %3748 = vmatpush1.msra.mxu0 0.0
        %3749 = vmatprep.subr.mxu0 0.0
        %3750 = vmatpush1.msra.mxu0 0.0
        %3751 = vmatprep.mubr.f32.mxu0 0.0
        %v3752 = vand.u32 %v1290, 4294901760
        %v3753 = vsub.f32 %v1290, %v3752
        %v3754 = vand.u32 %v3753, 4294901760
        %v3755 = vsub.f32 %v3753, %v3754
        %v3756 = vand.u32 %v3755, 4294901760
        %3757 = vmatmul.mubr.f32.gmra.mrb[0].mxu0 %v3756
        %v3758 = vpop.f32.mrb[0].mxu0
        %v3759 = vadd.f32 %v3632, %v3758
        %v3760 = vpop.f32.mrb[0].mxu0
        %v3761 = vadd.f32 %v3634, %v3760
        %3762 = vmatprep.mubr.f32.mxu0 0.0
        %v3763 = vand.u32 %v1293, 4294901760
        %v3764 = vsub.f32 %v1293, %v3763
        %v3765 = vand.u32 %v3764, 4294901760
        %v3766 = vsub.f32 %v3764, %v3765
        %v3767 = vand.u32 %v3766, 4294901760
        %3768 = vmatmul.mubr.f32.gmra.mrb[0].mxu0 %v3767
        %v3769 = vpop.f32.mrb[0].mxu0
        %v3770 = vadd.f32 %v3639, %v3769
        %v3771 = vpop.f32.mrb[0].mxu0
        %v3772 = vadd.f32 %v3641, %v3771
        %3773 = vmatprep.mubr.f32.mxu0 0.0
        %v3774 = vand.u32 %v1296, 4294901760
        %v3775 = vsub.f32 %v1296, %v3774
        %v3776 = vand.u32 %v3775, 4294901760
        %v3777 = vsub.f32 %v3775, %v3776
        %v3778 = vand.u32 %v3777, 4294901760
        %3779 = vmatmul.mubr.f32.gmra.mrb[0].mxu0 %v3778
        %v3780 = vpop.f32.mrb[0].mxu0
        %v3781 = vadd.f32 %v3646, %v3780
        %v3782 = vpop.f32.mrb[0].mxu0
        %v3783 = vadd.f32 %v3648, %v3782
        %3784 = vmatprep.mubr.f32.mxu0 0.0
        %v3785 = vand.u32 %v1299, 4294901760
        %v3786 = vsub.f32 %v1299, %v3785
        %v3787 = vand.u32 %v3786, 4294901760
        %v3788 = vsub.f32 %v3786, %v3787
        %v3789 = vand.u32 %v3788, 4294901760
        %3790 = vmatmul.mubr.f32.gmra.mrb[0].mxu0 %v3789
        %v3791 = vpop.f32.mrb[0].mxu0
        %v3792 = vadd.f32 %v3653, %v3791
        %v3793 = vpop.f32.mrb[0].mxu0
        %v3794 = vadd.f32 %v3655, %v3793
        %3795 = vmatprep.mubr.f32.mxu0 0.0
        %v3796 = vand.u32 %v1302, 4294901760
        %v3797 = vsub.f32 %v1302, %v3796
        %v3798 = vand.u32 %v3797, 4294901760
        %v3799 = vsub.f32 %v3797, %v3798
        %v3800 = vand.u32 %v3799, 4294901760
        %3801 = vmatmul.mubr.f32.gmra.mrb[0].mxu0 %v3800
        %v3802 = vpop.f32.mrb[0].mxu0
        %v3803 = vadd.f32 %v3660, %v3802
        %v3804 = vpop.f32.mrb[0].mxu0
        %v3805 = vadd.f32 %v3662, %v3804
        %3806 = vmatprep.mubr.f32.mxu0 0.0
        %v3807 = vand.u32 %v1305, 4294901760
        %v3808 = vsub.f32 %v1305, %v3807
        %v3809 = vand.u32 %v3808, 4294901760
        %v3810 = vsub.f32 %v3808, %v3809
        %v3811 = vand.u32 %v3810, 4294901760
        %3812 = vmatmul.mubr.f32.gmra.mrb[0].mxu0 %v3811
        %v3813 = vpop.f32.mrb[0].mxu0
        %v3814 = vadd.f32 %v3667, %v3813
        %v3815 = vpop.f32.mrb[0].mxu0
        %v3816 = vadd.f32 %v3669, %v3815
        %3817 = vmatprep.mubr.f32.mxu0 0.0
        %v3818 = vand.u32 %v1308, 4294901760
        %v3819 = vsub.f32 %v1308, %v3818
        %v3820 = vand.u32 %v3819, 4294901760
        %v3821 = vsub.f32 %v3819, %v3820
        %v3822 = vand.u32 %v3821, 4294901760
        %3823 = vmatmul.mubr.f32.gmra.mrb[0].mxu0 %v3822
        %v3824 = vpop.f32.mrb[0].mxu0
        %v3825 = vadd.f32 %v3674, %v3824
        %v3826 = vpop.f32.mrb[0].mxu0
        %v3827 = vadd.f32 %v3676, %v3826
        %3828 = vmatprep.mubr.f32.mxu0 0.0
        %v3829 = vand.u32 %v1311, 4294901760
        %v3830 = vsub.f32 %v1311, %v3829
        %v3831 = vand.u32 %v3830, 4294901760
        %v3832 = vsub.f32 %v3830, %v3831
        %v3833 = vand.u32 %v3832, 4294901760
        %3834 = vmatmul.mubr.f32.gmra.mrb[0].mxu0 %v3833
        %v3835 = vpop.f32.mrb[0].mxu0
        %v3836 = vadd.f32 %v3681, %v3835
        %v3837 = vpop.f32.mrb[0].mxu0
        %v3838 = vadd.f32 %v3683, %v3837
        %3839 = vdwg.mxu0
        %v3840 = vand.u32 %v2873, 4294901760
        %v3841 = vsub.f32 %v2873, %v3840
        %v3842 = vand.u32 %v3841, 4294901760
        %v3843 = vsub.f32 %v3841, %v3842
        %v3844 = vand.u32 %v3843, 4294901760
        %3845 = vmatprep.subr.mxu0 %v3844
        %v3846 = vand.u32 %v2872, 4294901760
        %v3847 = vsub.f32 %v2872, %v3846
        %v3848 = vand.u32 %v3847, 4294901760
        %v3849 = vsub.f32 %v3847, %v3848
        %v3850 = vand.u32 %v3849, 4294901760
        %3851 = vmatpush1.msra.mxu0 %v3850
        %3852 = vmatprep.subr.mxu0 0.0
        %3853 = vmatpush1.msra.mxu0 0.0
        %3854 = vmatprep.subr.mxu0 0.0
        %3855 = vmatpush1.msra.mxu0 0.0
        %3856 = vmatprep.subr.mxu0 0.0
        %3857 = vmatpush1.msra.mxu0 0.0
        %3858 = vmatprep.subr.mxu0 0.0
        %3859 = vmatpush1.msra.mxu0 0.0
        %3860 = vmatprep.subr.mxu0 0.0
        %3861 = vmatpush1.msra.mxu0 0.0
        %3862 = vmatprep.subr.mxu0 0.0
        %3863 = vmatpush1.msra.mxu0 0.0
        %3864 = vmatprep.subr.mxu0 0.0
        %3865 = vmatpush1.msra.mxu0 0.0
        %3866 = vmatprep.subr.mxu0 0.0
        %3867 = vmatpush1.msra.mxu0 0.0
        %3868 = vmatprep.subr.mxu0 0.0
        %3869 = vmatpush1.msra.mxu0 0.0
        %3870 = vmatprep.subr.mxu0 0.0
        %3871 = vmatpush1.msra.mxu0 0.0
        %3872 = vmatprep.subr.mxu0 0.0
        %3873 = vmatpush1.msra.mxu0 0.0
        %3874 = vmatprep.subr.mxu0 0.0
        %3875 = vmatpush1.msra.mxu0 0.0
        %3876 = vmatprep.subr.mxu0 0.0
        %3877 = vmatpush1.msra.mxu0 0.0
        %3878 = vmatprep.subr.mxu0 0.0
        %3879 = vmatpush1.msra.mxu0 0.0
        %3880 = vmatprep.subr.mxu0 0.0
        %3881 = vmatpush1.msra.mxu0 0.0
        %3882 = vmatprep.subr.mxu0 0.0
        %3883 = vmatpush1.msra.mxu0 0.0
        %3884 = vmatprep.subr.mxu0 0.0
        %3885 = vmatpush1.msra.mxu0 0.0
        %3886 = vmatprep.subr.mxu0 0.0
        %3887 = vmatpush1.msra.mxu0 0.0
        %3888 = vmatprep.subr.mxu0 0.0
        %3889 = vmatpush1.msra.mxu0 0.0
        %3890 = vmatprep.subr.mxu0 0.0
        %3891 = vmatpush1.msra.mxu0 0.0
        %3892 = vmatprep.subr.mxu0 0.0
        %3893 = vmatpush1.msra.mxu0 0.0
        %3894 = vmatprep.subr.mxu0 0.0
        %3895 = vmatpush1.msra.mxu0 0.0
        %3896 = vmatprep.subr.mxu0 0.0
        %3897 = vmatpush1.msra.mxu0 0.0
        %3898 = vmatprep.subr.mxu0 0.0
        %3899 = vmatpush1.msra.mxu0 0.0
        %3900 = vmatprep.subr.mxu0 0.0
        %3901 = vmatpush1.msra.mxu0 0.0
        %3902 = vmatprep.subr.mxu0 0.0
        %3903 = vmatpush1.msra.mxu0 0.0
        %3904 = vmatprep.subr.mxu0 0.0
        %3905 = vmatpush1.msra.mxu0 0.0
        %3906 = vmatprep.subr.mxu0 0.0
        %3907 = vmatpush1.msra.mxu0 0.0
        %3908 = vmatprep.subr.mxu0 0.0
        %3909 = vmatpush1.msra.mxu0 0.0
        %3910 = vmatprep.subr.mxu0 0.0
        %3911 = vmatpush1.msra.mxu0 0.0
        %3912 = vmatprep.subr.mxu0 0.0
        %3913 = vmatpush1.msra.mxu0 0.0
        %3914 = vmatprep.mubr.f32.mxu0 0.0
        %v3915 = vand.u32 %v1290, 4294901760
        %3916 = vmatmul.mubr.f32.gmra.mrb[0].mxu0 %v3915
        %v3917 = vpop.f32.mrb[0].mxu0
        %v3918 = vadd.f32 %v3759, %v3917
        %v3919 = vpop.f32.mrb[0].mxu0
        %v3920 = vadd.f32 %v3761, %v3919
        %3921 = vmatprep.mubr.f32.mxu0 0.0
        %v3922 = vand.u32 %v1293, 4294901760
        %3923 = vmatmul.mubr.f32.gmra.mrb[0].mxu0 %v3922
        %v3924 = vpop.f32.mrb[0].mxu0
        %v3925 = vadd.f32 %v3770, %v3924
        %v3926 = vpop.f32.mrb[0].mxu0
        %v3927 = vadd.f32 %v3772, %v3926
        %3928 = vmatprep.mubr.f32.mxu0 0.0
        %v3929 = vand.u32 %v1296, 4294901760
        %3930 = vmatmul.mubr.f32.gmra.mrb[0].mxu0 %v3929
        %v3931 = vpop.f32.mrb[0].mxu0
        %v3932 = vadd.f32 %v3781, %v3931
        %v3933 = vpop.f32.mrb[0].mxu0
        %v3934 = vadd.f32 %v3783, %v3933
        %3935 = vmatprep.mubr.f32.mxu0 0.0
        %v3936 = vand.u32 %v1299, 4294901760
        %3937 = vmatmul.mubr.f32.gmra.mrb[0].mxu0 %v3936
        %v3938 = vpop.f32.mrb[0].mxu0
        %v3939 = vadd.f32 %v3792, %v3938
        %v3940 = vpop.f32.mrb[0].mxu0
        %v3941 = vadd.f32 %v3794, %v3940
        %3942 = vmatprep.mubr.f32.mxu0 0.0
        %v3943 = vand.u32 %v1302, 4294901760
        %3944 = vmatmul.mubr.f32.gmra.mrb[0].mxu0 %v3943
        %v3945 = vpop.f32.mrb[0].mxu0
        %v3946 = vadd.f32 %v3803, %v3945
        %v3947 = vpop.f32.mrb[0].mxu0
        %v3948 = vadd.f32 %v3805, %v3947
        %3949 = vmatprep.mubr.f32.mxu0 0.0
        %v3950 = vand.u32 %v1305, 4294901760
        %3951 = vmatmul.mubr.f32.gmra.mrb[0].mxu0 %v3950
        %v3952 = vpop.f32.mrb[0].mxu0
        %v3953 = vadd.f32 %v3814, %v3952
        %v3954 = vpop.f32.mrb[0].mxu0
        %v3955 = vadd.f32 %v3816, %v3954
        %3956 = vmatprep.mubr.f32.mxu0 0.0
        %v3957 = vand.u32 %v1308, 4294901760
        %3958 = vmatmul.mubr.f32.gmra.mrb[0].mxu0 %v3957
        %v3959 = vpop.f32.mrb[0].mxu0
        %v3960 = vadd.f32 %v3825, %v3959
        %v3961 = vpop.f32.mrb[0].mxu0
        %v3962 = vadd.f32 %v3827, %v3961
        %3963 = vmatprep.mubr.f32.mxu0 0.0
        %v3964 = vand.u32 %v1311, 4294901760
        %3965 = vmatmul.mubr.f32.gmra.mrb[0].mxu0 %v3964
        %v3966 = vpop.f32.mrb[0].mxu0
        %v3967 = vadd.f32 %v3836, %v3966
        %v3968 = vpop.f32.mrb[0].mxu0
        %v3969 = vadd.f32 %v3838, %v3968
        %3970 = vdwg.mxu0
        %v3971 = vand.u32 %v2873, 4294901760
        %v3972 = vsub.f32 %v2873, %v3971
        %3973 = vmatprep.subr.mxu0 %v3972
        %v3974 = vand.u32 %v2872, 4294901760
        %v3975 = vsub.f32 %v2872, %v3974
        %3976 = vmatpush1.msra.mxu0 %v3975
        %3977 = vmatprep.subr.mxu0 0.0
        %3978 = vmatpush1.msra.mxu0 0.0
        %3979 = vmatprep.subr.mxu0 0.0
        %3980 = vmatpush1.msra.mxu0 0.0
        %3981 = vmatprep.subr.mxu0 0.0
        %3982 = vmatpush1.msra.mxu0 0.0
        %3983 = vmatprep.subr.mxu0 0.0
        %3984 = vmatpush1.msra.mxu0 0.0
        %3985 = vmatprep.subr.mxu0 0.0
        %3986 = vmatpush1.msra.mxu0 0.0
        %3987 = vmatprep.subr.mxu0 0.0
        %3988 = vmatpush1.msra.mxu0 0.0
        %3989 = vmatprep.subr.mxu0 0.0
        %3990 = vmatpush1.msra.mxu0 0.0
        %3991 = vmatprep.subr.mxu0 0.0
        %3992 = vmatpush1.msra.mxu0 0.0
        %3993 = vmatprep.subr.mxu0 0.0
        %3994 = vmatpush1.msra.mxu0 0.0
        %3995 = vmatprep.subr.mxu0 0.0
        %3996 = vmatpush1.msra.mxu0 0.0
        %3997 = vmatprep.subr.mxu0 0.0
        %3998 = vmatpush1.msra.mxu0 0.0
        %3999 = vmatprep.subr.mxu0 0.0
        %4000 = vmatpush1.msra.mxu0 0.0
        %4001 = vmatprep.subr.mxu0 0.0
        %4002 = vmatpush1.msra.mxu0 0.0
        %4003 = vmatprep.subr.mxu0 0.0
        %4004 = vmatpush1.msra.mxu0 0.0
        %4005 = vmatprep.subr.mxu0 0.0
        %4006 = vmatpush1.msra.mxu0 0.0
        %4007 = vmatprep.subr.mxu0 0.0
        %4008 = vmatpush1.msra.mxu0 0.0
        %4009 = vmatprep.subr.mxu0 0.0
        %4010 = vmatpush1.msra.mxu0 0.0
        %4011 = vmatprep.subr.mxu0 0.0
        %4012 = vmatpush1.msra.mxu0 0.0
        %4013 = vmatprep.subr.mxu0 0.0
        %4014 = vmatpush1.msra.mxu0 0.0
        %4015 = vmatprep.subr.mxu0 0.0
        %4016 = vmatpush1.msra.mxu0 0.0
        %4017 = vmatprep.subr.mxu0 0.0
        %4018 = vmatpush1.msra.mxu0 0.0
        %4019 = vmatprep.subr.mxu0 0.0
        %4020 = vmatpush1.msra.mxu0 0.0
        %4021 = vmatprep.subr.mxu0 0.0
        %4022 = vmatpush1.msra.mxu0 0.0
        %4023 = vmatprep.subr.mxu0 0.0
        %4024 = vmatpush1.msra.mxu0 0.0
        %4025 = vmatprep.subr.mxu0 0.0
        %4026 = vmatpush1.msra.mxu0 0.0
        %4027 = vmatprep.subr.mxu0 0.0
        %4028 = vmatpush1.msra.mxu0 0.0
        %4029 = vmatprep.subr.mxu0 0.0
        %4030 = vmatpush1.msra.mxu0 0.0
        %4031 = vmatprep.subr.mxu0 0.0
        %4032 = vmatpush1.msra.mxu0 0.0
        %4033 = vmatprep.subr.mxu0 0.0
        %4034 = vmatpush1.msra.mxu0 0.0
        %4035 = vmatprep.subr.mxu0 0.0
        %4036 = vmatpush1.msra.mxu0 0.0
        %4037 = vmatprep.subr.mxu0 0.0
        %4038 = vmatpush1.msra.mxu0 0.0
        %4039 = vmatprep.mubr.f32.mxu0 0.0
        %v4040 = vand.u32 %v1290, 4294901760
        %v4041 = vsub.f32 %v1290, %v4040
        %4042 = vmatmul.mubr.f32.gmra.mrb[0].mxu0 %v4041
        %v4043 = vpop.f32.mrb[0].mxu0
        %v4044 = vadd.f32 %v3918, %v4043
        %v4045 = vpop.f32.mrb[0].mxu0
        %v4046 = vadd.f32 %v3920, %v4045
        %4047 = vmatprep.mubr.f32.mxu0 0.0
        %v4048 = vand.u32 %v1293, 4294901760
        %v4049 = vsub.f32 %v1293, %v4048
        %4050 = vmatmul.mubr.f32.gmra.mrb[0].mxu0 %v4049
        %v4051 = vpop.f32.mrb[0].mxu0
        %v4052 = vadd.f32 %v3925, %v4051
        %v4053 = vpop.f32.mrb[0].mxu0
        %v4054 = vadd.f32 %v3927, %v4053
        %4055 = vmatprep.mubr.f32.mxu0 0.0
        %v4056 = vand.u32 %v1296, 4294901760
        %v4057 = vsub.f32 %v1296, %v4056
        %4058 = vmatmul.mubr.f32.gmra.mrb[0].mxu0 %v4057
        %v4059 = vpop.f32.mrb[0].mxu0
        %v4060 = vadd.f32 %v3932, %v4059
        %v4061 = vpop.f32.mrb[0].mxu0
        %v4062 = vadd.f32 %v3934, %v4061
        %4063 = vmatprep.mubr.f32.mxu0 0.0
        %v4064 = vand.u32 %v1299, 4294901760
        %v4065 = vsub.f32 %v1299, %v4064
        %4066 = vmatmul.mubr.f32.gmra.mrb[0].mxu0 %v4065
        %v4067 = vpop.f32.mrb[0].mxu0
        %v4068 = vadd.f32 %v3939, %v4067
        %v4069 = vpop.f32.mrb[0].mxu0
        %v4070 = vadd.f32 %v3941, %v4069
        %4071 = vmatprep.mubr.f32.mxu0 0.0
        %v4072 = vand.u32 %v1302, 4294901760
        %v4073 = vsub.f32 %v1302, %v4072
        %4074 = vmatmul.mubr.f32.gmra.mrb[0].mxu0 %v4073
        %v4075 = vpop.f32.mrb[0].mxu0
        %v4076 = vadd.f32 %v3946, %v4075
        %v4077 = vpop.f32.mrb[0].mxu0
        %v4078 = vadd.f32 %v3948, %v4077
        %4079 = vmatprep.mubr.f32.mxu0 0.0
        %v4080 = vand.u32 %v1305, 4294901760
        %v4081 = vsub.f32 %v1305, %v4080
        %4082 = vmatmul.mubr.f32.gmra.mrb[0].mxu0 %v4081
        %v4083 = vpop.f32.mrb[0].mxu0
        %v4084 = vadd.f32 %v3953, %v4083
        %v4085 = vpop.f32.mrb[0].mxu0
        %v4086 = vadd.f32 %v3955, %v4085
        %4087 = vmatprep.mubr.f32.mxu0 0.0
        %v4088 = vand.u32 %v1308, 4294901760
        %v4089 = vsub.f32 %v1308, %v4088
        %4090 = vmatmul.mubr.f32.gmra.mrb[0].mxu0 %v4089
        %v4091 = vpop.f32.mrb[0].mxu0
        %v4092 = vadd.f32 %v3960, %v4091
        %v4093 = vpop.f32.mrb[0].mxu0
        %v4094 = vadd.f32 %v3962, %v4093
        %4095 = vmatprep.mubr.f32.mxu0 0.0
        %v4096 = vand.u32 %v1311, 4294901760
        %v4097 = vsub.f32 %v1311, %v4096
        %4098 = vmatmul.mubr.f32.gmra.mrb[0].mxu0 %v4097
        %v4099 = vpop.f32.mrb[0].mxu0
        %v4100 = vadd.f32 %v3967, %v4099
        %v4101 = vpop.f32.mrb[0].mxu0
        %v4102 = vadd.f32 %v3969, %v4101
        %4103 = vdwg.mxu0
        %v4104 = vand.u32 %v2873, 4294901760
        %4105 = vmatprep.subr.mxu0 %v4104
        %v4106 = vand.u32 %v2872, 4294901760
        %4107 = vmatpush1.msra.mxu0 %v4106
        %4108 = vmatprep.subr.mxu0 0.0
        %4109 = vmatpush1.msra.mxu0 0.0
        %4110 = vmatprep.subr.mxu0 0.0
        %4111 = vmatpush1.msra.mxu0 0.0
        %4112 = vmatprep.subr.mxu0 0.0
        %4113 = vmatpush1.msra.mxu0 0.0
        %4114 = vmatprep.subr.mxu0 0.0
        %4115 = vmatpush1.msra.mxu0 0.0
        %4116 = vmatprep.subr.mxu0 0.0
        %4117 = vmatpush1.msra.mxu0 0.0
        %4118 = vmatprep.subr.mxu0 0.0
        %4119 = vmatpush1.msra.mxu0 0.0
        %4120 = vmatprep.subr.mxu0 0.0
        %4121 = vmatpush1.msra.mxu0 0.0
        %4122 = vmatprep.subr.mxu0 0.0
        %4123 = vmatpush1.msra.mxu0 0.0
        %4124 = vmatprep.subr.mxu0 0.0
        %4125 = vmatpush1.msra.mxu0 0.0
        %4126 = vmatprep.subr.mxu0 0.0
        %4127 = vmatpush1.msra.mxu0 0.0
        %4128 = vmatprep.subr.mxu0 0.0
        %4129 = vmatpush1.msra.mxu0 0.0
        %4130 = vmatprep.subr.mxu0 0.0
        %4131 = vmatpush1.msra.mxu0 0.0
        %4132 = vmatprep.subr.mxu0 0.0
        %4133 = vmatpush1.msra.mxu0 0.0
        %4134 = vmatprep.subr.mxu0 0.0
        %4135 = vmatpush1.msra.mxu0 0.0
        %4136 = vmatprep.subr.mxu0 0.0
        %4137 = vmatpush1.msra.mxu0 0.0
        %4138 = vmatprep.subr.mxu0 0.0
        %4139 = vmatpush1.msra.mxu0 0.0
        %4140 = vmatprep.subr.mxu0 0.0
        %4141 = vmatpush1.msra.mxu0 0.0
        %4142 = vmatprep.subr.mxu0 0.0
        %4143 = vmatpush1.msra.mxu0 0.0
        %4144 = vmatprep.subr.mxu0 0.0
        %4145 = vmatpush1.msra.mxu0 0.0
        %4146 = vmatprep.subr.mxu0 0.0
        %4147 = vmatpush1.msra.mxu0 0.0
        %4148 = vmatprep.subr.mxu0 0.0
        %4149 = vmatpush1.msra.mxu0 0.0
        %4150 = vmatprep.subr.mxu0 0.0
        %4151 = vmatpush1.msra.mxu0 0.0
        %4152 = vmatprep.subr.mxu0 0.0
        %4153 = vmatpush1.msra.mxu0 0.0
        %4154 = vmatprep.subr.mxu0 0.0
        %4155 = vmatpush1.msra.mxu0 0.0
        %4156 = vmatprep.subr.mxu0 0.0
        %4157 = vmatpush1.msra.mxu0 0.0
        %4158 = vmatprep.subr.mxu0 0.0
        %4159 = vmatpush1.msra.mxu0 0.0
        %4160 = vmatprep.subr.mxu0 0.0
        %4161 = vmatpush1.msra.mxu0 0.0
        %4162 = vmatprep.subr.mxu0 0.0
        %4163 = vmatpush1.msra.mxu0 0.0
        %4164 = vmatprep.subr.mxu0 0.0
        %4165 = vmatpush1.msra.mxu0 0.0
        %4166 = vmatprep.subr.mxu0 0.0
        %4167 = vmatpush1.msra.mxu0 0.0
        %4168 = vmatprep.subr.mxu0 0.0
        %4169 = vmatpush1.msra.mxu0 0.0
        %4170 = vmatprep.mubr.f32.mxu0 0.0
        %v4171 = vand.u32 %v1290, 4294901760
        %v4172 = vsub.f32 %v1290, %v4171
        %v4173 = vand.u32 %v4172, 4294901760
        %4174 = vmatmul.mubr.f32.gmra.mrb[0].mxu0 %v4173
        %v4175 = vpop.f32.mrb[0].mxu0
        %v4176 = vadd.f32 %v4044, %v4175
        %v4177 = vpop.f32.mrb[0].mxu0
        %v4178 = vadd.f32 %v4046, %v4177
        %4179 = vmatprep.mubr.f32.mxu0 0.0
        %v4180 = vand.u32 %v1293, 4294901760
        %v4181 = vsub.f32 %v1293, %v4180
        %v4182 = vand.u32 %v4181, 4294901760
        %4183 = vmatmul.mubr.f32.gmra.mrb[0].mxu0 %v4182
        %v4184 = vpop.f32.mrb[0].mxu0
        %v4185 = vadd.f32 %v4052, %v4184
        %v4186 = vpop.f32.mrb[0].mxu0
        %v4187 = vadd.f32 %v4054, %v4186
        %4188 = vmatprep.mubr.f32.mxu0 0.0
        %v4189 = vand.u32 %v1296, 4294901760
        %v4190 = vsub.f32 %v1296, %v4189
        %v4191 = vand.u32 %v4190, 4294901760
        %4192 = vmatmul.mubr.f32.gmra.mrb[0].mxu0 %v4191
        %v4193 = vpop.f32.mrb[0].mxu0
        %v4194 = vadd.f32 %v4060, %v4193
        %v4195 = vpop.f32.mrb[0].mxu0
        %v4196 = vadd.f32 %v4062, %v4195
        %4197 = vmatprep.mubr.f32.mxu0 0.0
        %v4198 = vand.u32 %v1299, 4294901760
        %v4199 = vsub.f32 %v1299, %v4198
        %v4200 = vand.u32 %v4199, 4294901760
        %4201 = vmatmul.mubr.f32.gmra.mrb[0].mxu0 %v4200
        %v4202 = vpop.f32.mrb[0].mxu0
        %v4203 = vadd.f32 %v4068, %v4202
        %v4204 = vpop.f32.mrb[0].mxu0
        %v4205 = vadd.f32 %v4070, %v4204
        %4206 = vmatprep.mubr.f32.mxu0 0.0
        %v4207 = vand.u32 %v1302, 4294901760
        %v4208 = vsub.f32 %v1302, %v4207
        %v4209 = vand.u32 %v4208, 4294901760
        %4210 = vmatmul.mubr.f32.gmra.mrb[0].mxu0 %v4209
        %v4211 = vpop.f32.mrb[0].mxu0
        %v4212 = vadd.f32 %v4076, %v4211
        %v4213 = vpop.f32.mrb[0].mxu0
        %v4214 = vadd.f32 %v4078, %v4213
        %4215 = vmatprep.mubr.f32.mxu0 0.0
        %v4216 = vand.u32 %v1305, 4294901760
        %v4217 = vsub.f32 %v1305, %v4216
        %v4218 = vand.u32 %v4217, 4294901760
        %4219 = vmatmul.mubr.f32.gmra.mrb[0].mxu0 %v4218
        %v4220 = vpop.f32.mrb[0].mxu0
        %v4221 = vadd.f32 %v4084, %v4220
        %v4222 = vpop.f32.mrb[0].mxu0
        %v4223 = vadd.f32 %v4086, %v4222
        %4224 = vmatprep.mubr.f32.mxu0 0.0
        %v4225 = vand.u32 %v1308, 4294901760
        %v4226 = vsub.f32 %v1308, %v4225
        %v4227 = vand.u32 %v4226, 4294901760
        %4228 = vmatmul.mubr.f32.gmra.mrb[0].mxu0 %v4227
        %v4229 = vpop.f32.mrb[0].mxu0
        %v4230 = vadd.f32 %v4092, %v4229
        %v4231 = vpop.f32.mrb[0].mxu0
        %v4232 = vadd.f32 %v4094, %v4231
        %4233 = vmatprep.mubr.f32.mxu0 0.0
        %v4234 = vand.u32 %v1311, 4294901760
        %v4235 = vsub.f32 %v1311, %v4234
        %v4236 = vand.u32 %v4235, 4294901760
        %4237 = vmatmul.mubr.f32.gmra.mrb[0].mxu0 %v4236
        %v4238 = vpop.f32.mrb[0].mxu0
        %v4239 = vadd.f32 %v4100, %v4238
        %v4240 = vpop.f32.mrb[0].mxu0
        %v4241 = vadd.f32 %v4102, %v4240
        %4242 = vdwg.mxu0
        %v4243 = vand.u32 %v2873, 4294901760
        %v4244 = vsub.f32 %v2873, %v4243
        %v4245 = vand.u32 %v4244, 4294901760
        %4246 = vmatprep.subr.mxu0 %v4245
        %v4247 = vand.u32 %v2872, 4294901760
        %v4248 = vsub.f32 %v2872, %v4247
        %v4249 = vand.u32 %v4248, 4294901760
        %4250 = vmatpush1.msra.mxu0 %v4249
        %4251 = vmatprep.subr.mxu0 0.0
        %4252 = vmatpush1.msra.mxu0 0.0
        %4253 = vmatprep.subr.mxu0 0.0
        %4254 = vmatpush1.msra.mxu0 0.0
        %4255 = vmatprep.subr.mxu0 0.0
        %4256 = vmatpush1.msra.mxu0 0.0
        %4257 = vmatprep.subr.mxu0 0.0
        %4258 = vmatpush1.msra.mxu0 0.0
        %4259 = vmatprep.subr.mxu0 0.0
        %4260 = vmatpush1.msra.mxu0 0.0
        %4261 = vmatprep.subr.mxu0 0.0
        %4262 = vmatpush1.msra.mxu0 0.0
        %4263 = vmatprep.subr.mxu0 0.0
        %4264 = vmatpush1.msra.mxu0 0.0
        %4265 = vmatprep.subr.mxu0 0.0
        %4266 = vmatpush1.msra.mxu0 0.0
        %4267 = vmatprep.subr.mxu0 0.0
        %4268 = vmatpush1.msra.mxu0 0.0
        %4269 = vmatprep.subr.mxu0 0.0
        %4270 = vmatpush1.msra.mxu0 0.0
        %4271 = vmatprep.subr.mxu0 0.0
        %4272 = vmatpush1.msra.mxu0 0.0
        %4273 = vmatprep.subr.mxu0 0.0
        %4274 = vmatpush1.msra.mxu0 0.0
        %4275 = vmatprep.subr.mxu0 0.0
        %4276 = vmatpush1.msra.mxu0 0.0
        %4277 = vmatprep.subr.mxu0 0.0
        %4278 = vmatpush1.msra.mxu0 0.0
        %4279 = vmatprep.subr.mxu0 0.0
        %4280 = vmatpush1.msra.mxu0 0.0
        %4281 = vmatprep.subr.mxu0 0.0
        %4282 = vmatpush1.msra.mxu0 0.0
        %4283 = vmatprep.subr.mxu0 0.0
        %4284 = vmatpush1.msra.mxu0 0.0
        %4285 = vmatprep.subr.mxu0 0.0
        %4286 = vmatpush1.msra.mxu0 0.0
        %4287 = vmatprep.subr.mxu0 0.0
        %4288 = vmatpush1.msra.mxu0 0.0
        %4289 = vmatprep.subr.mxu0 0.0
        %4290 = vmatpush1.msra.mxu0 0.0
        %4291 = vmatprep.subr.mxu0 0.0
        %4292 = vmatpush1.msra.mxu0 0.0
        %4293 = vmatprep.subr.mxu0 0.0
        %4294 = vmatpush1.msra.mxu0 0.0
        %4295 = vmatprep.subr.mxu0 0.0
        %4296 = vmatpush1.msra.mxu0 0.0
        %4297 = vmatprep.subr.mxu0 0.0
        %4298 = vmatpush1.msra.mxu0 0.0
        %4299 = vmatprep.subr.mxu0 0.0
        %4300 = vmatpush1.msra.mxu0 0.0
        %4301 = vmatprep.subr.mxu0 0.0
        %4302 = vmatpush1.msra.mxu0 0.0
        %4303 = vmatprep.subr.mxu0 0.0
        %4304 = vmatpush1.msra.mxu0 0.0
        %4305 = vmatprep.subr.mxu0 0.0
        %4306 = vmatpush1.msra.mxu0 0.0
        %4307 = vmatprep.subr.mxu0 0.0
        %4308 = vmatpush1.msra.mxu0 0.0
        %4309 = vmatprep.subr.mxu0 0.0
        %4310 = vmatpush1.msra.mxu0 0.0
        %4311 = vmatprep.subr.mxu0 0.0
        %4312 = vmatpush1.msra.mxu0 0.0
        %4313 = vmatprep.mubr.f32.mxu0 0.0
        %v4314 = vand.u32 %v1290, 4294901760
        %4315 = vmatmul.mubr.f32.gmra.mrb[0].mxu0 %v4314
        %v4316 = vpop.f32.mrb[0].mxu0
        %v4317 = vadd.f32 %v4176, %v4316
        %v4318 = vpop.f32.mrb[0].mxu0
        %v4319 = vadd.f32 %v4178, %v4318
        %4320 = vmatprep.mubr.f32.mxu0 0.0
        %v4321 = vand.u32 %v1293, 4294901760
        %4322 = vmatmul.mubr.f32.gmra.mrb[0].mxu0 %v4321
        %v4323 = vpop.f32.mrb[0].mxu0
        %v4324 = vadd.f32 %v4185, %v4323
        %v4325 = vpop.f32.mrb[0].mxu0
        %v4326 = vadd.f32 %v4187, %v4325
        %4327 = vmatprep.mubr.f32.mxu0 0.0
        %v4328 = vand.u32 %v1296, 4294901760
        %4329 = vmatmul.mubr.f32.gmra.mrb[0].mxu0 %v4328
        %v4330 = vpop.f32.mrb[0].mxu0
        %v4331 = vadd.f32 %v4194, %v4330
        %v4332 = vpop.f32.mrb[0].mxu0
        %v4333 = vadd.f32 %v4196, %v4332
        %4334 = vmatprep.mubr.f32.mxu0 0.0
        %v4335 = vand.u32 %v1299, 4294901760
        %4336 = vmatmul.mubr.f32.gmra.mrb[0].mxu0 %v4335
        %v4337 = vpop.f32.mrb[0].mxu0
        %v4338 = vadd.f32 %v4203, %v4337
        %v4339 = vpop.f32.mrb[0].mxu0
        %v4340 = vadd.f32 %v4205, %v4339
        %4341 = vmatprep.mubr.f32.mxu0 0.0
        %v4342 = vand.u32 %v1302, 4294901760
        %4343 = vmatmul.mubr.f32.gmra.mrb[0].mxu0 %v4342
        %v4344 = vpop.f32.mrb[0].mxu0
        %v4345 = vadd.f32 %v4212, %v4344
        %v4346 = vpop.f32.mrb[0].mxu0
        %v4347 = vadd.f32 %v4214, %v4346
        %4348 = vmatprep.mubr.f32.mxu0 0.0
        %v4349 = vand.u32 %v1305, 4294901760
        %4350 = vmatmul.mubr.f32.gmra.mrb[0].mxu0 %v4349
        %v4351 = vpop.f32.mrb[0].mxu0
        %v4352 = vadd.f32 %v4221, %v4351
        %v4353 = vpop.f32.mrb[0].mxu0
        %v4354 = vadd.f32 %v4223, %v4353
        %4355 = vmatprep.mubr.f32.mxu0 0.0
        %v4356 = vand.u32 %v1308, 4294901760
        %4357 = vmatmul.mubr.f32.gmra.mrb[0].mxu0 %v4356
        %v4358 = vpop.f32.mrb[0].mxu0
        %v4359 = vadd.f32 %v4230, %v4358
        %v4360 = vpop.f32.mrb[0].mxu0
        %v4361 = vadd.f32 %v4232, %v4360
        %4362 = vmatprep.mubr.f32.mxu0 0.0
        %v4363 = vand.u32 %v1311, 4294901760
        %4364 = vmatmul.mubr.f32.gmra.mrb[0].mxu0 %v4363
        %v4365 = vpop.f32.mrb[0].mxu0
        %v4366 = vadd.f32 %v4239, %v4365
        %v4367 = vpop.f32.mrb[0].mxu0
        %v4368 = vadd.f32 %v4241, %v4367
        %4369 = vdwg.mxu0
        %v4370 = vand.u32 %v2873, 4294901760
        %4371 = vmatprep.subr.mxu0 %v4370
        %v4372 = vand.u32 %v2872, 4294901760
        %4373 = vmatpush1.msra.mxu0 %v4372
        %4374 = vmatprep.subr.mxu0 0.0
        %4375 = vmatpush1.msra.mxu0 0.0
        %4376 = vmatprep.subr.mxu0 0.0
        %4377 = vmatpush1.msra.mxu0 0.0
        %4378 = vmatprep.subr.mxu0 0.0
        %4379 = vmatpush1.msra.mxu0 0.0
        %4380 = vmatprep.subr.mxu0 0.0
        %4381 = vmatpush1.msra.mxu0 0.0
        %4382 = vmatprep.subr.mxu0 0.0
        %4383 = vmatpush1.msra.mxu0 0.0
        %4384 = vmatprep.subr.mxu0 0.0
        %4385 = vmatpush1.msra.mxu0 0.0
        %4386 = vmatprep.subr.mxu0 0.0
        %4387 = vmatpush1.msra.mxu0 0.0
        %4388 = vmatprep.subr.mxu0 0.0
        %4389 = vmatpush1.msra.mxu0 0.0
        %4390 = vmatprep.subr.mxu0 0.0
        %4391 = vmatpush1.msra.mxu0 0.0
        %4392 = vmatprep.subr.mxu0 0.0
        %4393 = vmatpush1.msra.mxu0 0.0
        %4394 = vmatprep.subr.mxu0 0.0
        %4395 = vmatpush1.msra.mxu0 0.0
        %4396 = vmatprep.subr.mxu0 0.0
        %4397 = vmatpush1.msra.mxu0 0.0
        %4398 = vmatprep.subr.mxu0 0.0
        %4399 = vmatpush1.msra.mxu0 0.0
        %4400 = vmatprep.subr.mxu0 0.0
        %4401 = vmatpush1.msra.mxu0 0.0
        %4402 = vmatprep.subr.mxu0 0.0
        %4403 = vmatpush1.msra.mxu0 0.0
        %4404 = vmatprep.subr.mxu0 0.0
        %4405 = vmatpush1.msra.mxu0 0.0
        %4406 = vmatprep.subr.mxu0 0.0
        %4407 = vmatpush1.msra.mxu0 0.0
        %4408 = vmatprep.subr.mxu0 0.0
        %4409 = vmatpush1.msra.mxu0 0.0
        %4410 = vmatprep.subr.mxu0 0.0
        %4411 = vmatpush1.msra.mxu0 0.0
        %4412 = vmatprep.subr.mxu0 0.0
        %4413 = vmatpush1.msra.mxu0 0.0
        %4414 = vmatprep.subr.mxu0 0.0
        %4415 = vmatpush1.msra.mxu0 0.0
        %4416 = vmatprep.subr.mxu0 0.0
        %4417 = vmatpush1.msra.mxu0 0.0
        %4418 = vmatprep.subr.mxu0 0.0
        %4419 = vmatpush1.msra.mxu0 0.0
        %4420 = vmatprep.subr.mxu0 0.0
        %4421 = vmatpush1.msra.mxu0 0.0
        %4422 = vmatprep.subr.mxu0 0.0
        %4423 = vmatpush1.msra.mxu0 0.0
        %4424 = vmatprep.subr.mxu0 0.0
        %4425 = vmatpush1.msra.mxu0 0.0
        %4426 = vmatprep.subr.mxu0 0.0
        %4427 = vmatpush1.msra.mxu0 0.0
        %4428 = vmatprep.subr.mxu0 0.0
        %4429 = vmatpush1.msra.mxu0 0.0
        %4430 = vmatprep.subr.mxu0 0.0
        %4431 = vmatpush1.msra.mxu0 0.0
        %4432 = vmatprep.subr.mxu0 0.0
        %4433 = vmatpush1.msra.mxu0 0.0
        %4434 = vmatprep.subr.mxu0 0.0
        %4435 = vmatpush1.msra.mxu0 0.0
        %4436 = vmatprep.mubr.f32.mxu0 0.0
        %v4437 = vand.u32 %v1290, 4294901760
        %4438 = vmatmul.mubr.f32.gmra.mrb[0].mxu0 %v4437
        %v4439 = vpop.f32.mrb[0].mxu0
        %v4440 = vadd.f32 %v4317, %v4439
        %v4441 = vpop.f32.mrb[0].mxu0
        %v4442 = vadd.f32 %v4319, %v4441
        %4443 = vmatprep.mubr.f32.mxu0 0.0
        %v4444 = vand.u32 %v1293, 4294901760
        %4445 = vmatmul.mubr.f32.gmra.mrb[0].mxu0 %v4444
        %v4446 = vpop.f32.mrb[0].mxu0
        %v4447 = vadd.f32 %v4324, %v4446
        %v4448 = vpop.f32.mrb[0].mxu0
        %v4449 = vadd.f32 %v4326, %v4448
        %4450 = vmatprep.mubr.f32.mxu0 0.0
        %v4451 = vand.u32 %v1296, 4294901760
        %4452 = vmatmul.mubr.f32.gmra.mrb[0].mxu0 %v4451
        %v4453 = vpop.f32.mrb[0].mxu0
        %v4454 = vadd.f32 %v4331, %v4453
        %v4455 = vpop.f32.mrb[0].mxu0
        %v4456 = vadd.f32 %v4333, %v4455
        %4457 = vmatprep.mubr.f32.mxu0 0.0
        %v4458 = vand.u32 %v1299, 4294901760
        %4459 = vmatmul.mubr.f32.gmra.mrb[0].mxu0 %v4458
        %v4460 = vpop.f32.mrb[0].mxu0
        %v4461 = vadd.f32 %v4338, %v4460
        %v4462 = vpop.f32.mrb[0].mxu0
        %v4463 = vadd.f32 %v4340, %v4462
        %4464 = vmatprep.mubr.f32.mxu0 0.0
        %v4465 = vand.u32 %v1302, 4294901760
        %4466 = vmatmul.mubr.f32.gmra.mrb[0].mxu0 %v4465
        %v4467 = vpop.f32.mrb[0].mxu0
        %v4468 = vadd.f32 %v4345, %v4467
        %v4469 = vpop.f32.mrb[0].mxu0
        %v4470 = vadd.f32 %v4347, %v4469
        %4471 = vmatprep.mubr.f32.mxu0 0.0
        %v4472 = vand.u32 %v1305, 4294901760
        %4473 = vmatmul.mubr.f32.gmra.mrb[0].mxu0 %v4472
        %v4474 = vpop.f32.mrb[0].mxu0
        %v4475 = vadd.f32 %v4352, %v4474
        %v4476 = vpop.f32.mrb[0].mxu0
        %v4477 = vadd.f32 %v4354, %v4476
        %4478 = vmatprep.mubr.f32.mxu0 0.0
        %v4479 = vand.u32 %v1308, 4294901760
        %4480 = vmatmul.mubr.f32.gmra.mrb[0].mxu0 %v4479
        %v4481 = vpop.f32.mrb[0].mxu0
        %v4482 = vadd.f32 %v4359, %v4481
        %v4483 = vpop.f32.mrb[0].mxu0
        %v4484 = vadd.f32 %v4361, %v4483
        %4485 = vmatprep.mubr.f32.mxu0 0.0
        %v4486 = vand.u32 %v1311, 4294901760
        %4487 = vmatmul.mubr.f32.gmra.mrb[0].mxu0 %v4486
        %v4488 = vpop.f32.mrb[0].mxu0
        %v4489 = vadd.f32 %v4366, %v4488
        %v4490 = vpop.f32.mrb[0].mxu0
        %v4491 = vadd.f32 %v4368, %v4490
        %4492 = vdwg.mxu0
        %v4493 = vadd.f32 %v4440, %v2124
        %v4494 = vadd.f32 %v4442, %v2124
        %v4495 = vadd.f32 %v4447, %v2129
        %v4496 = vadd.f32 %v4449, %v2129
        %v4497 = vadd.f32 %v4454, %v2134
        %v4498 = vadd.f32 %v4456, %v2134
        %v4499 = vadd.f32 %v4461, %v2139
        %v4500 = vadd.f32 %v4463, %v2139
        %v4501 = vadd.f32 %v4468, %v2144
        %v4502 = vadd.f32 %v4470, %v2144
        %v4503 = vadd.f32 %v4475, %v2149
        %v4504 = vadd.f32 %v4477, %v2149
        %v4505 = vadd.f32 %v4482, %v2154
        %v4506 = vadd.f32 %v4484, %v2154
        %v4507 = vadd.f32 %v4489, %v2159
        %v4508 = vadd.f32 %v4491, %v2159
        %v4509 = vmax.f32 %v4493, 0.0
        %v4510 = vmax.f32 %v4494, 0.0
        %v4511 = vmax.f32 %v4495, 0.0
        %v4512 = vmax.f32 %v4496, 0.0
        %v4513 = vmax.f32 %v4497, 0.0
        %v4514 = vmax.f32 %v4498, 0.0
        %v4515 = vmax.f32 %v4499, 0.0
        %v4516 = vmax.f32 %v4500, 0.0
        %v4517 = vmax.f32 %v4501, 0.0
        %v4518 = vmax.f32 %v4502, 0.0
        %v4519 = vmax.f32 %v4503, 0.0
        %v4520 = vmax.f32 %v4504, 0.0
        %v4521 = vmax.f32 %v4505, 0.0
        %v4522 = vmax.f32 %v4506, 0.0
        %v4523 = vmax.f32 %v4507, 0.0
        %v4524 = vmax.f32 %v4508, 0.0
        %v4525 = vand.u32 %v4510, 4294901760
        %4526 = vmatprep.subr.mxu0 %v4525
        %v4527 = vand.u32 %v4509, 4294901760
        %4528 = vmatpush1.msra.mxu0 %v4527
        %v4529 = vand.u32 %v4512, 4294901760
        %4530 = vmatprep.subr.mxu0 %v4529
        %v4531 = vand.u32 %v4511, 4294901760
        %4532 = vmatpush1.msra.mxu0 %v4531
        %v4533 = vand.u32 %v4514, 4294901760
        %4534 = vmatprep.subr.mxu0 %v4533
        %v4535 = vand.u32 %v4513, 4294901760
        %4536 = vmatpush1.msra.mxu0 %v4535
        %v4537 = vand.u32 %v4516, 4294901760
        %4538 = vmatprep.subr.mxu0 %v4537
        %v4539 = vand.u32 %v4515, 4294901760
        %4540 = vmatpush1.msra.mxu0 %v4539
        %v4541 = vand.u32 %v4518, 4294901760
        %4542 = vmatprep.subr.mxu0 %v4541
        %v4543 = vand.u32 %v4517, 4294901760
        %4544 = vmatpush1.msra.mxu0 %v4543
        %v4545 = vand.u32 %v4520, 4294901760
        %4546 = vmatprep.subr.mxu0 %v4545
        %v4547 = vand.u32 %v4519, 4294901760
        %4548 = vmatpush1.msra.mxu0 %v4547
        %v4549 = vand.u32 %v4522, 4294901760
        %4550 = vmatprep.subr.mxu0 %v4549
        %v4551 = vand.u32 %v4521, 4294901760
        %4552 = vmatpush1.msra.mxu0 %v4551
        %v4553 = vand.u32 %v4524, 4294901760
        %4554 = vmatprep.subr.mxu0 %v4553
        %v4555 = vand.u32 %v4523, 4294901760
        %4556 = vmatpush1.msra.mxu0 %v4555
        %4557 = vmatprep.subr.mxu0 0.0
        %4558 = vmatpush1.msra.mxu0 0.0
        %4559 = vmatprep.subr.mxu0 0.0
        %4560 = vmatpush1.msra.mxu0 0.0
        %4561 = vmatprep.subr.mxu0 0.0
        %4562 = vmatpush1.msra.mxu0 0.0
        %4563 = vmatprep.subr.mxu0 0.0
        %4564 = vmatpush1.msra.mxu0 0.0
        %4565 = vmatprep.subr.mxu0 0.0
        %4566 = vmatpush1.msra.mxu0 0.0
        %4567 = vmatprep.subr.mxu0 0.0
        %4568 = vmatpush1.msra.mxu0 0.0
        %4569 = vmatprep.subr.mxu0 0.0
        %4570 = vmatpush1.msra.mxu0 0.0
        %4571 = vmatprep.subr.mxu0 0.0
        %4572 = vmatpush1.msra.mxu0 0.0
        %4573 = vmatprep.subr.mxu0 0.0
        %4574 = vmatpush1.msra.mxu0 0.0
        %4575 = vmatprep.subr.mxu0 0.0
        %4576 = vmatpush1.msra.mxu0 0.0
        %4577 = vmatprep.subr.mxu0 0.0
        %4578 = vmatpush1.msra.mxu0 0.0
        %4579 = vmatprep.subr.mxu0 0.0
        %4580 = vmatpush1.msra.mxu0 0.0
        %4581 = vmatprep.subr.mxu0 0.0
        %4582 = vmatpush1.msra.mxu0 0.0
        %4583 = vmatprep.subr.mxu0 0.0
        %4584 = vmatpush1.msra.mxu0 0.0
        %4585 = vmatprep.subr.mxu0 0.0
        %4586 = vmatpush1.msra.mxu0 0.0
        %4587 = vmatprep.subr.mxu0 0.0
        %4588 = vmatpush1.msra.mxu0 0.0
        %4589 = vmatprep.subr.mxu0 0.0
        %4590 = vmatpush1.msra.mxu0 0.0
        %4591 = vmatprep.subr.mxu0 0.0
        %4592 = vmatpush1.msra.mxu0 0.0
        %4593 = vmatprep.subr.mxu0 0.0
        %4594 = vmatpush1.msra.mxu0 0.0
        %4595 = vmatprep.subr.mxu0 0.0
        %4596 = vmatpush1.msra.mxu0 0.0
        %4597 = vmatprep.subr.mxu0 0.0
        %4598 = vmatpush1.msra.mxu0 0.0
        %4599 = vmatprep.subr.mxu0 0.0
        %4600 = vmatpush1.msra.mxu0 0.0
        %4601 = vmatprep.subr.mxu0 0.0
        %4602 = vmatpush1.msra.mxu0 0.0
        %4603 = vmatprep.subr.mxu0 0.0
        %4604 = vmatpush1.msra.mxu0 0.0
        %4605 = vmatprep.mubr.f32.mxu0 0.0
        %v4606 = vand.u32 %v2204, 4294901760
        %v4607 = vsub.f32 %v2204, %v4606
        %v4608 = vand.u32 %v4607, 4294901760
        %v4609 = vsub.f32 %v4607, %v4608
        %v4610 = vand.u32 %v4609, 4294901760
        %4611 = vmatmul.mubr.f32.gmra.mrb[0].mxu0 %v4610
        %v4612 = vpop.f32.mrb[0].mxu0
        %v4613 = vadd.f32 %v2201, %v4612
        %v4614 = vpop.f32.mrb[0].mxu0
        %v4615 = vadd.f32 %v2201, %v4614
        %4616 = vdwg.mxu0
        %v4617 = vand.u32 %v4510, 4294901760
        %v4618 = vsub.f32 %v4510, %v4617
        %v4619 = vand.u32 %v4618, 4294901760
        %v4620 = vsub.f32 %v4618, %v4619
        %v4621 = vand.u32 %v4620, 4294901760
        %4622 = vmatprep.subr.mxu0 %v4621
        %v4623 = vand.u32 %v4509, 4294901760
        %v4624 = vsub.f32 %v4509, %v4623
        %v4625 = vand.u32 %v4624, 4294901760
        %v4626 = vsub.f32 %v4624, %v4625
        %v4627 = vand.u32 %v4626, 4294901760
        %4628 = vmatpush1.msra.mxu0 %v4627
        %v4629 = vand.u32 %v4512, 4294901760
        %v4630 = vsub.f32 %v4512, %v4629
        %v4631 = vand.u32 %v4630, 4294901760
        %v4632 = vsub.f32 %v4630, %v4631
        %v4633 = vand.u32 %v4632, 4294901760
        %4634 = vmatprep.subr.mxu0 %v4633
        %v4635 = vand.u32 %v4511, 4294901760
        %v4636 = vsub.f32 %v4511, %v4635
        %v4637 = vand.u32 %v4636, 4294901760
        %v4638 = vsub.f32 %v4636, %v4637
        %v4639 = vand.u32 %v4638, 4294901760
        %4640 = vmatpush1.msra.mxu0 %v4639
        %v4641 = vand.u32 %v4514, 4294901760
        %v4642 = vsub.f32 %v4514, %v4641
        %v4643 = vand.u32 %v4642, 4294901760
        %v4644 = vsub.f32 %v4642, %v4643
        %v4645 = vand.u32 %v4644, 4294901760
        %4646 = vmatprep.subr.mxu0 %v4645
        %v4647 = vand.u32 %v4513, 4294901760
        %v4648 = vsub.f32 %v4513, %v4647
        %v4649 = vand.u32 %v4648, 4294901760
        %v4650 = vsub.f32 %v4648, %v4649
        %v4651 = vand.u32 %v4650, 4294901760
        %4652 = vmatpush1.msra.mxu0 %v4651
        %v4653 = vand.u32 %v4516, 4294901760
        %v4654 = vsub.f32 %v4516, %v4653
        %v4655 = vand.u32 %v4654, 4294901760
        %v4656 = vsub.f32 %v4654, %v4655
        %v4657 = vand.u32 %v4656, 4294901760
        %4658 = vmatprep.subr.mxu0 %v4657
        %v4659 = vand.u32 %v4515, 4294901760
        %v4660 = vsub.f32 %v4515, %v4659
        %v4661 = vand.u32 %v4660, 4294901760
        %v4662 = vsub.f32 %v4660, %v4661
        %v4663 = vand.u32 %v4662, 4294901760
        %4664 = vmatpush1.msra.mxu0 %v4663
        %v4665 = vand.u32 %v4518, 4294901760
        %v4666 = vsub.f32 %v4518, %v4665
        %v4667 = vand.u32 %v4666, 4294901760
        %v4668 = vsub.f32 %v4666, %v4667
        %v4669 = vand.u32 %v4668, 4294901760
        %4670 = vmatprep.subr.mxu0 %v4669
        %v4671 = vand.u32 %v4517, 4294901760
        %v4672 = vsub.f32 %v4517, %v4671
        %v4673 = vand.u32 %v4672, 4294901760
        %v4674 = vsub.f32 %v4672, %v4673
        %v4675 = vand.u32 %v4674, 4294901760
        %4676 = vmatpush1.msra.mxu0 %v4675
        %v4677 = vand.u32 %v4520, 4294901760
        %v4678 = vsub.f32 %v4520, %v4677
        %v4679 = vand.u32 %v4678, 4294901760
        %v4680 = vsub.f32 %v4678, %v4679
        %v4681 = vand.u32 %v4680, 4294901760
        %4682 = vmatprep.subr.mxu0 %v4681
        %v4683 = vand.u32 %v4519, 4294901760
        %v4684 = vsub.f32 %v4519, %v4683
        %v4685 = vand.u32 %v4684, 4294901760
        %v4686 = vsub.f32 %v4684, %v4685
        %v4687 = vand.u32 %v4686, 4294901760
        %4688 = vmatpush1.msra.mxu0 %v4687
        %v4689 = vand.u32 %v4522, 4294901760
        %v4690 = vsub.f32 %v4522, %v4689
        %v4691 = vand.u32 %v4690, 4294901760
        %v4692 = vsub.f32 %v4690, %v4691
        %v4693 = vand.u32 %v4692, 4294901760
        %4694 = vmatprep.subr.mxu0 %v4693
        %v4695 = vand.u32 %v4521, 4294901760
        %v4696 = vsub.f32 %v4521, %v4695
        %v4697 = vand.u32 %v4696, 4294901760
        %v4698 = vsub.f32 %v4696, %v4697
        %v4699 = vand.u32 %v4698, 4294901760
        %4700 = vmatpush1.msra.mxu0 %v4699
        %v4701 = vand.u32 %v4524, 4294901760
        %v4702 = vsub.f32 %v4524, %v4701
        %v4703 = vand.u32 %v4702, 4294901760
        %v4704 = vsub.f32 %v4702, %v4703
        %v4705 = vand.u32 %v4704, 4294901760
        %4706 = vmatprep.subr.mxu0 %v4705
        %v4707 = vand.u32 %v4523, 4294901760
        %v4708 = vsub.f32 %v4523, %v4707
        %v4709 = vand.u32 %v4708, 4294901760
        %v4710 = vsub.f32 %v4708, %v4709
        %v4711 = vand.u32 %v4710, 4294901760
        %4712 = vmatpush1.msra.mxu0 %v4711
        %4713 = vmatprep.subr.mxu0 0.0
        %4714 = vmatpush1.msra.mxu0 0.0
        %4715 = vmatprep.subr.mxu0 0.0
        %4716 = vmatpush1.msra.mxu0 0.0
        %4717 = vmatprep.subr.mxu0 0.0
        %4718 = vmatpush1.msra.mxu0 0.0
        %4719 = vmatprep.subr.mxu0 0.0
        %4720 = vmatpush1.msra.mxu0 0.0
        %4721 = vmatprep.subr.mxu0 0.0
        %4722 = vmatpush1.msra.mxu0 0.0
        %4723 = vmatprep.subr.mxu0 0.0
        %4724 = vmatpush1.msra.mxu0 0.0
        %4725 = vmatprep.subr.mxu0 0.0
        %4726 = vmatpush1.msra.mxu0 0.0
        %4727 = vmatprep.subr.mxu0 0.0
        %4728 = vmatpush1.msra.mxu0 0.0
        %4729 = vmatprep.subr.mxu0 0.0
        %4730 = vmatpush1.msra.mxu0 0.0
        %4731 = vmatprep.subr.mxu0 0.0
        %4732 = vmatpush1.msra.mxu0 0.0
        %4733 = vmatprep.subr.mxu0 0.0
        %4734 = vmatpush1.msra.mxu0 0.0
        %4735 = vmatprep.subr.mxu0 0.0
        %4736 = vmatpush1.msra.mxu0 0.0
        %4737 = vmatprep.subr.mxu0 0.0
        %4738 = vmatpush1.msra.mxu0 0.0
        %4739 = vmatprep.subr.mxu0 0.0
        %4740 = vmatpush1.msra.mxu0 0.0
        %4741 = vmatprep.subr.mxu0 0.0
        %4742 = vmatpush1.msra.mxu0 0.0
        %4743 = vmatprep.subr.mxu0 0.0
        %4744 = vmatpush1.msra.mxu0 0.0
        %4745 = vmatprep.subr.mxu0 0.0
        %4746 = vmatpush1.msra.mxu0 0.0
        %4747 = vmatprep.subr.mxu0 0.0
        %4748 = vmatpush1.msra.mxu0 0.0
        %4749 = vmatprep.subr.mxu0 0.0
        %4750 = vmatpush1.msra.mxu0 0.0
        %4751 = vmatprep.subr.mxu0 0.0
        %4752 = vmatpush1.msra.mxu0 0.0
        %4753 = vmatprep.subr.mxu0 0.0
        %4754 = vmatpush1.msra.mxu0 0.0
        %4755 = vmatprep.subr.mxu0 0.0
        %4756 = vmatpush1.msra.mxu0 0.0
        %4757 = vmatprep.subr.mxu0 0.0
        %4758 = vmatpush1.msra.mxu0 0.0
        %4759 = vmatprep.subr.mxu0 0.0
        %4760 = vmatpush1.msra.mxu0 0.0
        %4761 = vmatprep.mubr.f32.mxu0 0.0
        %v4762 = vand.u32 %v2204, 4294901760
        %4763 = vmatmul.mubr.f32.gmra.mrb[0].mxu0 %v4762
        %v4764 = vpop.f32.mrb[0].mxu0
        %v4765 = vadd.f32 %v4613, %v4764
        %v4766 = vpop.f32.mrb[0].mxu0
        %v4767 = vadd.f32 %v4615, %v4766
        %4768 = vdwg.mxu0
        %v4769 = vand.u32 %v4510, 4294901760
        %v4770 = vsub.f32 %v4510, %v4769
        %4771 = vmatprep.subr.mxu0 %v4770
        %v4772 = vand.u32 %v4509, 4294901760
        %v4773 = vsub.f32 %v4509, %v4772
        %4774 = vmatpush1.msra.mxu0 %v4773
        %v4775 = vand.u32 %v4512, 4294901760
        %v4776 = vsub.f32 %v4512, %v4775
        %4777 = vmatprep.subr.mxu0 %v4776
        %v4778 = vand.u32 %v4511, 4294901760
        %v4779 = vsub.f32 %v4511, %v4778
        %4780 = vmatpush1.msra.mxu0 %v4779
        %v4781 = vand.u32 %v4514, 4294901760
        %v4782 = vsub.f32 %v4514, %v4781
        %4783 = vmatprep.subr.mxu0 %v4782
        %v4784 = vand.u32 %v4513, 4294901760
        %v4785 = vsub.f32 %v4513, %v4784
        %4786 = vmatpush1.msra.mxu0 %v4785
        %v4787 = vand.u32 %v4516, 4294901760
        %v4788 = vsub.f32 %v4516, %v4787
        %4789 = vmatprep.subr.mxu0 %v4788
        %v4790 = vand.u32 %v4515, 4294901760
        %v4791 = vsub.f32 %v4515, %v4790
        %4792 = vmatpush1.msra.mxu0 %v4791
        %v4793 = vand.u32 %v4518, 4294901760
        %v4794 = vsub.f32 %v4518, %v4793
        %4795 = vmatprep.subr.mxu0 %v4794
        %v4796 = vand.u32 %v4517, 4294901760
        %v4797 = vsub.f32 %v4517, %v4796
        %4798 = vmatpush1.msra.mxu0 %v4797
        %v4799 = vand.u32 %v4520, 4294901760
        %v4800 = vsub.f32 %v4520, %v4799
        %4801 = vmatprep.subr.mxu0 %v4800
        %v4802 = vand.u32 %v4519, 4294901760
        %v4803 = vsub.f32 %v4519, %v4802
        %4804 = vmatpush1.msra.mxu0 %v4803
        %v4805 = vand.u32 %v4522, 4294901760
        %v4806 = vsub.f32 %v4522, %v4805
        %4807 = vmatprep.subr.mxu0 %v4806
        %v4808 = vand.u32 %v4521, 4294901760
        %v4809 = vsub.f32 %v4521, %v4808
        %4810 = vmatpush1.msra.mxu0 %v4809
        %v4811 = vand.u32 %v4524, 4294901760
        %v4812 = vsub.f32 %v4524, %v4811
        %4813 = vmatprep.subr.mxu0 %v4812
        %v4814 = vand.u32 %v4523, 4294901760
        %v4815 = vsub.f32 %v4523, %v4814
        %4816 = vmatpush1.msra.mxu0 %v4815
        %4817 = vmatprep.subr.mxu0 0.0
        %4818 = vmatpush1.msra.mxu0 0.0
        %4819 = vmatprep.subr.mxu0 0.0
        %4820 = vmatpush1.msra.mxu0 0.0
        %4821 = vmatprep.subr.mxu0 0.0
        %4822 = vmatpush1.msra.mxu0 0.0
        %4823 = vmatprep.subr.mxu0 0.0
        %4824 = vmatpush1.msra.mxu0 0.0
        %4825 = vmatprep.subr.mxu0 0.0
        %4826 = vmatpush1.msra.mxu0 0.0
        %4827 = vmatprep.subr.mxu0 0.0
        %4828 = vmatpush1.msra.mxu0 0.0
        %4829 = vmatprep.subr.mxu0 0.0
        %4830 = vmatpush1.msra.mxu0 0.0
        %4831 = vmatprep.subr.mxu0 0.0
        %4832 = vmatpush1.msra.mxu0 0.0
        %4833 = vmatprep.subr.mxu0 0.0
        %4834 = vmatpush1.msra.mxu0 0.0
        %4835 = vmatprep.subr.mxu0 0.0
        %4836 = vmatpush1.msra.mxu0 0.0
        %4837 = vmatprep.subr.mxu0 0.0
        %4838 = vmatpush1.msra.mxu0 0.0
        %4839 = vmatprep.subr.mxu0 0.0
        %4840 = vmatpush1.msra.mxu0 0.0
        %4841 = vmatprep.subr.mxu0 0.0
        %4842 = vmatpush1.msra.mxu0 0.0
        %4843 = vmatprep.subr.mxu0 0.0
        %4844 = vmatpush1.msra.mxu0 0.0
        %4845 = vmatprep.subr.mxu0 0.0
        %4846 = vmatpush1.msra.mxu0 0.0
        %4847 = vmatprep.subr.mxu0 0.0
        %4848 = vmatpush1.msra.mxu0 0.0
        %4849 = vmatprep.subr.mxu0 0.0
        %4850 = vmatpush1.msra.mxu0 0.0
        %4851 = vmatprep.subr.mxu0 0.0
        %4852 = vmatpush1.msra.mxu0 0.0
        %4853 = vmatprep.subr.mxu0 0.0
        %4854 = vmatpush1.msra.mxu0 0.0
        %4855 = vmatprep.subr.mxu0 0.0
        %4856 = vmatpush1.msra.mxu0 0.0
        %4857 = vmatprep.subr.mxu0 0.0
        %4858 = vmatpush1.msra.mxu0 0.0
        %4859 = vmatprep.subr.mxu0 0.0
        %4860 = vmatpush1.msra.mxu0 0.0
        %4861 = vmatprep.subr.mxu0 0.0
        %4862 = vmatpush1.msra.mxu0 0.0
        %4863 = vmatprep.subr.mxu0 0.0
        %4864 = vmatpush1.msra.mxu0 0.0
        %4865 = vmatprep.mubr.f32.mxu0 0.0
        %v4866 = vand.u32 %v2204, 4294901760
        %v4867 = vsub.f32 %v2204, %v4866
        %4868 = vmatmul.mubr.f32.gmra.mrb[0].mxu0 %v4867
        %v4869 = vpop.f32.mrb[0].mxu0
        %v4870 = vadd.f32 %v4765, %v4869
        %v4871 = vpop.f32.mrb[0].mxu0
        %v4872 = vadd.f32 %v4767, %v4871
        %4873 = vdwg.mxu0
        %v4874 = vand.u32 %v4510, 4294901760
        %4875 = vmatprep.subr.mxu0 %v4874
        %v4876 = vand.u32 %v4509, 4294901760
        %4877 = vmatpush1.msra.mxu0 %v4876
        %v4878 = vand.u32 %v4512, 4294901760
        %4879 = vmatprep.subr.mxu0 %v4878
        %v4880 = vand.u32 %v4511, 4294901760
        %4881 = vmatpush1.msra.mxu0 %v4880
        %v4882 = vand.u32 %v4514, 4294901760
        %4883 = vmatprep.subr.mxu0 %v4882
        %v4884 = vand.u32 %v4513, 4294901760
        %4885 = vmatpush1.msra.mxu0 %v4884
        %v4886 = vand.u32 %v4516, 4294901760
        %4887 = vmatprep.subr.mxu0 %v4886
        %v4888 = vand.u32 %v4515, 4294901760
        %4889 = vmatpush1.msra.mxu0 %v4888
        %v4890 = vand.u32 %v4518, 4294901760
        %4891 = vmatprep.subr.mxu0 %v4890
        %v4892 = vand.u32 %v4517, 4294901760
        %4893 = vmatpush1.msra.mxu0 %v4892
        %v4894 = vand.u32 %v4520, 4294901760
        %4895 = vmatprep.subr.mxu0 %v4894
        %v4896 = vand.u32 %v4519, 4294901760
        %4897 = vmatpush1.msra.mxu0 %v4896
        %v4898 = vand.u32 %v4522, 4294901760
        %4899 = vmatprep.subr.mxu0 %v4898
        %v4900 = vand.u32 %v4521, 4294901760
        %4901 = vmatpush1.msra.mxu0 %v4900
        %v4902 = vand.u32 %v4524, 4294901760
        %4903 = vmatprep.subr.mxu0 %v4902
        %v4904 = vand.u32 %v4523, 4294901760
        %4905 = vmatpush1.msra.mxu0 %v4904
        %4906 = vmatprep.subr.mxu0 0.0
        %4907 = vmatpush1.msra.mxu0 0.0
        %4908 = vmatprep.subr.mxu0 0.0
        %4909 = vmatpush1.msra.mxu0 0.0
        %4910 = vmatprep.subr.mxu0 0.0
        %4911 = vmatpush1.msra.mxu0 0.0
        %4912 = vmatprep.subr.mxu0 0.0
        %4913 = vmatpush1.msra.mxu0 0.0
        %4914 = vmatprep.subr.mxu0 0.0
        %4915 = vmatpush1.msra.mxu0 0.0
        %4916 = vmatprep.subr.mxu0 0.0
        %4917 = vmatpush1.msra.mxu0 0.0
        %4918 = vmatprep.subr.mxu0 0.0
        %4919 = vmatpush1.msra.mxu0 0.0
        %4920 = vmatprep.subr.mxu0 0.0
        %4921 = vmatpush1.msra.mxu0 0.0
        %4922 = vmatprep.subr.mxu0 0.0
        %4923 = vmatpush1.msra.mxu0 0.0
        %4924 = vmatprep.subr.mxu0 0.0
        %4925 = vmatpush1.msra.mxu0 0.0
        %4926 = vmatprep.subr.mxu0 0.0
        %4927 = vmatpush1.msra.mxu0 0.0
        %4928 = vmatprep.subr.mxu0 0.0
        %4929 = vmatpush1.msra.mxu0 0.0
        %4930 = vmatprep.subr.mxu0 0.0
        %4931 = vmatpush1.msra.mxu0 0.0
        %4932 = vmatprep.subr.mxu0 0.0
        %4933 = vmatpush1.msra.mxu0 0.0
        %4934 = vmatprep.subr.mxu0 0.0
        %4935 = vmatpush1.msra.mxu0 0.0
        %4936 = vmatprep.subr.mxu0 0.0
        %4937 = vmatpush1.msra.mxu0 0.0
        %4938 = vmatprep.subr.mxu0 0.0
        %4939 = vmatpush1.msra.mxu0 0.0
        %4940 = vmatprep.subr.mxu0 0.0
        %4941 = vmatpush1.msra.mxu0 0.0
        %4942 = vmatprep.subr.mxu0 0.0
        %4943 = vmatpush1.msra.mxu0 0.0
        %4944 = vmatprep.subr.mxu0 0.0
        %4945 = vmatpush1.msra.mxu0 0.0
        %4946 = vmatprep.subr.mxu0 0.0
        %4947 = vmatpush1.msra.mxu0 0.0
        %4948 = vmatprep.subr.mxu0 0.0
        %4949 = vmatpush1.msra.mxu0 0.0
        %4950 = vmatprep.subr.mxu0 0.0
        %4951 = vmatpush1.msra.mxu0 0.0
        %4952 = vmatprep.subr.mxu0 0.0
        %4953 = vmatpush1.msra.mxu0 0.0
        %4954 = vmatprep.mubr.f32.mxu0 0.0
        %v4955 = vand.u32 %v2204, 4294901760
        %v4956 = vsub.f32 %v2204, %v4955
        %v4957 = vand.u32 %v4956, 4294901760
        %4958 = vmatmul.mubr.f32.gmra.mrb[0].mxu0 %v4957
        %v4959 = vpop.f32.mrb[0].mxu0
        %v4960 = vadd.f32 %v4870, %v4959
        %v4961 = vpop.f32.mrb[0].mxu0
        %v4962 = vadd.f32 %v4872, %v4961
        %4963 = vdwg.mxu0
        %v4964 = vand.u32 %v4510, 4294901760
        %v4965 = vsub.f32 %v4510, %v4964
        %v4966 = vand.u32 %v4965, 4294901760
        %4967 = vmatprep.subr.mxu0 %v4966
        %v4968 = vand.u32 %v4509, 4294901760
        %v4969 = vsub.f32 %v4509, %v4968
        %v4970 = vand.u32 %v4969, 4294901760
        %4971 = vmatpush1.msra.mxu0 %v4970
        %v4972 = vand.u32 %v4512, 4294901760
        %v4973 = vsub.f32 %v4512, %v4972
        %v4974 = vand.u32 %v4973, 4294901760
        %4975 = vmatprep.subr.mxu0 %v4974
        %v4976 = vand.u32 %v4511, 4294901760
        %v4977 = vsub.f32 %v4511, %v4976
        %v4978 = vand.u32 %v4977, 4294901760
        %4979 = vmatpush1.msra.mxu0 %v4978
        %v4980 = vand.u32 %v4514, 4294901760
        %v4981 = vsub.f32 %v4514, %v4980
        %v4982 = vand.u32 %v4981, 4294901760
        %4983 = vmatprep.subr.mxu0 %v4982
        %v4984 = vand.u32 %v4513, 4294901760
        %v4985 = vsub.f32 %v4513, %v4984
        %v4986 = vand.u32 %v4985, 4294901760
        %4987 = vmatpush1.msra.mxu0 %v4986
        %v4988 = vand.u32 %v4516, 4294901760
        %v4989 = vsub.f32 %v4516, %v4988
        %v4990 = vand.u32 %v4989, 4294901760
        %4991 = vmatprep.subr.mxu0 %v4990
        %v4992 = vand.u32 %v4515, 4294901760
        %v4993 = vsub.f32 %v4515, %v4992
        %v4994 = vand.u32 %v4993, 4294901760
        %4995 = vmatpush1.msra.mxu0 %v4994
        %v4996 = vand.u32 %v4518, 4294901760
        %v4997 = vsub.f32 %v4518, %v4996
        %v4998 = vand.u32 %v4997, 4294901760
        %4999 = vmatprep.subr.mxu0 %v4998
        %v5000 = vand.u32 %v4517, 4294901760
        %v5001 = vsub.f32 %v4517, %v5000
        %v5002 = vand.u32 %v5001, 4294901760
        %5003 = vmatpush1.msra.mxu0 %v5002
        %v5004 = vand.u32 %v4520, 4294901760
        %v5005 = vsub.f32 %v4520, %v5004
        %v5006 = vand.u32 %v5005, 4294901760
        %5007 = vmatprep.subr.mxu0 %v5006
        %v5008 = vand.u32 %v4519, 4294901760
        %v5009 = vsub.f32 %v4519, %v5008
        %v5010 = vand.u32 %v5009, 4294901760
        %5011 = vmatpush1.msra.mxu0 %v5010
        %v5012 = vand.u32 %v4522, 4294901760
        %v5013 = vsub.f32 %v4522, %v5012
        %v5014 = vand.u32 %v5013, 4294901760
        %5015 = vmatprep.subr.mxu0 %v5014
        %v5016 = vand.u32 %v4521, 4294901760
        %v5017 = vsub.f32 %v4521, %v5016
        %v5018 = vand.u32 %v5017, 4294901760
        %5019 = vmatpush1.msra.mxu0 %v5018
        %v5020 = vand.u32 %v4524, 4294901760
        %v5021 = vsub.f32 %v4524, %v5020
        %v5022 = vand.u32 %v5021, 4294901760
        %5023 = vmatprep.subr.mxu0 %v5022
        %v5024 = vand.u32 %v4523, 4294901760
        %v5025 = vsub.f32 %v4523, %v5024
        %v5026 = vand.u32 %v5025, 4294901760
        %5027 = vmatpush1.msra.mxu0 %v5026
        %5028 = vmatprep.subr.mxu0 0.0
        %5029 = vmatpush1.msra.mxu0 0.0
        %5030 = vmatprep.subr.mxu0 0.0
        %5031 = vmatpush1.msra.mxu0 0.0
        %5032 = vmatprep.subr.mxu0 0.0
        %5033 = vmatpush1.msra.mxu0 0.0
        %5034 = vmatprep.subr.mxu0 0.0
        %5035 = vmatpush1.msra.mxu0 0.0
        %5036 = vmatprep.subr.mxu0 0.0
        %5037 = vmatpush1.msra.mxu0 0.0
        %5038 = vmatprep.subr.mxu0 0.0
        %5039 = vmatpush1.msra.mxu0 0.0
        %5040 = vmatprep.subr.mxu0 0.0
        %5041 = vmatpush1.msra.mxu0 0.0
        %5042 = vmatprep.subr.mxu0 0.0
        %5043 = vmatpush1.msra.mxu0 0.0
        %5044 = vmatprep.subr.mxu0 0.0
        %5045 = vmatpush1.msra.mxu0 0.0
        %5046 = vmatprep.subr.mxu0 0.0
        %5047 = vmatpush1.msra.mxu0 0.0
        %5048 = vmatprep.subr.mxu0 0.0
        %5049 = vmatpush1.msra.mxu0 0.0
        %5050 = vmatprep.subr.mxu0 0.0
        %5051 = vmatpush1.msra.mxu0 0.0
        %5052 = vmatprep.subr.mxu0 0.0
        %5053 = vmatpush1.msra.mxu0 0.0
        %5054 = vmatprep.subr.mxu0 0.0
        %5055 = vmatpush1.msra.mxu0 0.0
        %5056 = vmatprep.subr.mxu0 0.0
        %5057 = vmatpush1.msra.mxu0 0.0
        %5058 = vmatprep.subr.mxu0 0.0
        %5059 = vmatpush1.msra.mxu0 0.0
        %5060 = vmatprep.subr.mxu0 0.0
        %5061 = vmatpush1.msra.mxu0 0.0
        %5062 = vmatprep.subr.mxu0 0.0
        %5063 = vmatpush1.msra.mxu0 0.0
        %5064 = vmatprep.subr.mxu0 0.0
        %5065 = vmatpush1.msra.mxu0 0.0
        %5066 = vmatprep.subr.mxu0 0.0
        %5067 = vmatpush1.msra.mxu0 0.0
        %5068 = vmatprep.subr.mxu0 0.0
        %5069 = vmatpush1.msra.mxu0 0.0
        %5070 = vmatprep.subr.mxu0 0.0
        %5071 = vmatpush1.msra.mxu0 0.0
        %5072 = vmatprep.subr.mxu0 0.0
        %5073 = vmatpush1.msra.mxu0 0.0
        %5074 = vmatprep.subr.mxu0 0.0
        %5075 = vmatpush1.msra.mxu0 0.0
        %5076 = vmatprep.mubr.f32.mxu0 0.0
        %v5077 = vand.u32 %v2204, 4294901760
        %5078 = vmatmul.mubr.f32.gmra.mrb[0].mxu0 %v5077
        %v5079 = vpop.f32.mrb[0].mxu0
        %v5080 = vadd.f32 %v4960, %v5079
        %v5081 = vpop.f32.mrb[0].mxu0
        %v5082 = vadd.f32 %v4962, %v5081
        %5083 = vdwg.mxu0
        %v5084 = vand.u32 %v4510, 4294901760
        %5085 = vmatprep.subr.mxu0 %v5084
        %v5086 = vand.u32 %v4509, 4294901760
        %5087 = vmatpush1.msra.mxu0 %v5086
        %v5088 = vand.u32 %v4512, 4294901760
        %5089 = vmatprep.subr.mxu0 %v5088
        %v5090 = vand.u32 %v4511, 4294901760
        %5091 = vmatpush1.msra.mxu0 %v5090
        %v5092 = vand.u32 %v4514, 4294901760
        %5093 = vmatprep.subr.mxu0 %v5092
        %v5094 = vand.u32 %v4513, 4294901760
        %5095 = vmatpush1.msra.mxu0 %v5094
        %v5096 = vand.u32 %v4516, 4294901760
        %5097 = vmatprep.subr.mxu0 %v5096
        %v5098 = vand.u32 %v4515, 4294901760
        %5099 = vmatpush1.msra.mxu0 %v5098
        %v5100 = vand.u32 %v4518, 4294901760
        %5101 = vmatprep.subr.mxu0 %v5100
        %v5102 = vand.u32 %v4517, 4294901760
        %5103 = vmatpush1.msra.mxu0 %v5102
        %v5104 = vand.u32 %v4520, 4294901760
        %5105 = vmatprep.subr.mxu0 %v5104
        %v5106 = vand.u32 %v4519, 4294901760
        %5107 = vmatpush1.msra.mxu0 %v5106
        %v5108 = vand.u32 %v4522, 4294901760
        %5109 = vmatprep.subr.mxu0 %v5108
        %v5110 = vand.u32 %v4521, 4294901760
        %5111 = vmatpush1.msra.mxu0 %v5110
        %v5112 = vand.u32 %v4524, 4294901760
        %5113 = vmatprep.subr.mxu0 %v5112
        %v5114 = vand.u32 %v4523, 4294901760
        %5115 = vmatpush1.msra.mxu0 %v5114
        %5116 = vmatprep.subr.mxu0 0.0
        %5117 = vmatpush1.msra.mxu0 0.0
        %5118 = vmatprep.subr.mxu0 0.0
        %5119 = vmatpush1.msra.mxu0 0.0
        %5120 = vmatprep.subr.mxu0 0.0
        %5121 = vmatpush1.msra.mxu0 0.0
        %5122 = vmatprep.subr.mxu0 0.0
        %5123 = vmatpush1.msra.mxu0 0.0
        %5124 = vmatprep.subr.mxu0 0.0
        %5125 = vmatpush1.msra.mxu0 0.0
        %5126 = vmatprep.subr.mxu0 0.0
        %5127 = vmatpush1.msra.mxu0 0.0
        %5128 = vmatprep.subr.mxu0 0.0
        %5129 = vmatpush1.msra.mxu0 0.0
        %5130 = vmatprep.subr.mxu0 0.0
        %5131 = vmatpush1.msra.mxu0 0.0
        %5132 = vmatprep.subr.mxu0 0.0
        %5133 = vmatpush1.msra.mxu0 0.0
        %5134 = vmatprep.subr.mxu0 0.0
        %5135 = vmatpush1.msra.mxu0 0.0
        %5136 = vmatprep.subr.mxu0 0.0
        %5137 = vmatpush1.msra.mxu0 0.0
        %5138 = vmatprep.subr.mxu0 0.0
        %5139 = vmatpush1.msra.mxu0 0.0
        %5140 = vmatprep.subr.mxu0 0.0
        %5141 = vmatpush1.msra.mxu0 0.0
        %5142 = vmatprep.subr.mxu0 0.0
        %5143 = vmatpush1.msra.mxu0 0.0
        %5144 = vmatprep.subr.mxu0 0.0
        %5145 = vmatpush1.msra.mxu0 0.0
        %5146 = vmatprep.subr.mxu0 0.0
        %5147 = vmatpush1.msra.mxu0 0.0
        %5148 = vmatprep.subr.mxu0 0.0
        %5149 = vmatpush1.msra.mxu0 0.0
        %5150 = vmatprep.subr.mxu0 0.0
        %5151 = vmatpush1.msra.mxu0 0.0
        %5152 = vmatprep.subr.mxu0 0.0
        %5153 = vmatpush1.msra.mxu0 0.0
        %5154 = vmatprep.subr.mxu0 0.0
        %5155 = vmatpush1.msra.mxu0 0.0
        %5156 = vmatprep.subr.mxu0 0.0
        %5157 = vmatpush1.msra.mxu0 0.0
        %5158 = vmatprep.subr.mxu0 0.0
        %5159 = vmatpush1.msra.mxu0 0.0
        %5160 = vmatprep.subr.mxu0 0.0
        %5161 = vmatpush1.msra.mxu0 0.0
        %5162 = vmatprep.subr.mxu0 0.0
        %5163 = vmatpush1.msra.mxu0 0.0
        %5164 = vmatprep.mubr.f32.mxu0 0.0
        %v5165 = vand.u32 %v2204, 4294901760
        %5166 = vmatmul.mubr.f32.gmra.mrb[0].mxu0 %v5165
        %v5167 = vpop.f32.mrb[0].mxu0
        %v5168 = vadd.f32 %v5080, %v5167
        %v5169 = vpop.f32.mrb[0].mxu0
        %v5170 = vadd.f32 %v5082, %v5169
        %5171 = vdwg.mxu0
        %v5174 = vrot.slane %v5168, 7
        %v5175 = vrot.slane %v5170, 7
        %vm5178 = vcmask 1040384
        %v5179 = vsel %vm5178, %v2849, %v5174
        %v5180 = vsel %vm5178, %v2851, %v5175
        %v5183 = vcombine.low %v5179, %v5180
        %v5185 = vunpack.c.l.s4 1983009808
        %v5186 = vunpack.c.0.s8 %v5185
        %v5187 = vlaneseq
        %v5188 = vshrl.u32 %v5187, 7
        %v5189 = vsub.s32 %v5186, %v5188
        %v5190 = vrot.slane %v5183, %v5189
        %5192 = vst [vmem:[%s408] sm:$0xf] %v5190
        %s5193 = smul.u32 2, %s22
        %p5194 = scmp.lt.s32.totalorder %s5193, 3
        %s5195 = scalar_select %p5194, %s5193, 3
        %s5196 = smul.addr %s5195, 2
        %s5197 = scalar_lea.vmem %s9, %s5196
        // Predicated region
        $region103: #{lno3d_forward.9} parent=93 // pred_check
          %p5198 = pneg %p239
        $region104: #{lno3d_forward.9} parent=93 // pred_check_branch
          %5200 = sbr.rel (%p5198) target = $region106
        $region105: #{lno3d_forward.9} parent=93 // pred_region
          %s5201 = smul.u32 2, %s22
        $region106: #{lno3d_forward.9} parent=93 // pred_fallthru
          _
      $region94: #{lno3d_forward.9} parent=5 // pred_fallthru
        _
      %p5202 = scmp.le.s32.totalorder 2, %s17
      // Predicated region
      $region107: #{lno3d_forward.9} parent=5 // pred_check
        %p5203 = pneg %p5202
      $region108: #{lno3d_forward.9} parent=5 // pred_check_branch
        %5205 = sbr.rel (%p5203) target = $region110
      $region109: #{lno3d_forward.9} parent=5 // pred_region
        %s5206 = ssub.s32 %s17, 2
        // Predicated region
        $region111: #{lno3d_forward.9} parent=109 // pred_check
          %p5207 = pneg %p245
        $region112: #{lno3d_forward.9} parent=109 // pred_check_branch
          %5209 = sbr.rel (%p5207) target = $region114
        $region113: #{lno3d_forward.9} parent=109 // pred_region
          %s5210 = smul.u32 2, %s23
          %p5211 = scmp.lt.s32.totalorder %s5210, 3
          %s5212 = scalar_select %p5211, %s5210, 3
          %s5213 = smul.addr %s5212, 2
          %s5214 = scalar_lea.vmem %s9, %s5213
        $region114: #{lno3d_forward.9} parent=109 // pred_fallthru
          _
      $region110: #{lno3d_forward.9} parent=5 // pred_fallthru
        _
    $region6: #{lno3d_forward.9} parent=1 // loop_footer
      %s21 = sadd.s32 1, %s17
    $region7: #{lno3d_forward.9} parent=1 // loop_footer_branch
      %16 = sbr.rel target = $region3
    $region8: #{lno3d_forward.9} parent=1 // loop_exit
      _

</llo_original>
